<compile_context>
chip_gen: v6e
topology: v6e:2x2x1
jax: 0.10.0
libtpu: 0.0.40
codegen_flags: <defaults>
</compile_context>

<pallas_src>
import functools

import jax
import jax.numpy as jnp
from jax import lax
from jax.experimental import pallas as pl
from jax.experimental.pallas import tpu as pltpu

EPS = 1e-8  # TODO(synk): select_norm() source not given; standard gLN eps=1e-8 assumed.
ACT_DTYPE = jnp.bfloat16   # inter-stage activation storage dtype (all math in f32)
MXU_DTYPE = jnp.bfloat16   # matmul operand dtype (f32 accumulation on the MXU)


@functools.lru_cache(maxsize=None)
def _vmem_limit_bytes():
    """Generation-aware scoped-VMEM request (leave headroom on v7x's 64 MiB)."""
    try:
        cap = int(pltpu.get_tpu_info().vmem_capacity_bytes)
    except Exception:  # non-TPU backend / older API: conservative default
        cap = 128 * 1024 * 1024
    return min(64 * 1024 * 1024, max((cap * 3) // 4, 16 * 1024 * 1024))


def _compiler_params(dims=("parallel",)):
    return pltpu.CompilerParams(
        dimension_semantics=dims,
        vmem_limit_bytes=_vmem_limit_bytes(),
    )


def _gln(y, gamma, beta):
    """Single-pass global layer norm over the full (C, L) tile. f32 stats."""
    n = float(y.size)
    s = jnp.sum(y)
    s2 = jnp.sum(y * y)
    mu = s / n
    var = jnp.maximum(s2 / n - mu * mu, 0.0)
    return (y - mu) * lax.rsqrt(var + EPS) * gamma + beta


def _prelu(y, alpha):
    return jnp.where(y >= 0, y, alpha * y)


def _pick_l_tile(l_total, cap=1024):
    """Largest multiple-of-128 divisor of l_total up to `cap` (lane-aligned tiles);
    falls back to the full length when none exists (small / awkward L)."""
    if l_total <= cap:
        return l_total
    t = (cap // 128) * 128
    while t >= 128:
        if l_total % t == 0:
            return t
        t -= 128
    # TODO(synk): masked ragged last tile for L not divisible by 128.
    return l_total


# ---------------------------------------------------------------------------
# Pallas kernels
# ---------------------------------------------------------------------------
def pointwise_gln_prelu(x, w, b, gamma, beta, alpha):
    """Conv1d(k=1) -> gLN -> PReLU (CNA). x: [B, Cin, L] -> [B, Cout, L] bf16."""
    B, Cin, L = x.shape
    Cout = w.shape[0]
    w = w.astype(MXU_DTYPE)

    def kernel(x_ref, w_ref, b_ref, g_ref, bt_ref, a_ref, o_ref):
        y = jnp.dot(w_ref[...], x_ref[...].astype(MXU_DTYPE),
                    preferred_element_type=jnp.float32) + b_ref[...]
        y = _gln(y, g_ref[...], bt_ref[...])
        o_ref[...] = _prelu(y, a_ref[0]).astype(o_ref.dtype)

    return pl.pallas_call(
        kernel,
        out_shape=jax.ShapeDtypeStruct((B, Cout, L), ACT_DTYPE),
        grid=(B,),
        in_specs=[
            pl.BlockSpec((None, Cin, L), lambda i: (i, 0, 0)),
            pl.BlockSpec((Cout, Cin), lambda i: (0, 0)),
            pl.BlockSpec((Cout, 1), lambda i: (0, 0)),
            pl.BlockSpec((Cout, 1), lambda i: (0, 0)),
            pl.BlockSpec((Cout, 1), lambda i: (0, 0)),
            pl.BlockSpec(memory_space=pltpu.MemorySpace.SMEM),  # PReLU alpha scalar
        ],
        out_specs=pl.BlockSpec((None, Cout, L), lambda i: (i, 0, 0)),
        compiler_params=_compiler_params(),
    )(x, w, b, gamma, beta, alpha)


def dw5_gln(x, w, b, gamma, beta):
    """Fused depthwise 'same' Conv1d(k=5, stride=1) + gLN (CN). x: [B, C, L]."""
    B, C, L = x.shape
    K, pad = 5, 2
    # TODO(synk): halo still via XLA pad; could be fused into the producer's store
    # or handled in-kernel with pltpu.roll to save one [B,C,L] round trip.
    xp = jnp.pad(x, ((0, 0), (0, 0), (pad, pad)))
    Lp = L + 2 * pad

    def kernel(xp_ref, w_ref, b_ref, g_ref, bt_ref, o_ref):
        w = w_ref[...]
        acc = jnp.zeros((C, L), jnp.float32)
        for k in range(K):  # unrolled: static lane-shifted slices, tap-by-tap
            acc = acc + w[:, k:k + 1] * xp_ref[:, k:k + L].astype(jnp.float32)
        acc = acc + b_ref[...]
        o_ref[...] = _gln(acc, g_ref[...], bt_ref[...]).astype(o_ref.dtype)

    return pl.pallas_call(
        kernel,
        out_shape=jax.ShapeDtypeStruct((B, C, L), ACT_DTYPE),
        grid=(B,),
        in_specs=[
            pl.BlockSpec((None, C, Lp), lambda i: (i, 0, 0)),
            pl.BlockSpec((C, K), lambda i: (0, 0)),
            pl.BlockSpec((C, 1), lambda i: (0, 0)),
            pl.BlockSpec((C, 1), lambda i: (0, 0)),
            pl.BlockSpec((C, 1), lambda i: (0, 0)),
        ],
        out_specs=pl.BlockSpec((None, C, L), lambda i: (i, 0, 0)),
        compiler_params=_compiler_params(),
    )(xp, w, b, gamma, beta)


def dw5_stride2_dual_gln(xe_p, xo_p, params_a, params_b):
    """Two fused depthwise stride-2 Conv1d(k=5)+gLN branches sharing one input.

    Computed directly on the even/odd phase split:
        out[:, j] = sum_k w[k] * x[:, 2j + k - 2]
    so only the Le = ceil(L/2) surviving frames are produced.
      xe_p: [B, C, Le+2] = [0, x_even, 0]
      xo_p: [B, C, Le+1] = [0, x_odd zero-padded to Le]
    Returns (y_a, y_b), each [B, C, Le] (bottom_up[k] branch, fuse[k] branch).
    The two branch accumulators are updated together per tap so each shifted
    slab is consumed immediately (low VMEM/vreg pressure).
    """
    B, C, Lep2 = xe_p.shape
    Le = Lep2 - 2

    def kernel(xe_ref, xo_ref,
               wa_ref, ba_ref, ga_ref, bta_ref,
               wb_ref, bb_ref, gb_ref, btb_ref,
               oa_ref, ob_ref):
        wa = wa_ref[...]
        wb = wb_ref[...]
        acc_a = jnp.zeros((C, Le), jnp.float32)
        acc_b = jnp.zeros((C, Le), jnp.float32)
        # (phase ref, slice start, weight tap): slab == x[2j + tap - 2]
        taps = ((xe_ref, 0, 0), (xo_ref, 0, 1), (xe_ref, 1, 2),
                (xo_ref, 1, 3), (xe_ref, 2, 4))
        for ref, s, k in taps:
            slab = ref[:, s:s + Le].astype(jnp.float32)
            acc_a = acc_a + wa[:, k:k + 1] * slab
            acc_b = acc_b + wb[:, k:k + 1] * slab
        acc_a = acc_a + ba_ref[...]
        acc_b = acc_b + bb_ref[...]
        oa_ref[...] = _gln(acc_a, ga_ref[...], bta_ref[...]).astype(oa_ref.dtype)
        ob_ref[...] = _gln(acc_b, gb_ref[...], btb_ref[...]).astype(ob_ref.dtype)

    w_spec = pl.BlockSpec((C, 5), lambda i: (0, 0))
    c_spec = pl.BlockSpec((C, 1), lambda i: (0, 0))
    out_spec = pl.BlockSpec((None, C, Le), lambda i: (i, 0, 0))
    return pl.pallas_call(
        kernel,
        out_shape=(jax.ShapeDtypeStruct((B, C, Le), ACT_DTYPE),
                   jax.ShapeDtypeStruct((B, C, Le), ACT_DTYPE)),
        grid=(B,),
        in_specs=[
            pl.BlockSpec((None, C, Le + 2), lambda i: (i, 0, 0)),
            pl.BlockSpec((None, C, Le + 1), lambda i: (i, 0, 0)),
            w_spec, c_spec, c_spec, c_spec,
            w_spec, c_spec, c_spec, c_spec,
        ],
        out_specs=(out_spec, out_spec),
        compiler_params=_compiler_params(),
    )(xe_p, xo_p,
      params_a["w"], params_a["b"], params_a["g"], params_a["beta"],
      params_b["w"], params_b["b"], params_b["g"], params_b["beta"])


def sum_gln_prelu(inputs, gamma, beta, alpha):
    """Fused (y1 + y2 + ...) -> gLN -> PReLU (NA mode). inputs: list of [B, C, L]."""
    B, C, L = inputs[0].shape
    n_in = len(inputs)

    def kernel(*refs):
        in_refs = refs[:n_in]
        g_ref, bt_ref, a_ref, o_ref = refs[n_in:]
        y = in_refs[0][...].astype(jnp.float32)
        for r in in_refs[1:]:
            y = y + r[...].astype(jnp.float32)
        y = _gln(y, g_ref[...], bt_ref[...])
        o_ref[...] = _prelu(y, a_ref[0]).astype(o_ref.dtype)

    in_specs = [pl.BlockSpec((None, C, L), lambda i: (i, 0, 0)) for _ in range(n_in)]
    in_specs += [
        pl.BlockSpec((C, 1), lambda i: (0, 0)),
        pl.BlockSpec((C, 1), lambda i: (0, 0)),
        pl.BlockSpec(memory_space=pltpu.MemorySpace.SMEM),
    ]
    return pl.pallas_call(
        kernel,
        out_shape=jax.ShapeDtypeStruct((B, C, L), ACT_DTYPE),
        grid=(B,),
        in_specs=in_specs,
        out_specs=pl.BlockSpec((None, C, L), lambda i: (i, 0, 0)),
        compiler_params=_compiler_params(),
    )(*inputs, gamma, beta, alpha)


def skip_accumulate(tds, w_skip, b_skip, l_tile):
    """Skip stage pass 1, L-tiled: acc = sum_s W_s @ t_s + b_skip per tile
    (== 1x1 conv over the virtual concat; concat never built), plus running
    global sum / sumsq (f32) for the two-pass gLN."""
    states = len(tds)
    B, Chid, L = tds[0].shape
    nL = L // l_tile
    w_skip = w_skip.astype(MXU_DTYPE)

    def kernel(*refs):
        t_refs = refs[:states]
        ws_ref, bs_ref = refs[states], refs[states + 1]
        acc_ref, ssum_ref, ssq_ref = refs[states + 2:]

        acc = jnp.zeros((Chid, l_tile), jnp.float32)
        for s in range(states):
            acc = acc + jnp.dot(ws_ref[s], t_refs[s][...].astype(MXU_DTYPE),
                                preferred_element_type=jnp.float32)
        acc = acc + bs_ref[...]
        acc_ref[...] = acc.astype(acc_ref.dtype)

        @pl.when(pl.program_id(1) == 0)
        def _():
            ssum_ref[...] = jnp.zeros_like(ssum_ref)
            ssq_ref[...] = jnp.zeros_like(ssq_ref)

        ssum_ref[...] = ssum_ref[...] + jnp.sum(acc)
        ssq_ref[...] = ssq_ref[...] + jnp.sum(acc * acc)

    in_specs = [pl.BlockSpec((None, Chid, l_tile), lambda b, l: (b, 0, l))
                for _ in range(states)]
    in_specs += [
        pl.BlockSpec((states, Chid, Chid), lambda b, l: (0, 0, 0)),
        pl.BlockSpec((Chid, 1), lambda b, l: (0, 0)),
    ]
    out_specs = (
        pl.BlockSpec((None, Chid, l_tile), lambda b, l: (b, 0, l)),
        pl.BlockSpec((None, 1, 1), lambda b, l: (b, 0, 0)),
        pl.BlockSpec((None, 1, 1), lambda b, l: (b, 0, 0)),
    )
    out_shape = (
        jax.ShapeDtypeStruct((B, Chid, L), ACT_DTYPE),
        jax.ShapeDtypeStruct((B, 1, 1), jnp.float32),
        jax.ShapeDtypeStruct((B, 1, 1), jnp.float32),
    )
    return pl.pallas_call(
        kernel,
        out_shape=out_shape,
        grid=(B, nL),
        in_specs=in_specs,
        out_specs=out_specs,
        compiler_params=_compiler_params(("parallel", "arbitrary")),
    )(*tds, w_skip, b_skip)


def skip_finalize(acc, ssum, ssq, gamma, beta, alpha, w_res, b_res, residual, l_tile):
    """Skip stage pass 2, L-tiled and fully parallel: gLN (precomputed stats)
    -> PReLU -> res 1x1 conv + bias + residual."""
    B, Chid, L = acc.shape
    Cout = w_res.shape[0]
    nL = L // l_tile
    n_elems = float(Chid * L)
    w_res = w_res.astype(MXU_DTYPE)

    def kernel(acc_ref, sum_ref, sq_ref, g_ref, bt_ref, a_ref,
               wr_ref, br_ref, res_ref, o_ref):
        mu = sum_ref[...] / n_elems                                  # (1, 1)
        var = jnp.maximum(sq_ref[...] / n_elems - mu * mu, 0.0)
        inv = lax.rsqrt(var + EPS)
        y = (acc_ref[...].astype(jnp.float32) - mu) * inv * g_ref[...] + bt_ref[...]
        y = _prelu(y, a_ref[0])
        out = (jnp.dot(wr_ref[...], y.astype(MXU_DTYPE),
                       preferred_element_type=jnp.float32)
               + br_ref[...] + res_ref[...].astype(jnp.float32))
        o_ref[...] = out.astype(o_ref.dtype)

    return pl.pallas_call(
        kernel,
        out_shape=jax.ShapeDtypeStruct((B, Cout, L), residual.dtype),
        grid=(B, nL),
        in_specs=[
            pl.BlockSpec((None, Chid, l_tile), lambda b, l: (b, 0, l)),
            pl.BlockSpec((None, 1, 1), lambda b, l: (b, 0, 0)),
            pl.BlockSpec((None, 1, 1), lambda b, l: (b, 0, 0)),
            pl.BlockSpec((Chid, 1), lambda b, l: (0, 0)),
            pl.BlockSpec((Chid, 1), lambda b, l: (0, 0)),
            pl.BlockSpec(memory_space=pltpu.MemorySpace.SMEM),
            pl.BlockSpec((Cout, Chid), lambda b, l: (0, 0)),
            pl.BlockSpec((Cout, 1), lambda b, l: (0, 0)),
            pl.BlockSpec((None, Cout, l_tile), lambda b, l: (b, 0, l)),
        ],
        out_specs=pl.BlockSpec((None, Cout, l_tile), lambda b, l: (b, 0, l)),
        compiler_params=_compiler_params(("parallel", "parallel")),
    )(acc, ssum, ssq, gamma, beta, alpha, w_res, b_res, residual)


# ---------------------------------------------------------------------------
# Glue (pure indexing / zero halos, no arithmetic hot path)
# ---------------------------------------------------------------------------
def nearest_interp(x, l_out):
    """F.interpolate(mode='nearest'): out[i] = in[floor(i*Lin/Lout)].
    TODO(synk): fold the 2x upsample into the consumer kernels (lane interleave)
    to remove these HBM gather round trips."""
    l_in = x.shape[-1]
    if l_in == l_out:
        return x
    idx = (jnp.arange(l_out) * l_in) // l_out
    return jnp.take(x, idx, axis=-1)


def split_even_odd_padded(x):
    """x: [B,C,L] -> (xe_p [B,C,Le+2], xo_p [B,C,Le+1]) with zero halos baked in.
    TODO(synk): could move in-kernel with strided lane reads to drop this glue."""
    xe = x[:, :, 0::2]
    xo = x[:, :, 1::2]
    le = xe.shape[-1]
    xe_p = jnp.pad(xe, ((0, 0), (0, 0), (1, 1)))
    xo_p = jnp.pad(xo, ((0, 0), (0, 0), (1, le - xo.shape[-1])))
    return xe_p, xo_p


# ---------------------------------------------------------------------------
# Parameter init (PyTorch-like defaults: gamma=1, beta=0, PReLU a=0.25,
# conv weights ~ U(-1/sqrt(fan_in), 1/sqrt(fan_in)))
# ---------------------------------------------------------------------------
def init_params(key, c_io, c_hid, states):
    ks = iter(jax.random.split(key, 128))

    def winit(shape, fan_in):
        bound = 1.0 / (fan_in ** 0.5)
        return jax.random.uniform(next(ks), shape, jnp.float32, -bound, bound)

    def gln_p(c):
        return dict(g=jnp.ones((c, 1), jnp.float32), beta=jnp.zeros((c, 1), jnp.float32))

    prelu = lambda: jnp.full((1,), 0.25, jnp.float32)  # shared PReLU scalar (SMEM)

    params = {}
    params["first"] = dict(w=winit((c_hid, c_io), c_io), b=winit((c_hid, 1), c_io),
                           a=prelu(), **gln_p(c_hid))
    params["bottom_up"] = [dict(w=winit((c_hid, 5), 5), b=winit((c_hid, 1), 5),
                                **gln_p(c_hid)) for _ in range(states)]
    params["fuse"] = [None] + [dict(w=winit((c_hid, 5), 5), b=winit((c_hid, 1), 5),
                                    **gln_p(c_hid)) for _ in range(1, states)]
    # TODO(synk): original NA-norm defaults to 512 channels; modeled with c_hid channels.
    params["top_down"] = [dict(a=prelu(), **gln_p(c_hid)) for _ in range(states)]
    # top_down_skip weight pre-split per state: w[s] == W_flat[:, s*c_hid:(s+1)*c_hid]
    params["skip"] = dict(w=winit((states, c_hid, c_hid), c_hid * states),
                          b=winit((c_hid, 1), c_hid * states), a=prelu(), **gln_p(c_hid))
    params["res"] = dict(w=winit((c_io, c_hid), c_hid), b=winit((c_io, 1), c_hid))
    return params


# ---------------------------------------------------------------------------
# AFRCNN_Block forward
# ---------------------------------------------------------------------------
def afrcnn_block_forward(params, x, *, states):
    residual = x

    # first: CNA (1x1 conv + gLN + PReLU), single fused kernel (bf16 out)
    p = params["first"]
    out1 = pointwise_gln_prelu(x, p["w"], p["b"], p["g"], p["beta"], p["a"])

    # bottom-up (CN): depthwise conv + gLN fused. For k >= 1 the stride-2
    # bottom_up[k] and fuse_layers[k][0] branches share the same input and are
    # computed by a single dual-output kernel.
    p0 = params["bottom_up"][0]
    output = [dw5_gln(out1, p0["w"], p0["b"], p0["g"], p0["beta"])]
    fuse_out = [None]
    for k in range(1, states):
        xe_p, xo_p = split_even_odd_padded(output[k - 1])
        y_bu, y_fu = dw5_stride2_dual_gln(xe_p, xo_p,
                                          params["bottom_up"][k], params["fuse"][k])
        output.append(y_bu)
        fuse_out.append(y_fu)

    # top-down (NA): (y1 + y2 + y3) -> gLN -> PReLU fused; nearest interp is a
    # pure index gather left to XLA (bf16, so half the bytes of the f32 version).
    top_down_f = []
    for i in range(states):
        li = output[i].shape[-1]
        terms = []
        if i - 1 >= 0:
            terms.append(fuse_out[i])        # stride-2 fused branch of output[i-1]
        terms.append(output[i])
        if i + 1 < states:  # TODO(synk): original reads undefined self.depth; assumed == states
            terms.append(nearest_interp(output[i + 1], li))
        pt = params["top_down"][i]
        top_down_f.append(sum_gln_prelu(terms, pt["g"], pt["beta"], pt["a"]))

    l0 = top_down_f[0].shape[-1]
    # TODO(synk): the skip 1x1 conv commutes with nearest upsampling; doing the
    # per-state matmul at native length and upsampling in-kernel would cut skip
    # FLOPs/bytes ~2x (left as XLA gathers here for lowering robustness).
    tds = [top_down_f[0]] + [nearest_interp(t, l0) for t in top_down_f[1:]]

    # skip 1x1 conv over the virtual concat + two-pass gLN + PReLU + res_conv
    # + residual, L-tiled across two pallas_calls.
    ps, pr = params["skip"], params["res"]
    l_tile = _pick_l_tile(l0)
    acc, ssum, ssq = skip_accumulate(tds, ps["w"], ps["b"], l_tile)
    return skip_finalize(acc, ssum, ssq, ps["g"], ps["beta"], ps["a"],
                         pr["w"], pr["b"], residual, l_tile)


# ---------------------------------------------------------------------------
if __name__ == "__main__":
    B, C_IO, C_HID, STATES, L = 2, 16, 32, 4, 32  # small analogue of (128, 512, 4)
    key = jax.random.PRNGKey(0)
    kx, kp = jax.random.split(key)
    x = jax.random.normal(kx, (B, C_IO, L), jnp.float32)
    params = init_params(kp, C_IO, C_HID, STATES)

    fwd = jax.jit(functools.partial(afrcnn_block_forward, states=STATES))
    out = fwd(params, x)
    jax.block_until_ready(out)
    assert out.shape == (B, C_IO, L), out.shape
    assert bool(jnp.all(jnp.isfinite(out)))
    print("KERNEL_OK")
</pallas_src>

<mosaic_0001>
module attributes {stable_mosaic.version = 11 : i64} {
  func.func @kernel(%arg0: i32, %arg1: memref<1x16x32xf32, #tpu.memory_space<vmem>>, %arg2: memref<32x16xbf16, #tpu.memory_space<vmem>>, %arg3: memref<32x1xf32, #tpu.memory_space<vmem>>, %arg4: memref<32x1xf32, #tpu.memory_space<vmem>>, %arg5: memref<32x1xf32, #tpu.memory_space<vmem>>, %arg6: memref<1xf32, #tpu.memory_space<smem>>, %arg7: memref<1x32x32xbf16, #tpu.memory_space<vmem>>) attributes {dimension_semantics = [#tpu.dimension_semantics<parallel>], iteration_bounds = array<i64: 2>, scalar_prefetch = 0 : i64, scratch_operands = 0 : i64, tpu.core_type = #tpu.core_type<tc>, window_params = [{transform_indices = @transform_0, window_bounds = array<i64: 1, 16, 32>}, {pipeline_mode = #tpu.pipeline_mode<synchronous>, transform_indices = @transform_1, window_bounds = array<i64: 32, 16>}, {pipeline_mode = #tpu.pipeline_mode<synchronous>, transform_indices = @transform_2, window_bounds = array<i64: 32, 1>}, {pipeline_mode = #tpu.pipeline_mode<synchronous>, transform_indices = @transform_3, window_bounds = array<i64: 32, 1>}, {pipeline_mode = #tpu.pipeline_mode<synchronous>, transform_indices = @transform_4, window_bounds = array<i64: 32, 1>}, {transform_indices = @transform_5, window_bounds = array<i64: 1>}, {transform_indices = @transform_6, window_bounds = array<i64: 1, 32, 32>}]} {
    %c0 = arith.constant 0 : index
    %c0_0 = arith.constant 0 : index
    %0 = vector.load %arg2[%c0, %c0_0] : memref<32x16xbf16, #tpu.memory_space<vmem>>, vector<32x16xbf16>
    %c0_1 = arith.constant 0 : index
    %c0_2 = arith.constant 0 : index
    %c0_3 = arith.constant 0 : index
    %1 = vector.load %arg1[%c0_1, %c0_2, %c0_3] : memref<1x16x32xf32, #tpu.memory_space<vmem>>, vector<1x16x32xf32>
    %2 = vector.shape_cast %1 : vector<1x16x32xf32> to vector<16x32xf32>
    %3 = arith.truncf %2 : vector<16x32xf32> to vector<16x32xbf16>
    %cst = arith.constant dense<0.000000e+00> : vector<32x32xf32>
    %4 = tpu.matmul %0, %3, %cst {dimension_numbers = #tpu.dot_dimension_numbers<[1], [0], [0], [1], [0, 0, 1, 1], [], []>} : vector<32x16xbf16>, vector<16x32xbf16>, vector<32x32xf32> -> vector<32x32xf32>
    %c0_4 = arith.constant 0 : index
    %c0_5 = arith.constant 0 : index
    %5 = vector.load %arg3[%c0_4, %c0_5] : memref<32x1xf32, #tpu.memory_space<vmem>>, vector<32x1xf32>
    %6 = vector.broadcast %5 : vector<32x1xf32> to vector<32x32xf32>
    %7 = arith.addf %4, %6 : vector<32x32xf32>
    %c0_6 = arith.constant 0 : index
    %c0_7 = arith.constant 0 : index
    %8 = vector.load %arg4[%c0_6, %c0_7] : memref<32x1xf32, #tpu.memory_space<vmem>>, vector<32x1xf32>
    %c0_8 = arith.constant 0 : index
    %c0_9 = arith.constant 0 : index
    %9 = vector.load %arg5[%c0_8, %c0_9] : memref<32x1xf32, #tpu.memory_space<vmem>>, vector<32x1xf32>
    %10 = vector.shape_cast %7 : vector<32x32xf32> to vector<1x32x32xf32>
    %cst_10 = arith.constant dense<0.000000e+00> : vector<1xf32>
    %11 = vector.multi_reduction <add>, %10, %cst_10 [1, 2] : vector<1x32x32xf32> to vector<1xf32>
    %12 = vector.shape_cast %11 : vector<1xf32> to vector<1x1x1xf32>
    %13 = vector.extract %12[0, 0, 0] : f32 from vector<1x1x1xf32>
    %14 = arith.mulf %7, %7 : vector<32x32xf32>
    %15 = vector.shape_cast %14 : vector<32x32xf32> to vector<1x32x32xf32>
    %cst_11 = arith.constant dense<0.000000e+00> : vector<1xf32>
    %16 = vector.multi_reduction <add>, %15, %cst_11 [1, 2] : vector<1x32x32xf32> to vector<1xf32>
    %17 = vector.shape_cast %16 : vector<1xf32> to vector<1x1x1xf32>
    %18 = vector.extract %17[0, 0, 0] : f32 from vector<1x1x1xf32>
    %cst_12 = arith.constant 1.024000e+03 : f32
    %19 = arith.divf %13, %cst_12 : f32
    %cst_13 = arith.constant 1.024000e+03 : f32
    %20 = arith.divf %18, %cst_13 : f32
    %21 = arith.mulf %19, %19 : f32
    %22 = arith.subf %20, %21 : f32
    %cst_14 = arith.constant 0.000000e+00 : f32
    %23 = arith.maximumf %22, %cst_14 : f32
    %24 = vector.broadcast %19 : f32 to vector<32x32xf32>
    %25 = arith.subf %7, %24 : vector<32x32xf32>
    %cst_15 = arith.constant 9.99999993E-9 : f32
    %26 = arith.addf %23, %cst_15 : f32
    %27 = math.rsqrt %26 : f32
    %28 = vector.broadcast %27 : f32 to vector<32x32xf32>
    %29 = arith.mulf %25, %28 : vector<32x32xf32>
    %30 = vector.broadcast %8 : vector<32x1xf32> to vector<32x32xf32>
    %31 = arith.mulf %29, %30 : vector<32x32xf32>
    %32 = vector.broadcast %9 : vector<32x1xf32> to vector<32x32xf32>
    %33 = arith.addf %31, %32 : vector<32x32xf32>
    %c0_16 = arith.constant 0 : index
    %34 = memref.load %arg6[%c0_16] : memref<1xf32, #tpu.memory_space<smem>>
    %cst_17 = arith.constant 0.000000e+00 : f32
    %35 = vector.broadcast %cst_17 : f32 to vector<32x32xf32>
    %36 = arith.cmpf oge, %33, %35 : vector<32x32xf32>
    %37 = vector.broadcast %34 : f32 to vector<32x32xf32>
    %38 = arith.mulf %37, %33 : vector<32x32xf32>
    %39 = arith.select %36, %33, %38 : vector<32x32xi1>, vector<32x32xf32>
    %40 = arith.truncf %39 : vector<32x32xf32> to vector<32x32xbf16>
    %c0_18 = arith.constant 0 : index
    %c0_19 = arith.constant 0 : index
    %c0_20 = arith.constant 0 : index
    %41 = vector.load %arg7[%c0_18, %c0_19, %c0_20] : memref<1x32x32xbf16, #tpu.memory_space<vmem>>, vector<1x32x32xbf16>
    %42 = vector.shape_cast %41 : vector<1x32x32xbf16> to vector<32x32xbf16>
    %43 = vector.shape_cast %40 : vector<32x32xbf16> to vector<1x32x32xbf16>
    tpu.vector_store %arg7[%c0_18, %c0_19, %c0_20], %43 {strides = array<i32>} : memref<1x32x32xbf16, #tpu.memory_space<vmem>>, vector<1x32x32xbf16>,
    return
  }
  func.func @transform_0(%arg0: i32) -> (i32, i32, i32) {
    %c0_i32 = arith.constant 0 : i32
    %c0_i32_0 = arith.constant 0 : i32
    %c0_i32_1 = arith.constant 0 : i32
    return %arg0, %c0_i32, %c0_i32_0 : i32, i32, i32
  }
  func.func @transform_1(%arg0: i32) -> (i32, i32) {
    %c0_i32 = arith.constant 0 : i32
    %c0_i32_0 = arith.constant 0 : i32
    %c0_i32_1 = arith.constant 0 : i32
    return %c0_i32, %c0_i32_0 : i32, i32
  }
  func.func @transform_2(%arg0: i32) -> (i32, i32) {
    %c0_i32 = arith.constant 0 : i32
    %c0_i32_0 = arith.constant 0 : i32
    %c0_i32_1 = arith.constant 0 : i32
    return %c0_i32, %c0_i32_0 : i32, i32
  }
  func.func @transform_3(%arg0: i32) -> (i32, i32) {
    %c0_i32 = arith.constant 0 : i32
    %c0_i32_0 = arith.constant 0 : i32
    %c0_i32_1 = arith.constant 0 : i32
    return %c0_i32, %c0_i32_0 : i32, i32
  }
  func.func @transform_4(%arg0: i32) -> (i32, i32) {
    %c0_i32 = arith.constant 0 : i32
    %c0_i32_0 = arith.constant 0 : i32
    %c0_i32_1 = arith.constant 0 : i32
    return %c0_i32, %c0_i32_0 : i32, i32
  }
  func.func @transform_5(%arg0: i32) -> i32 {
    %c0_i32 = arith.constant 0 : i32
    %c0_i32_0 = arith.constant 0 : i32
    return %c0_i32 : i32
  }
  func.func @transform_6(%arg0: i32) -> (i32, i32, i32) {
    %c0_i32 = arith.constant 0 : i32
    %c0_i32_0 = arith.constant 0 : i32
    %c0_i32_1 = arith.constant 0 : i32
    return %arg0, %c0_i32, %c0_i32_0 : i32, i32, i32
  }
}

module attributes {stable_mosaic.version = 11 : i64} {
  func.func @kernel(%arg0: i32, %arg1: memref<1x32x36xbf16, #tpu.memory_space<vmem>>, %arg2: memref<32x5xf32, #tpu.memory_space<vmem>>, %arg3: memref<32x1xf32, #tpu.memory_space<vmem>>, %arg4: memref<32x1xf32, #tpu.memory_space<vmem>>, %arg5: memref<32x1xf32, #tpu.memory_space<vmem>>, %arg6: memref<1x32x32xbf16, #tpu.memory_space<vmem>>) attributes {dimension_semantics = [#tpu.dimension_semantics<parallel>], iteration_bounds = array<i64: 2>, scalar_prefetch = 0 : i64, scratch_operands = 0 : i64, tpu.core_type = #tpu.core_type<tc>, window_params = [{transform_indices = @transform_0, window_bounds = array<i64: 1, 32, 36>}, {pipeline_mode = #tpu.pipeline_mode<synchronous>, transform_indices = @transform_1, window_bounds = array<i64: 32, 5>}, {pipeline_mode = #tpu.pipeline_mode<synchronous>, transform_indices = @transform_2, window_bounds = array<i64: 32, 1>}, {pipeline_mode = #tpu.pipeline_mode<synchronous>, transform_indices = @transform_3, window_bounds = array<i64: 32, 1>}, {pipeline_mode = #tpu.pipeline_mode<synchronous>, transform_indices = @transform_4, window_bounds = array<i64: 32, 1>}, {transform_indices = @transform_5, window_bounds = array<i64: 1, 32, 32>}]} {
    %c0 = arith.constant 0 : index
    %c0_0 = arith.constant 0 : index
    %0 = vector.load %arg2[%c0, %c0_0] : memref<32x5xf32, #tpu.memory_space<vmem>>, vector<32x5xf32>
    %cst = arith.constant 0.000000e+00 : f32
    %1 = vector.broadcast %cst : f32 to vector<32x32xf32>
    %2 = vector.extract_strided_slice %0 {offsets = [0, 0], sizes = [32, 1], strides = [1, 1]} : vector<32x5xf32> to vector<32x1xf32>
    %c0_1 = arith.constant 0 : index
    %c0_2 = arith.constant 0 : index
    %c0_3 = arith.constant 0 : index
    %3 = vector.load %arg1[%c0_1, %c0_2, %c0_3] : memref<1x32x36xbf16, #tpu.memory_space<vmem>>, vector<1x32x32xbf16>
    %4 = vector.shape_cast %3 : vector<1x32x32xbf16> to vector<32x32xbf16>
    %5 = arith.extf %4 : vector<32x32xbf16> to vector<32x32xf32>
    %6 = vector.broadcast %2 : vector<32x1xf32> to vector<32x32xf32>
    %7 = arith.mulf %6, %5 : vector<32x32xf32>
    %8 = arith.addf %1, %7 : vector<32x32xf32>
    %9 = vector.extract_strided_slice %0 {offsets = [0, 1], sizes = [32, 1], strides = [1, 1]} : vector<32x5xf32> to vector<32x1xf32>
    %c0_4 = arith.constant 0 : index
    %c0_5 = arith.constant 0 : index
    %c1 = arith.constant 1 : index
    %10 = vector.load %arg1[%c0_4, %c0_5, %c1] : memref<1x32x36xbf16, #tpu.memory_space<vmem>>, vector<1x32x32xbf16>
    %11 = vector.shape_cast %10 : vector<1x32x32xbf16> to vector<32x32xbf16>
    %12 = arith.extf %11 : vector<32x32xbf16> to vector<32x32xf32>
    %13 = vector.broadcast %9 : vector<32x1xf32> to vector<32x32xf32>
    %14 = arith.mulf %13, %12 : vector<32x32xf32>
    %15 = arith.addf %8, %14 : vector<32x32xf32>
    %16 = vector.extract_strided_slice %0 {offsets = [0, 2], sizes = [32, 1], strides = [1, 1]} : vector<32x5xf32> to vector<32x1xf32>
    %c0_6 = arith.constant 0 : index
    %c0_7 = arith.constant 0 : index
    %c2 = arith.constant 2 : index
    %17 = vector.load %arg1[%c0_6, %c0_7, %c2] : memref<1x32x36xbf16, #tpu.memory_space<vmem>>, vector<1x32x32xbf16>
    %18 = vector.shape_cast %17 : vector<1x32x32xbf16> to vector<32x32xbf16>
    %19 = arith.extf %18 : vector<32x32xbf16> to vector<32x32xf32>
    %20 = vector.broadcast %16 : vector<32x1xf32> to vector<32x32xf32>
    %21 = arith.mulf %20, %19 : vector<32x32xf32>
    %22 = arith.addf %15, %21 : vector<32x32xf32>
    %23 = vector.extract_strided_slice %0 {offsets = [0, 3], sizes = [32, 1], strides = [1, 1]} : vector<32x5xf32> to vector<32x1xf32>
    %c0_8 = arith.constant 0 : index
    %c0_9 = arith.constant 0 : index
    %c3 = arith.constant 3 : index
    %24 = vector.load %arg1[%c0_8, %c0_9, %c3] : memref<1x32x36xbf16, #tpu.memory_space<vmem>>, vector<1x32x32xbf16>
    %25 = vector.shape_cast %24 : vector<1x32x32xbf16> to vector<32x32xbf16>
    %26 = arith.extf %25 : vector<32x32xbf16> to vector<32x32xf32>
    %27 = vector.broadcast %23 : vector<32x1xf32> to vector<32x32xf32>
    %28 = arith.mulf %27, %26 : vector<32x32xf32>
    %29 = arith.addf %22, %28 : vector<32x32xf32>
    %30 = vector.extract_strided_slice %0 {offsets = [0, 4], sizes = [32, 1], strides = [1, 1]} : vector<32x5xf32> to vector<32x1xf32>
    %c0_10 = arith.constant 0 : index
    %c0_11 = arith.constant 0 : index
    %c4 = arith.constant 4 : index
    %31 = vector.load %arg1[%c0_10, %c0_11, %c4] : memref<1x32x36xbf16, #tpu.memory_space<vmem>>, vector<1x32x32xbf16>
    %32 = vector.shape_cast %31 : vector<1x32x32xbf16> to vector<32x32xbf16>
    %33 = arith.extf %32 : vector<32x32xbf16> to vector<32x32xf32>
    %34 = vector.broadcast %30 : vector<32x1xf32> to vector<32x32xf32>
    %35 = arith.mulf %34, %33 : vector<32x32xf32>
    %36 = arith.addf %29, %35 : vector<32x32xf32>
    %c0_12 = arith.constant 0 : index
    %c0_13 = arith.constant 0 : index
    %37 = vector.load %arg3[%c0_12, %c0_13] : memref<32x1xf32, #tpu.memory_space<vmem>>, vector<32x1xf32>
    %38 = vector.broadcast %37 : vector<32x1xf32> to vector<32x32xf32>
    %39 = arith.addf %36, %38 : vector<32x32xf32>
    %c0_14 = arith.constant 0 : index
    %c0_15 = arith.constant 0 : index
    %40 = vector.load %arg4[%c0_14, %c0_15] : memref<32x1xf32, #tpu.memory_space<vmem>>, vector<32x1xf32>
    %c0_16 = arith.constant 0 : index
    %c0_17 = arith.constant 0 : index
    %41 = vector.load %arg5[%c0_16, %c0_17] : memref<32x1xf32, #tpu.memory_space<vmem>>, vector<32x1xf32>
    %42 = vector.shape_cast %39 : vector<32x32xf32> to vector<1x32x32xf32>
    %cst_18 = arith.constant dense<0.000000e+00> : vector<1xf32>
    %43 = vector.multi_reduction <add>, %42, %cst_18 [1, 2] : vector<1x32x32xf32> to vector<1xf32>
    %44 = vector.shape_cast %43 : vector<1xf32> to vector<1x1x1xf32>
    %45 = vector.extract %44[0, 0, 0] : f32 from vector<1x1x1xf32>
    %46 = arith.mulf %39, %39 : vector<32x32xf32>
    %47 = vector.shape_cast %46 : vector<32x32xf32> to vector<1x32x32xf32>
    %cst_19 = arith.constant dense<0.000000e+00> : vector<1xf32>
    %48 = vector.multi_reduction <add>, %47, %cst_19 [1, 2] : vector<1x32x32xf32> to vector<1xf32>
    %49 = vector.shape_cast %48 : vector<1xf32> to vector<1x1x1xf32>
    %50 = vector.extract %49[0, 0, 0] : f32 from vector<1x1x1xf32>
    %cst_20 = arith.constant 1.024000e+03 : f32
    %51 = arith.divf %45, %cst_20 : f32
    %cst_21 = arith.constant 1.024000e+03 : f32
    %52 = arith.divf %50, %cst_21 : f32
    %53 = arith.mulf %51, %51 : f32
    %54 = arith.subf %52, %53 : f32
    %cst_22 = arith.constant 0.000000e+00 : f32
    %55 = arith.maximumf %54, %cst_22 : f32
    %56 = vector.broadcast %51 : f32 to vector<32x32xf32>
    %57 = arith.subf %39, %56 : vector<32x32xf32>
    %cst_23 = arith.constant 9.99999993E-9 : f32
    %58 = arith.addf %55, %cst_23 : f32
    %59 = math.rsqrt %58 : f32
    %60 = vector.broadcast %59 : f32 to vector<32x32xf32>
    %61 = arith.mulf %57, %60 : vector<32x32xf32>
    %62 = vector.broadcast %40 : vector<32x1xf32> to vector<32x32xf32>
    %63 = arith.mulf %61, %62 : vector<32x32xf32>
    %64 = vector.broadcast %41 : vector<32x1xf32> to vector<32x32xf32>
    %65 = arith.addf %63, %64 : vector<32x32xf32>
    %66 = arith.truncf %65 : vector<32x32xf32> to vector<32x32xbf16>
    %c0_24 = arith.constant 0 : index
    %c0_25 = arith.constant 0 : index
    %c0_26 = arith.constant 0 : index
    %67 = vector.load %arg6[%c0_24, %c0_25, %c0_26] : memref<1x32x32xbf16, #tpu.memory_space<vmem>>, vector<1x32x32xbf16>
    %68 = vector.shape_cast %67 : vector<1x32x32xbf16> to vector<32x32xbf16>
    %69 = vector.shape_cast %66 : vector<32x32xbf16> to vector<1x32x32xbf16>
    tpu.vector_store %arg6[%c0_24, %c0_25, %c0_26], %69 {strides = array<i32>} : memref<1x32x32xbf16, #tpu.memory_space<vmem>>, vector<1x32x32xbf16>,
    return
  }
  func.func @transform_0(%arg0: i32) -> (i32, i32, i32) {
    %c0_i32 = arith.constant 0 : i32
    %c0_i32_0 = arith.constant 0 : i32
    %c0_i32_1 = arith.constant 0 : i32
    return %arg0, %c0_i32, %c0_i32_0 : i32, i32, i32
  }
  func.func @transform_1(%arg0: i32) -> (i32, i32) {
    %c0_i32 = arith.constant 0 : i32
    %c0_i32_0 = arith.constant 0 : i32
    %c0_i32_1 = arith.constant 0 : i32
    return %c0_i32, %c0_i32_0 : i32, i32
  }
  func.func @transform_2(%arg0: i32) -> (i32, i32) {
    %c0_i32 = arith.constant 0 : i32
    %c0_i32_0 = arith.constant 0 : i32
    %c0_i32_1 = arith.constant 0 : i32
    return %c0_i32, %c0_i32_0 : i32, i32
  }
  func.func @transform_3(%arg0: i32) -> (i32, i32) {
    %c0_i32 = arith.constant 0 : i32
    %c0_i32_0 = arith.constant 0 : i32
    %c0_i32_1 = arith.constant 0 : i32
    return %c0_i32, %c0_i32_0 : i32, i32
  }
  func.func @transform_4(%arg0: i32) -> (i32, i32) {
    %c0_i32 = arith.constant 0 : i32
    %c0_i32_0 = arith.constant 0 : i32
    %c0_i32_1 = arith.constant 0 : i32
    return %c0_i32, %c0_i32_0 : i32, i32
  }
  func.func @transform_5(%arg0: i32) -> (i32, i32, i32) {
    %c0_i32 = arith.constant 0 : i32
    %c0_i32_0 = arith.constant 0 : i32
    %c0_i32_1 = arith.constant 0 : i32
    return %arg0, %c0_i32, %c0_i32_0 : i32, i32, i32
  }
}

module attributes {stable_mosaic.version = 11 : i64} {
  func.func @kernel(%arg0: i32, %arg1: memref<1x32x18xbf16, #tpu.memory_space<vmem>>, %arg2: memref<1x32x17xbf16, #tpu.memory_space<vmem>>, %arg3: memref<32x5xf32, #tpu.memory_space<vmem>>, %arg4: memref<32x1xf32, #tpu.memory_space<vmem>>, %arg5: memref<32x1xf32, #tpu.memory_space<vmem>>, %arg6: memref<32x1xf32, #tpu.memory_space<vmem>>, %arg7: memref<32x5xf32, #tpu.memory_space<vmem>>, %arg8: memref<32x1xf32, #tpu.memory_space<vmem>>, %arg9: memref<32x1xf32, #tpu.memory_space<vmem>>, %arg10: memref<32x1xf32, #tpu.memory_space<vmem>>, %arg11: memref<1x32x16xbf16, #tpu.memory_space<vmem>>, %arg12: memref<1x32x16xbf16, #tpu.memory_space<vmem>>) attributes {dimension_semantics = [#tpu.dimension_semantics<parallel>], iteration_bounds = array<i64: 2>, scalar_prefetch = 0 : i64, scratch_operands = 0 : i64, tpu.core_type = #tpu.core_type<tc>, window_params = [{transform_indices = @transform_0, window_bounds = array<i64: 1, 32, 18>}, {transform_indices = @transform_1, window_bounds = array<i64: 1, 32, 17>}, {pipeline_mode = #tpu.pipeline_mode<synchronous>, transform_indices = @transform_2, window_bounds = array<i64: 32, 5>}, {pipeline_mode = #tpu.pipeline_mode<synchronous>, transform_indices = @transform_3, window_bounds = array<i64: 32, 1>}, {pipeline_mode = #tpu.pipeline_mode<synchronous>, transform_indices = @transform_4, window_bounds = array<i64: 32, 1>}, {pipeline_mode = #tpu.pipeline_mode<synchronous>, transform_indices = @transform_5, window_bounds = array<i64: 32, 1>}, {pipeline_mode = #tpu.pipeline_mode<synchronous>, transform_indices = @transform_6, window_bounds = array<i64: 32, 5>}, {pipeline_mode = #tpu.pipeline_mode<synchronous>, transform_indices = @transform_7, window_bounds = array<i64: 32, 1>}, {pipeline_mode = #tpu.pipeline_mode<synchronous>, transform_indices = @transform_8, window_bounds = array<i64: 32, 1>}, {pipeline_mode = #tpu.pipeline_mode<synchronous>, transform_indices = @transform_9, window_bounds = array<i64: 32, 1>}, {transform_indices = @transform_10, window_bounds = array<i64: 1, 32, 16>}, {transform_indices = @transform_11, window_bounds = array<i64: 1, 32, 16>}]} {
    %c0 = arith.constant 0 : index
    %c0_0 = arith.constant 0 : index
    %0 = vector.load %arg3[%c0, %c0_0] : memref<32x5xf32, #tpu.memory_space<vmem>>, vector<32x5xf32>
    %c0_1 = arith.constant 0 : index
    %c0_2 = arith.constant 0 : index
    %1 = vector.load %arg7[%c0_1, %c0_2] : memref<32x5xf32, #tpu.memory_space<vmem>>, vector<32x5xf32>
    %cst = arith.constant 0.000000e+00 : f32
    %2 = vector.broadcast %cst : f32 to vector<32x16xf32>
    %cst_3 = arith.constant 0.000000e+00 : f32
    %3 = vector.broadcast %cst_3 : f32 to vector<32x16xf32>
    %c0_4 = arith.constant 0 : index
    %c0_5 = arith.constant 0 : index
    %c0_6 = arith.constant 0 : index
    %4 = vector.load %arg1[%c0_4, %c0_5, %c0_6] : memref<1x32x18xbf16, #tpu.memory_space<vmem>>, vector<1x32x16xbf16>
    %5 = vector.shape_cast %4 : vector<1x32x16xbf16> to vector<32x16xbf16>
    %6 = arith.extf %5 : vector<32x16xbf16> to vector<32x16xf32>
    %7 = vector.extract_strided_slice %0 {offsets = [0, 0], sizes = [32, 1], strides = [1, 1]} : vector<32x5xf32> to vector<32x1xf32>
    %8 = vector.broadcast %7 : vector<32x1xf32> to vector<32x16xf32>
    %9 = arith.mulf %8, %6 : vector<32x16xf32>
    %10 = arith.addf %2, %9 : vector<32x16xf32>
    %11 = vector.extract_strided_slice %1 {offsets = [0, 0], sizes = [32, 1], strides = [1, 1]} : vector<32x5xf32> to vector<32x1xf32>
    %12 = vector.broadcast %11 : vector<32x1xf32> to vector<32x16xf32>
    %13 = arith.mulf %12, %6 : vector<32x16xf32>
    %14 = arith.addf %3, %13 : vector<32x16xf32>
    %c0_7 = arith.constant 0 : index
    %c0_8 = arith.constant 0 : index
    %c0_9 = arith.constant 0 : index
    %15 = vector.load %arg2[%c0_7, %c0_8, %c0_9] : memref<1x32x17xbf16, #tpu.memory_space<vmem>>, vector<1x32x16xbf16>
    %16 = vector.shape_cast %15 : vector<1x32x16xbf16> to vector<32x16xbf16>
    %17 = arith.extf %16 : vector<32x16xbf16> to vector<32x16xf32>
    %18 = vector.extract_strided_slice %0 {offsets = [0, 1], sizes = [32, 1], strides = [1, 1]} : vector<32x5xf32> to vector<32x1xf32>
    %19 = vector.broadcast %18 : vector<32x1xf32> to vector<32x16xf32>
    %20 = arith.mulf %19, %17 : vector<32x16xf32>
    %21 = arith.addf %10, %20 : vector<32x16xf32>
    %22 = vector.extract_strided_slice %1 {offsets = [0, 1], sizes = [32, 1], strides = [1, 1]} : vector<32x5xf32> to vector<32x1xf32>
    %23 = vector.broadcast %22 : vector<32x1xf32> to vector<32x16xf32>
    %24 = arith.mulf %23, %17 : vector<32x16xf32>
    %25 = arith.addf %14, %24 : vector<32x16xf32>
    %c0_10 = arith.constant 0 : index
    %c0_11 = arith.constant 0 : index
    %c1 = arith.constant 1 : index
    %26 = vector.load %arg1[%c0_10, %c0_11, %c1] : memref<1x32x18xbf16, #tpu.memory_space<vmem>>, vector<1x32x16xbf16>
    %27 = vector.shape_cast %26 : vector<1x32x16xbf16> to vector<32x16xbf16>
    %28 = arith.extf %27 : vector<32x16xbf16> to vector<32x16xf32>
    %29 = vector.extract_strided_slice %0 {offsets = [0, 2], sizes = [32, 1], strides = [1, 1]} : vector<32x5xf32> to vector<32x1xf32>
    %30 = vector.broadcast %29 : vector<32x1xf32> to vector<32x16xf32>
    %31 = arith.mulf %30, %28 : vector<32x16xf32>
    %32 = arith.addf %21, %31 : vector<32x16xf32>
    %33 = vector.extract_strided_slice %1 {offsets = [0, 2], sizes = [32, 1], strides = [1, 1]} : vector<32x5xf32> to vector<32x1xf32>
    %34 = vector.broadcast %33 : vector<32x1xf32> to vector<32x16xf32>
    %35 = arith.mulf %34, %28 : vector<32x16xf32>
    %36 = arith.addf %25, %35 : vector<32x16xf32>
    %c0_12 = arith.constant 0 : index
    %c0_13 = arith.constant 0 : index
    %c1_14 = arith.constant 1 : index
    %37 = vector.load %arg2[%c0_12, %c0_13, %c1_14] : memref<1x32x17xbf16, #tpu.memory_space<vmem>>, vector<1x32x16xbf16>
    %38 = vector.shape_cast %37 : vector<1x32x16xbf16> to vector<32x16xbf16>
    %39 = arith.extf %38 : vector<32x16xbf16> to vector<32x16xf32>
    %40 = vector.extract_strided_slice %0 {offsets = [0, 3], sizes = [32, 1], strides = [1, 1]} : vector<32x5xf32> to vector<32x1xf32>
    %41 = vector.broadcast %40 : vector<32x1xf32> to vector<32x16xf32>
    %42 = arith.mulf %41, %39 : vector<32x16xf32>
    %43 = arith.addf %32, %42 : vector<32x16xf32>
    %44 = vector.extract_strided_slice %1 {offsets = [0, 3], sizes = [32, 1], strides = [1, 1]} : vector<32x5xf32> to vector<32x1xf32>
    %45 = vector.broadcast %44 : vector<32x1xf32> to vector<32x16xf32>
    %46 = arith.mulf %45, %39 : vector<32x16xf32>
    %47 = arith.addf %36, %46 : vector<32x16xf32>
    %c0_15 = arith.constant 0 : index
    %c0_16 = arith.constant 0 : index
    %c2 = arith.constant 2 : index
    %48 = vector.load %arg1[%c0_15, %c0_16, %c2] : memref<1x32x18xbf16, #tpu.memory_space<vmem>>, vector<1x32x16xbf16>
    %49 = vector.shape_cast %48 : vector<1x32x16xbf16> to vector<32x16xbf16>
    %50 = arith.extf %49 : vector<32x16xbf16> to vector<32x16xf32>
    %51 = vector.extract_strided_slice %0 {offsets = [0, 4], sizes = [32, 1], strides = [1, 1]} : vector<32x5xf32> to vector<32x1xf32>
    %52 = vector.broadcast %51 : vector<32x1xf32> to vector<32x16xf32>
    %53 = arith.mulf %52, %50 : vector<32x16xf32>
    %54 = arith.addf %43, %53 : vector<32x16xf32>
    %55 = vector.extract_strided_slice %1 {offsets = [0, 4], sizes = [32, 1], strides = [1, 1]} : vector<32x5xf32> to vector<32x1xf32>
    %56 = vector.broadcast %55 : vector<32x1xf32> to vector<32x16xf32>
    %57 = arith.mulf %56, %50 : vector<32x16xf32>
    %58 = arith.addf %47, %57 : vector<32x16xf32>
    %c0_17 = arith.constant 0 : index
    %c0_18 = arith.constant 0 : index
    %59 = vector.load %arg4[%c0_17, %c0_18] : memref<32x1xf32, #tpu.memory_space<vmem>>, vector<32x1xf32>
    %60 = vector.broadcast %59 : vector<32x1xf32> to vector<32x16xf32>
    %61 = arith.addf %54, %60 : vector<32x16xf32>
    %c0_19 = arith.constant 0 : index
    %c0_20 = arith.constant 0 : index
    %62 = vector.load %arg8[%c0_19, %c0_20] : memref<32x1xf32, #tpu.memory_space<vmem>>, vector<32x1xf32>
    %63 = vector.broadcast %62 : vector<32x1xf32> to vector<32x16xf32>
    %64 = arith.addf %58, %63 : vector<32x16xf32>
    %c0_21 = arith.constant 0 : index
    %c0_22 = arith.constant 0 : index
    %65 = vector.load %arg5[%c0_21, %c0_22] : memref<32x1xf32, #tpu.memory_space<vmem>>, vector<32x1xf32>
    %c0_23 = arith.constant 0 : index
    %c0_24 = arith.constant 0 : index
    %66 = vector.load %arg6[%c0_23, %c0_24] : memref<32x1xf32, #tpu.memory_space<vmem>>, vector<32x1xf32>
    %67 = vector.shape_cast %61 : vector<32x16xf32> to vector<1x32x16xf32>
    %cst_25 = arith.constant dense<0.000000e+00> : vector<1xf32>
    %68 = vector.multi_reduction <add>, %67, %cst_25 [1, 2] : vector<1x32x16xf32> to vector<1xf32>
    %69 = vector.shape_cast %68 : vector<1xf32> to vector<1x1x1xf32>
    %70 = vector.extract %69[0, 0, 0] : f32 from vector<1x1x1xf32>
    %71 = arith.mulf %61, %61 : vector<32x16xf32>
    %72 = vector.shape_cast %71 : vector<32x16xf32> to vector<1x32x16xf32>
    %cst_26 = arith.constant dense<0.000000e+00> : vector<1xf32>
    %73 = vector.multi_reduction <add>, %72, %cst_26 [1, 2] : vector<1x32x16xf32> to vector<1xf32>
    %74 = vector.shape_cast %73 : vector<1xf32> to vector<1x1x1xf32>
    %75 = vector.extract %74[0, 0, 0] : f32 from vector<1x1x1xf32>
    %cst_27 = arith.constant 5.120000e+02 : f32
    %76 = arith.divf %70, %cst_27 : f32
    %cst_28 = arith.constant 5.120000e+02 : f32
    %77 = arith.divf %75, %cst_28 : f32
    %78 = arith.mulf %76, %76 : f32
    %79 = arith.subf %77, %78 : f32
    %cst_29 = arith.constant 0.000000e+00 : f32
    %80 = arith.maximumf %79, %cst_29 : f32
    %81 = vector.broadcast %76 : f32 to vector<32x16xf32>
    %82 = arith.subf %61, %81 : vector<32x16xf32>
    %cst_30 = arith.constant 9.99999993E-9 : f32
    %83 = arith.addf %80, %cst_30 : f32
    %84 = math.rsqrt %83 : f32
    %85 = vector.broadcast %84 : f32 to vector<32x16xf32>
    %86 = arith.mulf %82, %85 : vector<32x16xf32>
    %87 = vector.broadcast %65 : vector<32x1xf32> to vector<32x16xf32>
    %88 = arith.mulf %86, %87 : vector<32x16xf32>
    %89 = vector.broadcast %66 : vector<32x1xf32> to vector<32x16xf32>
    %90 = arith.addf %88, %89 : vector<32x16xf32>
    %91 = arith.truncf %90 : vector<32x16xf32> to vector<32x16xbf16>
    %c0_31 = arith.constant 0 : index
    %c0_32 = arith.constant 0 : index
    %c0_33 = arith.constant 0 : index
    %92 = vector.load %arg11[%c0_31, %c0_32, %c0_33] : memref<1x32x16xbf16, #tpu.memory_space<vmem>>, vector<1x32x16xbf16>
    %93 = vector.shape_cast %92 : vector<1x32x16xbf16> to vector<32x16xbf16>
    %94 = vector.shape_cast %91 : vector<32x16xbf16> to vector<1x32x16xbf16>
    tpu.vector_store %arg11[%c0_31, %c0_32, %c0_33], %94 {strides = array<i32>} : memref<1x32x16xbf16, #tpu.memory_space<vmem>>, vector<1x32x16xbf16>,
    %c0_34 = arith.constant 0 : index
    %c0_35 = arith.constant 0 : index
    %95 = vector.load %arg9[%c0_34, %c0_35] : memref<32x1xf32, #tpu.memory_space<vmem>>, vector<32x1xf32>
    %c0_36 = arith.constant 0 : index
    %c0_37 = arith.constant 0 : index
    %96 = vector.load %arg10[%c0_36, %c0_37] : memref<32x1xf32, #tpu.memory_space<vmem>>, vector<32x1xf32>
    %97 = vector.shape_cast %64 : vector<32x16xf32> to vector<1x32x16xf32>
    %cst_38 = arith.constant dense<0.000000e+00> : vector<1xf32>
    %98 = vector.multi_reduction <add>, %97, %cst_38 [1, 2] : vector<1x32x16xf32> to vector<1xf32>
    %99 = vector.shape_cast %98 : vector<1xf32> to vector<1x1x1xf32>
    %100 = vector.extract %99[0, 0, 0] : f32 from vector<1x1x1xf32>
    %101 = arith.mulf %64, %64 : vector<32x16xf32>
    %102 = vector.shape_cast %101 : vector<32x16xf32> to vector<1x32x16xf32>
    %cst_39 = arith.constant dense<0.000000e+00> : vector<1xf32>
    %103 = vector.multi_reduction <add>, %102, %cst_39 [1, 2] : vector<1x32x16xf32> to vector<1xf32>
    %104 = vector.shape_cast %103 : vector<1xf32> to vector<1x1x1xf32>
    %105 = vector.extract %104[0, 0, 0] : f32 from vector<1x1x1xf32>
    %cst_40 = arith.constant 5.120000e+02 : f32
    %106 = arith.divf %100, %cst_40 : f32
    %cst_41 = arith.constant 5.120000e+02 : f32
    %107 = arith.divf %105, %cst_41 : f32
    %108 = arith.mulf %106, %106 : f32
    %109 = arith.subf %107, %108 : f32
    %cst_42 = arith.constant 0.000000e+00 : f32
    %110 = arith.maximumf %109, %cst_42 : f32
    %111 = vector.broadcast %106 : f32 to vector<32x16xf32>
    %112 = arith.subf %64, %111 : vector<32x16xf32>
    %cst_43 = arith.constant 9.99999993E-9 : f32
    %113 = arith.addf %110, %cst_43 : f32
    %114 = math.rsqrt %113 : f32
    %115 = vector.broadcast %114 : f32 to vector<32x16xf32>
    %116 = arith.mulf %112, %115 : vector<32x16xf32>
    %117 = vector.broadcast %95 : vector<32x1xf32> to vector<32x16xf32>
    %118 = arith.mulf %116, %117 : vector<32x16xf32>
    %119 = vector.broadcast %96 : vector<32x1xf32> to vector<32x16xf32>
    %120 = arith.addf %118, %119 : vector<32x16xf32>
    %121 = arith.truncf %120 : vector<32x16xf32> to vector<32x16xbf16>
    %c0_44 = arith.constant 0 : index
    %c0_45 = arith.constant 0 : index
    %c0_46 = arith.constant 0 : index
    %122 = vector.load %arg12[%c0_44, %c0_45, %c0_46] : memref<1x32x16xbf16, #tpu.memory_space<vmem>>, vector<1x32x16xbf16>
    %123 = vector.shape_cast %122 : vector<1x32x16xbf16> to vector<32x16xbf16>
    %124 = vector.shape_cast %121 : vector<32x16xbf16> to vector<1x32x16xbf16>
    tpu.vector_store %arg12[%c0_44, %c0_45, %c0_46], %124 {strides = array<i32>} : memref<1x32x16xbf16, #tpu.memory_space<vmem>>, vector<1x32x16xbf16>,
    return
  }
  func.func @transform_0(%arg0: i32) -> (i32, i32, i32) {
    %c0_i32 = arith.constant 0 : i32
    %c0_i32_0 = arith.constant 0 : i32
    %c0_i32_1 = arith.constant 0 : i32
    return %arg0, %c0_i32, %c0_i32_0 : i32, i32, i32
  }
  func.func @transform_1(%arg0: i32) -> (i32, i32, i32) {
    %c0_i32 = arith.constant 0 : i32
    %c0_i32_0 = arith.constant 0 : i32
    %c0_i32_1 = arith.constant 0 : i32
    return %arg0, %c0_i32, %c0_i32_0 : i32, i32, i32
  }
  func.func @transform_2(%arg0: i32) -> (i32, i32) {
    %c0_i32 = arith.constant 0 : i32
    %c0_i32_0 = arith.constant 0 : i32
    %c0_i32_1 = arith.constant 0 : i32
    return %c0_i32, %c0_i32_0 : i32, i32
  }
  func.func @transform_3(%arg0: i32) -> (i32, i32) {
    %c0_i32 = arith.constant 0 : i32
    %c0_i32_0 = arith.constant 0 : i32
    %c0_i32_1 = arith.constant 0 : i32
    return %c0_i32, %c0_i32_0 : i32, i32
  }
  func.func @transform_4(%arg0: i32) -> (i32, i32) {
    %c0_i32 = arith.constant 0 : i32
    %c0_i32_0 = arith.constant 0 : i32
    %c0_i32_1 = arith.constant 0 : i32
    return %c0_i32, %c0_i32_0 : i32, i32
  }
  func.func @transform_5(%arg0: i32) -> (i32, i32) {
    %c0_i32 = arith.constant 0 : i32
    %c0_i32_0 = arith.constant 0 : i32
    %c0_i32_1 = arith.constant 0 : i32
    return %c0_i32, %c0_i32_0 : i32, i32
  }
  func.func @transform_6(%arg0: i32) -> (i32, i32) {
    %c0_i32 = arith.constant 0 : i32
    %c0_i32_0 = arith.constant 0 : i32
    %c0_i32_1 = arith.constant 0 : i32
    return %c0_i32, %c0_i32_0 : i32, i32
  }
  func.func @transform_7(%arg0: i32) -> (i32, i32) {
    %c0_i32 = arith.constant 0 : i32
    %c0_i32_0 = arith.constant 0 : i32
    %c0_i32_1 = arith.constant 0 : i32
    return %c0_i32, %c0_i32_0 : i32, i32
  }
  func.func @transform_8(%arg0: i32) -> (i32, i32) {
    %c0_i32 = arith.constant 0 : i32
    %c0_i32_0 = arith.constant 0 : i32
    %c0_i32_1 = arith.constant 0 : i32
    return %c0_i32, %c0_i32_0 : i32, i32
  }
  func.func @transform_9(%arg0: i32) -> (i32, i32) {
    %c0_i32 = arith.constant 0 : i32
    %c0_i32_0 = arith.constant 0 : i32
    %c0_i32_1 = arith.constant 0 : i32
    return %c0_i32, %c0_i32_0 : i32, i32
  }
  func.func @transform_10(%arg0: i32) -> (i32, i32, i32) {
    %c0_i32 = arith.constant 0 : i32
    %c0_i32_0 = arith.constant 0 : i32
    %c0_i32_1 = arith.constant 0 : i32
    return %arg0, %c0_i32, %c0_i32_0 : i32, i32, i32
  }
  func.func @transform_11(%arg0: i32) -> (i32, i32, i32) {
    %c0_i32 = arith.constant 0 : i32
    %c0_i32_0 = arith.constant 0 : i32
    %c0_i32_1 = arith.constant 0 : i32
    return %arg0, %c0_i32, %c0_i32_0 : i32, i32, i32
  }
}

module attributes {stable_mosaic.version = 11 : i64} {
  func.func @kernel(%arg0: i32, %arg1: memref<1x32x10xbf16, #tpu.memory_space<vmem>>, %arg2: memref<1x32x9xbf16, #tpu.memory_space<vmem>>, %arg3: memref<32x5xf32, #tpu.memory_space<vmem>>, %arg4: memref<32x1xf32, #tpu.memory_space<vmem>>, %arg5: memref<32x1xf32, #tpu.memory_space<vmem>>, %arg6: memref<32x1xf32, #tpu.memory_space<vmem>>, %arg7: memref<32x5xf32, #tpu.memory_space<vmem>>, %arg8: memref<32x1xf32, #tpu.memory_space<vmem>>, %arg9: memref<32x1xf32, #tpu.memory_space<vmem>>, %arg10: memref<32x1xf32, #tpu.memory_space<vmem>>, %arg11: memref<1x32x8xbf16, #tpu.memory_space<vmem>>, %arg12: memref<1x32x8xbf16, #tpu.memory_space<vmem>>) attributes {dimension_semantics = [#tpu.dimension_semantics<parallel>], iteration_bounds = array<i64: 2>, scalar_prefetch = 0 : i64, scratch_operands = 0 : i64, tpu.core_type = #tpu.core_type<tc>, window_params = [{transform_indices = @transform_0, window_bounds = array<i64: 1, 32, 10>}, {transform_indices = @transform_1, window_bounds = array<i64: 1, 32, 9>}, {pipeline_mode = #tpu.pipeline_mode<synchronous>, transform_indices = @transform_2, window_bounds = array<i64: 32, 5>}, {pipeline_mode = #tpu.pipeline_mode<synchronous>, transform_indices = @transform_3, window_bounds = array<i64: 32, 1>}, {pipeline_mode = #tpu.pipeline_mode<synchronous>, transform_indices = @transform_4, window_bounds = array<i64: 32, 1>}, {pipeline_mode = #tpu.pipeline_mode<synchronous>, transform_indices = @transform_5, window_bounds = array<i64: 32, 1>}, {pipeline_mode = #tpu.pipeline_mode<synchronous>, transform_indices = @transform_6, window_bounds = array<i64: 32, 5>}, {pipeline_mode = #tpu.pipeline_mode<synchronous>, transform_indices = @transform_7, window_bounds = array<i64: 32, 1>}, {pipeline_mode = #tpu.pipeline_mode<synchronous>, transform_indices = @transform_8, window_bounds = array<i64: 32, 1>}, {pipeline_mode = #tpu.pipeline_mode<synchronous>, transform_indices = @transform_9, window_bounds = array<i64: 32, 1>}, {transform_indices = @transform_10, window_bounds = array<i64: 1, 32, 8>}, {transform_indices = @transform_11, window_bounds = array<i64: 1, 32, 8>}]} {
    %c0 = arith.constant 0 : index
    %c0_0 = arith.constant 0 : index
    %0 = vector.load %arg3[%c0, %c0_0] : memref<32x5xf32, #tpu.memory_space<vmem>>, vector<32x5xf32>
    %c0_1 = arith.constant 0 : index
    %c0_2 = arith.constant 0 : index
    %1 = vector.load %arg7[%c0_1, %c0_2] : memref<32x5xf32, #tpu.memory_space<vmem>>, vector<32x5xf32>
    %cst = arith.constant 0.000000e+00 : f32
    %2 = vector.broadcast %cst : f32 to vector<32x8xf32>
    %cst_3 = arith.constant 0.000000e+00 : f32
    %3 = vector.broadcast %cst_3 : f32 to vector<32x8xf32>
    %c0_4 = arith.constant 0 : index
    %c0_5 = arith.constant 0 : index
    %c0_6 = arith.constant 0 : index
    %4 = vector.load %arg1[%c0_4, %c0_5, %c0_6] : memref<1x32x10xbf16, #tpu.memory_space<vmem>>, vector<1x32x8xbf16>
    %5 = vector.shape_cast %4 : vector<1x32x8xbf16> to vector<32x8xbf16>
    %6 = arith.extf %5 : vector<32x8xbf16> to vector<32x8xf32>
    %7 = vector.extract_strided_slice %0 {offsets = [0, 0], sizes = [32, 1], strides = [1, 1]} : vector<32x5xf32> to vector<32x1xf32>
    %8 = vector.broadcast %7 : vector<32x1xf32> to vector<32x8xf32>
    %9 = arith.mulf %8, %6 : vector<32x8xf32>
    %10 = arith.addf %2, %9 : vector<32x8xf32>
    %11 = vector.extract_strided_slice %1 {offsets = [0, 0], sizes = [32, 1], strides = [1, 1]} : vector<32x5xf32> to vector<32x1xf32>
    %12 = vector.broadcast %11 : vector<32x1xf32> to vector<32x8xf32>
    %13 = arith.mulf %12, %6 : vector<32x8xf32>
    %14 = arith.addf %3, %13 : vector<32x8xf32>
    %c0_7 = arith.constant 0 : index
    %c0_8 = arith.constant 0 : index
    %c0_9 = arith.constant 0 : index
    %15 = vector.load %arg2[%c0_7, %c0_8, %c0_9] : memref<1x32x9xbf16, #tpu.memory_space<vmem>>, vector<1x32x8xbf16>
    %16 = vector.shape_cast %15 : vector<1x32x8xbf16> to vector<32x8xbf16>
    %17 = arith.extf %16 : vector<32x8xbf16> to vector<32x8xf32>
    %18 = vector.extract_strided_slice %0 {offsets = [0, 1], sizes = [32, 1], strides = [1, 1]} : vector<32x5xf32> to vector<32x1xf32>
    %19 = vector.broadcast %18 : vector<32x1xf32> to vector<32x8xf32>
    %20 = arith.mulf %19, %17 : vector<32x8xf32>
    %21 = arith.addf %10, %20 : vector<32x8xf32>
    %22 = vector.extract_strided_slice %1 {offsets = [0, 1], sizes = [32, 1], strides = [1, 1]} : vector<32x5xf32> to vector<32x1xf32>
    %23 = vector.broadcast %22 : vector<32x1xf32> to vector<32x8xf32>
    %24 = arith.mulf %23, %17 : vector<32x8xf32>
    %25 = arith.addf %14, %24 : vector<32x8xf32>
    %c0_10 = arith.constant 0 : index
    %c0_11 = arith.constant 0 : index
    %c1 = arith.constant 1 : index
    %26 = vector.load %arg1[%c0_10, %c0_11, %c1] : memref<1x32x10xbf16, #tpu.memory_space<vmem>>, vector<1x32x8xbf16>
    %27 = vector.shape_cast %26 : vector<1x32x8xbf16> to vector<32x8xbf16>
    %28 = arith.extf %27 : vector<32x8xbf16> to vector<32x8xf32>
    %29 = vector.extract_strided_slice %0 {offsets = [0, 2], sizes = [32, 1], strides = [1, 1]} : vector<32x5xf32> to vector<32x1xf32>
    %30 = vector.broadcast %29 : vector<32x1xf32> to vector<32x8xf32>
    %31 = arith.mulf %30, %28 : vector<32x8xf32>
    %32 = arith.addf %21, %31 : vector<32x8xf32>
    %33 = vector.extract_strided_slice %1 {offsets = [0, 2], sizes = [32, 1], strides = [1, 1]} : vector<32x5xf32> to vector<32x1xf32>
    %34 = vector.broadcast %33 : vector<32x1xf32> to vector<32x8xf32>
    %35 = arith.mulf %34, %28 : vector<32x8xf32>
    %36 = arith.addf %25, %35 : vector<32x8xf32>
    %c0_12 = arith.constant 0 : index
    %c0_13 = arith.constant 0 : index
    %c1_14 = arith.constant 1 : index
    %37 = vector.load %arg2[%c0_12, %c0_13, %c1_14] : memref<1x32x9xbf16, #tpu.memory_space<vmem>>, vector<1x32x8xbf16>
    %38 = vector.shape_cast %37 : vector<1x32x8xbf16> to vector<32x8xbf16>
    %39 = arith.extf %38 : vector<32x8xbf16> to vector<32x8xf32>
    %40 = vector.extract_strided_slice %0 {offsets = [0, 3], sizes = [32, 1], strides = [1, 1]} : vector<32x5xf32> to vector<32x1xf32>
    %41 = vector.broadcast %40 : vector<32x1xf32> to vector<32x8xf32>
    %42 = arith.mulf %41, %39 : vector<32x8xf32>
    %43 = arith.addf %32, %42 : vector<32x8xf32>
    %44 = vector.extract_strided_slice %1 {offsets = [0, 3], sizes = [32, 1], strides = [1, 1]} : vector<32x5xf32> to vector<32x1xf32>
    %45 = vector.broadcast %44 : vector<32x1xf32> to vector<32x8xf32>
    %46 = arith.mulf %45, %39 : vector<32x8xf32>
    %47 = arith.addf %36, %46 : vector<32x8xf32>
    %c0_15 = arith.constant 0 : index
    %c0_16 = arith.constant 0 : index
    %c2 = arith.constant 2 : index
    %48 = vector.load %arg1[%c0_15, %c0_16, %c2] : memref<1x32x10xbf16, #tpu.memory_space<vmem>>, vector<1x32x8xbf16>
    %49 = vector.shape_cast %48 : vector<1x32x8xbf16> to vector<32x8xbf16>
    %50 = arith.extf %49 : vector<32x8xbf16> to vector<32x8xf32>
    %51 = vector.extract_strided_slice %0 {offsets = [0, 4], sizes = [32, 1], strides = [1, 1]} : vector<32x5xf32> to vector<32x1xf32>
    %52 = vector.broadcast %51 : vector<32x1xf32> to vector<32x8xf32>
    %53 = arith.mulf %52, %50 : vector<32x8xf32>
    %54 = arith.addf %43, %53 : vector<32x8xf32>
    %55 = vector.extract_strided_slice %1 {offsets = [0, 4], sizes = [32, 1], strides = [1, 1]} : vector<32x5xf32> to vector<32x1xf32>
    %56 = vector.broadcast %55 : vector<32x1xf32> to vector<32x8xf32>
    %57 = arith.mulf %56, %50 : vector<32x8xf32>
    %58 = arith.addf %47, %57 : vector<32x8xf32>
    %c0_17 = arith.constant 0 : index
    %c0_18 = arith.constant 0 : index
    %59 = vector.load %arg4[%c0_17, %c0_18] : memref<32x1xf32, #tpu.memory_space<vmem>>, vector<32x1xf32>
    %60 = vector.broadcast %59 : vector<32x1xf32> to vector<32x8xf32>
    %61 = arith.addf %54, %60 : vector<32x8xf32>
    %c0_19 = arith.constant 0 : index
    %c0_20 = arith.constant 0 : index
    %62 = vector.load %arg8[%c0_19, %c0_20] : memref<32x1xf32, #tpu.memory_space<vmem>>, vector<32x1xf32>
    %63 = vector.broadcast %62 : vector<32x1xf32> to vector<32x8xf32>
    %64 = arith.addf %58, %63 : vector<32x8xf32>
    %c0_21 = arith.constant 0 : index
    %c0_22 = arith.constant 0 : index
    %65 = vector.load %arg5[%c0_21, %c0_22] : memref<32x1xf32, #tpu.memory_space<vmem>>, vector<32x1xf32>
    %c0_23 = arith.constant 0 : index
    %c0_24 = arith.constant 0 : index
    %66 = vector.load %arg6[%c0_23, %c0_24] : memref<32x1xf32, #tpu.memory_space<vmem>>, vector<32x1xf32>
    %67 = vector.shape_cast %61 : vector<32x8xf32> to vector<1x32x8xf32>
    %cst_25 = arith.constant dense<0.000000e+00> : vector<1xf32>
    %68 = vector.multi_reduction <add>, %67, %cst_25 [1, 2] : vector<1x32x8xf32> to vector<1xf32>
    %69 = vector.shape_cast %68 : vector<1xf32> to vector<1x1x1xf32>
    %70 = vector.extract %69[0, 0, 0] : f32 from vector<1x1x1xf32>
    %71 = arith.mulf %61, %61 : vector<32x8xf32>
    %72 = vector.shape_cast %71 : vector<32x8xf32> to vector<1x32x8xf32>
    %cst_26 = arith.constant dense<0.000000e+00> : vector<1xf32>
    %73 = vector.multi_reduction <add>, %72, %cst_26 [1, 2] : vector<1x32x8xf32> to vector<1xf32>
    %74 = vector.shape_cast %73 : vector<1xf32> to vector<1x1x1xf32>
    %75 = vector.extract %74[0, 0, 0] : f32 from vector<1x1x1xf32>
    %cst_27 = arith.constant 2.560000e+02 : f32
    %76 = arith.divf %70, %cst_27 : f32
    %cst_28 = arith.constant 2.560000e+02 : f32
    %77 = arith.divf %75, %cst_28 : f32
    %78 = arith.mulf %76, %76 : f32
    %79 = arith.subf %77, %78 : f32
    %cst_29 = arith.constant 0.000000e+00 : f32
    %80 = arith.maximumf %79, %cst_29 : f32
    %81 = vector.broadcast %76 : f32 to vector<32x8xf32>
    %82 = arith.subf %61, %81 : vector<32x8xf32>
    %cst_30 = arith.constant 9.99999993E-9 : f32
    %83 = arith.addf %80, %cst_30 : f32
    %84 = math.rsqrt %83 : f32
    %85 = vector.broadcast %84 : f32 to vector<32x8xf32>
    %86 = arith.mulf %82, %85 : vector<32x8xf32>
    %87 = vector.broadcast %65 : vector<32x1xf32> to vector<32x8xf32>
    %88 = arith.mulf %86, %87 : vector<32x8xf32>
    %89 = vector.broadcast %66 : vector<32x1xf32> to vector<32x8xf32>
    %90 = arith.addf %88, %89 : vector<32x8xf32>
    %91 = arith.truncf %90 : vector<32x8xf32> to vector<32x8xbf16>
    %c0_31 = arith.constant 0 : index
    %c0_32 = arith.constant 0 : index
    %c0_33 = arith.constant 0 : index
    %92 = vector.load %arg11[%c0_31, %c0_32, %c0_33] : memref<1x32x8xbf16, #tpu.memory_space<vmem>>, vector<1x32x8xbf16>
    %93 = vector.shape_cast %92 : vector<1x32x8xbf16> to vector<32x8xbf16>
    %94 = vector.shape_cast %91 : vector<32x8xbf16> to vector<1x32x8xbf16>
    tpu.vector_store %arg11[%c0_31, %c0_32, %c0_33], %94 {strides = array<i32>} : memref<1x32x8xbf16, #tpu.memory_space<vmem>>, vector<1x32x8xbf16>,
    %c0_34 = arith.constant 0 : index
    %c0_35 = arith.constant 0 : index
    %95 = vector.load %arg9[%c0_34, %c0_35] : memref<32x1xf32, #tpu.memory_space<vmem>>, vector<32x1xf32>
    %c0_36 = arith.constant 0 : index
    %c0_37 = arith.constant 0 : index
    %96 = vector.load %arg10[%c0_36, %c0_37] : memref<32x1xf32, #tpu.memory_space<vmem>>, vector<32x1xf32>
    %97 = vector.shape_cast %64 : vector<32x8xf32> to vector<1x32x8xf32>
    %cst_38 = arith.constant dense<0.000000e+00> : vector<1xf32>
    %98 = vector.multi_reduction <add>, %97, %cst_38 [1, 2] : vector<1x32x8xf32> to vector<1xf32>
    %99 = vector.shape_cast %98 : vector<1xf32> to vector<1x1x1xf32>
    %100 = vector.extract %99[0, 0, 0] : f32 from vector<1x1x1xf32>
    %101 = arith.mulf %64, %64 : vector<32x8xf32>
    %102 = vector.shape_cast %101 : vector<32x8xf32> to vector<1x32x8xf32>
    %cst_39 = arith.constant dense<0.000000e+00> : vector<1xf32>
    %103 = vector.multi_reduction <add>, %102, %cst_39 [1, 2] : vector<1x32x8xf32> to vector<1xf32>
    %104 = vector.shape_cast %103 : vector<1xf32> to vector<1x1x1xf32>
    %105 = vector.extract %104[0, 0, 0] : f32 from vector<1x1x1xf32>
    %cst_40 = arith.constant 2.560000e+02 : f32
    %106 = arith.divf %100, %cst_40 : f32
    %cst_41 = arith.constant 2.560000e+02 : f32
    %107 = arith.divf %105, %cst_41 : f32
    %108 = arith.mulf %106, %106 : f32
    %109 = arith.subf %107, %108 : f32
    %cst_42 = arith.constant 0.000000e+00 : f32
    %110 = arith.maximumf %109, %cst_42 : f32
    %111 = vector.broadcast %106 : f32 to vector<32x8xf32>
    %112 = arith.subf %64, %111 : vector<32x8xf32>
    %cst_43 = arith.constant 9.99999993E-9 : f32
    %113 = arith.addf %110, %cst_43 : f32
    %114 = math.rsqrt %113 : f32
    %115 = vector.broadcast %114 : f32 to vector<32x8xf32>
    %116 = arith.mulf %112, %115 : vector<32x8xf32>
    %117 = vector.broadcast %95 : vector<32x1xf32> to vector<32x8xf32>
    %118 = arith.mulf %116, %117 : vector<32x8xf32>
    %119 = vector.broadcast %96 : vector<32x1xf32> to vector<32x8xf32>
    %120 = arith.addf %118, %119 : vector<32x8xf32>
    %121 = arith.truncf %120 : vector<32x8xf32> to vector<32x8xbf16>
    %c0_44 = arith.constant 0 : index
    %c0_45 = arith.constant 0 : index
    %c0_46 = arith.constant 0 : index
    %122 = vector.load %arg12[%c0_44, %c0_45, %c0_46] : memref<1x32x8xbf16, #tpu.memory_space<vmem>>, vector<1x32x8xbf16>
    %123 = vector.shape_cast %122 : vector<1x32x8xbf16> to vector<32x8xbf16>
    %124 = vector.shape_cast %121 : vector<32x8xbf16> to vector<1x32x8xbf16>
    tpu.vector_store %arg12[%c0_44, %c0_45, %c0_46], %124 {strides = array<i32>} : memref<1x32x8xbf16, #tpu.memory_space<vmem>>, vector<1x32x8xbf16>,
    return
  }
  func.func @transform_0(%arg0: i32) -> (i32, i32, i32) {
    %c0_i32 = arith.constant 0 : i32
    %c0_i32_0 = arith.constant 0 : i32
    %c0_i32_1 = arith.constant 0 : i32
    return %arg0, %c0_i32, %c0_i32_0 : i32, i32, i32
  }
  func.func @transform_1(%arg0: i32) -> (i32, i32, i32) {
    %c0_i32 = arith.constant 0 : i32
    %c0_i32_0 = arith.constant 0 : i32
    %c0_i32_1 = arith.constant 0 : i32
    return %arg0, %c0_i32, %c0_i32_0 : i32, i32, i32
  }
  func.func @transform_2(%arg0: i32) -> (i32, i32) {
    %c0_i32 = arith.constant 0 : i32
    %c0_i32_0 = arith.constant 0 : i32
    %c0_i32_1 = arith.constant 0 : i32
    return %c0_i32, %c0_i32_0 : i32, i32
  }
  func.func @transform_3(%arg0: i32) -> (i32, i32) {
    %c0_i32 = arith.constant 0 : i32
    %c0_i32_0 = arith.constant 0 : i32
    %c0_i32_1 = arith.constant 0 : i32
    return %c0_i32, %c0_i32_0 : i32, i32
  }
  func.func @transform_4(%arg0: i32) -> (i32, i32) {
    %c0_i32 = arith.constant 0 : i32
    %c0_i32_0 = arith.constant 0 : i32
    %c0_i32_1 = arith.constant 0 : i32
    return %c0_i32, %c0_i32_0 : i32, i32
  }
  func.func @transform_5(%arg0: i32) -> (i32, i32) {
    %c0_i32 = arith.constant 0 : i32
    %c0_i32_0 = arith.constant 0 : i32
    %c0_i32_1 = arith.constant 0 : i32
    return %c0_i32, %c0_i32_0 : i32, i32
  }
  func.func @transform_6(%arg0: i32) -> (i32, i32) {
    %c0_i32 = arith.constant 0 : i32
    %c0_i32_0 = arith.constant 0 : i32
    %c0_i32_1 = arith.constant 0 : i32
    return %c0_i32, %c0_i32_0 : i32, i32
  }
  func.func @transform_7(%arg0: i32) -> (i32, i32) {
    %c0_i32 = arith.constant 0 : i32
    %c0_i32_0 = arith.constant 0 : i32
    %c0_i32_1 = arith.constant 0 : i32
    return %c0_i32, %c0_i32_0 : i32, i32
  }
  func.func @transform_8(%arg0: i32) -> (i32, i32) {
    %c0_i32 = arith.constant 0 : i32
    %c0_i32_0 = arith.constant 0 : i32
    %c0_i32_1 = arith.constant 0 : i32
    return %c0_i32, %c0_i32_0 : i32, i32
  }
  func.func @transform_9(%arg0: i32) -> (i32, i32) {
    %c0_i32 = arith.constant 0 : i32
    %c0_i32_0 = arith.constant 0 : i32
    %c0_i32_1 = arith.constant 0 : i32
    return %c0_i32, %c0_i32_0 : i32, i32
  }
  func.func @transform_10(%arg0: i32) -> (i32, i32, i32) {
    %c0_i32 = arith.constant 0 : i32
    %c0_i32_0 = arith.constant 0 : i32
    %c0_i32_1 = arith.constant 0 : i32
    return %arg0, %c0_i32, %c0_i32_0 : i32, i32, i32
  }
  func.func @transform_11(%arg0: i32) -> (i32, i32, i32) {
    %c0_i32 = arith.constant 0 : i32
    %c0_i32_0 = arith.constant 0 : i32
    %c0_i32_1 = arith.constant 0 : i32
    return %arg0, %c0_i32, %c0_i32_0 : i32, i32, i32
  }
}

module attributes {stable_mosaic.version = 11 : i64} {
  func.func @kernel(%arg0: i32, %arg1: memref<1x32x6xbf16, #tpu.memory_space<vmem>>, %arg2: memref<1x32x5xbf16, #tpu.memory_space<vmem>>, %arg3: memref<32x5xf32, #tpu.memory_space<vmem>>, %arg4: memref<32x1xf32, #tpu.memory_space<vmem>>, %arg5: memref<32x1xf32, #tpu.memory_space<vmem>>, %arg6: memref<32x1xf32, #tpu.memory_space<vmem>>, %arg7: memref<32x5xf32, #tpu.memory_space<vmem>>, %arg8: memref<32x1xf32, #tpu.memory_space<vmem>>, %arg9: memref<32x1xf32, #tpu.memory_space<vmem>>, %arg10: memref<32x1xf32, #tpu.memory_space<vmem>>, %arg11: memref<1x32x4xbf16, #tpu.memory_space<vmem>>, %arg12: memref<1x32x4xbf16, #tpu.memory_space<vmem>>) attributes {dimension_semantics = [#tpu.dimension_semantics<parallel>], iteration_bounds = array<i64: 2>, scalar_prefetch = 0 : i64, scratch_operands = 0 : i64, tpu.core_type = #tpu.core_type<tc>, window_params = [{transform_indices = @transform_0, window_bounds = array<i64: 1, 32, 6>}, {transform_indices = @transform_1, window_bounds = array<i64: 1, 32, 5>}, {pipeline_mode = #tpu.pipeline_mode<synchronous>, transform_indices = @transform_2, window_bounds = array<i64: 32, 5>}, {pipeline_mode = #tpu.pipeline_mode<synchronous>, transform_indices = @transform_3, window_bounds = array<i64: 32, 1>}, {pipeline_mode = #tpu.pipeline_mode<synchronous>, transform_indices = @transform_4, window_bounds = array<i64: 32, 1>}, {pipeline_mode = #tpu.pipeline_mode<synchronous>, transform_indices = @transform_5, window_bounds = array<i64: 32, 1>}, {pipeline_mode = #tpu.pipeline_mode<synchronous>, transform_indices = @transform_6, window_bounds = array<i64: 32, 5>}, {pipeline_mode = #tpu.pipeline_mode<synchronous>, transform_indices = @transform_7, window_bounds = array<i64: 32, 1>}, {pipeline_mode = #tpu.pipeline_mode<synchronous>, transform_indices = @transform_8, window_bounds = array<i64: 32, 1>}, {pipeline_mode = #tpu.pipeline_mode<synchronous>, transform_indices = @transform_9, window_bounds = array<i64: 32, 1>}, {transform_indices = @transform_10, window_bounds = array<i64: 1, 32, 4>}, {transform_indices = @transform_11, window_bounds = array<i64: 1, 32, 4>}]} {
    %c0 = arith.constant 0 : index
    %c0_0 = arith.constant 0 : index
    %0 = vector.load %arg3[%c0, %c0_0] : memref<32x5xf32, #tpu.memory_space<vmem>>, vector<32x5xf32>
    %c0_1 = arith.constant 0 : index
    %c0_2 = arith.constant 0 : index
    %1 = vector.load %arg7[%c0_1, %c0_2] : memref<32x5xf32, #tpu.memory_space<vmem>>, vector<32x5xf32>
    %cst = arith.constant 0.000000e+00 : f32
    %2 = vector.broadcast %cst : f32 to vector<32x4xf32>
    %cst_3 = arith.constant 0.000000e+00 : f32
    %3 = vector.broadcast %cst_3 : f32 to vector<32x4xf32>
    %c0_4 = arith.constant 0 : index
    %c0_5 = arith.constant 0 : index
    %c0_6 = arith.constant 0 : index
    %4 = vector.load %arg1[%c0_4, %c0_5, %c0_6] : memref<1x32x6xbf16, #tpu.memory_space<vmem>>, vector<1x32x4xbf16>
    %5 = vector.shape_cast %4 : vector<1x32x4xbf16> to vector<32x4xbf16>
    %6 = arith.extf %5 : vector<32x4xbf16> to vector<32x4xf32>
    %7 = vector.extract_strided_slice %0 {offsets = [0, 0], sizes = [32, 1], strides = [1, 1]} : vector<32x5xf32> to vector<32x1xf32>
    %8 = vector.broadcast %7 : vector<32x1xf32> to vector<32x4xf32>
    %9 = arith.mulf %8, %6 : vector<32x4xf32>
    %10 = arith.addf %2, %9 : vector<32x4xf32>
    %11 = vector.extract_strided_slice %1 {offsets = [0, 0], sizes = [32, 1], strides = [1, 1]} : vector<32x5xf32> to vector<32x1xf32>
    %12 = vector.broadcast %11 : vector<32x1xf32> to vector<32x4xf32>
    %13 = arith.mulf %12, %6 : vector<32x4xf32>
    %14 = arith.addf %3, %13 : vector<32x4xf32>
    %c0_7 = arith.constant 0 : index
    %c0_8 = arith.constant 0 : index
    %c0_9 = arith.constant 0 : index
    %15 = vector.load %arg2[%c0_7, %c0_8, %c0_9] : memref<1x32x5xbf16, #tpu.memory_space<vmem>>, vector<1x32x4xbf16>
    %16 = vector.shape_cast %15 : vector<1x32x4xbf16> to vector<32x4xbf16>
    %17 = arith.extf %16 : vector<32x4xbf16> to vector<32x4xf32>
    %18 = vector.extract_strided_slice %0 {offsets = [0, 1], sizes = [32, 1], strides = [1, 1]} : vector<32x5xf32> to vector<32x1xf32>
    %19 = vector.broadcast %18 : vector<32x1xf32> to vector<32x4xf32>
    %20 = arith.mulf %19, %17 : vector<32x4xf32>
    %21 = arith.addf %10, %20 : vector<32x4xf32>
    %22 = vector.extract_strided_slice %1 {offsets = [0, 1], sizes = [32, 1], strides = [1, 1]} : vector<32x5xf32> to vector<32x1xf32>
    %23 = vector.broadcast %22 : vector<32x1xf32> to vector<32x4xf32>
    %24 = arith.mulf %23, %17 : vector<32x4xf32>
    %25 = arith.addf %14, %24 : vector<32x4xf32>
    %c0_10 = arith.constant 0 : index
    %c0_11 = arith.constant 0 : index
    %c1 = arith.constant 1 : index
    %26 = vector.load %arg1[%c0_10, %c0_11, %c1] : memref<1x32x6xbf16, #tpu.memory_space<vmem>>, vector<1x32x4xbf16>
    %27 = vector.shape_cast %26 : vector<1x32x4xbf16> to vector<32x4xbf16>
    %28 = arith.extf %27 : vector<32x4xbf16> to vector<32x4xf32>
    %29 = vector.extract_strided_slice %0 {offsets = [0, 2], sizes = [32, 1], strides = [1, 1]} : vector<32x5xf32> to vector<32x1xf32>
    %30 = vector.broadcast %29 : vector<32x1xf32> to vector<32x4xf32>
    %31 = arith.mulf %30, %28 : vector<32x4xf32>
    %32 = arith.addf %21, %31 : vector<32x4xf32>
    %33 = vector.extract_strided_slice %1 {offsets = [0, 2], sizes = [32, 1], strides = [1, 1]} : vector<32x5xf32> to vector<32x1xf32>
    %34 = vector.broadcast %33 : vector<32x1xf32> to vector<32x4xf32>
    %35 = arith.mulf %34, %28 : vector<32x4xf32>
    %36 = arith.addf %25, %35 : vector<32x4xf32>
    %c0_12 = arith.constant 0 : index
    %c0_13 = arith.constant 0 : index
    %c1_14 = arith.constant 1 : index
    %37 = vector.load %arg2[%c0_12, %c0_13, %c1_14] : memref<1x32x5xbf16, #tpu.memory_space<vmem>>, vector<1x32x4xbf16>
    %38 = vector.shape_cast %37 : vector<1x32x4xbf16> to vector<32x4xbf16>
    %39 = arith.extf %38 : vector<32x4xbf16> to vector<32x4xf32>
    %40 = vector.extract_strided_slice %0 {offsets = [0, 3], sizes = [32, 1], strides = [1, 1]} : vector<32x5xf32> to vector<32x1xf32>
    %41 = vector.broadcast %40 : vector<32x1xf32> to vector<32x4xf32>
    %42 = arith.mulf %41, %39 : vector<32x4xf32>
    %43 = arith.addf %32, %42 : vector<32x4xf32>
    %44 = vector.extract_strided_slice %1 {offsets = [0, 3], sizes = [32, 1], strides = [1, 1]} : vector<32x5xf32> to vector<32x1xf32>
    %45 = vector.broadcast %44 : vector<32x1xf32> to vector<32x4xf32>
    %46 = arith.mulf %45, %39 : vector<32x4xf32>
    %47 = arith.addf %36, %46 : vector<32x4xf32>
    %c0_15 = arith.constant 0 : index
    %c0_16 = arith.constant 0 : index
    %c2 = arith.constant 2 : index
    %48 = vector.load %arg1[%c0_15, %c0_16, %c2] : memref<1x32x6xbf16, #tpu.memory_space<vmem>>, vector<1x32x4xbf16>
    %49 = vector.shape_cast %48 : vector<1x32x4xbf16> to vector<32x4xbf16>
    %50 = arith.extf %49 : vector<32x4xbf16> to vector<32x4xf32>
    %51 = vector.extract_strided_slice %0 {offsets = [0, 4], sizes = [32, 1], strides = [1, 1]} : vector<32x5xf32> to vector<32x1xf32>
    %52 = vector.broadcast %51 : vector<32x1xf32> to vector<32x4xf32>
    %53 = arith.mulf %52, %50 : vector<32x4xf32>
    %54 = arith.addf %43, %53 : vector<32x4xf32>
    %55 = vector.extract_strided_slice %1 {offsets = [0, 4], sizes = [32, 1], strides = [1, 1]} : vector<32x5xf32> to vector<32x1xf32>
    %56 = vector.broadcast %55 : vector<32x1xf32> to vector<32x4xf32>
    %57 = arith.mulf %56, %50 : vector<32x4xf32>
    %58 = arith.addf %47, %57 : vector<32x4xf32>
    %c0_17 = arith.constant 0 : index
    %c0_18 = arith.constant 0 : index
    %59 = vector.load %arg4[%c0_17, %c0_18] : memref<32x1xf32, #tpu.memory_space<vmem>>, vector<32x1xf32>
    %60 = vector.broadcast %59 : vector<32x1xf32> to vector<32x4xf32>
    %61 = arith.addf %54, %60 : vector<32x4xf32>
    %c0_19 = arith.constant 0 : index
    %c0_20 = arith.constant 0 : index
    %62 = vector.load %arg8[%c0_19, %c0_20] : memref<32x1xf32, #tpu.memory_space<vmem>>, vector<32x1xf32>
    %63 = vector.broadcast %62 : vector<32x1xf32> to vector<32x4xf32>
    %64 = arith.addf %58, %63 : vector<32x4xf32>
    %c0_21 = arith.constant 0 : index
    %c0_22 = arith.constant 0 : index
    %65 = vector.load %arg5[%c0_21, %c0_22] : memref<32x1xf32, #tpu.memory_space<vmem>>, vector<32x1xf32>
    %c0_23 = arith.constant 0 : index
    %c0_24 = arith.constant 0 : index
    %66 = vector.load %arg6[%c0_23, %c0_24] : memref<32x1xf32, #tpu.memory_space<vmem>>, vector<32x1xf32>
    %67 = vector.shape_cast %61 : vector<32x4xf32> to vector<1x32x4xf32>
    %cst_25 = arith.constant dense<0.000000e+00> : vector<1xf32>
    %68 = vector.multi_reduction <add>, %67, %cst_25 [1, 2] : vector<1x32x4xf32> to vector<1xf32>
    %69 = vector.shape_cast %68 : vector<1xf32> to vector<1x1x1xf32>
    %70 = vector.extract %69[0, 0, 0] : f32 from vector<1x1x1xf32>
    %71 = arith.mulf %61, %61 : vector<32x4xf32>
    %72 = vector.shape_cast %71 : vector<32x4xf32> to vector<1x32x4xf32>
    %cst_26 = arith.constant dense<0.000000e+00> : vector<1xf32>
    %73 = vector.multi_reduction <add>, %72, %cst_26 [1, 2] : vector<1x32x4xf32> to vector<1xf32>
    %74 = vector.shape_cast %73 : vector<1xf32> to vector<1x1x1xf32>
    %75 = vector.extract %74[0, 0, 0] : f32 from vector<1x1x1xf32>
    %cst_27 = arith.constant 1.280000e+02 : f32
    %76 = arith.divf %70, %cst_27 : f32
    %cst_28 = arith.constant 1.280000e+02 : f32
    %77 = arith.divf %75, %cst_28 : f32
    %78 = arith.mulf %76, %76 : f32
    %79 = arith.subf %77, %78 : f32
    %cst_29 = arith.constant 0.000000e+00 : f32
    %80 = arith.maximumf %79, %cst_29 : f32
    %81 = vector.broadcast %76 : f32 to vector<32x4xf32>
    %82 = arith.subf %61, %81 : vector<32x4xf32>
    %cst_30 = arith.constant 9.99999993E-9 : f32
    %83 = arith.addf %80, %cst_30 : f32
    %84 = math.rsqrt %83 : f32
    %85 = vector.broadcast %84 : f32 to vector<32x4xf32>
    %86 = arith.mulf %82, %85 : vector<32x4xf32>
    %87 = vector.broadcast %65 : vector<32x1xf32> to vector<32x4xf32>
    %88 = arith.mulf %86, %87 : vector<32x4xf32>
    %89 = vector.broadcast %66 : vector<32x1xf32> to vector<32x4xf32>
    %90 = arith.addf %88, %89 : vector<32x4xf32>
    %91 = arith.truncf %90 : vector<32x4xf32> to vector<32x4xbf16>
    %c0_31 = arith.constant 0 : index
    %c0_32 = arith.constant 0 : index
    %c0_33 = arith.constant 0 : index
    %92 = vector.load %arg11[%c0_31, %c0_32, %c0_33] : memref<1x32x4xbf16, #tpu.memory_space<vmem>>, vector<1x32x4xbf16>
    %93 = vector.shape_cast %92 : vector<1x32x4xbf16> to vector<32x4xbf16>
    %94 = vector.shape_cast %91 : vector<32x4xbf16> to vector<1x32x4xbf16>
    tpu.vector_store %arg11[%c0_31, %c0_32, %c0_33], %94 {strides = array<i32>} : memref<1x32x4xbf16, #tpu.memory_space<vmem>>, vector<1x32x4xbf16>,
    %c0_34 = arith.constant 0 : index
    %c0_35 = arith.constant 0 : index
    %95 = vector.load %arg9[%c0_34, %c0_35] : memref<32x1xf32, #tpu.memory_space<vmem>>, vector<32x1xf32>
    %c0_36 = arith.constant 0 : index
    %c0_37 = arith.constant 0 : index
    %96 = vector.load %arg10[%c0_36, %c0_37] : memref<32x1xf32, #tpu.memory_space<vmem>>, vector<32x1xf32>
    %97 = vector.shape_cast %64 : vector<32x4xf32> to vector<1x32x4xf32>
    %cst_38 = arith.constant dense<0.000000e+00> : vector<1xf32>
    %98 = vector.multi_reduction <add>, %97, %cst_38 [1, 2] : vector<1x32x4xf32> to vector<1xf32>
    %99 = vector.shape_cast %98 : vector<1xf32> to vector<1x1x1xf32>
    %100 = vector.extract %99[0, 0, 0] : f32 from vector<1x1x1xf32>
    %101 = arith.mulf %64, %64 : vector<32x4xf32>
    %102 = vector.shape_cast %101 : vector<32x4xf32> to vector<1x32x4xf32>
    %cst_39 = arith.constant dense<0.000000e+00> : vector<1xf32>
    %103 = vector.multi_reduction <add>, %102, %cst_39 [1, 2] : vector<1x32x4xf32> to vector<1xf32>
    %104 = vector.shape_cast %103 : vector<1xf32> to vector<1x1x1xf32>
    %105 = vector.extract %104[0, 0, 0] : f32 from vector<1x1x1xf32>
    %cst_40 = arith.constant 1.280000e+02 : f32
    %106 = arith.divf %100, %cst_40 : f32
    %cst_41 = arith.constant 1.280000e+02 : f32
    %107 = arith.divf %105, %cst_41 : f32
    %108 = arith.mulf %106, %106 : f32
    %109 = arith.subf %107, %108 : f32
    %cst_42 = arith.constant 0.000000e+00 : f32
    %110 = arith.maximumf %109, %cst_42 : f32
    %111 = vector.broadcast %106 : f32 to vector<32x4xf32>
    %112 = arith.subf %64, %111 : vector<32x4xf32>
    %cst_43 = arith.constant 9.99999993E-9 : f32
    %113 = arith.addf %110, %cst_43 : f32
    %114 = math.rsqrt %113 : f32
    %115 = vector.broadcast %114 : f32 to vector<32x4xf32>
    %116 = arith.mulf %112, %115 : vector<32x4xf32>
    %117 = vector.broadcast %95 : vector<32x1xf32> to vector<32x4xf32>
    %118 = arith.mulf %116, %117 : vector<32x4xf32>
    %119 = vector.broadcast %96 : vector<32x1xf32> to vector<32x4xf32>
    %120 = arith.addf %118, %119 : vector<32x4xf32>
    %121 = arith.truncf %120 : vector<32x4xf32> to vector<32x4xbf16>
    %c0_44 = arith.constant 0 : index
    %c0_45 = arith.constant 0 : index
    %c0_46 = arith.constant 0 : index
    %122 = vector.load %arg12[%c0_44, %c0_45, %c0_46] : memref<1x32x4xbf16, #tpu.memory_space<vmem>>, vector<1x32x4xbf16>
    %123 = vector.shape_cast %122 : vector<1x32x4xbf16> to vector<32x4xbf16>
    %124 = vector.shape_cast %121 : vector<32x4xbf16> to vector<1x32x4xbf16>
    tpu.vector_store %arg12[%c0_44, %c0_45, %c0_46], %124 {strides = array<i32>} : memref<1x32x4xbf16, #tpu.memory_space<vmem>>, vector<1x32x4xbf16>,
    return
  }
  func.func @transform_0(%arg0: i32) -> (i32, i32, i32) {
    %c0_i32 = arith.constant 0 : i32
    %c0_i32_0 = arith.constant 0 : i32
    %c0_i32_1 = arith.constant 0 : i32
    return %arg0, %c0_i32, %c0_i32_0 : i32, i32, i32
  }
  func.func @transform_1(%arg0: i32) -> (i32, i32, i32) {
    %c0_i32 = arith.constant 0 : i32
    %c0_i32_0 = arith.constant 0 : i32
    %c0_i32_1 = arith.constant 0 : i32
    return %arg0, %c0_i32, %c0_i32_0 : i32, i32, i32
  }
  func.func @transform_2(%arg0: i32) -> (i32, i32) {
    %c0_i32 = arith.constant 0 : i32
    %c0_i32_0 = arith.constant 0 : i32
    %c0_i32_1 = arith.constant 0 : i32
    return %c0_i32, %c0_i32_0 : i32, i32
  }
  func.func @transform_3(%arg0: i32) -> (i32, i32) {
    %c0_i32 = arith.constant 0 : i32
    %c0_i32_0 = arith.constant 0 : i32
    %c0_i32_1 = arith.constant 0 : i32
    return %c0_i32, %c0_i32_0 : i32, i32
  }
  func.func @transform_4(%arg0: i32) -> (i32, i32) {
    %c0_i32 = arith.constant 0 : i32
    %c0_i32_0 = arith.constant 0 : i32
    %c0_i32_1 = arith.constant 0 : i32
    return %c0_i32, %c0_i32_0 : i32, i32
  }
  func.func @transform_5(%arg0: i32) -> (i32, i32) {
    %c0_i32 = arith.constant 0 : i32
    %c0_i32_0 = arith.constant 0 : i32
    %c0_i32_1 = arith.constant 0 : i32
    return %c0_i32, %c0_i32_0 : i32, i32
  }
  func.func @transform_6(%arg0: i32) -> (i32, i32) {
    %c0_i32 = arith.constant 0 : i32
    %c0_i32_0 = arith.constant 0 : i32
    %c0_i32_1 = arith.constant 0 : i32
    return %c0_i32, %c0_i32_0 : i32, i32
  }
  func.func @transform_7(%arg0: i32) -> (i32, i32) {
    %c0_i32 = arith.constant 0 : i32
    %c0_i32_0 = arith.constant 0 : i32
    %c0_i32_1 = arith.constant 0 : i32
    return %c0_i32, %c0_i32_0 : i32, i32
  }
  func.func @transform_8(%arg0: i32) -> (i32, i32) {
    %c0_i32 = arith.constant 0 : i32
    %c0_i32_0 = arith.constant 0 : i32
    %c0_i32_1 = arith.constant 0 : i32
    return %c0_i32, %c0_i32_0 : i32, i32
  }
  func.func @transform_9(%arg0: i32) -> (i32, i32) {
    %c0_i32 = arith.constant 0 : i32
    %c0_i32_0 = arith.constant 0 : i32
    %c0_i32_1 = arith.constant 0 : i32
    return %c0_i32, %c0_i32_0 : i32, i32
  }
  func.func @transform_10(%arg0: i32) -> (i32, i32, i32) {
    %c0_i32 = arith.constant 0 : i32
    %c0_i32_0 = arith.constant 0 : i32
    %c0_i32_1 = arith.constant 0 : i32
    return %arg0, %c0_i32, %c0_i32_0 : i32, i32, i32
  }
  func.func @transform_11(%arg0: i32) -> (i32, i32, i32) {
    %c0_i32 = arith.constant 0 : i32
    %c0_i32_0 = arith.constant 0 : i32
    %c0_i32_1 = arith.constant 0 : i32
    return %arg0, %c0_i32, %c0_i32_0 : i32, i32, i32
  }
}

module attributes {stable_mosaic.version = 11 : i64} {
  func.func @kernel(%arg0: i32, %arg1: memref<1x32x4xbf16, #tpu.memory_space<vmem>>, %arg2: memref<1x32x4xbf16, #tpu.memory_space<vmem>>, %arg3: memref<32x1xf32, #tpu.memory_space<vmem>>, %arg4: memref<32x1xf32, #tpu.memory_space<vmem>>, %arg5: memref<1xf32, #tpu.memory_space<smem>>, %arg6: memref<1x32x4xbf16, #tpu.memory_space<vmem>>) attributes {dimension_semantics = [#tpu.dimension_semantics<parallel>], iteration_bounds = array<i64: 2>, scalar_prefetch = 0 : i64, scratch_operands = 0 : i64, tpu.core_type = #tpu.core_type<tc>, window_params = [{transform_indices = @transform_0, window_bounds = array<i64: 1, 32, 4>}, {transform_indices = @transform_1, window_bounds = array<i64: 1, 32, 4>}, {pipeline_mode = #tpu.pipeline_mode<synchronous>, transform_indices = @transform_2, window_bounds = array<i64: 32, 1>}, {pipeline_mode = #tpu.pipeline_mode<synchronous>, transform_indices = @transform_3, window_bounds = array<i64: 32, 1>}, {transform_indices = @transform_4, window_bounds = array<i64: 1>}, {transform_indices = @transform_5, window_bounds = array<i64: 1, 32, 4>}]} {
    %c0 = arith.constant 0 : index
    %c0_0 = arith.constant 0 : index
    %c0_1 = arith.constant 0 : index
    %0 = vector.load %arg1[%c0, %c0_0, %c0_1] : memref<1x32x4xbf16, #tpu.memory_space<vmem>>, vector<1x32x4xbf16>
    %1 = vector.shape_cast %0 : vector<1x32x4xbf16> to vector<32x4xbf16>
    %2 = arith.extf %1 : vector<32x4xbf16> to vector<32x4xf32>
    %c0_2 = arith.constant 0 : index
    %c0_3 = arith.constant 0 : index
    %c0_4 = arith.constant 0 : index
    %3 = vector.load %arg2[%c0_2, %c0_3, %c0_4] : memref<1x32x4xbf16, #tpu.memory_space<vmem>>, vector<1x32x4xbf16>
    %4 = vector.shape_cast %3 : vector<1x32x4xbf16> to vector<32x4xbf16>
    %5 = arith.extf %4 : vector<32x4xbf16> to vector<32x4xf32>
    %6 = arith.addf %2, %5 : vector<32x4xf32>
    %c0_5 = arith.constant 0 : index
    %c0_6 = arith.constant 0 : index
    %7 = vector.load %arg3[%c0_5, %c0_6] : memref<32x1xf32, #tpu.memory_space<vmem>>, vector<32x1xf32>
    %c0_7 = arith.constant 0 : index
    %c0_8 = arith.constant 0 : index
    %8 = vector.load %arg4[%c0_7, %c0_8] : memref<32x1xf32, #tpu.memory_space<vmem>>, vector<32x1xf32>
    %9 = vector.shape_cast %6 : vector<32x4xf32> to vector<1x32x4xf32>
    %cst = arith.constant dense<0.000000e+00> : vector<1xf32>
    %10 = vector.multi_reduction <add>, %9, %cst [1, 2] : vector<1x32x4xf32> to vector<1xf32>
    %11 = vector.shape_cast %10 : vector<1xf32> to vector<1x1x1xf32>
    %12 = vector.extract %11[0, 0, 0] : f32 from vector<1x1x1xf32>
    %13 = arith.mulf %6, %6 : vector<32x4xf32>
    %14 = vector.shape_cast %13 : vector<32x4xf32> to vector<1x32x4xf32>
    %cst_9 = arith.constant dense<0.000000e+00> : vector<1xf32>
    %15 = vector.multi_reduction <add>, %14, %cst_9 [1, 2] : vector<1x32x4xf32> to vector<1xf32>
    %16 = vector.shape_cast %15 : vector<1xf32> to vector<1x1x1xf32>
    %17 = vector.extract %16[0, 0, 0] : f32 from vector<1x1x1xf32>
    %cst_10 = arith.constant 1.280000e+02 : f32
    %18 = arith.divf %12, %cst_10 : f32
    %cst_11 = arith.constant 1.280000e+02 : f32
    %19 = arith.divf %17, %cst_11 : f32
    %20 = arith.mulf %18, %18 : f32
    %21 = arith.subf %19, %20 : f32
    %cst_12 = arith.constant 0.000000e+00 : f32
    %22 = arith.maximumf %21, %cst_12 : f32
    %23 = vector.broadcast %18 : f32 to vector<32x4xf32>
    %24 = arith.subf %6, %23 : vector<32x4xf32>
    %cst_13 = arith.constant 9.99999993E-9 : f32
    %25 = arith.addf %22, %cst_13 : f32
    %26 = math.rsqrt %25 : f32
    %27 = vector.broadcast %26 : f32 to vector<32x4xf32>
    %28 = arith.mulf %24, %27 : vector<32x4xf32>
    %29 = vector.broadcast %7 : vector<32x1xf32> to vector<32x4xf32>
    %30 = arith.mulf %28, %29 : vector<32x4xf32>
    %31 = vector.broadcast %8 : vector<32x1xf32> to vector<32x4xf32>
    %32 = arith.addf %30, %31 : vector<32x4xf32>
    %c0_14 = arith.constant 0 : index
    %33 = memref.load %arg5[%c0_14] : memref<1xf32, #tpu.memory_space<smem>>
    %cst_15 = arith.constant 0.000000e+00 : f32
    %34 = vector.broadcast %cst_15 : f32 to vector<32x4xf32>
    %35 = arith.cmpf oge, %32, %34 : vector<32x4xf32>
    %36 = vector.broadcast %33 : f32 to vector<32x4xf32>
    %37 = arith.mulf %36, %32 : vector<32x4xf32>
    %38 = arith.select %35, %32, %37 : vector<32x4xi1>, vector<32x4xf32>
    %39 = arith.truncf %38 : vector<32x4xf32> to vector<32x4xbf16>
    %c0_16 = arith.constant 0 : index
    %c0_17 = arith.constant 0 : index
    %c0_18 = arith.constant 0 : index
    %40 = vector.load %arg6[%c0_16, %c0_17, %c0_18] : memref<1x32x4xbf16, #tpu.memory_space<vmem>>, vector<1x32x4xbf16>
    %41 = vector.shape_cast %40 : vector<1x32x4xbf16> to vector<32x4xbf16>
    %42 = vector.shape_cast %39 : vector<32x4xbf16> to vector<1x32x4xbf16>
    tpu.vector_store %arg6[%c0_16, %c0_17, %c0_18], %42 {strides = array<i32>} : memref<1x32x4xbf16, #tpu.memory_space<vmem>>, vector<1x32x4xbf16>,
    return
  }
  func.func @transform_0(%arg0: i32) -> (i32, i32, i32) {
    %c0_i32 = arith.constant 0 : i32
    %c0_i32_0 = arith.constant 0 : i32
    %c0_i32_1 = arith.constant 0 : i32
    return %arg0, %c0_i32, %c0_i32_0 : i32, i32, i32
  }
  func.func @transform_1(%arg0: i32) -> (i32, i32, i32) {
    %c0_i32 = arith.constant 0 : i32
    %c0_i32_0 = arith.constant 0 : i32
    %c0_i32_1 = arith.constant 0 : i32
    return %arg0, %c0_i32, %c0_i32_0 : i32, i32, i32
  }
  func.func @transform_2(%arg0: i32) -> (i32, i32) {
    %c0_i32 = arith.constant 0 : i32
    %c0_i32_0 = arith.constant 0 : i32
    %c0_i32_1 = arith.constant 0 : i32
    return %c0_i32, %c0_i32_0 : i32, i32
  }
  func.func @transform_3(%arg0: i32) -> (i32, i32) {
    %c0_i32 = arith.constant 0 : i32
    %c0_i32_0 = arith.constant 0 : i32
    %c0_i32_1 = arith.constant 0 : i32
    return %c0_i32, %c0_i32_0 : i32, i32
  }
  func.func @transform_4(%arg0: i32) -> i32 {
    %c0_i32 = arith.constant 0 : i32
    %c0_i32_0 = arith.constant 0 : i32
    return %c0_i32 : i32
  }
  func.func @transform_5(%arg0: i32) -> (i32, i32, i32) {
    %c0_i32 = arith.constant 0 : i32
    %c0_i32_0 = arith.constant 0 : i32
    %c0_i32_1 = arith.constant 0 : i32
    return %arg0, %c0_i32, %c0_i32_0 : i32, i32, i32
  }
}

module attributes {stable_mosaic.version = 11 : i64} {
  func.func @kernel(%arg0: i32, %arg1: memref<1x32x16xbf16, #tpu.memory_space<vmem>>, %arg2: memref<1x32x16xbf16, #tpu.memory_space<vmem>>, %arg3: memref<1x32x16xbf16, #tpu.memory_space<vmem>>, %arg4: memref<32x1xf32, #tpu.memory_space<vmem>>, %arg5: memref<32x1xf32, #tpu.memory_space<vmem>>, %arg6: memref<1xf32, #tpu.memory_space<smem>>, %arg7: memref<1x32x16xbf16, #tpu.memory_space<vmem>>) attributes {dimension_semantics = [#tpu.dimension_semantics<parallel>], iteration_bounds = array<i64: 2>, scalar_prefetch = 0 : i64, scratch_operands = 0 : i64, tpu.core_type = #tpu.core_type<tc>, window_params = [{transform_indices = @transform_0, window_bounds = array<i64: 1, 32, 16>}, {transform_indices = @transform_1, window_bounds = array<i64: 1, 32, 16>}, {transform_indices = @transform_2, window_bounds = array<i64: 1, 32, 16>}, {pipeline_mode = #tpu.pipeline_mode<synchronous>, transform_indices = @transform_3, window_bounds = array<i64: 32, 1>}, {pipeline_mode = #tpu.pipeline_mode<synchronous>, transform_indices = @transform_4, window_bounds = array<i64: 32, 1>}, {transform_indices = @transform_5, window_bounds = array<i64: 1>}, {transform_indices = @transform_6, window_bounds = array<i64: 1, 32, 16>}]} {
    %c0 = arith.constant 0 : index
    %c0_0 = arith.constant 0 : index
    %c0_1 = arith.constant 0 : index
    %0 = vector.load %arg1[%c0, %c0_0, %c0_1] : memref<1x32x16xbf16, #tpu.memory_space<vmem>>, vector<1x32x16xbf16>
    %1 = vector.shape_cast %0 : vector<1x32x16xbf16> to vector<32x16xbf16>
    %2 = arith.extf %1 : vector<32x16xbf16> to vector<32x16xf32>
    %c0_2 = arith.constant 0 : index
    %c0_3 = arith.constant 0 : index
    %c0_4 = arith.constant 0 : index
    %3 = vector.load %arg2[%c0_2, %c0_3, %c0_4] : memref<1x32x16xbf16, #tpu.memory_space<vmem>>, vector<1x32x16xbf16>
    %4 = vector.shape_cast %3 : vector<1x32x16xbf16> to vector<32x16xbf16>
    %5 = arith.extf %4 : vector<32x16xbf16> to vector<32x16xf32>
    %6 = arith.addf %2, %5 : vector<32x16xf32>
    %c0_5 = arith.constant 0 : index
    %c0_6 = arith.constant 0 : index
    %c0_7 = arith.constant 0 : index
    %7 = vector.load %arg3[%c0_5, %c0_6, %c0_7] : memref<1x32x16xbf16, #tpu.memory_space<vmem>>, vector<1x32x16xbf16>
    %8 = vector.shape_cast %7 : vector<1x32x16xbf16> to vector<32x16xbf16>
    %9 = arith.extf %8 : vector<32x16xbf16> to vector<32x16xf32>
    %10 = arith.addf %6, %9 : vector<32x16xf32>
    %c0_8 = arith.constant 0 : index
    %c0_9 = arith.constant 0 : index
    %11 = vector.load %arg4[%c0_8, %c0_9] : memref<32x1xf32, #tpu.memory_space<vmem>>, vector<32x1xf32>
    %c0_10 = arith.constant 0 : index
    %c0_11 = arith.constant 0 : index
    %12 = vector.load %arg5[%c0_10, %c0_11] : memref<32x1xf32, #tpu.memory_space<vmem>>, vector<32x1xf32>
    %13 = vector.shape_cast %10 : vector<32x16xf32> to vector<1x32x16xf32>
    %cst = arith.constant dense<0.000000e+00> : vector<1xf32>
    %14 = vector.multi_reduction <add>, %13, %cst [1, 2] : vector<1x32x16xf32> to vector<1xf32>
    %15 = vector.shape_cast %14 : vector<1xf32> to vector<1x1x1xf32>
    %16 = vector.extract %15[0, 0, 0] : f32 from vector<1x1x1xf32>
    %17 = arith.mulf %10, %10 : vector<32x16xf32>
    %18 = vector.shape_cast %17 : vector<32x16xf32> to vector<1x32x16xf32>
    %cst_12 = arith.constant dense<0.000000e+00> : vector<1xf32>
    %19 = vector.multi_reduction <add>, %18, %cst_12 [1, 2] : vector<1x32x16xf32> to vector<1xf32>
    %20 = vector.shape_cast %19 : vector<1xf32> to vector<1x1x1xf32>
    %21 = vector.extract %20[0, 0, 0] : f32 from vector<1x1x1xf32>
    %cst_13 = arith.constant 5.120000e+02 : f32
    %22 = arith.divf %16, %cst_13 : f32
    %cst_14 = arith.constant 5.120000e+02 : f32
    %23 = arith.divf %21, %cst_14 : f32
    %24 = arith.mulf %22, %22 : f32
    %25 = arith.subf %23, %24 : f32
    %cst_15 = arith.constant 0.000000e+00 : f32
    %26 = arith.maximumf %25, %cst_15 : f32
    %27 = vector.broadcast %22 : f32 to vector<32x16xf32>
    %28 = arith.subf %10, %27 : vector<32x16xf32>
    %cst_16 = arith.constant 9.99999993E-9 : f32
    %29 = arith.addf %26, %cst_16 : f32
    %30 = math.rsqrt %29 : f32
    %31 = vector.broadcast %30 : f32 to vector<32x16xf32>
    %32 = arith.mulf %28, %31 : vector<32x16xf32>
    %33 = vector.broadcast %11 : vector<32x1xf32> to vector<32x16xf32>
    %34 = arith.mulf %32, %33 : vector<32x16xf32>
    %35 = vector.broadcast %12 : vector<32x1xf32> to vector<32x16xf32>
    %36 = arith.addf %34, %35 : vector<32x16xf32>
    %c0_17 = arith.constant 0 : index
    %37 = memref.load %arg6[%c0_17] : memref<1xf32, #tpu.memory_space<smem>>
    %cst_18 = arith.constant 0.000000e+00 : f32
    %38 = vector.broadcast %cst_18 : f32 to vector<32x16xf32>
    %39 = arith.cmpf oge, %36, %38 : vector<32x16xf32>
    %40 = vector.broadcast %37 : f32 to vector<32x16xf32>
    %41 = arith.mulf %40, %36 : vector<32x16xf32>
    %42 = arith.select %39, %36, %41 : vector<32x16xi1>, vector<32x16xf32>
    %43 = arith.truncf %42 : vector<32x16xf32> to vector<32x16xbf16>
    %c0_19 = arith.constant 0 : index
    %c0_20 = arith.constant 0 : index
    %c0_21 = arith.constant 0 : index
    %44 = vector.load %arg7[%c0_19, %c0_20, %c0_21] : memref<1x32x16xbf16, #tpu.memory_space<vmem>>, vector<1x32x16xbf16>
    %45 = vector.shape_cast %44 : vector<1x32x16xbf16> to vector<32x16xbf16>
    %46 = vector.shape_cast %43 : vector<32x16xbf16> to vector<1x32x16xbf16>
    tpu.vector_store %arg7[%c0_19, %c0_20, %c0_21], %46 {strides = array<i32>} : memref<1x32x16xbf16, #tpu.memory_space<vmem>>, vector<1x32x16xbf16>,
    return
  }
  func.func @transform_0(%arg0: i32) -> (i32, i32, i32) {
    %c0_i32 = arith.constant 0 : i32
    %c0_i32_0 = arith.constant 0 : i32
    %c0_i32_1 = arith.constant 0 : i32
    return %arg0, %c0_i32, %c0_i32_0 : i32, i32, i32
  }
  func.func @transform_1(%arg0: i32) -> (i32, i32, i32) {
    %c0_i32 = arith.constant 0 : i32
    %c0_i32_0 = arith.constant 0 : i32
    %c0_i32_1 = arith.constant 0 : i32
    return %arg0, %c0_i32, %c0_i32_0 : i32, i32, i32
  }
  func.func @transform_2(%arg0: i32) -> (i32, i32, i32) {
    %c0_i32 = arith.constant 0 : i32
    %c0_i32_0 = arith.constant 0 : i32
    %c0_i32_1 = arith.constant 0 : i32
    return %arg0, %c0_i32, %c0_i32_0 : i32, i32, i32
  }
  func.func @transform_3(%arg0: i32) -> (i32, i32) {
    %c0_i32 = arith.constant 0 : i32
    %c0_i32_0 = arith.constant 0 : i32
    %c0_i32_1 = arith.constant 0 : i32
    return %c0_i32, %c0_i32_0 : i32, i32
  }
  func.func @transform_4(%arg0: i32) -> (i32, i32) {
    %c0_i32 = arith.constant 0 : i32
    %c0_i32_0 = arith.constant 0 : i32
    %c0_i32_1 = arith.constant 0 : i32
    return %c0_i32, %c0_i32_0 : i32, i32
  }
  func.func @transform_5(%arg0: i32) -> i32 {
    %c0_i32 = arith.constant 0 : i32
    %c0_i32_0 = arith.constant 0 : i32
    return %c0_i32 : i32
  }
  func.func @transform_6(%arg0: i32) -> (i32, i32, i32) {
    %c0_i32 = arith.constant 0 : i32
    %c0_i32_0 = arith.constant 0 : i32
    %c0_i32_1 = arith.constant 0 : i32
    return %arg0, %c0_i32, %c0_i32_0 : i32, i32, i32
  }
}

module attributes {stable_mosaic.version = 11 : i64} {
  func.func @kernel(%arg0: i32, %arg1: memref<1x32x32xbf16, #tpu.memory_space<vmem>>, %arg2: memref<1x32x32xbf16, #tpu.memory_space<vmem>>, %arg3: memref<32x1xf32, #tpu.memory_space<vmem>>, %arg4: memref<32x1xf32, #tpu.memory_space<vmem>>, %arg5: memref<1xf32, #tpu.memory_space<smem>>, %arg6: memref<1x32x32xbf16, #tpu.memory_space<vmem>>) attributes {dimension_semantics = [#tpu.dimension_semantics<parallel>], iteration_bounds = array<i64: 2>, scalar_prefetch = 0 : i64, scratch_operands = 0 : i64, tpu.core_type = #tpu.core_type<tc>, window_params = [{transform_indices = @transform_0, window_bounds = array<i64: 1, 32, 32>}, {transform_indices = @transform_1, window_bounds = array<i64: 1, 32, 32>}, {pipeline_mode = #tpu.pipeline_mode<synchronous>, transform_indices = @transform_2, window_bounds = array<i64: 32, 1>}, {pipeline_mode = #tpu.pipeline_mode<synchronous>, transform_indices = @transform_3, window_bounds = array<i64: 32, 1>}, {transform_indices = @transform_4, window_bounds = array<i64: 1>}, {transform_indices = @transform_5, window_bounds = array<i64: 1, 32, 32>}]} {
    %c0 = arith.constant 0 : index
    %c0_0 = arith.constant 0 : index
    %c0_1 = arith.constant 0 : index
    %0 = vector.load %arg1[%c0, %c0_0, %c0_1] : memref<1x32x32xbf16, #tpu.memory_space<vmem>>, vector<1x32x32xbf16>
    %1 = vector.shape_cast %0 : vector<1x32x32xbf16> to vector<32x32xbf16>
    %2 = arith.extf %1 : vector<32x32xbf16> to vector<32x32xf32>
    %c0_2 = arith.constant 0 : index
    %c0_3 = arith.constant 0 : index
    %c0_4 = arith.constant 0 : index
    %3 = vector.load %arg2[%c0_2, %c0_3, %c0_4] : memref<1x32x32xbf16, #tpu.memory_space<vmem>>, vector<1x32x32xbf16>
    %4 = vector.shape_cast %3 : vector<1x32x32xbf16> to vector<32x32xbf16>
    %5 = arith.extf %4 : vector<32x32xbf16> to vector<32x32xf32>
    %6 = arith.addf %2, %5 : vector<32x32xf32>
    %c0_5 = arith.constant 0 : index
    %c0_6 = arith.constant 0 : index
    %7 = vector.load %arg3[%c0_5, %c0_6] : memref<32x1xf32, #tpu.memory_space<vmem>>, vector<32x1xf32>
    %c0_7 = arith.constant 0 : index
    %c0_8 = arith.constant 0 : index
    %8 = vector.load %arg4[%c0_7, %c0_8] : memref<32x1xf32, #tpu.memory_space<vmem>>, vector<32x1xf32>
    %9 = vector.shape_cast %6 : vector<32x32xf32> to vector<1x32x32xf32>
    %cst = arith.constant dense<0.000000e+00> : vector<1xf32>
    %10 = vector.multi_reduction <add>, %9, %cst [1, 2] : vector<1x32x32xf32> to vector<1xf32>
    %11 = vector.shape_cast %10 : vector<1xf32> to vector<1x1x1xf32>
    %12 = vector.extract %11[0, 0, 0] : f32 from vector<1x1x1xf32>
    %13 = arith.mulf %6, %6 : vector<32x32xf32>
    %14 = vector.shape_cast %13 : vector<32x32xf32> to vector<1x32x32xf32>
    %cst_9 = arith.constant dense<0.000000e+00> : vector<1xf32>
    %15 = vector.multi_reduction <add>, %14, %cst_9 [1, 2] : vector<1x32x32xf32> to vector<1xf32>
    %16 = vector.shape_cast %15 : vector<1xf32> to vector<1x1x1xf32>
    %17 = vector.extract %16[0, 0, 0] : f32 from vector<1x1x1xf32>
    %cst_10 = arith.constant 1.024000e+03 : f32
    %18 = arith.divf %12, %cst_10 : f32
    %cst_11 = arith.constant 1.024000e+03 : f32
    %19 = arith.divf %17, %cst_11 : f32
    %20 = arith.mulf %18, %18 : f32
    %21 = arith.subf %19, %20 : f32
    %cst_12 = arith.constant 0.000000e+00 : f32
    %22 = arith.maximumf %21, %cst_12 : f32
    %23 = vector.broadcast %18 : f32 to vector<32x32xf32>
    %24 = arith.subf %6, %23 : vector<32x32xf32>
    %cst_13 = arith.constant 9.99999993E-9 : f32
    %25 = arith.addf %22, %cst_13 : f32
    %26 = math.rsqrt %25 : f32
    %27 = vector.broadcast %26 : f32 to vector<32x32xf32>
    %28 = arith.mulf %24, %27 : vector<32x32xf32>
    %29 = vector.broadcast %7 : vector<32x1xf32> to vector<32x32xf32>
    %30 = arith.mulf %28, %29 : vector<32x32xf32>
    %31 = vector.broadcast %8 : vector<32x1xf32> to vector<32x32xf32>
    %32 = arith.addf %30, %31 : vector<32x32xf32>
    %c0_14 = arith.constant 0 : index
    %33 = memref.load %arg5[%c0_14] : memref<1xf32, #tpu.memory_space<smem>>
    %cst_15 = arith.constant 0.000000e+00 : f32
    %34 = vector.broadcast %cst_15 : f32 to vector<32x32xf32>
    %35 = arith.cmpf oge, %32, %34 : vector<32x32xf32>
    %36 = vector.broadcast %33 : f32 to vector<32x32xf32>
    %37 = arith.mulf %36, %32 : vector<32x32xf32>
    %38 = arith.select %35, %32, %37 : vector<32x32xi1>, vector<32x32xf32>
    %39 = arith.truncf %38 : vector<32x32xf32> to vector<32x32xbf16>
    %c0_16 = arith.constant 0 : index
    %c0_17 = arith.constant 0 : index
    %c0_18 = arith.constant 0 : index
    %40 = vector.load %arg6[%c0_16, %c0_17, %c0_18] : memref<1x32x32xbf16, #tpu.memory_space<vmem>>, vector<1x32x32xbf16>
    %41 = vector.shape_cast %40 : vector<1x32x32xbf16> to vector<32x32xbf16>
    %42 = vector.shape_cast %39 : vector<32x32xbf16> to vector<1x32x32xbf16>
    tpu.vector_store %arg6[%c0_16, %c0_17, %c0_18], %42 {strides = array<i32>} : memref<1x32x32xbf16, #tpu.memory_space<vmem>>, vector<1x32x32xbf16>,
    return
  }
  func.func @transform_0(%arg0: i32) -> (i32, i32, i32) {
    %c0_i32 = arith.constant 0 : i32
    %c0_i32_0 = arith.constant 0 : i32
    %c0_i32_1 = arith.constant 0 : i32
    return %arg0, %c0_i32, %c0_i32_0 : i32, i32, i32
  }
  func.func @transform_1(%arg0: i32) -> (i32, i32, i32) {
    %c0_i32 = arith.constant 0 : i32
    %c0_i32_0 = arith.constant 0 : i32
    %c0_i32_1 = arith.constant 0 : i32
    return %arg0, %c0_i32, %c0_i32_0 : i32, i32, i32
  }
  func.func @transform_2(%arg0: i32) -> (i32, i32) {
    %c0_i32 = arith.constant 0 : i32
    %c0_i32_0 = arith.constant 0 : i32
    %c0_i32_1 = arith.constant 0 : i32
    return %c0_i32, %c0_i32_0 : i32, i32
  }
  func.func @transform_3(%arg0: i32) -> (i32, i32) {
    %c0_i32 = arith.constant 0 : i32
    %c0_i32_0 = arith.constant 0 : i32
    %c0_i32_1 = arith.constant 0 : i32
    return %c0_i32, %c0_i32_0 : i32, i32
  }
  func.func @transform_4(%arg0: i32) -> i32 {
    %c0_i32 = arith.constant 0 : i32
    %c0_i32_0 = arith.constant 0 : i32
    return %c0_i32 : i32
  }
  func.func @transform_5(%arg0: i32) -> (i32, i32, i32) {
    %c0_i32 = arith.constant 0 : i32
    %c0_i32_0 = arith.constant 0 : i32
    %c0_i32_1 = arith.constant 0 : i32
    return %arg0, %c0_i32, %c0_i32_0 : i32, i32, i32
  }
}

module attributes {stable_mosaic.version = 11 : i64} {
  func.func @kernel(%arg0: i32, %arg1: memref<1x32x8xbf16, #tpu.memory_space<vmem>>, %arg2: memref<1x32x8xbf16, #tpu.memory_space<vmem>>, %arg3: memref<1x32x8xbf16, #tpu.memory_space<vmem>>, %arg4: memref<32x1xf32, #tpu.memory_space<vmem>>, %arg5: memref<32x1xf32, #tpu.memory_space<vmem>>, %arg6: memref<1xf32, #tpu.memory_space<smem>>, %arg7: memref<1x32x8xbf16, #tpu.memory_space<vmem>>) attributes {dimension_semantics = [#tpu.dimension_semantics<parallel>], iteration_bounds = array<i64: 2>, scalar_prefetch = 0 : i64, scratch_operands = 0 : i64, tpu.core_type = #tpu.core_type<tc>, window_params = [{transform_indices = @transform_0, window_bounds = array<i64: 1, 32, 8>}, {transform_indices = @transform_1, window_bounds = array<i64: 1, 32, 8>}, {transform_indices = @transform_2, window_bounds = array<i64: 1, 32, 8>}, {pipeline_mode = #tpu.pipeline_mode<synchronous>, transform_indices = @transform_3, window_bounds = array<i64: 32, 1>}, {pipeline_mode = #tpu.pipeline_mode<synchronous>, transform_indices = @transform_4, window_bounds = array<i64: 32, 1>}, {transform_indices = @transform_5, window_bounds = array<i64: 1>}, {transform_indices = @transform_6, window_bounds = array<i64: 1, 32, 8>}]} {
    %c0 = arith.constant 0 : index
    %c0_0 = arith.constant 0 : index
    %c0_1 = arith.constant 0 : index
    %0 = vector.load %arg1[%c0, %c0_0, %c0_1] : memref<1x32x8xbf16, #tpu.memory_space<vmem>>, vector<1x32x8xbf16>
    %1 = vector.shape_cast %0 : vector<1x32x8xbf16> to vector<32x8xbf16>
    %2 = arith.extf %1 : vector<32x8xbf16> to vector<32x8xf32>
    %c0_2 = arith.constant 0 : index
    %c0_3 = arith.constant 0 : index
    %c0_4 = arith.constant 0 : index
    %3 = vector.load %arg2[%c0_2, %c0_3, %c0_4] : memref<1x32x8xbf16, #tpu.memory_space<vmem>>, vector<1x32x8xbf16>
    %4 = vector.shape_cast %3 : vector<1x32x8xbf16> to vector<32x8xbf16>
    %5 = arith.extf %4 : vector<32x8xbf16> to vector<32x8xf32>
    %6 = arith.addf %2, %5 : vector<32x8xf32>
    %c0_5 = arith.constant 0 : index
    %c0_6 = arith.constant 0 : index
    %c0_7 = arith.constant 0 : index
    %7 = vector.load %arg3[%c0_5, %c0_6, %c0_7] : memref<1x32x8xbf16, #tpu.memory_space<vmem>>, vector<1x32x8xbf16>
    %8 = vector.shape_cast %7 : vector<1x32x8xbf16> to vector<32x8xbf16>
    %9 = arith.extf %8 : vector<32x8xbf16> to vector<32x8xf32>
    %10 = arith.addf %6, %9 : vector<32x8xf32>
    %c0_8 = arith.constant 0 : index
    %c0_9 = arith.constant 0 : index
    %11 = vector.load %arg4[%c0_8, %c0_9] : memref<32x1xf32, #tpu.memory_space<vmem>>, vector<32x1xf32>
    %c0_10 = arith.constant 0 : index
    %c0_11 = arith.constant 0 : index
    %12 = vector.load %arg5[%c0_10, %c0_11] : memref<32x1xf32, #tpu.memory_space<vmem>>, vector<32x1xf32>
    %13 = vector.shape_cast %10 : vector<32x8xf32> to vector<1x32x8xf32>
    %cst = arith.constant dense<0.000000e+00> : vector<1xf32>
    %14 = vector.multi_reduction <add>, %13, %cst [1, 2] : vector<1x32x8xf32> to vector<1xf32>
    %15 = vector.shape_cast %14 : vector<1xf32> to vector<1x1x1xf32>
    %16 = vector.extract %15[0, 0, 0] : f32 from vector<1x1x1xf32>
    %17 = arith.mulf %10, %10 : vector<32x8xf32>
    %18 = vector.shape_cast %17 : vector<32x8xf32> to vector<1x32x8xf32>
    %cst_12 = arith.constant dense<0.000000e+00> : vector<1xf32>
    %19 = vector.multi_reduction <add>, %18, %cst_12 [1, 2] : vector<1x32x8xf32> to vector<1xf32>
    %20 = vector.shape_cast %19 : vector<1xf32> to vector<1x1x1xf32>
    %21 = vector.extract %20[0, 0, 0] : f32 from vector<1x1x1xf32>
    %cst_13 = arith.constant 2.560000e+02 : f32
    %22 = arith.divf %16, %cst_13 : f32
    %cst_14 = arith.constant 2.560000e+02 : f32
    %23 = arith.divf %21, %cst_14 : f32
    %24 = arith.mulf %22, %22 : f32
    %25 = arith.subf %23, %24 : f32
    %cst_15 = arith.constant 0.000000e+00 : f32
    %26 = arith.maximumf %25, %cst_15 : f32
    %27 = vector.broadcast %22 : f32 to vector<32x8xf32>
    %28 = arith.subf %10, %27 : vector<32x8xf32>
    %cst_16 = arith.constant 9.99999993E-9 : f32
    %29 = arith.addf %26, %cst_16 : f32
    %30 = math.rsqrt %29 : f32
    %31 = vector.broadcast %30 : f32 to vector<32x8xf32>
    %32 = arith.mulf %28, %31 : vector<32x8xf32>
    %33 = vector.broadcast %11 : vector<32x1xf32> to vector<32x8xf32>
    %34 = arith.mulf %32, %33 : vector<32x8xf32>
    %35 = vector.broadcast %12 : vector<32x1xf32> to vector<32x8xf32>
    %36 = arith.addf %34, %35 : vector<32x8xf32>
    %c0_17 = arith.constant 0 : index
    %37 = memref.load %arg6[%c0_17] : memref<1xf32, #tpu.memory_space<smem>>
    %cst_18 = arith.constant 0.000000e+00 : f32
    %38 = vector.broadcast %cst_18 : f32 to vector<32x8xf32>
    %39 = arith.cmpf oge, %36, %38 : vector<32x8xf32>
    %40 = vector.broadcast %37 : f32 to vector<32x8xf32>
    %41 = arith.mulf %40, %36 : vector<32x8xf32>
    %42 = arith.select %39, %36, %41 : vector<32x8xi1>, vector<32x8xf32>
    %43 = arith.truncf %42 : vector<32x8xf32> to vector<32x8xbf16>
    %c0_19 = arith.constant 0 : index
    %c0_20 = arith.constant 0 : index
    %c0_21 = arith.constant 0 : index
    %44 = vector.load %arg7[%c0_19, %c0_20, %c0_21] : memref<1x32x8xbf16, #tpu.memory_space<vmem>>, vector<1x32x8xbf16>
    %45 = vector.shape_cast %44 : vector<1x32x8xbf16> to vector<32x8xbf16>
    %46 = vector.shape_cast %43 : vector<32x8xbf16> to vector<1x32x8xbf16>
    tpu.vector_store %arg7[%c0_19, %c0_20, %c0_21], %46 {strides = array<i32>} : memref<1x32x8xbf16, #tpu.memory_space<vmem>>, vector<1x32x8xbf16>,
    return
  }
  func.func @transform_0(%arg0: i32) -> (i32, i32, i32) {
    %c0_i32 = arith.constant 0 : i32
    %c0_i32_0 = arith.constant 0 : i32
    %c0_i32_1 = arith.constant 0 : i32
    return %arg0, %c0_i32, %c0_i32_0 : i32, i32, i32
  }
  func.func @transform_1(%arg0: i32) -> (i32, i32, i32) {
    %c0_i32 = arith.constant 0 : i32
    %c0_i32_0 = arith.constant 0 : i32
    %c0_i32_1 = arith.constant 0 : i32
    return %arg0, %c0_i32, %c0_i32_0 : i32, i32, i32
  }
  func.func @transform_2(%arg0: i32) -> (i32, i32, i32) {
    %c0_i32 = arith.constant 0 : i32
    %c0_i32_0 = arith.constant 0 : i32
    %c0_i32_1 = arith.constant 0 : i32
    return %arg0, %c0_i32, %c0_i32_0 : i32, i32, i32
  }
  func.func @transform_3(%arg0: i32) -> (i32, i32) {
    %c0_i32 = arith.constant 0 : i32
    %c0_i32_0 = arith.constant 0 : i32
    %c0_i32_1 = arith.constant 0 : i32
    return %c0_i32, %c0_i32_0 : i32, i32
  }
  func.func @transform_4(%arg0: i32) -> (i32, i32) {
    %c0_i32 = arith.constant 0 : i32
    %c0_i32_0 = arith.constant 0 : i32
    %c0_i32_1 = arith.constant 0 : i32
    return %c0_i32, %c0_i32_0 : i32, i32
  }
  func.func @transform_5(%arg0: i32) -> i32 {
    %c0_i32 = arith.constant 0 : i32
    %c0_i32_0 = arith.constant 0 : i32
    return %c0_i32 : i32
  }
  func.func @transform_6(%arg0: i32) -> (i32, i32, i32) {
    %c0_i32 = arith.constant 0 : i32
    %c0_i32_0 = arith.constant 0 : i32
    %c0_i32_1 = arith.constant 0 : i32
    return %arg0, %c0_i32, %c0_i32_0 : i32, i32, i32
  }
}

module attributes {stable_mosaic.version = 11 : i64} {
  func.func @kernel(%arg0: i32, %arg1: i32, %arg2: memref<1x32x32xbf16, #tpu.memory_space<vmem>>, %arg3: memref<1x32x32xbf16, #tpu.memory_space<vmem>>, %arg4: memref<1x32x32xbf16, #tpu.memory_space<vmem>>, %arg5: memref<1x32x32xbf16, #tpu.memory_space<vmem>>, %arg6: memref<4x32x32xbf16, #tpu.memory_space<vmem>>, %arg7: memref<32x1xf32, #tpu.memory_space<vmem>>, %arg8: memref<1x32x32xbf16, #tpu.memory_space<vmem>>, %arg9: memref<1x1x1xf32, #tpu.memory_space<vmem>>, %arg10: memref<1x1x1xf32, #tpu.memory_space<vmem>>) attributes {dimension_semantics = [#tpu.dimension_semantics<parallel>, #tpu.dimension_semantics<arbitrary>], iteration_bounds = array<i64: 2, 1>, scalar_prefetch = 0 : i64, scratch_operands = 0 : i64, tpu.core_type = #tpu.core_type<tc>, window_params = [{transform_indices = @transform_0, window_bounds = array<i64: 1, 32, 32>}, {transform_indices = @transform_1, window_bounds = array<i64: 1, 32, 32>}, {transform_indices = @transform_2, window_bounds = array<i64: 1, 32, 32>}, {transform_indices = @transform_3, window_bounds = array<i64: 1, 32, 32>}, {pipeline_mode = #tpu.pipeline_mode<synchronous>, transform_indices = @transform_4, window_bounds = array<i64: 4, 32, 32>}, {pipeline_mode = #tpu.pipeline_mode<synchronous>, transform_indices = @transform_5, window_bounds = array<i64: 32, 1>}, {transform_indices = @transform_6, window_bounds = array<i64: 1, 32, 32>}, {transform_indices = @transform_7, window_bounds = array<i64: 1, 1, 1>}, {transform_indices = @transform_8, window_bounds = array<i64: 1, 1, 1>}]} {
    %cst = arith.constant 0.000000e+00 : f32
    %0 = vector.broadcast %cst : f32 to vector<32x32xf32>
    %c0 = arith.constant 0 : index
    %c0_0 = arith.constant 0 : index
    %c0_1 = arith.constant 0 : index
    %1 = vector.load %arg6[%c0, %c0_0, %c0_1] : memref<4x32x32xbf16, #tpu.memory_space<vmem>>, vector<1x32x32xbf16>
    %2 = vector.shape_cast %1 : vector<1x32x32xbf16> to vector<32x32xbf16>
    %c0_2 = arith.constant 0 : index
    %c0_3 = arith.constant 0 : index
    %c0_4 = arith.constant 0 : index
    %3 = vector.load %arg2[%c0_2, %c0_3, %c0_4] : memref<1x32x32xbf16, #tpu.memory_space<vmem>>, vector<1x32x32xbf16>
    %4 = vector.shape_cast %3 : vector<1x32x32xbf16> to vector<32x32xbf16>
    %cst_5 = arith.constant dense<0.000000e+00> : vector<32x32xf32>
    %5 = tpu.matmul %2, %4, %cst_5 {dimension_numbers = #tpu.dot_dimension_numbers<[1], [0], [0], [1], [0, 0, 1, 1], [], []>} : vector<32x32xbf16>, vector<32x32xbf16>, vector<32x32xf32> -> vector<32x32xf32>
    %6 = arith.addf %0, %5 : vector<32x32xf32>
    %c1 = arith.constant 1 : index
    %c0_6 = arith.constant 0 : index
    %c0_7 = arith.constant 0 : index
    %7 = vector.load %arg6[%c1, %c0_6, %c0_7] : memref<4x32x32xbf16, #tpu.memory_space<vmem>>, vector<1x32x32xbf16>
    %8 = vector.shape_cast %7 : vector<1x32x32xbf16> to vector<32x32xbf16>
    %c0_8 = arith.constant 0 : index
    %c0_9 = arith.constant 0 : index
    %c0_10 = arith.constant 0 : index
    %9 = vector.load %arg3[%c0_8, %c0_9, %c0_10] : memref<1x32x32xbf16, #tpu.memory_space<vmem>>, vector<1x32x32xbf16>
    %10 = vector.shape_cast %9 : vector<1x32x32xbf16> to vector<32x32xbf16>
    %cst_11 = arith.constant dense<0.000000e+00> : vector<32x32xf32>
    %11 = tpu.matmul %8, %10, %cst_11 {dimension_numbers = #tpu.dot_dimension_numbers<[1], [0], [0], [1], [0, 0, 1, 1], [], []>} : vector<32x32xbf16>, vector<32x32xbf16>, vector<32x32xf32> -> vector<32x32xf32>
    %12 = arith.addf %6, %11 : vector<32x32xf32>
    %c2 = arith.constant 2 : index
    %c0_12 = arith.constant 0 : index
    %c0_13 = arith.constant 0 : index
    %13 = vector.load %arg6[%c2, %c0_12, %c0_13] : memref<4x32x32xbf16, #tpu.memory_space<vmem>>, vector<1x32x32xbf16>
    %14 = vector.shape_cast %13 : vector<1x32x32xbf16> to vector<32x32xbf16>
    %c0_14 = arith.constant 0 : index
    %c0_15 = arith.constant 0 : index
    %c0_16 = arith.constant 0 : index
    %15 = vector.load %arg4[%c0_14, %c0_15, %c0_16] : memref<1x32x32xbf16, #tpu.memory_space<vmem>>, vector<1x32x32xbf16>
    %16 = vector.shape_cast %15 : vector<1x32x32xbf16> to vector<32x32xbf16>
    %cst_17 = arith.constant dense<0.000000e+00> : vector<32x32xf32>
    %17 = tpu.matmul %14, %16, %cst_17 {dimension_numbers = #tpu.dot_dimension_numbers<[1], [0], [0], [1], [0, 0, 1, 1], [], []>} : vector<32x32xbf16>, vector<32x32xbf16>, vector<32x32xf32> -> vector<32x32xf32>
    %18 = arith.addf %12, %17 : vector<32x32xf32>
    %c3 = arith.constant 3 : index
    %c0_18 = arith.constant 0 : index
    %c0_19 = arith.constant 0 : index
    %19 = vector.load %arg6[%c3, %c0_18, %c0_19] : memref<4x32x32xbf16, #tpu.memory_space<vmem>>, vector<1x32x32xbf16>
    %20 = vector.shape_cast %19 : vector<1x32x32xbf16> to vector<32x32xbf16>
    %c0_20 = arith.constant 0 : index
    %c0_21 = arith.constant 0 : index
    %c0_22 = arith.constant 0 : index
    %21 = vector.load %arg5[%c0_20, %c0_21, %c0_22] : memref<1x32x32xbf16, #tpu.memory_space<vmem>>, vector<1x32x32xbf16>
    %22 = vector.shape_cast %21 : vector<1x32x32xbf16> to vector<32x32xbf16>
    %cst_23 = arith.constant dense<0.000000e+00> : vector<32x32xf32>
    %23 = tpu.matmul %20, %22, %cst_23 {dimension_numbers = #tpu.dot_dimension_numbers<[1], [0], [0], [1], [0, 0, 1, 1], [], []>} : vector<32x32xbf16>, vector<32x32xbf16>, vector<32x32xf32> -> vector<32x32xf32>
    %24 = arith.addf %18, %23 : vector<32x32xf32>
    %c0_24 = arith.constant 0 : index
    %c0_25 = arith.constant 0 : index
    %25 = vector.load %arg7[%c0_24, %c0_25] : memref<32x1xf32, #tpu.memory_space<vmem>>, vector<32x1xf32>
    %26 = vector.broadcast %25 : vector<32x1xf32> to vector<32x32xf32>
    %27 = arith.addf %24, %26 : vector<32x32xf32>
    %28 = arith.truncf %27 : vector<32x32xf32> to vector<32x32xbf16>
    %c0_26 = arith.constant 0 : index
    %c0_27 = arith.constant 0 : index
    %c0_28 = arith.constant 0 : index
    %29 = vector.load %arg8[%c0_26, %c0_27, %c0_28] : memref<1x32x32xbf16, #tpu.memory_space<vmem>>, vector<1x32x32xbf16>
    %30 = vector.shape_cast %29 : vector<1x32x32xbf16> to vector<32x32xbf16>
    %31 = vector.shape_cast %28 : vector<32x32xbf16> to vector<1x32x32xbf16>
    tpu.vector_store %arg8[%c0_26, %c0_27, %c0_28], %31 {strides = array<i32>} : memref<1x32x32xbf16, #tpu.memory_space<vmem>>, vector<1x32x32xbf16>,
    %c0_i32 = arith.constant 0 : i32
    %32 = arith.cmpi eq, %arg1, %c0_i32 : i32
    %33 = arith.extui %32 : i1 to i32
    %c0_i32_29 = arith.constant 0 : i32
    %34 = arith.cmpi ne, %33, %c0_i32_29 : i32
    scf.if %34 {
      %cst_44 = arith.constant 0.000000e+00 : f32
      %58 = vector.broadcast %cst_44 : f32 to vector<1x1xf32>
      %c0_45 = arith.constant 0 : index
      %c0_46 = arith.constant 0 : index
      %c0_47 = arith.constant 0 : index
      %59 = vector.load %arg9[%c0_45, %c0_46, %c0_47] : memref<1x1x1xf32, #tpu.memory_space<vmem>>, vector<1x1x1xf32>
      %60 = vector.shape_cast %59 : vector<1x1x1xf32> to vector<1x1xf32>
      %61 = vector.shape_cast %58 : vector<1x1xf32> to vector<1x1x1xf32>
      tpu.vector_store %arg9[%c0_45, %c0_46, %c0_47], %61 {strides = array<i32>} : memref<1x1x1xf32, #tpu.memory_space<vmem>>, vector<1x1x1xf32>,
      %cst_48 = arith.constant 0.000000e+00 : f32
      %62 = vector.broadcast %cst_48 : f32 to vector<1x1xf32>
      %c0_49 = arith.constant 0 : index
      %c0_50 = arith.constant 0 : index
      %c0_51 = arith.constant 0 : index
      %63 = vector.load %arg10[%c0_49, %c0_50, %c0_51] : memref<1x1x1xf32, #tpu.memory_space<vmem>>, vector<1x1x1xf32>
      %64 = vector.shape_cast %63 : vector<1x1x1xf32> to vector<1x1xf32>
      %65 = vector.shape_cast %62 : vector<1x1xf32> to vector<1x1x1xf32>
      tpu.vector_store %arg10[%c0_49, %c0_50, %c0_51], %65 {strides = array<i32>} : memref<1x1x1xf32, #tpu.memory_space<vmem>>, vector<1x1x1xf32>,
    } else {
    }
    %c0_30 = arith.constant 0 : index
    %c0_31 = arith.constant 0 : index
    %c0_32 = arith.constant 0 : index
    %35 = vector.load %arg9[%c0_30, %c0_31, %c0_32] : memref<1x1x1xf32, #tpu.memory_space<vmem>>, vector<1x1x1xf32>
    %36 = vector.shape_cast %35 : vector<1x1x1xf32> to vector<1x1xf32>
    %37 = vector.shape_cast %27 : vector<32x32xf32> to vector<1x32x32xf32>
    %cst_33 = arith.constant dense<0.000000e+00> : vector<1xf32>
    %38 = vector.multi_reduction <add>, %37, %cst_33 [1, 2] : vector<1x32x32xf32> to vector<1xf32>
    %39 = vector.shape_cast %38 : vector<1xf32> to vector<1x1x1xf32>
    %40 = vector.extract %39[0, 0, 0] : f32 from vector<1x1x1xf32>
    %41 = vector.broadcast %40 : f32 to vector<1x1xf32>
    %42 = arith.addf %36, %41 : vector<1x1xf32>
    %c0_34 = arith.constant 0 : index
    %c0_35 = arith.constant 0 : index
    %c0_36 = arith.constant 0 : index
    %43 = vector.load %arg9[%c0_34, %c0_35, %c0_36] : memref<1x1x1xf32, #tpu.memory_space<vmem>>, vector<1x1x1xf32>
    %44 = vector.shape_cast %43 : vector<1x1x1xf32> to vector<1x1xf32>
    %45 = vector.shape_cast %42 : vector<1x1xf32> to vector<1x1x1xf32>
    tpu.vector_store %arg9[%c0_34, %c0_35, %c0_36], %45 {strides = array<i32>} : memref<1x1x1xf32, #tpu.memory_space<vmem>>, vector<1x1x1xf32>,
    %c0_37 = arith.constant 0 : index
    %c0_38 = arith.constant 0 : index
    %c0_39 = arith.constant 0 : index
    %46 = vector.load %arg10[%c0_37, %c0_38, %c0_39] : memref<1x1x1xf32, #tpu.memory_space<vmem>>, vector<1x1x1xf32>
    %47 = vector.shape_cast %46 : vector<1x1x1xf32> to vector<1x1xf32>
    %48 = arith.mulf %27, %27 : vector<32x32xf32>
    %49 = vector.shape_cast %48 : vector<32x32xf32> to vector<1x32x32xf32>
    %cst_40 = arith.constant dense<0.000000e+00> : vector<1xf32>
    %50 = vector.multi_reduction <add>, %49, %cst_40 [1, 2] : vector<1x32x32xf32> to vector<1xf32>
    %51 = vector.shape_cast %50 : vector<1xf32> to vector<1x1x1xf32>
    %52 = vector.extract %51[0, 0, 0] : f32 from vector<1x1x1xf32>
    %53 = vector.broadcast %52 : f32 to vector<1x1xf32>
    %54 = arith.addf %47, %53 : vector<1x1xf32>
    %c0_41 = arith.constant 0 : index
    %c0_42 = arith.constant 0 : index
    %c0_43 = arith.constant 0 : index
    %55 = vector.load %arg10[%c0_41, %c0_42, %c0_43] : memref<1x1x1xf32, #tpu.memory_space<vmem>>, vector<1x1x1xf32>
    %56 = vector.shape_cast %55 : vector<1x1x1xf32> to vector<1x1xf32>
    %57 = vector.shape_cast %54 : vector<1x1xf32> to vector<1x1x1xf32>
    tpu.vector_store %arg10[%c0_41, %c0_42, %c0_43], %57 {strides = array<i32>} : memref<1x1x1xf32, #tpu.memory_space<vmem>>, vector<1x1x1xf32>,
    return
  }
  func.func @transform_0(%arg0: i32, %arg1: i32) -> (i32, i32, i32) {
    %c0_i32 = arith.constant 0 : i32
    %c0_i32_0 = arith.constant 0 : i32
    return %arg0, %c0_i32, %arg1 : i32, i32, i32
  }
  func.func @transform_1(%arg0: i32, %arg1: i32) -> (i32, i32, i32) {
    %c0_i32 = arith.constant 0 : i32
    %c0_i32_0 = arith.constant 0 : i32
    return %arg0, %c0_i32, %arg1 : i32, i32, i32
  }
  func.func @transform_2(%arg0: i32, %arg1: i32) -> (i32, i32, i32) {
    %c0_i32 = arith.constant 0 : i32
    %c0_i32_0 = arith.constant 0 : i32
    return %arg0, %c0_i32, %arg1 : i32, i32, i32
  }
  func.func @transform_3(%arg0: i32, %arg1: i32) -> (i32, i32, i32) {
    %c0_i32 = arith.constant 0 : i32
    %c0_i32_0 = arith.constant 0 : i32
    return %arg0, %c0_i32, %arg1 : i32, i32, i32
  }
  func.func @transform_4(%arg0: i32, %arg1: i32) -> (i32, i32, i32) {
    %c0_i32 = arith.constant 0 : i32
    %c0_i32_0 = arith.constant 0 : i32
    %c0_i32_1 = arith.constant 0 : i32
    %c0_i32_2 = arith.constant 0 : i32
    return %c0_i32, %c0_i32_0, %c0_i32_1 : i32, i32, i32
  }
  func.func @transform_5(%arg0: i32, %arg1: i32) -> (i32, i32) {
    %c0_i32 = arith.constant 0 : i32
    %c0_i32_0 = arith.constant 0 : i32
    %c0_i32_1 = arith.constant 0 : i32
    return %c0_i32, %c0_i32_0 : i32, i32
  }
  func.func @transform_6(%arg0: i32, %arg1: i32) -> (i32, i32, i32) {
    %c0_i32 = arith.constant 0 : i32
    %c0_i32_0 = arith.constant 0 : i32
    return %arg0, %c0_i32, %arg1 : i32, i32, i32
  }
  func.func @transform_7(%arg0: i32, %arg1: i32) -> (i32, i32, i32) {
    %c0_i32 = arith.constant 0 : i32
    %c0_i32_0 = arith.constant 0 : i32
    %c0_i32_1 = arith.constant 0 : i32
    return %arg0, %c0_i32, %c0_i32_0 : i32, i32, i32
  }
  func.func @transform_8(%arg0: i32, %arg1: i32) -> (i32, i32, i32) {
    %c0_i32 = arith.constant 0 : i32
    %c0_i32_0 = arith.constant 0 : i32
    %c0_i32_1 = arith.constant 0 : i32
    return %arg0, %c0_i32, %c0_i32_0 : i32, i32, i32
  }
}

module attributes {stable_mosaic.version = 11 : i64} {
  func.func @kernel(%arg0: i32, %arg1: i32, %arg2: memref<1x32x32xbf16, #tpu.memory_space<vmem>>, %arg3: memref<1x1x1xf32, #tpu.memory_space<vmem>>, %arg4: memref<1x1x1xf32, #tpu.memory_space<vmem>>, %arg5: memref<32x1xf32, #tpu.memory_space<vmem>>, %arg6: memref<32x1xf32, #tpu.memory_space<vmem>>, %arg7: memref<1xf32, #tpu.memory_space<smem>>, %arg8: memref<16x32xbf16, #tpu.memory_space<vmem>>, %arg9: memref<16x1xf32, #tpu.memory_space<vmem>>, %arg10: memref<1x16x32xf32, #tpu.memory_space<vmem>>, %arg11: memref<1x16x32xf32, #tpu.memory_space<vmem>>) attributes {dimension_semantics = [#tpu.dimension_semantics<parallel>, #tpu.dimension_semantics<parallel>], iteration_bounds = array<i64: 2, 1>, scalar_prefetch = 0 : i64, scratch_operands = 0 : i64, tpu.core_type = #tpu.core_type<tc>, window_params = [{transform_indices = @transform_0, window_bounds = array<i64: 1, 32, 32>}, {transform_indices = @transform_1, window_bounds = array<i64: 1, 1, 1>}, {transform_indices = @transform_2, window_bounds = array<i64: 1, 1, 1>}, {pipeline_mode = #tpu.pipeline_mode<synchronous>, transform_indices = @transform_3, window_bounds = array<i64: 32, 1>}, {pipeline_mode = #tpu.pipeline_mode<synchronous>, transform_indices = @transform_4, window_bounds = array<i64: 32, 1>}, {transform_indices = @transform_5, window_bounds = array<i64: 1>}, {pipeline_mode = #tpu.pipeline_mode<synchronous>, transform_indices = @transform_6, window_bounds = array<i64: 16, 32>}, {pipeline_mode = #tpu.pipeline_mode<synchronous>, transform_indices = @transform_7, window_bounds = array<i64: 16, 1>}, {transform_indices = @transform_8, window_bounds = array<i64: 1, 16, 32>}, {transform_indices = @transform_9, window_bounds = array<i64: 1, 16, 32>}]} {
    %c0 = arith.constant 0 : index
    %c0_0 = arith.constant 0 : index
    %c0_1 = arith.constant 0 : index
    %0 = vector.load %arg3[%c0, %c0_0, %c0_1] : memref<1x1x1xf32, #tpu.memory_space<vmem>>, vector<1x1x1xf32>
    %1 = vector.shape_cast %0 : vector<1x1x1xf32> to vector<1x1xf32>
    %cst = arith.constant 1.024000e+03 : f32
    %2 = vector.broadcast %cst : f32 to vector<1x1xf32>
    %3 = arith.divf %1, %2 : vector<1x1xf32>
    %c0_2 = arith.constant 0 : index
    %c0_3 = arith.constant 0 : index
    %c0_4 = arith.constant 0 : index
    %4 = vector.load %arg4[%c0_2, %c0_3, %c0_4] : memref<1x1x1xf32, #tpu.memory_space<vmem>>, vector<1x1x1xf32>
    %5 = vector.shape_cast %4 : vector<1x1x1xf32> to vector<1x1xf32>
    %cst_5 = arith.constant 1.024000e+03 : f32
    %6 = vector.broadcast %cst_5 : f32 to vector<1x1xf32>
    %7 = arith.divf %5, %6 : vector<1x1xf32>
    %8 = arith.mulf %3, %3 : vector<1x1xf32>
    %9 = arith.subf %7, %8 : vector<1x1xf32>
    %cst_6 = arith.constant 0.000000e+00 : f32
    %10 = vector.broadcast %cst_6 : f32 to vector<1x1xf32>
    %11 = arith.maximumf %9, %10 : vector<1x1xf32>
    %cst_7 = arith.constant 9.99999993E-9 : f32
    %12 = vector.broadcast %cst_7 : f32 to vector<1x1xf32>
    %13 = arith.addf %11, %12 : vector<1x1xf32>
    %14 = math.rsqrt %13 : vector<1x1xf32>
    %c0_8 = arith.constant 0 : index
    %c0_9 = arith.constant 0 : index
    %c0_10 = arith.constant 0 : index
    %15 = vector.load %arg2[%c0_8, %c0_9, %c0_10] : memref<1x32x32xbf16, #tpu.memory_space<vmem>>, vector<1x32x32xbf16>
    %16 = vector.shape_cast %15 : vector<1x32x32xbf16> to vector<32x32xbf16>
    %17 = arith.extf %16 : vector<32x32xbf16> to vector<32x32xf32>
    %18 = vector.broadcast %3 : vector<1x1xf32> to vector<32x32xf32>
    %19 = arith.subf %17, %18 : vector<32x32xf32>
    %20 = vector.broadcast %14 : vector<1x1xf32> to vector<32x32xf32>
    %21 = arith.mulf %19, %20 : vector<32x32xf32>
    %c0_11 = arith.constant 0 : index
    %c0_12 = arith.constant 0 : index
    %22 = vector.load %arg5[%c0_11, %c0_12] : memref<32x1xf32, #tpu.memory_space<vmem>>, vector<32x1xf32>
    %23 = vector.broadcast %22 : vector<32x1xf32> to vector<32x32xf32>
    %24 = arith.mulf %21, %23 : vector<32x32xf32>
    %c0_13 = arith.constant 0 : index
    %c0_14 = arith.constant 0 : index
    %25 = vector.load %arg6[%c0_13, %c0_14] : memref<32x1xf32, #tpu.memory_space<vmem>>, vector<32x1xf32>
    %26 = vector.broadcast %25 : vector<32x1xf32> to vector<32x32xf32>
    %27 = arith.addf %24, %26 : vector<32x32xf32>
    %c0_15 = arith.constant 0 : index
    %28 = memref.load %arg7[%c0_15] : memref<1xf32, #tpu.memory_space<smem>>
    %cst_16 = arith.constant 0.000000e+00 : f32
    %29 = vector.broadcast %cst_16 : f32 to vector<32x32xf32>
    %30 = arith.cmpf oge, %27, %29 : vector<32x32xf32>
    %31 = vector.broadcast %28 : f32 to vector<32x32xf32>
    %32 = arith.mulf %31, %27 : vector<32x32xf32>
    %33 = arith.select %30, %27, %32 : vector<32x32xi1>, vector<32x32xf32>
    %c0_17 = arith.constant 0 : index
    %c0_18 = arith.constant 0 : index
    %34 = vector.load %arg8[%c0_17, %c0_18] : memref<16x32xbf16, #tpu.memory_space<vmem>>, vector<16x32xbf16>
    %35 = arith.truncf %33 : vector<32x32xf32> to vector<32x32xbf16>
    %cst_19 = arith.constant dense<0.000000e+00> : vector<16x32xf32>
    %36 = tpu.matmul %34, %35, %cst_19 {dimension_numbers = #tpu.dot_dimension_numbers<[1], [0], [0], [1], [0, 0, 1, 1], [], []>} : vector<16x32xbf16>, vector<32x32xbf16>, vector<16x32xf32> -> vector<16x32xf32>
    %c0_20 = arith.constant 0 : index
    %c0_21 = arith.constant 0 : index
    %37 = vector.load %arg9[%c0_20, %c0_21] : memref<16x1xf32, #tpu.memory_space<vmem>>, vector<16x1xf32>
    %38 = vector.broadcast %37 : vector<16x1xf32> to vector<16x32xf32>
    %39 = arith.addf %36, %38 : vector<16x32xf32>
    %c0_22 = arith.constant 0 : index
    %c0_23 = arith.constant 0 : index
    %c0_24 = arith.constant 0 : index
    %40 = vector.load %arg10[%c0_22, %c0_23, %c0_24] : memref<1x16x32xf32, #tpu.memory_space<vmem>>, vector<1x16x32xf32>
    %41 = vector.shape_cast %40 : vector<1x16x32xf32> to vector<16x32xf32>
    %42 = arith.addf %39, %41 : vector<16x32xf32>
    %c0_25 = arith.constant 0 : index
    %c0_26 = arith.constant 0 : index
    %c0_27 = arith.constant 0 : index
    %43 = vector.load %arg11[%c0_25, %c0_26, %c0_27] : memref<1x16x32xf32, #tpu.memory_space<vmem>>, vector<1x16x32xf32>
    %44 = vector.shape_cast %43 : vector<1x16x32xf32> to vector<16x32xf32>
    %45 = vector.shape_cast %42 : vector<16x32xf32> to vector<1x16x32xf32>
    tpu.vector_store %arg11[%c0_25, %c0_26, %c0_27], %45 {strides = array<i32>} : memref<1x16x32xf32, #tpu.memory_space<vmem>>, vector<1x16x32xf32>,
    return
  }
  func.func @transform_0(%arg0: i32, %arg1: i32) -> (i32, i32, i32) {
    %c0_i32 = arith.constant 0 : i32
    %c0_i32_0 = arith.constant 0 : i32
    return %arg0, %c0_i32, %arg1 : i32, i32, i32
  }
  func.func @transform_1(%arg0: i32, %arg1: i32) -> (i32, i32, i32) {
    %c0_i32 = arith.constant 0 : i32
    %c0_i32_0 = arith.constant 0 : i32
    %c0_i32_1 = arith.constant 0 : i32
    return %arg0, %c0_i32, %c0_i32_0 : i32, i32, i32
  }
  func.func @transform_2(%arg0: i32, %arg1: i32) -> (i32, i32, i32) {
    %c0_i32 = arith.constant 0 : i32
    %c0_i32_0 = arith.constant 0 : i32
    %c0_i32_1 = arith.constant 0 : i32
    return %arg0, %c0_i32, %c0_i32_0 : i32, i32, i32
  }
  func.func @transform_3(%arg0: i32, %arg1: i32) -> (i32, i32) {
    %c0_i32 = arith.constant 0 : i32
    %c0_i32_0 = arith.constant 0 : i32
    %c0_i32_1 = arith.constant 0 : i32
    return %c0_i32, %c0_i32_0 : i32, i32
  }
  func.func @transform_4(%arg0: i32, %arg1: i32) -> (i32, i32) {
    %c0_i32 = arith.constant 0 : i32
    %c0_i32_0 = arith.constant 0 : i32
    %c0_i32_1 = arith.constant 0 : i32
    return %c0_i32, %c0_i32_0 : i32, i32
  }
  func.func @transform_5(%arg0: i32, %arg1: i32) -> i32 {
    %c0_i32 = arith.constant 0 : i32
    %c0_i32_0 = arith.constant 0 : i32
    return %c0_i32 : i32
  }
  func.func @transform_6(%arg0: i32, %arg1: i32) -> (i32, i32) {
    %c0_i32 = arith.constant 0 : i32
    %c0_i32_0 = arith.constant 0 : i32
    %c0_i32_1 = arith.constant 0 : i32
    return %c0_i32, %c0_i32_0 : i32, i32
  }
  func.func @transform_7(%arg0: i32, %arg1: i32) -> (i32, i32) {
    %c0_i32 = arith.constant 0 : i32
    %c0_i32_0 = arith.constant 0 : i32
    %c0_i32_1 = arith.constant 0 : i32
    return %c0_i32, %c0_i32_0 : i32, i32
  }
  func.func @transform_8(%arg0: i32, %arg1: i32) -> (i32, i32, i32) {
    %c0_i32 = arith.constant 0 : i32
    %c0_i32_0 = arith.constant 0 : i32
    return %arg0, %c0_i32, %arg1 : i32, i32, i32
  }
  func.func @transform_9(%arg0: i32, %arg1: i32) -> (i32, i32, i32) {
    %c0_i32 = arith.constant 0 : i32
    %c0_i32_0 = arith.constant 0 : i32
    return %arg0, %c0_i32, %arg1 : i32, i32, i32
  }
}

</mosaic_0001>

<llo_original>
// kernel: afrcnn_block_forward.11
$region0: #{afrcnn_block_forward.11}
  #allocation0 [shape = 'u32[]', space=smem, size = 0x4, offset = 0x4, fixed_abs, tag = 'smem constant byte address 0x4 - core index']
  #allocation1 [shape = 'u32[144,128]{1,0:T(1,128)}', space=vmem, size = 0x12000, scoped, tag = 'internal scratch']
  #allocation2 [shape = 'f32[1]{0:T(128)S(6)}', space=smem, size = 0x200, scoped, tag = 'scoped memory for afrcnn_block_forward.11']
  %s0 = inlined_call_operand.vmem [shape: f32[2,16,32], index: 0, kind: input, shape index: {}]
  %s1 = inlined_call_operand.vmem [shape: bf16[32,16], index: 1, kind: input, shape index: {}]
  %s2 = inlined_call_operand.vmem [shape: f32[32,1], index: 2, kind: input, shape index: {}]
  %s3 = inlined_call_operand.vmem [shape: f32[32,1], index: 3, kind: input, shape index: {}]
  %s4 = inlined_call_operand.vmem [shape: f32[32,1], index: 4, kind: input, shape index: {}]
  %s5 = inlined_call_operand.<no memory space> [shape: f32[1], index: 5, kind: input, shape index: {}]
  %s6 = inlined_call_operand.vmem [shape: bf16[2,32,32], index: 6, kind: output, shape index: {}]
  %s7 = sld [smem:[#allocation0]]
  $region57: #{afrcnn_block_forward.11} parent=0
    _
  %s9 = ssub.s32 1, %s7
  %s10 = scalar_select 0, %s9, %s7
  %11 = sst [smem:[#allocation2]] %s5
  loop: start=0, step=1, limit=4
  $region2: #{afrcnn_block_forward.11} parent=0 // loop_pre_header
    _
  $region3: #{afrcnn_block_forward.11} parent=0 // loop_header
    %s13 = sphi 0, %s17
    %p14 = scmp.ge.s32.totalorder %s13, 4
    %s23 = sphi 0, %s25
    %s26 = sphi 0, %s23
    %s27 = sphi 0, %s26
    %s43 = sphi 0, %s27
    %s47 = sphi 0, %s47
    %s49 = sphi 0, %s47
    %s50 = sphi 0, %s49
    %s64 = sphi 0, %s50
    %s68 = sphi 0, %s68
    %s70 = sphi 0, %s68
    %s71 = sphi 0, %s70
    %s85 = sphi 0, %s71
    %s89 = sphi 0, %s89
    %s91 = sphi 0, %s89
    %s92 = sphi 0, %s91
    %s106 = sphi 0, %s92
    %s110 = sphi 0, %s110
    %s112 = sphi 0, %s110
    %s113 = sphi 0, %s112
    %s127 = sphi 0, %s113
    %s131 = sphi 0, %s131
    %s133 = sphi 0, %s131
    %s134 = sphi 0, %s133
    %s148 = sphi 0, %s134
    %s154 = sphi 0, %s156
    %s157 = sphi 0, %s154
    %s158 = sphi 0, %s157
    %s174 = sphi 0, %s158
  $region4: #{afrcnn_block_forward.11} parent=0 // loop_header_branch
    %16 = sbr.rel (%p14) target = $region8
  $region5: #{afrcnn_block_forward.11} parent=0 // loop_body
    %s18 = ssub.s32 %s13, 1
    %s19 = ssub.s32 %s13, 2
    %s20 = sadd.s32 %s13, 1
    %s21 = ssub.s32 %s13, %s20
    %p22 = scmp.eq.s32.totalorder %s21, 0
    %s24 = sadd.s32 %s23, 1
    %s25 = scalar_select %p22, %s23, %s24
    %p28 = pneg %p22
    %p29 = scmp.eq.s32.totalorder %s13, 1
    %p30 = por %p28, %p29
    %p31 = scmp.ne.s32.totalorder %s23, %s26
    %p32 = scmp.eq.s32.totalorder %s13, 0
    %p33 = por %p31, %p32
    %p34 = scmp.ne.s32.totalorder %s23, %s26
    %p35 = scmp.eq.s32.totalorder %s18, 1
    %p36 = por %p34, %p35
    %p37 = scmp.ne.s32.totalorder %s26, %s27
    %p38 = scmp.eq.s32.totalorder %s18, 0
    %p39 = por %p37, %p38
    %p40 = scmp.ne.s32.totalorder %s26, %s27
    %p41 = scmp.eq.s32.totalorder %s19, 1
    %p42 = por %p40, %p41
    %p44 = scmp.ne.s32.totalorder %s27, %s43
    %p45 = scmp.eq.s32.totalorder %s19, 0
    %p46 = por %p44, %p45
    %s48 = sadd.s32 %s47, 1
    %p51 = scmp.eq.s32.totalorder %s13, 1
    %p52 = scmp.ne.s32.totalorder %s47, %s49
    %p53 = scmp.eq.s32.totalorder %s13, 0
    %p54 = por %p52, %p53
    %p55 = scmp.ne.s32.totalorder %s47, %s49
    %p56 = scmp.eq.s32.totalorder %s18, 1
    %p57 = por %p55, %p56
    %p58 = scmp.ne.s32.totalorder %s49, %s50
    %p59 = scmp.eq.s32.totalorder %s18, 0
    %p60 = por %p58, %p59
    %p61 = scmp.ne.s32.totalorder %s49, %s50
    %p62 = scmp.eq.s32.totalorder %s19, 1
    %p63 = por %p61, %p62
    %p65 = scmp.ne.s32.totalorder %s50, %s64
    %p66 = scmp.eq.s32.totalorder %s19, 0
    %p67 = por %p65, %p66
    %s69 = sadd.s32 %s68, 1
    %p72 = scmp.eq.s32.totalorder %s13, 1
    %p73 = scmp.ne.s32.totalorder %s68, %s70
    %p74 = scmp.eq.s32.totalorder %s13, 0
    %p75 = por %p73, %p74
    %p76 = scmp.ne.s32.totalorder %s68, %s70
    %p77 = scmp.eq.s32.totalorder %s18, 1
    %p78 = por %p76, %p77
    %p79 = scmp.ne.s32.totalorder %s70, %s71
    %p80 = scmp.eq.s32.totalorder %s18, 0
    %p81 = por %p79, %p80
    %p82 = scmp.ne.s32.totalorder %s70, %s71
    %p83 = scmp.eq.s32.totalorder %s19, 1
    %p84 = por %p82, %p83
    %p86 = scmp.ne.s32.totalorder %s71, %s85
    %p87 = scmp.eq.s32.totalorder %s19, 0
    %p88 = por %p86, %p87
    %s90 = sadd.s32 %s89, 1
    %p93 = scmp.eq.s32.totalorder %s13, 1
    %p94 = scmp.ne.s32.totalorder %s89, %s91
    %p95 = scmp.eq.s32.totalorder %s13, 0
    %p96 = por %p94, %p95
    %p97 = scmp.ne.s32.totalorder %s89, %s91
    %p98 = scmp.eq.s32.totalorder %s18, 1
    %p99 = por %p97, %p98
    %p100 = scmp.ne.s32.totalorder %s91, %s92
    %p101 = scmp.eq.s32.totalorder %s18, 0
    %p102 = por %p100, %p101
    %p103 = scmp.ne.s32.totalorder %s91, %s92
    %p104 = scmp.eq.s32.totalorder %s19, 1
    %p105 = por %p103, %p104
    %p107 = scmp.ne.s32.totalorder %s92, %s106
    %p108 = scmp.eq.s32.totalorder %s19, 0
    %p109 = por %p107, %p108
    %s111 = sadd.s32 %s110, 1
    %p114 = scmp.eq.s32.totalorder %s13, 1
    %p115 = scmp.ne.s32.totalorder %s110, %s112
    %p116 = scmp.eq.s32.totalorder %s13, 0
    %p117 = por %p115, %p116
    %p118 = scmp.ne.s32.totalorder %s110, %s112
    %p119 = scmp.eq.s32.totalorder %s18, 1
    %p120 = por %p118, %p119
    %p121 = scmp.ne.s32.totalorder %s112, %s113
    %p122 = scmp.eq.s32.totalorder %s18, 0
    %p123 = por %p121, %p122
    %p124 = scmp.ne.s32.totalorder %s112, %s113
    %p125 = scmp.eq.s32.totalorder %s19, 1
    %p126 = por %p124, %p125
    %p128 = scmp.ne.s32.totalorder %s113, %s127
    %p129 = scmp.eq.s32.totalorder %s19, 0
    %p130 = por %p128, %p129
    %s132 = sadd.s32 %s131, 1
    %p135 = scmp.eq.s32.totalorder %s13, 1
    %p136 = scmp.ne.s32.totalorder %s131, %s133
    %p137 = scmp.eq.s32.totalorder %s13, 0
    %p138 = por %p136, %p137
    %p139 = scmp.ne.s32.totalorder %s131, %s133
    %p140 = scmp.eq.s32.totalorder %s18, 1
    %p141 = por %p139, %p140
    %p142 = scmp.ne.s32.totalorder %s133, %s134
    %p143 = scmp.eq.s32.totalorder %s18, 0
    %p144 = por %p142, %p143
    %p145 = scmp.ne.s32.totalorder %s133, %s134
    %p146 = scmp.eq.s32.totalorder %s19, 1
    %p147 = por %p145, %p146
    %p149 = scmp.ne.s32.totalorder %s134, %s148
    %p150 = scmp.eq.s32.totalorder %s19, 0
    %p151 = por %p149, %p150
    %s152 = ssub.s32 %s13, %s20
    %p153 = scmp.eq.s32.totalorder %s152, 0
    %s155 = sadd.s32 %s154, 1
    %s156 = scalar_select %p153, %s154, %s155
    %p159 = pneg %p153
    %p160 = scmp.eq.s32.totalorder %s13, 1
    %p161 = por %p159, %p160
    %p162 = scmp.ne.s32.totalorder %s154, %s157
    %p163 = scmp.eq.s32.totalorder %s13, 0
    %p164 = por %p162, %p163
    %p165 = scmp.ne.s32.totalorder %s154, %s157
    %p166 = scmp.eq.s32.totalorder %s18, 1
    %p167 = por %p165, %p166
    %p168 = scmp.ne.s32.totalorder %s157, %s158
    %p169 = scmp.eq.s32.totalorder %s18, 0
    %p170 = por %p168, %p169
    %p171 = scmp.ne.s32.totalorder %s157, %s158
    %p172 = scmp.eq.s32.totalorder %s19, 1
    %p173 = por %p171, %p172
    %p175 = scmp.ne.s32.totalorder %s158, %s174
    %p176 = scmp.eq.s32.totalorder %s19, 0
    %p177 = por %p175, %p176
    %p178 = scmp.le.s32.totalorder 1, %s13
    %p179 = scmp.lt.s32.totalorder %s13, 3
    %p180 = pnand %p178, %p179
    %p181 = pneg %p180
    // Predicated region
    $region9: #{afrcnn_block_forward.11} parent=5 // pred_check
      _
    $region10: #{afrcnn_block_forward.11} parent=5 // pred_check_branch
      %183 = sbr.rel (%p180) target = $region12
    $region11: #{afrcnn_block_forward.11} parent=5 // pred_region
      %s184 = ssub.s32 %s13, 1
      // Predicated region
      $region13: #{afrcnn_block_forward.11} parent=11 // pred_check
        %p185 = pneg %p60
      $region14: #{afrcnn_block_forward.11} parent=11 // pred_check_branch
        %187 = sbr.rel (%p185) target = $region16
      $region15: #{afrcnn_block_forward.11} parent=11 // pred_region
        _
      $region16: #{afrcnn_block_forward.11} parent=11 // pred_fallthru
        _
      // Predicated region
      $region17: #{afrcnn_block_forward.11} parent=11 // pred_check
        %p188 = pneg %p81
      $region18: #{afrcnn_block_forward.11} parent=11 // pred_check_branch
        %190 = sbr.rel (%p188) target = $region20
      $region19: #{afrcnn_block_forward.11} parent=11 // pred_region
        _
      $region20: #{afrcnn_block_forward.11} parent=11 // pred_fallthru
        _
      // Predicated region
      $region21: #{afrcnn_block_forward.11} parent=11 // pred_check
        %p191 = pneg %p102
      $region22: #{afrcnn_block_forward.11} parent=11 // pred_check_branch
        %193 = sbr.rel (%p191) target = $region24
      $region23: #{afrcnn_block_forward.11} parent=11 // pred_region
        _
      $region24: #{afrcnn_block_forward.11} parent=11 // pred_fallthru
        _
      // Predicated region
      $region25: #{afrcnn_block_forward.11} parent=11 // pred_check
        %p194 = pneg %p123
      $region26: #{afrcnn_block_forward.11} parent=11 // pred_check_branch
        %196 = sbr.rel (%p194) target = $region28
      $region27: #{afrcnn_block_forward.11} parent=11 // pred_region
        _
      $region28: #{afrcnn_block_forward.11} parent=11 // pred_fallthru
        _
      // Predicated region
      $region29: #{afrcnn_block_forward.11} parent=11 // pred_check
        %p197 = pneg %p144
      $region30: #{afrcnn_block_forward.11} parent=11 // pred_check_branch
        %199 = sbr.rel (%p197) target = $region32
      $region31: #{afrcnn_block_forward.11} parent=11 // pred_region
        _
      $region32: #{afrcnn_block_forward.11} parent=11 // pred_fallthru
        _
    $region12: #{afrcnn_block_forward.11} parent=5 // pred_fallthru
      _
    %p200 = scmp.lt.s32.totalorder %s13, 2
    // Predicated region
    $region33: #{afrcnn_block_forward.11} parent=5 // pred_check
      %p201 = pneg %p200
    $region34: #{afrcnn_block_forward.11} parent=5 // pred_check_branch
      %203 = sbr.rel (%p201) target = $region36
    $region35: #{afrcnn_block_forward.11} parent=5 // pred_region
      // Predicated region
      $region37: #{afrcnn_block_forward.11} parent=35 // pred_check
        %p204 = pneg %p33
      $region38: #{afrcnn_block_forward.11} parent=35 // pred_check_branch
        %206 = sbr.rel (%p204) target = $region40
      $region39: #{afrcnn_block_forward.11} parent=35 // pred_region
        %p207 = scmp.lt.s32.totalorder %s13, 1
        %s208 = scalar_select %p207, %s13, 1
        %s209 = smul.addr %s208, 2
        %s210 = smul.addr %s209, 8
        %s211 = scalar_lea.vmem %s0, %s210
      $region40: #{afrcnn_block_forward.11} parent=35 // pred_fallthru
        _
    $region36: #{afrcnn_block_forward.11} parent=5 // pred_fallthru
      _
    %p212 = scmp.le.s32.totalorder 1, %s13
    %p213 = scmp.lt.s32.totalorder %s13, 3
    %p214 = pnand %p212, %p213
    %p215 = pneg %p214
    // Predicated region
    $region41: #{afrcnn_block_forward.11} parent=5 // pred_check
      _
    $region42: #{afrcnn_block_forward.11} parent=5 // pred_check_branch
      %217 = sbr.rel (%p214) target = $region44
    $region43: #{afrcnn_block_forward.11} parent=5 // pred_region
      %s218 = ssub.s32 %s13, 1
      %p219 = scmp.lt.s32.totalorder %s18, 1
      %s220 = scalar_select %p219, %s18, 1
      %s221 = smul.addr %s220, 2
      %s222 = smul.addr %s221, 8
      %s223 = scalar_lea.vmem %s0, %s222
      %p224 = pneg %p39
      %p225 = pneg %p36
      %p226 = pneg %p60
      %p227 = pneg %p57
      %p228 = pneg %p81
      %p229 = pneg %p78
      %p230 = pneg %p102
      %p231 = pneg %p99
      %p232 = pneg %p123
      %p233 = pneg %p120
      %p234 = pneg %p144
      %p235 = pneg %p141
      %p236 = pneg %p170
      %p237 = pneg %p167
      %p238 = scmp.lt.s32.totalorder %s18, 1
      %s239 = scalar_select %p238, %s18, 1
      %s240 = smul.addr %s239, 4
      %s241 = smul.addr %s240, 4
      %s242 = scalar_lea.vmem %s6, %s241
      %p243 = scmp.lt.s32.totalorder %s18, 1
      %s244 = scalar_select %p243, %s18, 1
      %s245 = smul.addr %s244, 2
      %s246 = smul.addr %s245, 8
      %s247 = scalar_lea.vmem %s0, %s246
      %p248 = scmp.lt.s32.totalorder %s18, 1
      %s249 = scalar_select %p248, %s18, 1
      %s250 = smul.addr %s249, 4
      %s251 = smul.addr %s250, 4
      %s252 = scalar_lea.vmem %s6, %s251
      %v254 = vld [vmem:[%s1] sm:$0xf]
      %v255 = vld [vmem:[%s1 + $0x4] sm:$0xf]
      %v256 = vld [vmem:[%s1 + $0x8] sm:$0xf]
      %v257 = vld [vmem:[%s1 + $0xc] sm:$0xf]
      %v258 = vld [vmem:[%s247] sm:$0xff]
      %v259 = vld [vmem:[%s247 + $0x8] sm:$0xff]
      %v260 = vpack.c.bf16 %v259, %v258
      %v261 = vld [vmem:[%s2] sm:$0xff]
      %v262 = vld [vmem:[%s2 + $0x8] sm:$0xff]
      %v263 = vld [vmem:[%s2 + $0x10] sm:$0xff]
      %v264 = vld [vmem:[%s2 + $0x18] sm:$0xff]
      %266 = vset.pattern.permute.xlu0 0
      %267 = vperm.xlu0 %266, %v261
      %v268 = vpop.permute.xlu0 %267
      %271 = vset.pattern.permute.xlu0 0
      %272 = vperm.xlu0 %271, %v262
      %v273 = vpop.permute.xlu0 %272
      %276 = vset.pattern.permute.xlu0 0
      %277 = vperm.xlu0 %276, %v263
      %v278 = vpop.permute.xlu0 %277
      %281 = vset.pattern.permute.xlu0 0
      %282 = vperm.xlu0 %281, %v264
      %v283 = vpop.permute.xlu0 %282
      %v289 = vunpack.c.l.b16 %v254
      %v290 = vunpack.c.l.b16 %v255
      %v291 = vunpack.c.l.b16 %v256
      %v292 = vunpack.c.l.b16 %v257
      %v293 = vpack.c.b16 %v290, %v289
      %v294 = vpack.c.b16 %v292, %v291
      %vm295 = vcmask 130048
      %v297 = vsel %vm295, %v293, 0
      %v300 = vsel %vm295, %v294, 0
      %302 = vmatprep.subr.bf16.mxu0 0
      %303 = vmatpush1.bf16.msra.mxu0 0
      %304 = vmatprep.subr.bf16.mxu0 0
      %305 = vmatpush1.bf16.msra.mxu0 0
      %306 = vmatprep.subr.bf16.mxu0 0
      %307 = vmatpush1.bf16.msra.mxu0 0
      %308 = vmatprep.subr.bf16.mxu0 0
      %309 = vmatpush1.bf16.msra.mxu0 0
      %310 = vmatprep.subr.bf16.mxu0 0
      %311 = vmatpush1.bf16.msra.mxu0 0
      %312 = vmatprep.subr.bf16.mxu0 0
      %313 = vmatpush1.bf16.msra.mxu0 0
      %314 = vmatprep.subr.bf16.mxu0 0
      %315 = vmatpush1.bf16.msra.mxu0 0
      %316 = vmatprep.subr.bf16.mxu0 0
      %317 = vmatpush1.bf16.msra.mxu0 %v260
      %318 = vmatprep.subr.bf16.mxu0 0
      %319 = vmatpush2.bf16.msra.mxu0 0
      %320 = vmatprep.subr.bf16.mxu0 0
      %321 = vmatpush2.bf16.msra.mxu0 0
      %322 = vmatprep.subr.bf16.mxu0 0
      %323 = vmatpush2.bf16.msra.mxu0 0
      %324 = vmatprep.subr.bf16.mxu0 0
      %325 = vmatpush2.bf16.msra.mxu0 0
      %326 = vmatprep.subr.bf16.mxu0 0
      %327 = vmatpush2.bf16.msra.mxu0 0
      %328 = vmatprep.subr.bf16.mxu0 0
      %329 = vmatpush2.bf16.msra.mxu0 0
      %330 = vmatprep.subr.bf16.mxu0 0
      %331 = vmatpush2.bf16.msra.mxu0 0
      %332 = vmatprep.subr.bf16.mxu0 0
      %333 = vmatpush2.bf16.msra.mxu0 0
      %334 = vmatprep.mubr.bf16.mxu0 0
      %335 = vmatmul.mubr.bf16.gmra.mxu0 %v297
      %v336 = vpop.f32.mrf.mxu0
      %v337 = vadd.f32 %v268, %v336
      %v338 = vpop.f32.mrf.mxu0
      %v339 = vpop.f32.mrf.mxu0
      %v340 = vadd.f32 %v273, %v339
      %v341 = vpop.f32.mrf.mxu0
      %342 = vmatprep.mubr.bf16.mxu0 0
      %343 = vmatmul.mubr.bf16.gmra.mxu0 %v300
      %v344 = vpop.f32.mrf.mxu0
      %v345 = vadd.f32 %v278, %v344
      %v346 = vpop.f32.mrf.mxu0
      %v347 = vpop.f32.mrf.mxu0
      %v348 = vadd.f32 %v283, %v347
      %v349 = vpop.f32.mrf.mxu0
      %350 = vdwg.mxu0
      %v351 = vld [vmem:[%s3] sm:$0xff]
      %v352 = vld [vmem:[%s3 + $0x8] sm:$0xff]
      %v353 = vld [vmem:[%s3 + $0x10] sm:$0xff]
      %v354 = vld [vmem:[%s3 + $0x18] sm:$0xff]
      %v355 = vld [vmem:[%s4] sm:$0xff]
      %v356 = vld [vmem:[%s4 + $0x8] sm:$0xff]
      %v357 = vld [vmem:[%s4 + $0x10] sm:$0xff]
      %v358 = vld [vmem:[%s4 + $0x18] sm:$0xff]
      %vm359 = vcmask 261120
      %v360 = vsel %vm359, %v337, 0.0
      %v361 = vsel %vm359, %v340, 0.0
      %v362 = vadd.f32 %v360, %v361
      %v363 = vsel %vm359, %v345, 0.0
      %v364 = vadd.f32 %v362, %v363
      %v365 = vsel %vm359, %v348, 0.0
      %v366 = vadd.f32 %v364, %v365
      %367 = vadd.xlane.f32.xlu0 %v366
      %v368 = vpop.xlane.xlu0 %367
      %v369 = vrot.slane %v368, 4
      %v370 = vadd.f32 %v368, %v369
      %v371 = vrot.slane %v370, 2
      %v372 = vadd.f32 %v370, %v371
      %v373 = vrot.slane %v372, 1
      %v374 = vadd.f32 %v372, %v373
      %s375 = vtos %v374
      %v376 = vmul.f32 %v337, %v337
      %v377 = vmul.f32 %v340, %v340
      %v378 = vmul.f32 %v345, %v345
      %v379 = vmul.f32 %v348, %v348
      %v380 = vsel %vm359, %v376, 0.0
      %v381 = vsel %vm359, %v377, 0.0
      %v382 = vadd.f32 %v380, %v381
      %v383 = vsel %vm359, %v378, 0.0
      %v384 = vadd.f32 %v382, %v383
      %v385 = vsel %vm359, %v379, 0.0
      %v386 = vadd.f32 %v384, %v385
      %387 = vadd.xlane.f32.xlu0 %v386
      %v388 = vpop.xlane.xlu0 %387
      %v389 = vrot.slane %v388, 4
      %v390 = vadd.f32 %v388, %v389
      %v391 = vrot.slane %v390, 2
      %v392 = vadd.f32 %v390, %v391
      %v393 = vrot.slane %v392, 1
      %v394 = vadd.f32 %v392, %v393
      %s395 = vtos %v394
      %v396 = vrcp.pop 1024.0
      %s397 = vtos %v396
      %s398 = smul.f32 %s375, %s397
      %v399 = vrcp.pop 1024.0
      %s400 = vtos %v399
      %s401 = smul.f32 %s395, %s400
      %s402 = smul.f32 %s398, %s398
      %s403 = ssub.f32 %s401, %s402
      %s404 = smax.f32 %s403, 0.0
      %v405 = vstv %s398
      %v406 = vsub.f32 %v337, %v405
      %v407 = vsub.f32 %v340, %v405
      %v408 = vsub.f32 %v345, %v405
      %v409 = vsub.f32 %v348, %v405
      %s410 = sadd.f32 %s404, 1e-08
      %v411 = vstv %s410
      %v412 = vrsqrt.pop %v411
      %s413 = vtos %v412
      %v414 = vstv %s413
      %v415 = vmul.f32 %v406, %v414
      %v416 = vmul.f32 %v407, %v414
      %v417 = vmul.f32 %v408, %v414
      %v418 = vmul.f32 %v409, %v414
      %420 = vset.pattern.permute.xlu0 0
      %421 = vperm.xlu0 %420, %v351
      %v422 = vpop.permute.xlu0 %421
      %425 = vset.pattern.permute.xlu0 0
      %426 = vperm.xlu0 %425, %v352
      %v427 = vpop.permute.xlu0 %426
      %430 = vset.pattern.permute.xlu0 0
      %431 = vperm.xlu0 %430, %v353
      %v432 = vpop.permute.xlu0 %431
      %435 = vset.pattern.permute.xlu0 0
      %436 = vperm.xlu0 %435, %v354
      %v437 = vpop.permute.xlu0 %436
      %v439 = vmul.f32 %v415, %v422
      %v440 = vmul.f32 %v416, %v427
      %v441 = vmul.f32 %v417, %v432
      %v442 = vmul.f32 %v418, %v437
      %444 = vset.pattern.permute.xlu0 0
      %445 = vperm.xlu0 %444, %v355
      %v446 = vpop.permute.xlu0 %445
      %449 = vset.pattern.permute.xlu0 0
      %450 = vperm.xlu0 %449, %v356
      %v451 = vpop.permute.xlu0 %450
      %454 = vset.pattern.permute.xlu0 0
      %455 = vperm.xlu0 %454, %v357
      %v456 = vpop.permute.xlu0 %455
      %459 = vset.pattern.permute.xlu0 0
      %460 = vperm.xlu0 %459, %v358
      %v461 = vpop.permute.xlu0 %460
      %v463 = vadd.f32 %v439, %v446
      %v464 = vadd.f32 %v440, %v451
      %v465 = vadd.f32 %v441, %v456
      %v466 = vadd.f32 %v442, %v461
      %s467 = sld [smem:[#allocation2]]
      %vm468 = vcmp.ge.f32.partialorder %v463, 0.0
      %vm469 = vcmp.ge.f32.partialorder %v464, 0.0
      %vm470 = vcmp.ge.f32.partialorder %v465, 0.0
      %vm471 = vcmp.ge.f32.partialorder %v466, 0.0
      %v472 = vstv %s467
      %v473 = vmul.f32 %v472, %v463
      %v474 = vmul.f32 %v472, %v464
      %v475 = vmul.f32 %v472, %v465
      %v476 = vmul.f32 %v472, %v466
      %v477 = vsel %vm468, %v463, %v473
      %v478 = vsel %vm469, %v464, %v474
      %v479 = vsel %vm470, %v465, %v475
      %v480 = vsel %vm471, %v466, %v476
      %v481 = vpack.c.bf16 %v478, %v477
      %v482 = vpack.c.bf16 %v480, %v479
      %v485 = vunpack.c.l.b16 %v481
      %v486 = vunpack.c.h.b16 %v481
      %v487 = vunpack.c.l.b16 %v482
      %v488 = vunpack.c.h.b16 %v482
      %v489 = vpack.c.b16 %v485, %v485
      %v490 = vpack.c.b16 %v486, %v486
      %v491 = vpack.c.b16 %v487, %v487
      %v492 = vpack.c.b16 %v488, %v488
      %vm497 = vcmask 257024
      %498 = vst.msk [vmem:[%s252] sm:$0xf] %vm497, %v489
      %499 = vst.msk [vmem:[%s252 + $0x4] sm:$0xf] %vm497, %v490
      %500 = vst.msk [vmem:[%s252 + $0x8] sm:$0xf] %vm497, %v491
      %501 = vst.msk [vmem:[%s252 + $0xc] sm:$0xf] %vm497, %v492
      %p502 = scmp.lt.s32.totalorder %s18, 1
      %s503 = scalar_select %p502, %s18, 1
      %s504 = smul.addr %s503, 4
      %s505 = smul.addr %s504, 4
      %s506 = scalar_lea.vmem %s6, %s505
      // Predicated region
      $region45: #{afrcnn_block_forward.11} parent=43 // pred_check
        %p507 = pneg %p167
      $region46: #{afrcnn_block_forward.11} parent=43 // pred_check_branch
        %509 = sbr.rel (%p507) target = $region48
      $region47: #{afrcnn_block_forward.11} parent=43 // pred_region
        _
      $region48: #{afrcnn_block_forward.11} parent=43 // pred_fallthru
        _
    $region44: #{afrcnn_block_forward.11} parent=5 // pred_fallthru
      _
    %p510 = scmp.le.s32.totalorder 2, %s13
    // Predicated region
    $region49: #{afrcnn_block_forward.11} parent=5 // pred_check
      %p511 = pneg %p510
    $region50: #{afrcnn_block_forward.11} parent=5 // pred_check_branch
      %513 = sbr.rel (%p511) target = $region52
    $region51: #{afrcnn_block_forward.11} parent=5 // pred_region
      %s514 = ssub.s32 %s13, 2
      // Predicated region
      $region53: #{afrcnn_block_forward.11} parent=51 // pred_check
        %p515 = pneg %p173
      $region54: #{afrcnn_block_forward.11} parent=51 // pred_check_branch
        %517 = sbr.rel (%p515) target = $region56
      $region55: #{afrcnn_block_forward.11} parent=51 // pred_region
        %p518 = scmp.lt.s32.totalorder %s19, 1
        %s519 = scalar_select %p518, %s19, 1
        %s520 = smul.addr %s519, 4
        %s521 = smul.addr %s520, 4
        %s522 = scalar_lea.vmem %s6, %s521
      $region56: #{afrcnn_block_forward.11} parent=51 // pred_fallthru
        _
    $region52: #{afrcnn_block_forward.11} parent=5 // pred_fallthru
      _
  $region6: #{afrcnn_block_forward.11} parent=0 // loop_footer
    %s17 = sadd.s32 1, %s13
  $region7: #{afrcnn_block_forward.11} parent=0 // loop_footer_branch
    %12 = sbr.rel target = $region3
  $region8: #{afrcnn_block_forward.11} parent=0 // loop_exit
    _

// kernel: afrcnn_block_forward.12
$region0: #{afrcnn_block_forward.12}
  #allocation0 [shape = 'u32[]', space=smem, size = 0x4, offset = 0x4, fixed_abs, tag = 'smem constant byte address 0x4 - core index']
  #allocation1 [shape = 'u32[144,128]{1,0:T(1,128)}', space=vmem, size = 0x12000, scoped, tag = 'internal scratch']
  %s0 = inlined_call_operand.vmem [shape: bf16[2,32,36], index: 0, kind: input, shape index: {}]
  %s1 = inlined_call_operand.vmem [shape: f32[32,5], index: 1, kind: input, shape index: {}]
  %s2 = inlined_call_operand.vmem [shape: f32[32,1], index: 2, kind: input, shape index: {}]
  %s3 = inlined_call_operand.vmem [shape: f32[32,1], index: 3, kind: input, shape index: {}]
  %s4 = inlined_call_operand.vmem [shape: f32[32,1], index: 4, kind: input, shape index: {}]
  %s5 = inlined_call_operand.vmem [shape: bf16[2,32,32], index: 5, kind: output, shape index: {}]
  %s6 = sld [smem:[#allocation0]]
  $region53: #{afrcnn_block_forward.12} parent=0
    _
  %s8 = ssub.s32 1, %s6
  %s9 = scalar_select 0, %s8, %s6
  loop: start=0, step=1, limit=4
  $region2: #{afrcnn_block_forward.12} parent=0 // loop_pre_header
    _
  $region3: #{afrcnn_block_forward.12} parent=0 // loop_header
    %s11 = sphi 0, %s15
    %p12 = scmp.ge.s32.totalorder %s11, 4
    %s21 = sphi 0, %s23
    %s24 = sphi 0, %s21
    %s25 = sphi 0, %s24
    %s41 = sphi 0, %s25
    %s45 = sphi 0, %s45
    %s47 = sphi 0, %s45
    %s48 = sphi 0, %s47
    %s62 = sphi 0, %s48
    %s66 = sphi 0, %s66
    %s68 = sphi 0, %s66
    %s69 = sphi 0, %s68
    %s83 = sphi 0, %s69
    %s87 = sphi 0, %s87
    %s89 = sphi 0, %s87
    %s90 = sphi 0, %s89
    %s104 = sphi 0, %s90
    %s108 = sphi 0, %s108
    %s110 = sphi 0, %s108
    %s111 = sphi 0, %s110
    %s125 = sphi 0, %s111
    %s131 = sphi 0, %s133
    %s134 = sphi 0, %s131
    %s135 = sphi 0, %s134
    %s151 = sphi 0, %s135
  $region4: #{afrcnn_block_forward.12} parent=0 // loop_header_branch
    %14 = sbr.rel (%p12) target = $region8
  $region5: #{afrcnn_block_forward.12} parent=0 // loop_body
    %s16 = ssub.s32 %s11, 1
    %s17 = ssub.s32 %s11, 2
    %s18 = sadd.s32 %s11, 1
    %s19 = ssub.s32 %s11, %s18
    %p20 = scmp.eq.s32.totalorder %s19, 0
    %s22 = sadd.s32 %s21, 1
    %s23 = scalar_select %p20, %s21, %s22
    %p26 = pneg %p20
    %p27 = scmp.eq.s32.totalorder %s11, 1
    %p28 = por %p26, %p27
    %p29 = scmp.ne.s32.totalorder %s21, %s24
    %p30 = scmp.eq.s32.totalorder %s11, 0
    %p31 = por %p29, %p30
    %p32 = scmp.ne.s32.totalorder %s21, %s24
    %p33 = scmp.eq.s32.totalorder %s16, 1
    %p34 = por %p32, %p33
    %p35 = scmp.ne.s32.totalorder %s24, %s25
    %p36 = scmp.eq.s32.totalorder %s16, 0
    %p37 = por %p35, %p36
    %p38 = scmp.ne.s32.totalorder %s24, %s25
    %p39 = scmp.eq.s32.totalorder %s17, 1
    %p40 = por %p38, %p39
    %p42 = scmp.ne.s32.totalorder %s25, %s41
    %p43 = scmp.eq.s32.totalorder %s17, 0
    %p44 = por %p42, %p43
    %s46 = sadd.s32 %s45, 1
    %p49 = scmp.eq.s32.totalorder %s11, 1
    %p50 = scmp.ne.s32.totalorder %s45, %s47
    %p51 = scmp.eq.s32.totalorder %s11, 0
    %p52 = por %p50, %p51
    %p53 = scmp.ne.s32.totalorder %s45, %s47
    %p54 = scmp.eq.s32.totalorder %s16, 1
    %p55 = por %p53, %p54
    %p56 = scmp.ne.s32.totalorder %s47, %s48
    %p57 = scmp.eq.s32.totalorder %s16, 0
    %p58 = por %p56, %p57
    %p59 = scmp.ne.s32.totalorder %s47, %s48
    %p60 = scmp.eq.s32.totalorder %s17, 1
    %p61 = por %p59, %p60
    %p63 = scmp.ne.s32.totalorder %s48, %s62
    %p64 = scmp.eq.s32.totalorder %s17, 0
    %p65 = por %p63, %p64
    %s67 = sadd.s32 %s66, 1
    %p70 = scmp.eq.s32.totalorder %s11, 1
    %p71 = scmp.ne.s32.totalorder %s66, %s68
    %p72 = scmp.eq.s32.totalorder %s11, 0
    %p73 = por %p71, %p72
    %p74 = scmp.ne.s32.totalorder %s66, %s68
    %p75 = scmp.eq.s32.totalorder %s16, 1
    %p76 = por %p74, %p75
    %p77 = scmp.ne.s32.totalorder %s68, %s69
    %p78 = scmp.eq.s32.totalorder %s16, 0
    %p79 = por %p77, %p78
    %p80 = scmp.ne.s32.totalorder %s68, %s69
    %p81 = scmp.eq.s32.totalorder %s17, 1
    %p82 = por %p80, %p81
    %p84 = scmp.ne.s32.totalorder %s69, %s83
    %p85 = scmp.eq.s32.totalorder %s17, 0
    %p86 = por %p84, %p85
    %s88 = sadd.s32 %s87, 1
    %p91 = scmp.eq.s32.totalorder %s11, 1
    %p92 = scmp.ne.s32.totalorder %s87, %s89
    %p93 = scmp.eq.s32.totalorder %s11, 0
    %p94 = por %p92, %p93
    %p95 = scmp.ne.s32.totalorder %s87, %s89
    %p96 = scmp.eq.s32.totalorder %s16, 1
    %p97 = por %p95, %p96
    %p98 = scmp.ne.s32.totalorder %s89, %s90
    %p99 = scmp.eq.s32.totalorder %s16, 0
    %p100 = por %p98, %p99
    %p101 = scmp.ne.s32.totalorder %s89, %s90
    %p102 = scmp.eq.s32.totalorder %s17, 1
    %p103 = por %p101, %p102
    %p105 = scmp.ne.s32.totalorder %s90, %s104
    %p106 = scmp.eq.s32.totalorder %s17, 0
    %p107 = por %p105, %p106
    %s109 = sadd.s32 %s108, 1
    %p112 = scmp.eq.s32.totalorder %s11, 1
    %p113 = scmp.ne.s32.totalorder %s108, %s110
    %p114 = scmp.eq.s32.totalorder %s11, 0
    %p115 = por %p113, %p114
    %p116 = scmp.ne.s32.totalorder %s108, %s110
    %p117 = scmp.eq.s32.totalorder %s16, 1
    %p118 = por %p116, %p117
    %p119 = scmp.ne.s32.totalorder %s110, %s111
    %p120 = scmp.eq.s32.totalorder %s16, 0
    %p121 = por %p119, %p120
    %p122 = scmp.ne.s32.totalorder %s110, %s111
    %p123 = scmp.eq.s32.totalorder %s17, 1
    %p124 = por %p122, %p123
    %p126 = scmp.ne.s32.totalorder %s111, %s125
    %p127 = scmp.eq.s32.totalorder %s17, 0
    %p128 = por %p126, %p127
    %s129 = ssub.s32 %s11, %s18
    %p130 = scmp.eq.s32.totalorder %s129, 0
    %s132 = sadd.s32 %s131, 1
    %s133 = scalar_select %p130, %s131, %s132
    %p136 = pneg %p130
    %p137 = scmp.eq.s32.totalorder %s11, 1
    %p138 = por %p136, %p137
    %p139 = scmp.ne.s32.totalorder %s131, %s134
    %p140 = scmp.eq.s32.totalorder %s11, 0
    %p141 = por %p139, %p140
    %p142 = scmp.ne.s32.totalorder %s131, %s134
    %p143 = scmp.eq.s32.totalorder %s16, 1
    %p144 = por %p142, %p143
    %p145 = scmp.ne.s32.totalorder %s134, %s135
    %p146 = scmp.eq.s32.totalorder %s16, 0
    %p147 = por %p145, %p146
    %p148 = scmp.ne.s32.totalorder %s134, %s135
    %p149 = scmp.eq.s32.totalorder %s17, 1
    %p150 = por %p148, %p149
    %p152 = scmp.ne.s32.totalorder %s135, %s151
    %p153 = scmp.eq.s32.totalorder %s17, 0
    %p154 = por %p152, %p153
    %p155 = scmp.le.s32.totalorder 1, %s11
    %p156 = scmp.lt.s32.totalorder %s11, 3
    %p157 = pnand %p155, %p156
    %p158 = pneg %p157
    // Predicated region
    $region9: #{afrcnn_block_forward.12} parent=5 // pred_check
      _
    $region10: #{afrcnn_block_forward.12} parent=5 // pred_check_branch
      %160 = sbr.rel (%p157) target = $region12
    $region11: #{afrcnn_block_forward.12} parent=5 // pred_region
      %s161 = ssub.s32 %s11, 1
      // Predicated region
      $region13: #{afrcnn_block_forward.12} parent=11 // pred_check
        %p162 = pneg %p58
      $region14: #{afrcnn_block_forward.12} parent=11 // pred_check_branch
        %164 = sbr.rel (%p162) target = $region16
      $region15: #{afrcnn_block_forward.12} parent=11 // pred_region
        _
      $region16: #{afrcnn_block_forward.12} parent=11 // pred_fallthru
        _
      // Predicated region
      $region17: #{afrcnn_block_forward.12} parent=11 // pred_check
        %p165 = pneg %p79
      $region18: #{afrcnn_block_forward.12} parent=11 // pred_check_branch
        %167 = sbr.rel (%p165) target = $region20
      $region19: #{afrcnn_block_forward.12} parent=11 // pred_region
        _
      $region20: #{afrcnn_block_forward.12} parent=11 // pred_fallthru
        _
      // Predicated region
      $region21: #{afrcnn_block_forward.12} parent=11 // pred_check
        %p168 = pneg %p100
      $region22: #{afrcnn_block_forward.12} parent=11 // pred_check_branch
        %170 = sbr.rel (%p168) target = $region24
      $region23: #{afrcnn_block_forward.12} parent=11 // pred_region
        _
      $region24: #{afrcnn_block_forward.12} parent=11 // pred_fallthru
        _
      // Predicated region
      $region25: #{afrcnn_block_forward.12} parent=11 // pred_check
        %p171 = pneg %p121
      $region26: #{afrcnn_block_forward.12} parent=11 // pred_check_branch
        %173 = sbr.rel (%p171) target = $region28
      $region27: #{afrcnn_block_forward.12} parent=11 // pred_region
        _
      $region28: #{afrcnn_block_forward.12} parent=11 // pred_fallthru
        _
    $region12: #{afrcnn_block_forward.12} parent=5 // pred_fallthru
      _
    %p174 = scmp.lt.s32.totalorder %s11, 2
    // Predicated region
    $region29: #{afrcnn_block_forward.12} parent=5 // pred_check
      %p175 = pneg %p174
    $region30: #{afrcnn_block_forward.12} parent=5 // pred_check_branch
      %177 = sbr.rel (%p175) target = $region32
    $region31: #{afrcnn_block_forward.12} parent=5 // pred_region
      // Predicated region
      $region33: #{afrcnn_block_forward.12} parent=31 // pred_check
        %p178 = pneg %p31
      $region34: #{afrcnn_block_forward.12} parent=31 // pred_check_branch
        %180 = sbr.rel (%p178) target = $region36
      $region35: #{afrcnn_block_forward.12} parent=31 // pred_region
        %p181 = scmp.lt.s32.totalorder %s11, 1
        %s182 = scalar_select %p181, %s11, 1
        %s183 = smul.addr %s182, 4
        %s184 = smul.addr %s183, 4
        %s185 = scalar_lea.vmem %s0, %s184
      $region36: #{afrcnn_block_forward.12} parent=31 // pred_fallthru
        _
    $region32: #{afrcnn_block_forward.12} parent=5 // pred_fallthru
      _
    %p186 = scmp.le.s32.totalorder 1, %s11
    %p187 = scmp.lt.s32.totalorder %s11, 3
    %p188 = pnand %p186, %p187
    %p189 = pneg %p188
    // Predicated region
    $region37: #{afrcnn_block_forward.12} parent=5 // pred_check
      _
    $region38: #{afrcnn_block_forward.12} parent=5 // pred_check_branch
      %191 = sbr.rel (%p188) target = $region40
    $region39: #{afrcnn_block_forward.12} parent=5 // pred_region
      %s192 = ssub.s32 %s11, 1
      %p193 = scmp.lt.s32.totalorder %s16, 1
      %s194 = scalar_select %p193, %s16, 1
      %s195 = smul.addr %s194, 4
      %s196 = smul.addr %s195, 4
      %s197 = scalar_lea.vmem %s0, %s196
      %p198 = pneg %p37
      %p199 = pneg %p34
      %p200 = pneg %p58
      %p201 = pneg %p55
      %p202 = pneg %p79
      %p203 = pneg %p76
      %p204 = pneg %p100
      %p205 = pneg %p97
      %p206 = pneg %p121
      %p207 = pneg %p118
      %p208 = pneg %p147
      %p209 = pneg %p144
      %p210 = scmp.lt.s32.totalorder %s16, 1
      %s211 = scalar_select %p210, %s16, 1
      %s212 = smul.addr %s211, 4
      %s213 = smul.addr %s212, 4
      %s214 = scalar_lea.vmem %s5, %s213
      %p215 = scmp.lt.s32.totalorder %s16, 1
      %s216 = scalar_select %p215, %s16, 1
      %s217 = smul.addr %s216, 4
      %s218 = smul.addr %s217, 4
      %s219 = scalar_lea.vmem %s0, %s218
      %p220 = scmp.lt.s32.totalorder %s16, 1
      %s221 = scalar_select %p220, %s16, 1
      %s222 = smul.addr %s221, 4
      %s223 = smul.addr %s222, 4
      %s224 = scalar_lea.vmem %s5, %s223
      %v225 = vld [vmem:[%s1] sm:$0xff]
      %v226 = vld [vmem:[%s1 + $0x8] sm:$0xff]
      %v227 = vld [vmem:[%s1 + $0x10] sm:$0xff]
      %v228 = vld [vmem:[%s1 + $0x18] sm:$0xff]
      %v229 = vld [vmem:[%s219] sm:$0xf]
      %v230 = vld [vmem:[%s219 + $0x4] sm:$0xf]
      %v231 = vld [vmem:[%s219 + $0x8] sm:$0xf]
      %v232 = vld [vmem:[%s219 + $0xc] sm:$0xf]
      %v233 = vunpack.c.l.bf16 %v229
      %v234 = vunpack.c.l.bf16 %v230
      %v235 = vunpack.c.l.bf16 %v231
      %v236 = vunpack.c.l.bf16 %v232
      %238 = vset.pattern.permute.xlu0 0
      %239 = vperm.xlu0 %238, %v225
      %v240 = vpop.permute.xlu0 %239
      %243 = vset.pattern.permute.xlu0 0
      %244 = vperm.xlu0 %243, %v226
      %v245 = vpop.permute.xlu0 %244
      %248 = vset.pattern.permute.xlu0 0
      %249 = vperm.xlu0 %248, %v227
      %v250 = vpop.permute.xlu0 %249
      %253 = vset.pattern.permute.xlu0 0
      %254 = vperm.xlu0 %253, %v228
      %v255 = vpop.permute.xlu0 %254
      %v257 = vmul.f32 %v240, %v233
      %v258 = vmul.f32 %v245, %v234
      %v259 = vmul.f32 %v250, %v235
      %v260 = vmul.f32 %v255, %v236
      %v261 = vadd.f32 %v257, 0.0
      %v262 = vadd.f32 %v258, 0.0
      %v263 = vadd.f32 %v259, 0.0
      %v264 = vadd.f32 %v260, 0.0
      %265 = vset.pattern.permute.xlu0 1
      %266 = vperm.xlu0 %265, %v225
      %v267 = vpop.permute.xlu0 %266
      %269 = vset.pattern.permute.xlu0 1
      %270 = vperm.xlu0 %269, %v226
      %v271 = vpop.permute.xlu0 %270
      %273 = vset.pattern.permute.xlu0 1
      %274 = vperm.xlu0 %273, %v227
      %v275 = vpop.permute.xlu0 %274
      %277 = vset.pattern.permute.xlu0 1
      %278 = vperm.xlu0 %277, %v228
      %v279 = vpop.permute.xlu0 %278
      %v281 = vmul.f32 %v267, %v233
      %v282 = vmul.f32 %v271, %v234
      %v283 = vmul.f32 %v275, %v235
      %v284 = vmul.f32 %v279, %v236
      %289 = vrot.lane.b32.xlu0 %v281, 127
      %v290 = vpop.permute.xlu0 %289
      %291 = vrot.lane.b32.xlu0 %v282, 127
      %v292 = vpop.permute.xlu0 %291
      %293 = vrot.lane.b32.xlu0 %v283, 127
      %v294 = vpop.permute.xlu0 %293
      %295 = vrot.lane.b32.xlu0 %v284, 127
      %v296 = vpop.permute.xlu0 %295
      %v301 = vadd.f32 %v261, %v290
      %v302 = vadd.f32 %v262, %v292
      %v303 = vadd.f32 %v263, %v294
      %v304 = vadd.f32 %v264, %v296
      %305 = vset.pattern.permute.xlu0 2
      %306 = vperm.xlu0 %305, %v225
      %v307 = vpop.permute.xlu0 %306
      %309 = vset.pattern.permute.xlu0 2
      %310 = vperm.xlu0 %309, %v226
      %v311 = vpop.permute.xlu0 %310
      %313 = vset.pattern.permute.xlu0 2
      %314 = vperm.xlu0 %313, %v227
      %v315 = vpop.permute.xlu0 %314
      %317 = vset.pattern.permute.xlu0 2
      %318 = vperm.xlu0 %317, %v228
      %v319 = vpop.permute.xlu0 %318
      %v321 = vmul.f32 %v307, %v233
      %v322 = vmul.f32 %v311, %v234
      %v323 = vmul.f32 %v315, %v235
      %v324 = vmul.f32 %v319, %v236
      %329 = vrot.lane.b32.xlu0 %v321, 126
      %v330 = vpop.permute.xlu0 %329
      %331 = vrot.lane.b32.xlu0 %v322, 126
      %v332 = vpop.permute.xlu0 %331
      %333 = vrot.lane.b32.xlu0 %v323, 126
      %v334 = vpop.permute.xlu0 %333
      %335 = vrot.lane.b32.xlu0 %v324, 126
      %v336 = vpop.permute.xlu0 %335
      %v341 = vadd.f32 %v301, %v330
      %v342 = vadd.f32 %v302, %v332
      %v343 = vadd.f32 %v303, %v334
      %v344 = vadd.f32 %v304, %v336
      %345 = vset.pattern.permute.xlu0 3
      %346 = vperm.xlu0 %345, %v225
      %v347 = vpop.permute.xlu0 %346
      %349 = vset.pattern.permute.xlu0 3
      %350 = vperm.xlu0 %349, %v226
      %v351 = vpop.permute.xlu0 %350
      %353 = vset.pattern.permute.xlu0 3
      %354 = vperm.xlu0 %353, %v227
      %v355 = vpop.permute.xlu0 %354
      %357 = vset.pattern.permute.xlu0 3
      %358 = vperm.xlu0 %357, %v228
      %v359 = vpop.permute.xlu0 %358
      %v361 = vmul.f32 %v347, %v233
      %v362 = vmul.f32 %v351, %v234
      %v363 = vmul.f32 %v355, %v235
      %v364 = vmul.f32 %v359, %v236
      %369 = vrot.lane.b32.xlu0 %v361, 125
      %v370 = vpop.permute.xlu0 %369
      %371 = vrot.lane.b32.xlu0 %v362, 125
      %v372 = vpop.permute.xlu0 %371
      %373 = vrot.lane.b32.xlu0 %v363, 125
      %v374 = vpop.permute.xlu0 %373
      %375 = vrot.lane.b32.xlu0 %v364, 125
      %v376 = vpop.permute.xlu0 %375
      %v381 = vadd.f32 %v341, %v370
      %v382 = vadd.f32 %v342, %v372
      %v383 = vadd.f32 %v343, %v374
      %v384 = vadd.f32 %v344, %v376
      %385 = vset.pattern.permute.xlu0 4
      %386 = vperm.xlu0 %385, %v225
      %v387 = vpop.permute.xlu0 %386
      %389 = vset.pattern.permute.xlu0 4
      %390 = vperm.xlu0 %389, %v226
      %v391 = vpop.permute.xlu0 %390
      %393 = vset.pattern.permute.xlu0 4
      %394 = vperm.xlu0 %393, %v227
      %v395 = vpop.permute.xlu0 %394
      %397 = vset.pattern.permute.xlu0 4
      %398 = vperm.xlu0 %397, %v228
      %v399 = vpop.permute.xlu0 %398
      %v401 = vmul.f32 %v387, %v233
      %v402 = vmul.f32 %v391, %v234
      %v403 = vmul.f32 %v395, %v235
      %v404 = vmul.f32 %v399, %v236
      %409 = vrot.lane.b32.xlu0 %v401, 124
      %v410 = vpop.permute.xlu0 %409
      %411 = vrot.lane.b32.xlu0 %v402, 124
      %v412 = vpop.permute.xlu0 %411
      %413 = vrot.lane.b32.xlu0 %v403, 124
      %v414 = vpop.permute.xlu0 %413
      %415 = vrot.lane.b32.xlu0 %v404, 124
      %v416 = vpop.permute.xlu0 %415
      %v421 = vadd.f32 %v381, %v410
      %v422 = vadd.f32 %v382, %v412
      %v423 = vadd.f32 %v383, %v414
      %v424 = vadd.f32 %v384, %v416
      %v425 = vld [vmem:[%s2] sm:$0xff]
      %v426 = vld [vmem:[%s2 + $0x8] sm:$0xff]
      %v427 = vld [vmem:[%s2 + $0x10] sm:$0xff]
      %v428 = vld [vmem:[%s2 + $0x18] sm:$0xff]
      %430 = vset.pattern.permute.xlu0 0
      %431 = vperm.xlu0 %430, %v425
      %v432 = vpop.permute.xlu0 %431
      %435 = vset.pattern.permute.xlu0 0
      %436 = vperm.xlu0 %435, %v426
      %v437 = vpop.permute.xlu0 %436
      %440 = vset.pattern.permute.xlu0 0
      %441 = vperm.xlu0 %440, %v427
      %v442 = vpop.permute.xlu0 %441
      %445 = vset.pattern.permute.xlu0 0
      %446 = vperm.xlu0 %445, %v428
      %v447 = vpop.permute.xlu0 %446
      %v449 = vadd.f32 %v421, %v432
      %v450 = vadd.f32 %v422, %v437
      %v451 = vadd.f32 %v423, %v442
      %v452 = vadd.f32 %v424, %v447
      %v453 = vld [vmem:[%s3] sm:$0xff]
      %v454 = vld [vmem:[%s3 + $0x8] sm:$0xff]
      %v455 = vld [vmem:[%s3 + $0x10] sm:$0xff]
      %v456 = vld [vmem:[%s3 + $0x18] sm:$0xff]
      %v457 = vld [vmem:[%s4] sm:$0xff]
      %v458 = vld [vmem:[%s4 + $0x8] sm:$0xff]
      %v459 = vld [vmem:[%s4 + $0x10] sm:$0xff]
      %v460 = vld [vmem:[%s4 + $0x18] sm:$0xff]
      %vm461 = vcmask 261120
      %v462 = vsel %vm461, %v449, 0.0
      %v463 = vsel %vm461, %v450, 0.0
      %v464 = vadd.f32 %v462, %v463
      %v465 = vsel %vm461, %v451, 0.0
      %v466 = vadd.f32 %v464, %v465
      %v467 = vsel %vm461, %v452, 0.0
      %v468 = vadd.f32 %v466, %v467
      %469 = vadd.xlane.f32.xlu0 %v468
      %v470 = vpop.xlane.xlu0 %469
      %v471 = vrot.slane %v470, 4
      %v472 = vadd.f32 %v470, %v471
      %v473 = vrot.slane %v472, 2
      %v474 = vadd.f32 %v472, %v473
      %v475 = vrot.slane %v474, 1
      %v476 = vadd.f32 %v474, %v475
      %s477 = vtos %v476
      %v478 = vmul.f32 %v449, %v449
      %v479 = vmul.f32 %v450, %v450
      %v480 = vmul.f32 %v451, %v451
      %v481 = vmul.f32 %v452, %v452
      %v482 = vsel %vm461, %v478, 0.0
      %v483 = vsel %vm461, %v479, 0.0
      %v484 = vadd.f32 %v482, %v483
      %v485 = vsel %vm461, %v480, 0.0
      %v486 = vadd.f32 %v484, %v485
      %v487 = vsel %vm461, %v481, 0.0
      %v488 = vadd.f32 %v486, %v487
      %489 = vadd.xlane.f32.xlu0 %v488
      %v490 = vpop.xlane.xlu0 %489
      %v491 = vrot.slane %v490, 4
      %v492 = vadd.f32 %v490, %v491
      %v493 = vrot.slane %v492, 2
      %v494 = vadd.f32 %v492, %v493
      %v495 = vrot.slane %v494, 1
      %v496 = vadd.f32 %v494, %v495
      %s497 = vtos %v496
      %v498 = vrcp.pop 1024.0
      %s499 = vtos %v498
      %s500 = smul.f32 %s477, %s499
      %v501 = vrcp.pop 1024.0
      %s502 = vtos %v501
      %s503 = smul.f32 %s497, %s502
      %s504 = smul.f32 %s500, %s500
      %s505 = ssub.f32 %s503, %s504
      %s506 = smax.f32 %s505, 0.0
      %v507 = vstv %s500
      %v508 = vsub.f32 %v449, %v507
      %v509 = vsub.f32 %v450, %v507
      %v510 = vsub.f32 %v451, %v507
      %v511 = vsub.f32 %v452, %v507
      %s512 = sadd.f32 %s506, 1e-08
      %v513 = vstv %s512
      %v514 = vrsqrt.pop %v513
      %s515 = vtos %v514
      %v516 = vstv %s515
      %v517 = vmul.f32 %v508, %v516
      %v518 = vmul.f32 %v509, %v516
      %v519 = vmul.f32 %v510, %v516
      %v520 = vmul.f32 %v511, %v516
      %522 = vset.pattern.permute.xlu0 0
      %523 = vperm.xlu0 %522, %v453
      %v524 = vpop.permute.xlu0 %523
      %527 = vset.pattern.permute.xlu0 0
      %528 = vperm.xlu0 %527, %v454
      %v529 = vpop.permute.xlu0 %528
      %532 = vset.pattern.permute.xlu0 0
      %533 = vperm.xlu0 %532, %v455
      %v534 = vpop.permute.xlu0 %533
      %537 = vset.pattern.permute.xlu0 0
      %538 = vperm.xlu0 %537, %v456
      %v539 = vpop.permute.xlu0 %538
      %v541 = vmul.f32 %v517, %v524
      %v542 = vmul.f32 %v518, %v529
      %v543 = vmul.f32 %v519, %v534
      %v544 = vmul.f32 %v520, %v539
      %546 = vset.pattern.permute.xlu0 0
      %547 = vperm.xlu0 %546, %v457
      %v548 = vpop.permute.xlu0 %547
      %551 = vset.pattern.permute.xlu0 0
      %552 = vperm.xlu0 %551, %v458
      %v553 = vpop.permute.xlu0 %552
      %556 = vset.pattern.permute.xlu0 0
      %557 = vperm.xlu0 %556, %v459
      %v558 = vpop.permute.xlu0 %557
      %561 = vset.pattern.permute.xlu0 0
      %562 = vperm.xlu0 %561, %v460
      %v563 = vpop.permute.xlu0 %562
      %v565 = vadd.f32 %v541, %v548
      %v566 = vadd.f32 %v542, %v553
      %v567 = vadd.f32 %v543, %v558
      %v568 = vadd.f32 %v544, %v563
      %v569 = vpack.c.bf16 %v566, %v565
      %v570 = vpack.c.bf16 %v568, %v567
      %v573 = vunpack.c.l.b16 %v569
      %v574 = vunpack.c.h.b16 %v569
      %v575 = vunpack.c.l.b16 %v570
      %v576 = vunpack.c.h.b16 %v570
      %v577 = vpack.c.b16 %v573, %v573
      %v578 = vpack.c.b16 %v574, %v574
      %v579 = vpack.c.b16 %v575, %v575
      %v580 = vpack.c.b16 %v576, %v576
      %vm585 = vcmask 257024
      %586 = vst.msk [vmem:[%s224] sm:$0xf] %vm585, %v577
      %587 = vst.msk [vmem:[%s224 + $0x4] sm:$0xf] %vm585, %v578
      %588 = vst.msk [vmem:[%s224 + $0x8] sm:$0xf] %vm585, %v579
      %589 = vst.msk [vmem:[%s224 + $0xc] sm:$0xf] %vm585, %v580
      %p590 = scmp.lt.s32.totalorder %s16, 1
      %s591 = scalar_select %p590, %s16, 1
      %s592 = smul.addr %s591, 4
      %s593 = smul.addr %s592, 4
      %s594 = scalar_lea.vmem %s5, %s593
      // Predicated region
      $region41: #{afrcnn_block_forward.12} parent=39 // pred_check
        %p595 = pneg %p144
      $region42: #{afrcnn_block_forward.12} parent=39 // pred_check_branch
        %597 = sbr.rel (%p595) target = $region44
      $region43: #{afrcnn_block_forward.12} parent=39 // pred_region
        _
      $region44: #{afrcnn_block_forward.12} parent=39 // pred_fallthru
        _
    $region40: #{afrcnn_block_forward.12} parent=5 // pred_fallthru
      _
    %p598 = scmp.le.s32.totalorder 2, %s11
    // Predicated region
    $region45: #{afrcnn_block_forward.12} parent=5 // pred_check
      %p599 = pneg %p598
    $region46: #{afrcnn_block_forward.12} parent=5 // pred_check_branch
      %601 = sbr.rel (%p599) target = $region48
    $region47: #{afrcnn_block_forward.12} parent=5 // pred_region
      %s602 = ssub.s32 %s11, 2
      // Predicated region
      $region49: #{afrcnn_block_forward.12} parent=47 // pred_check
        %p603 = pneg %p150
      $region50: #{afrcnn_block_forward.12} parent=47 // pred_check_branch
        %605 = sbr.rel (%p603) target = $region52
      $region51: #{afrcnn_block_forward.12} parent=47 // pred_region
        %p606 = scmp.lt.s32.totalorder %s17, 1
        %s607 = scalar_select %p606, %s17, 1
        %s608 = smul.addr %s607, 4
        %s609 = smul.addr %s608, 4
        %s610 = scalar_lea.vmem %s5, %s609
      $region52: #{afrcnn_block_forward.12} parent=47 // pred_fallthru
        _
    $region48: #{afrcnn_block_forward.12} parent=5 // pred_fallthru
      _
  $region6: #{afrcnn_block_forward.12} parent=0 // loop_footer
    %s15 = sadd.s32 1, %s11
  $region7: #{afrcnn_block_forward.12} parent=0 // loop_footer_branch
    %10 = sbr.rel target = $region3
  $region8: #{afrcnn_block_forward.12} parent=0 // loop_exit
    _

// kernel: afrcnn_block_forward.13
$region0: #{afrcnn_block_forward.13}
  #allocation0 [shape = 'u32[]', space=smem, size = 0x4, offset = 0x4, fixed_abs, tag = 'smem constant byte address 0x4 - core index']
  #allocation1 [shape = 'u32[144,128]{1,0:T(1,128)}', space=vmem, size = 0x12000, scoped, tag = 'internal scratch']
  %s0 = inlined_call_operand.vmem [shape: bf16[2,32,18], index: 0, kind: input, shape index: {}]
  %s1 = inlined_call_operand.vmem [shape: bf16[2,32,17], index: 1, kind: input, shape index: {}]
  %s2 = inlined_call_operand.vmem [shape: f32[32,5], index: 2, kind: input, shape index: {}]
  %s3 = inlined_call_operand.vmem [shape: f32[32,1], index: 3, kind: input, shape index: {}]
  %s4 = inlined_call_operand.vmem [shape: f32[32,1], index: 4, kind: input, shape index: {}]
  %s5 = inlined_call_operand.vmem [shape: f32[32,1], index: 5, kind: input, shape index: {}]
  %s6 = inlined_call_operand.vmem [shape: f32[32,5], index: 6, kind: input, shape index: {}]
  %s7 = inlined_call_operand.vmem [shape: f32[32,1], index: 7, kind: input, shape index: {}]
  %s8 = inlined_call_operand.vmem [shape: f32[32,1], index: 8, kind: input, shape index: {}]
  %s9 = inlined_call_operand.vmem [shape: f32[32,1], index: 9, kind: input, shape index: {}]
  %s10 = inlined_call_operand.vmem [shape: bf16[2,32,16], index: 10, kind: output, shape index: {0}]
  %s11 = inlined_call_operand.vmem [shape: bf16[2,32,16], index: 11, kind: output, shape index: {1}]
  %12 = xla_tuple %s10, %s11
  %s13 = sld [smem:[#allocation0]]
  $region81: #{afrcnn_block_forward.13} parent=0
    _
  %s15 = ssub.s32 1, %s13
  %s16 = scalar_select 0, %s15, %s13
  loop: start=0, step=1, limit=4
  $region2: #{afrcnn_block_forward.13} parent=0 // loop_pre_header
    _
  $region3: #{afrcnn_block_forward.13} parent=0 // loop_header
    %s18 = sphi 0, %s22
    %p19 = scmp.ge.s32.totalorder %s18, 4
    %s28 = sphi 0, %s30
    %s31 = sphi 0, %s28
    %s32 = sphi 0, %s31
    %s48 = sphi 0, %s32
    %s54 = sphi 0, %s56
    %s57 = sphi 0, %s54
    %s58 = sphi 0, %s57
    %s74 = sphi 0, %s58
    %s78 = sphi 0, %s78
    %s80 = sphi 0, %s78
    %s81 = sphi 0, %s80
    %s95 = sphi 0, %s81
    %s99 = sphi 0, %s99
    %s101 = sphi 0, %s99
    %s102 = sphi 0, %s101
    %s116 = sphi 0, %s102
    %s120 = sphi 0, %s120
    %s122 = sphi 0, %s120
    %s123 = sphi 0, %s122
    %s137 = sphi 0, %s123
    %s141 = sphi 0, %s141
    %s143 = sphi 0, %s141
    %s144 = sphi 0, %s143
    %s158 = sphi 0, %s144
    %s162 = sphi 0, %s162
    %s164 = sphi 0, %s162
    %s165 = sphi 0, %s164
    %s179 = sphi 0, %s165
    %s183 = sphi 0, %s183
    %s185 = sphi 0, %s183
    %s186 = sphi 0, %s185
    %s200 = sphi 0, %s186
    %s204 = sphi 0, %s204
    %s206 = sphi 0, %s204
    %s207 = sphi 0, %s206
    %s221 = sphi 0, %s207
    %s225 = sphi 0, %s225
    %s227 = sphi 0, %s225
    %s228 = sphi 0, %s227
    %s242 = sphi 0, %s228
    %s248 = sphi 0, %s250
    %s251 = sphi 0, %s248
    %s252 = sphi 0, %s251
    %s268 = sphi 0, %s252
    %s274 = sphi 0, %s276
    %s277 = sphi 0, %s274
    %s278 = sphi 0, %s277
    %s294 = sphi 0, %s278
  $region4: #{afrcnn_block_forward.13} parent=0 // loop_header_branch
    %21 = sbr.rel (%p19) target = $region8
  $region5: #{afrcnn_block_forward.13} parent=0 // loop_body
    %s23 = ssub.s32 %s18, 1
    %s24 = ssub.s32 %s18, 2
    %s25 = sadd.s32 %s18, 1
    %s26 = ssub.s32 %s18, %s25
    %p27 = scmp.eq.s32.totalorder %s26, 0
    %s29 = sadd.s32 %s28, 1
    %s30 = scalar_select %p27, %s28, %s29
    %p33 = pneg %p27
    %p34 = scmp.eq.s32.totalorder %s18, 1
    %p35 = por %p33, %p34
    %p36 = scmp.ne.s32.totalorder %s28, %s31
    %p37 = scmp.eq.s32.totalorder %s18, 0
    %p38 = por %p36, %p37
    %p39 = scmp.ne.s32.totalorder %s28, %s31
    %p40 = scmp.eq.s32.totalorder %s23, 1
    %p41 = por %p39, %p40
    %p42 = scmp.ne.s32.totalorder %s31, %s32
    %p43 = scmp.eq.s32.totalorder %s23, 0
    %p44 = por %p42, %p43
    %p45 = scmp.ne.s32.totalorder %s31, %s32
    %p46 = scmp.eq.s32.totalorder %s24, 1
    %p47 = por %p45, %p46
    %p49 = scmp.ne.s32.totalorder %s32, %s48
    %p50 = scmp.eq.s32.totalorder %s24, 0
    %p51 = por %p49, %p50
    %s52 = ssub.s32 %s18, %s25
    %p53 = scmp.eq.s32.totalorder %s52, 0
    %s55 = sadd.s32 %s54, 1
    %s56 = scalar_select %p53, %s54, %s55
    %p59 = pneg %p53
    %p60 = scmp.eq.s32.totalorder %s18, 1
    %p61 = por %p59, %p60
    %p62 = scmp.ne.s32.totalorder %s54, %s57
    %p63 = scmp.eq.s32.totalorder %s18, 0
    %p64 = por %p62, %p63
    %p65 = scmp.ne.s32.totalorder %s54, %s57
    %p66 = scmp.eq.s32.totalorder %s23, 1
    %p67 = por %p65, %p66
    %p68 = scmp.ne.s32.totalorder %s57, %s58
    %p69 = scmp.eq.s32.totalorder %s23, 0
    %p70 = por %p68, %p69
    %p71 = scmp.ne.s32.totalorder %s57, %s58
    %p72 = scmp.eq.s32.totalorder %s24, 1
    %p73 = por %p71, %p72
    %p75 = scmp.ne.s32.totalorder %s58, %s74
    %p76 = scmp.eq.s32.totalorder %s24, 0
    %p77 = por %p75, %p76
    %s79 = sadd.s32 %s78, 1
    %p82 = scmp.eq.s32.totalorder %s18, 1
    %p83 = scmp.ne.s32.totalorder %s78, %s80
    %p84 = scmp.eq.s32.totalorder %s18, 0
    %p85 = por %p83, %p84
    %p86 = scmp.ne.s32.totalorder %s78, %s80
    %p87 = scmp.eq.s32.totalorder %s23, 1
    %p88 = por %p86, %p87
    %p89 = scmp.ne.s32.totalorder %s80, %s81
    %p90 = scmp.eq.s32.totalorder %s23, 0
    %p91 = por %p89, %p90
    %p92 = scmp.ne.s32.totalorder %s80, %s81
    %p93 = scmp.eq.s32.totalorder %s24, 1
    %p94 = por %p92, %p93
    %p96 = scmp.ne.s32.totalorder %s81, %s95
    %p97 = scmp.eq.s32.totalorder %s24, 0
    %p98 = por %p96, %p97
    %s100 = sadd.s32 %s99, 1
    %p103 = scmp.eq.s32.totalorder %s18, 1
    %p104 = scmp.ne.s32.totalorder %s99, %s101
    %p105 = scmp.eq.s32.totalorder %s18, 0
    %p106 = por %p104, %p105
    %p107 = scmp.ne.s32.totalorder %s99, %s101
    %p108 = scmp.eq.s32.totalorder %s23, 1
    %p109 = por %p107, %p108
    %p110 = scmp.ne.s32.totalorder %s101, %s102
    %p111 = scmp.eq.s32.totalorder %s23, 0
    %p112 = por %p110, %p111
    %p113 = scmp.ne.s32.totalorder %s101, %s102
    %p114 = scmp.eq.s32.totalorder %s24, 1
    %p115 = por %p113, %p114
    %p117 = scmp.ne.s32.totalorder %s102, %s116
    %p118 = scmp.eq.s32.totalorder %s24, 0
    %p119 = por %p117, %p118
    %s121 = sadd.s32 %s120, 1
    %p124 = scmp.eq.s32.totalorder %s18, 1
    %p125 = scmp.ne.s32.totalorder %s120, %s122
    %p126 = scmp.eq.s32.totalorder %s18, 0
    %p127 = por %p125, %p126
    %p128 = scmp.ne.s32.totalorder %s120, %s122
    %p129 = scmp.eq.s32.totalorder %s23, 1
    %p130 = por %p128, %p129
    %p131 = scmp.ne.s32.totalorder %s122, %s123
    %p132 = scmp.eq.s32.totalorder %s23, 0
    %p133 = por %p131, %p132
    %p134 = scmp.ne.s32.totalorder %s122, %s123
    %p135 = scmp.eq.s32.totalorder %s24, 1
    %p136 = por %p134, %p135
    %p138 = scmp.ne.s32.totalorder %s123, %s137
    %p139 = scmp.eq.s32.totalorder %s24, 0
    %p140 = por %p138, %p139
    %s142 = sadd.s32 %s141, 1
    %p145 = scmp.eq.s32.totalorder %s18, 1
    %p146 = scmp.ne.s32.totalorder %s141, %s143
    %p147 = scmp.eq.s32.totalorder %s18, 0
    %p148 = por %p146, %p147
    %p149 = scmp.ne.s32.totalorder %s141, %s143
    %p150 = scmp.eq.s32.totalorder %s23, 1
    %p151 = por %p149, %p150
    %p152 = scmp.ne.s32.totalorder %s143, %s144
    %p153 = scmp.eq.s32.totalorder %s23, 0
    %p154 = por %p152, %p153
    %p155 = scmp.ne.s32.totalorder %s143, %s144
    %p156 = scmp.eq.s32.totalorder %s24, 1
    %p157 = por %p155, %p156
    %p159 = scmp.ne.s32.totalorder %s144, %s158
    %p160 = scmp.eq.s32.totalorder %s24, 0
    %p161 = por %p159, %p160
    %s163 = sadd.s32 %s162, 1
    %p166 = scmp.eq.s32.totalorder %s18, 1
    %p167 = scmp.ne.s32.totalorder %s162, %s164
    %p168 = scmp.eq.s32.totalorder %s18, 0
    %p169 = por %p167, %p168
    %p170 = scmp.ne.s32.totalorder %s162, %s164
    %p171 = scmp.eq.s32.totalorder %s23, 1
    %p172 = por %p170, %p171
    %p173 = scmp.ne.s32.totalorder %s164, %s165
    %p174 = scmp.eq.s32.totalorder %s23, 0
    %p175 = por %p173, %p174
    %p176 = scmp.ne.s32.totalorder %s164, %s165
    %p177 = scmp.eq.s32.totalorder %s24, 1
    %p178 = por %p176, %p177
    %p180 = scmp.ne.s32.totalorder %s165, %s179
    %p181 = scmp.eq.s32.totalorder %s24, 0
    %p182 = por %p180, %p181
    %s184 = sadd.s32 %s183, 1
    %p187 = scmp.eq.s32.totalorder %s18, 1
    %p188 = scmp.ne.s32.totalorder %s183, %s185
    %p189 = scmp.eq.s32.totalorder %s18, 0
    %p190 = por %p188, %p189
    %p191 = scmp.ne.s32.totalorder %s183, %s185
    %p192 = scmp.eq.s32.totalorder %s23, 1
    %p193 = por %p191, %p192
    %p194 = scmp.ne.s32.totalorder %s185, %s186
    %p195 = scmp.eq.s32.totalorder %s23, 0
    %p196 = por %p194, %p195
    %p197 = scmp.ne.s32.totalorder %s185, %s186
    %p198 = scmp.eq.s32.totalorder %s24, 1
    %p199 = por %p197, %p198
    %p201 = scmp.ne.s32.totalorder %s186, %s200
    %p202 = scmp.eq.s32.totalorder %s24, 0
    %p203 = por %p201, %p202
    %s205 = sadd.s32 %s204, 1
    %p208 = scmp.eq.s32.totalorder %s18, 1
    %p209 = scmp.ne.s32.totalorder %s204, %s206
    %p210 = scmp.eq.s32.totalorder %s18, 0
    %p211 = por %p209, %p210
    %p212 = scmp.ne.s32.totalorder %s204, %s206
    %p213 = scmp.eq.s32.totalorder %s23, 1
    %p214 = por %p212, %p213
    %p215 = scmp.ne.s32.totalorder %s206, %s207
    %p216 = scmp.eq.s32.totalorder %s23, 0
    %p217 = por %p215, %p216
    %p218 = scmp.ne.s32.totalorder %s206, %s207
    %p219 = scmp.eq.s32.totalorder %s24, 1
    %p220 = por %p218, %p219
    %p222 = scmp.ne.s32.totalorder %s207, %s221
    %p223 = scmp.eq.s32.totalorder %s24, 0
    %p224 = por %p222, %p223
    %s226 = sadd.s32 %s225, 1
    %p229 = scmp.eq.s32.totalorder %s18, 1
    %p230 = scmp.ne.s32.totalorder %s225, %s227
    %p231 = scmp.eq.s32.totalorder %s18, 0
    %p232 = por %p230, %p231
    %p233 = scmp.ne.s32.totalorder %s225, %s227
    %p234 = scmp.eq.s32.totalorder %s23, 1
    %p235 = por %p233, %p234
    %p236 = scmp.ne.s32.totalorder %s227, %s228
    %p237 = scmp.eq.s32.totalorder %s23, 0
    %p238 = por %p236, %p237
    %p239 = scmp.ne.s32.totalorder %s227, %s228
    %p240 = scmp.eq.s32.totalorder %s24, 1
    %p241 = por %p239, %p240
    %p243 = scmp.ne.s32.totalorder %s228, %s242
    %p244 = scmp.eq.s32.totalorder %s24, 0
    %p245 = por %p243, %p244
    %s246 = ssub.s32 %s18, %s25
    %p247 = scmp.eq.s32.totalorder %s246, 0
    %s249 = sadd.s32 %s248, 1
    %s250 = scalar_select %p247, %s248, %s249
    %p253 = pneg %p247
    %p254 = scmp.eq.s32.totalorder %s18, 1
    %p255 = por %p253, %p254
    %p256 = scmp.ne.s32.totalorder %s248, %s251
    %p257 = scmp.eq.s32.totalorder %s18, 0
    %p258 = por %p256, %p257
    %p259 = scmp.ne.s32.totalorder %s248, %s251
    %p260 = scmp.eq.s32.totalorder %s23, 1
    %p261 = por %p259, %p260
    %p262 = scmp.ne.s32.totalorder %s251, %s252
    %p263 = scmp.eq.s32.totalorder %s23, 0
    %p264 = por %p262, %p263
    %p265 = scmp.ne.s32.totalorder %s251, %s252
    %p266 = scmp.eq.s32.totalorder %s24, 1
    %p267 = por %p265, %p266
    %p269 = scmp.ne.s32.totalorder %s252, %s268
    %p270 = scmp.eq.s32.totalorder %s24, 0
    %p271 = por %p269, %p270
    %s272 = ssub.s32 %s18, %s25
    %p273 = scmp.eq.s32.totalorder %s272, 0
    %s275 = sadd.s32 %s274, 1
    %s276 = scalar_select %p273, %s274, %s275
    %p279 = pneg %p273
    %p280 = scmp.eq.s32.totalorder %s18, 1
    %p281 = por %p279, %p280
    %p282 = scmp.ne.s32.totalorder %s274, %s277
    %p283 = scmp.eq.s32.totalorder %s18, 0
    %p284 = por %p282, %p283
    %p285 = scmp.ne.s32.totalorder %s274, %s277
    %p286 = scmp.eq.s32.totalorder %s23, 1
    %p287 = por %p285, %p286
    %p288 = scmp.ne.s32.totalorder %s277, %s278
    %p289 = scmp.eq.s32.totalorder %s23, 0
    %p290 = por %p288, %p289
    %p291 = scmp.ne.s32.totalorder %s277, %s278
    %p292 = scmp.eq.s32.totalorder %s24, 1
    %p293 = por %p291, %p292
    %p295 = scmp.ne.s32.totalorder %s278, %s294
    %p296 = scmp.eq.s32.totalorder %s24, 0
    %p297 = por %p295, %p296
    %p298 = scmp.le.s32.totalorder 1, %s18
    %p299 = scmp.lt.s32.totalorder %s18, 3
    %p300 = pnand %p298, %p299
    %p301 = pneg %p300
    // Predicated region
    $region9: #{afrcnn_block_forward.13} parent=5 // pred_check
      _
    $region10: #{afrcnn_block_forward.13} parent=5 // pred_check_branch
      %303 = sbr.rel (%p300) target = $region12
    $region11: #{afrcnn_block_forward.13} parent=5 // pred_region
      %s304 = ssub.s32 %s18, 1
      // Predicated region
      $region13: #{afrcnn_block_forward.13} parent=11 // pred_check
        %p305 = pneg %p91
      $region14: #{afrcnn_block_forward.13} parent=11 // pred_check_branch
        %307 = sbr.rel (%p305) target = $region16
      $region15: #{afrcnn_block_forward.13} parent=11 // pred_region
        _
      $region16: #{afrcnn_block_forward.13} parent=11 // pred_fallthru
        _
      // Predicated region
      $region17: #{afrcnn_block_forward.13} parent=11 // pred_check
        %p308 = pneg %p112
      $region18: #{afrcnn_block_forward.13} parent=11 // pred_check_branch
        %310 = sbr.rel (%p308) target = $region20
      $region19: #{afrcnn_block_forward.13} parent=11 // pred_region
        _
      $region20: #{afrcnn_block_forward.13} parent=11 // pred_fallthru
        _
      // Predicated region
      $region21: #{afrcnn_block_forward.13} parent=11 // pred_check
        %p311 = pneg %p133
      $region22: #{afrcnn_block_forward.13} parent=11 // pred_check_branch
        %313 = sbr.rel (%p311) target = $region24
      $region23: #{afrcnn_block_forward.13} parent=11 // pred_region
        _
      $region24: #{afrcnn_block_forward.13} parent=11 // pred_fallthru
        _
      // Predicated region
      $region25: #{afrcnn_block_forward.13} parent=11 // pred_check
        %p314 = pneg %p154
      $region26: #{afrcnn_block_forward.13} parent=11 // pred_check_branch
        %316 = sbr.rel (%p314) target = $region28
      $region27: #{afrcnn_block_forward.13} parent=11 // pred_region
        _
      $region28: #{afrcnn_block_forward.13} parent=11 // pred_fallthru
        _
      // Predicated region
      $region29: #{afrcnn_block_forward.13} parent=11 // pred_check
        %p317 = pneg %p175
      $region30: #{afrcnn_block_forward.13} parent=11 // pred_check_branch
        %319 = sbr.rel (%p317) target = $region32
      $region31: #{afrcnn_block_forward.13} parent=11 // pred_region
        _
      $region32: #{afrcnn_block_forward.13} parent=11 // pred_fallthru
        _
      // Predicated region
      $region33: #{afrcnn_block_forward.13} parent=11 // pred_check
        %p320 = pneg %p196
      $region34: #{afrcnn_block_forward.13} parent=11 // pred_check_branch
        %322 = sbr.rel (%p320) target = $region36
      $region35: #{afrcnn_block_forward.13} parent=11 // pred_region
        _
      $region36: #{afrcnn_block_forward.13} parent=11 // pred_fallthru
        _
      // Predicated region
      $region37: #{afrcnn_block_forward.13} parent=11 // pred_check
        %p323 = pneg %p217
      $region38: #{afrcnn_block_forward.13} parent=11 // pred_check_branch
        %325 = sbr.rel (%p323) target = $region40
      $region39: #{afrcnn_block_forward.13} parent=11 // pred_region
        _
      $region40: #{afrcnn_block_forward.13} parent=11 // pred_fallthru
        _
      // Predicated region
      $region41: #{afrcnn_block_forward.13} parent=11 // pred_check
        %p326 = pneg %p238
      $region42: #{afrcnn_block_forward.13} parent=11 // pred_check_branch
        %328 = sbr.rel (%p326) target = $region44
      $region43: #{afrcnn_block_forward.13} parent=11 // pred_region
        _
      $region44: #{afrcnn_block_forward.13} parent=11 // pred_fallthru
        _
    $region12: #{afrcnn_block_forward.13} parent=5 // pred_fallthru
      _
    %p329 = scmp.lt.s32.totalorder %s18, 2
    // Predicated region
    $region45: #{afrcnn_block_forward.13} parent=5 // pred_check
      %p330 = pneg %p329
    $region46: #{afrcnn_block_forward.13} parent=5 // pred_check_branch
      %332 = sbr.rel (%p330) target = $region48
    $region47: #{afrcnn_block_forward.13} parent=5 // pred_region
      // Predicated region
      $region49: #{afrcnn_block_forward.13} parent=47 // pred_check
        %p333 = pneg %p38
      $region50: #{afrcnn_block_forward.13} parent=47 // pred_check_branch
        %335 = sbr.rel (%p333) target = $region52
      $region51: #{afrcnn_block_forward.13} parent=47 // pred_region
        %p336 = scmp.lt.s32.totalorder %s18, 1
        %s337 = scalar_select %p336, %s18, 1
        %s338 = smul.addr %s337, 4
        %s339 = smul.addr %s338, 4
        %s340 = scalar_lea.vmem %s0, %s339
      $region52: #{afrcnn_block_forward.13} parent=47 // pred_fallthru
        _
      // Predicated region
      $region53: #{afrcnn_block_forward.13} parent=47 // pred_check
        %p341 = pneg %p64
      $region54: #{afrcnn_block_forward.13} parent=47 // pred_check_branch
        %343 = sbr.rel (%p341) target = $region56
      $region55: #{afrcnn_block_forward.13} parent=47 // pred_region
        %p344 = scmp.lt.s32.totalorder %s18, 1
        %s345 = scalar_select %p344, %s18, 1
        %s346 = smul.addr %s345, 4
        %s347 = smul.addr %s346, 4
        %s348 = scalar_lea.vmem %s1, %s347
      $region56: #{afrcnn_block_forward.13} parent=47 // pred_fallthru
        _
    $region48: #{afrcnn_block_forward.13} parent=5 // pred_fallthru
      _
    %p349 = scmp.le.s32.totalorder 1, %s18
    %p350 = scmp.lt.s32.totalorder %s18, 3
    %p351 = pnand %p349, %p350
    %p352 = pneg %p351
    // Predicated region
    $region57: #{afrcnn_block_forward.13} parent=5 // pred_check
      _
    $region58: #{afrcnn_block_forward.13} parent=5 // pred_check_branch
      %354 = sbr.rel (%p351) target = $region60
    $region59: #{afrcnn_block_forward.13} parent=5 // pred_region
      %s355 = ssub.s32 %s18, 1
      %p356 = scmp.lt.s32.totalorder %s23, 1
      %s357 = scalar_select %p356, %s23, 1
      %s358 = smul.addr %s357, 4
      %s359 = smul.addr %s358, 4
      %s360 = scalar_lea.vmem %s0, %s359
      %p361 = pneg %p44
      %p362 = pneg %p41
      %p363 = scmp.lt.s32.totalorder %s23, 1
      %s364 = scalar_select %p363, %s23, 1
      %s365 = smul.addr %s364, 4
      %s366 = smul.addr %s365, 4
      %s367 = scalar_lea.vmem %s1, %s366
      %p368 = pneg %p70
      %p369 = pneg %p67
      %p370 = pneg %p91
      %p371 = pneg %p88
      %p372 = pneg %p112
      %p373 = pneg %p109
      %p374 = pneg %p133
      %p375 = pneg %p130
      %p376 = pneg %p154
      %p377 = pneg %p151
      %p378 = pneg %p175
      %p379 = pneg %p172
      %p380 = pneg %p196
      %p381 = pneg %p193
      %p382 = pneg %p217
      %p383 = pneg %p214
      %p384 = pneg %p238
      %p385 = pneg %p235
      %p386 = pneg %p264
      %p387 = pneg %p261
      %p388 = scmp.lt.s32.totalorder %s23, 1
      %s389 = scalar_select %p388, %s23, 1
      %s390 = smul.addr %s389, 4
      %s391 = smul.addr %s390, 4
      %s392 = scalar_lea.vmem %s10, %s391
      %p393 = pneg %p290
      %p394 = pneg %p287
      %p395 = scmp.lt.s32.totalorder %s23, 1
      %s396 = scalar_select %p395, %s23, 1
      %s397 = smul.addr %s396, 4
      %s398 = smul.addr %s397, 4
      %s399 = scalar_lea.vmem %s11, %s398
      %p400 = scmp.lt.s32.totalorder %s23, 1
      %s401 = scalar_select %p400, %s23, 1
      %s402 = smul.addr %s401, 4
      %s403 = smul.addr %s402, 4
      %s404 = scalar_lea.vmem %s0, %s403
      %p405 = scmp.lt.s32.totalorder %s23, 1
      %s406 = scalar_select %p405, %s23, 1
      %s407 = smul.addr %s406, 4
      %s408 = smul.addr %s407, 4
      %s409 = scalar_lea.vmem %s1, %s408
      %p410 = scmp.lt.s32.totalorder %s23, 1
      %s411 = scalar_select %p410, %s23, 1
      %s412 = smul.addr %s411, 4
      %s413 = smul.addr %s412, 4
      %s414 = scalar_lea.vmem %s10, %s413
      %p415 = scmp.lt.s32.totalorder %s23, 1
      %s416 = scalar_select %p415, %s23, 1
      %s417 = smul.addr %s416, 4
      %s418 = smul.addr %s417, 4
      %s419 = scalar_lea.vmem %s11, %s418
      %v420 = vld [vmem:[%s2] sm:$0xff]
      %v421 = vld [vmem:[%s2 + $0x8] sm:$0xff]
      %v422 = vld [vmem:[%s2 + $0x10] sm:$0xff]
      %v423 = vld [vmem:[%s2 + $0x18] sm:$0xff]
      %v424 = vld [vmem:[%s6] sm:$0xff]
      %v425 = vld [vmem:[%s6 + $0x8] sm:$0xff]
      %v426 = vld [vmem:[%s6 + $0x10] sm:$0xff]
      %v427 = vld [vmem:[%s6 + $0x18] sm:$0xff]
      %v428 = vld [vmem:[%s404] sm:$0xf]
      %v429 = vld [vmem:[%s404 + $0x4] sm:$0xf]
      %v430 = vld [vmem:[%s404 + $0x8] sm:$0xf]
      %v431 = vld [vmem:[%s404 + $0xc] sm:$0xf]
      %v432 = vunpack.c.l.bf16 %v428
      %v433 = vunpack.c.l.bf16 %v429
      %v434 = vunpack.c.l.bf16 %v430
      %v435 = vunpack.c.l.bf16 %v431
      %437 = vset.pattern.permute.xlu0 0
      %438 = vperm.xlu0 %437, %v420
      %v439 = vpop.permute.xlu0 %438
      %442 = vset.pattern.permute.xlu0 0
      %443 = vperm.xlu0 %442, %v421
      %v444 = vpop.permute.xlu0 %443
      %447 = vset.pattern.permute.xlu0 0
      %448 = vperm.xlu0 %447, %v422
      %v449 = vpop.permute.xlu0 %448
      %452 = vset.pattern.permute.xlu0 0
      %453 = vperm.xlu0 %452, %v423
      %v454 = vpop.permute.xlu0 %453
      %v456 = vmul.f32 %v439, %v432
      %v457 = vmul.f32 %v444, %v433
      %v458 = vmul.f32 %v449, %v434
      %v459 = vmul.f32 %v454, %v435
      %v460 = vadd.f32 %v456, 0.0
      %v461 = vadd.f32 %v457, 0.0
      %v462 = vadd.f32 %v458, 0.0
      %v463 = vadd.f32 %v459, 0.0
      %465 = vset.pattern.permute.xlu0 0
      %466 = vperm.xlu0 %465, %v424
      %v467 = vpop.permute.xlu0 %466
      %470 = vset.pattern.permute.xlu0 0
      %471 = vperm.xlu0 %470, %v425
      %v472 = vpop.permute.xlu0 %471
      %475 = vset.pattern.permute.xlu0 0
      %476 = vperm.xlu0 %475, %v426
      %v477 = vpop.permute.xlu0 %476
      %480 = vset.pattern.permute.xlu0 0
      %481 = vperm.xlu0 %480, %v427
      %v482 = vpop.permute.xlu0 %481
      %v484 = vmul.f32 %v467, %v432
      %v485 = vmul.f32 %v472, %v433
      %v486 = vmul.f32 %v477, %v434
      %v487 = vmul.f32 %v482, %v435
      %v488 = vadd.f32 %v484, 0.0
      %v489 = vadd.f32 %v485, 0.0
      %v490 = vadd.f32 %v486, 0.0
      %v491 = vadd.f32 %v487, 0.0
      %v492 = vld [vmem:[%s409] sm:$0xf]
      %v493 = vld [vmem:[%s409 + $0x4] sm:$0xf]
      %v494 = vld [vmem:[%s409 + $0x8] sm:$0xf]
      %v495 = vld [vmem:[%s409 + $0xc] sm:$0xf]
      %v496 = vunpack.c.l.bf16 %v492
      %v497 = vunpack.c.l.bf16 %v493
      %v498 = vunpack.c.l.bf16 %v494
      %v499 = vunpack.c.l.bf16 %v495
      %500 = vset.pattern.permute.xlu0 1
      %501 = vperm.xlu0 %500, %v420
      %v502 = vpop.permute.xlu0 %501
      %504 = vset.pattern.permute.xlu0 1
      %505 = vperm.xlu0 %504, %v421
      %v506 = vpop.permute.xlu0 %505
      %508 = vset.pattern.permute.xlu0 1
      %509 = vperm.xlu0 %508, %v422
      %v510 = vpop.permute.xlu0 %509
      %512 = vset.pattern.permute.xlu0 1
      %513 = vperm.xlu0 %512, %v423
      %v514 = vpop.permute.xlu0 %513
      %v516 = vmul.f32 %v502, %v496
      %v517 = vmul.f32 %v506, %v497
      %v518 = vmul.f32 %v510, %v498
      %v519 = vmul.f32 %v514, %v499
      %v520 = vadd.f32 %v460, %v516
      %v521 = vadd.f32 %v461, %v517
      %v522 = vadd.f32 %v462, %v518
      %v523 = vadd.f32 %v463, %v519
      %524 = vset.pattern.permute.xlu0 1
      %525 = vperm.xlu0 %524, %v424
      %v526 = vpop.permute.xlu0 %525
      %528 = vset.pattern.permute.xlu0 1
      %529 = vperm.xlu0 %528, %v425
      %v530 = vpop.permute.xlu0 %529
      %532 = vset.pattern.permute.xlu0 1
      %533 = vperm.xlu0 %532, %v426
      %v534 = vpop.permute.xlu0 %533
      %536 = vset.pattern.permute.xlu0 1
      %537 = vperm.xlu0 %536, %v427
      %v538 = vpop.permute.xlu0 %537
      %v540 = vmul.f32 %v526, %v496
      %v541 = vmul.f32 %v530, %v497
      %v542 = vmul.f32 %v534, %v498
      %v543 = vmul.f32 %v538, %v499
      %v544 = vadd.f32 %v488, %v540
      %v545 = vadd.f32 %v489, %v541
      %v546 = vadd.f32 %v490, %v542
      %v547 = vadd.f32 %v491, %v543
      %548 = vset.pattern.permute.xlu0 2
      %549 = vperm.xlu0 %548, %v420
      %v550 = vpop.permute.xlu0 %549
      %552 = vset.pattern.permute.xlu0 2
      %553 = vperm.xlu0 %552, %v421
      %v554 = vpop.permute.xlu0 %553
      %556 = vset.pattern.permute.xlu0 2
      %557 = vperm.xlu0 %556, %v422
      %v558 = vpop.permute.xlu0 %557
      %560 = vset.pattern.permute.xlu0 2
      %561 = vperm.xlu0 %560, %v423
      %v562 = vpop.permute.xlu0 %561
      %v564 = vmul.f32 %v550, %v432
      %v565 = vmul.f32 %v554, %v433
      %v566 = vmul.f32 %v558, %v434
      %v567 = vmul.f32 %v562, %v435
      %572 = vrot.lane.b32.xlu0 %v564, 127
      %v573 = vpop.permute.xlu0 %572
      %574 = vrot.lane.b32.xlu0 %v565, 127
      %v575 = vpop.permute.xlu0 %574
      %576 = vrot.lane.b32.xlu0 %v566, 127
      %v577 = vpop.permute.xlu0 %576
      %578 = vrot.lane.b32.xlu0 %v567, 127
      %v579 = vpop.permute.xlu0 %578
      %v584 = vadd.f32 %v520, %v573
      %v585 = vadd.f32 %v521, %v575
      %v586 = vadd.f32 %v522, %v577
      %v587 = vadd.f32 %v523, %v579
      %588 = vset.pattern.permute.xlu0 2
      %589 = vperm.xlu0 %588, %v424
      %v590 = vpop.permute.xlu0 %589
      %592 = vset.pattern.permute.xlu0 2
      %593 = vperm.xlu0 %592, %v425
      %v594 = vpop.permute.xlu0 %593
      %596 = vset.pattern.permute.xlu0 2
      %597 = vperm.xlu0 %596, %v426
      %v598 = vpop.permute.xlu0 %597
      %600 = vset.pattern.permute.xlu0 2
      %601 = vperm.xlu0 %600, %v427
      %v602 = vpop.permute.xlu0 %601
      %v604 = vmul.f32 %v590, %v432
      %v605 = vmul.f32 %v594, %v433
      %v606 = vmul.f32 %v598, %v434
      %v607 = vmul.f32 %v602, %v435
      %612 = vrot.lane.b32.xlu0 %v604, 127
      %v613 = vpop.permute.xlu0 %612
      %614 = vrot.lane.b32.xlu0 %v605, 127
      %v615 = vpop.permute.xlu0 %614
      %616 = vrot.lane.b32.xlu0 %v606, 127
      %v617 = vpop.permute.xlu0 %616
      %618 = vrot.lane.b32.xlu0 %v607, 127
      %v619 = vpop.permute.xlu0 %618
      %v624 = vadd.f32 %v544, %v613
      %v625 = vadd.f32 %v545, %v615
      %v626 = vadd.f32 %v546, %v617
      %v627 = vadd.f32 %v547, %v619
      %628 = vset.pattern.permute.xlu0 3
      %629 = vperm.xlu0 %628, %v420
      %v630 = vpop.permute.xlu0 %629
      %632 = vset.pattern.permute.xlu0 3
      %633 = vperm.xlu0 %632, %v421
      %v634 = vpop.permute.xlu0 %633
      %636 = vset.pattern.permute.xlu0 3
      %637 = vperm.xlu0 %636, %v422
      %v638 = vpop.permute.xlu0 %637
      %640 = vset.pattern.permute.xlu0 3
      %641 = vperm.xlu0 %640, %v423
      %v642 = vpop.permute.xlu0 %641
      %v644 = vmul.f32 %v630, %v496
      %v645 = vmul.f32 %v634, %v497
      %v646 = vmul.f32 %v638, %v498
      %v647 = vmul.f32 %v642, %v499
      %652 = vrot.lane.b32.xlu0 %v644, 127
      %v653 = vpop.permute.xlu0 %652
      %654 = vrot.lane.b32.xlu0 %v645, 127
      %v655 = vpop.permute.xlu0 %654
      %656 = vrot.lane.b32.xlu0 %v646, 127
      %v657 = vpop.permute.xlu0 %656
      %658 = vrot.lane.b32.xlu0 %v647, 127
      %v659 = vpop.permute.xlu0 %658
      %v664 = vadd.f32 %v584, %v653
      %v665 = vadd.f32 %v585, %v655
      %v666 = vadd.f32 %v586, %v657
      %v667 = vadd.f32 %v587, %v659
      %668 = vset.pattern.permute.xlu0 3
      %669 = vperm.xlu0 %668, %v424
      %v670 = vpop.permute.xlu0 %669
      %672 = vset.pattern.permute.xlu0 3
      %673 = vperm.xlu0 %672, %v425
      %v674 = vpop.permute.xlu0 %673
      %676 = vset.pattern.permute.xlu0 3
      %677 = vperm.xlu0 %676, %v426
      %v678 = vpop.permute.xlu0 %677
      %680 = vset.pattern.permute.xlu0 3
      %681 = vperm.xlu0 %680, %v427
      %v682 = vpop.permute.xlu0 %681
      %v684 = vmul.f32 %v670, %v496
      %v685 = vmul.f32 %v674, %v497
      %v686 = vmul.f32 %v678, %v498
      %v687 = vmul.f32 %v682, %v499
      %692 = vrot.lane.b32.xlu0 %v684, 127
      %v693 = vpop.permute.xlu0 %692
      %694 = vrot.lane.b32.xlu0 %v685, 127
      %v695 = vpop.permute.xlu0 %694
      %696 = vrot.lane.b32.xlu0 %v686, 127
      %v697 = vpop.permute.xlu0 %696
      %698 = vrot.lane.b32.xlu0 %v687, 127
      %v699 = vpop.permute.xlu0 %698
      %v704 = vadd.f32 %v624, %v693
      %v705 = vadd.f32 %v625, %v695
      %v706 = vadd.f32 %v626, %v697
      %v707 = vadd.f32 %v627, %v699
      %708 = vset.pattern.permute.xlu0 4
      %709 = vperm.xlu0 %708, %v420
      %v710 = vpop.permute.xlu0 %709
      %712 = vset.pattern.permute.xlu0 4
      %713 = vperm.xlu0 %712, %v421
      %v714 = vpop.permute.xlu0 %713
      %716 = vset.pattern.permute.xlu0 4
      %717 = vperm.xlu0 %716, %v422
      %v718 = vpop.permute.xlu0 %717
      %720 = vset.pattern.permute.xlu0 4
      %721 = vperm.xlu0 %720, %v423
      %v722 = vpop.permute.xlu0 %721
      %v724 = vmul.f32 %v710, %v432
      %v725 = vmul.f32 %v714, %v433
      %v726 = vmul.f32 %v718, %v434
      %v727 = vmul.f32 %v722, %v435
      %732 = vrot.lane.b32.xlu0 %v724, 126
      %v733 = vpop.permute.xlu0 %732
      %734 = vrot.lane.b32.xlu0 %v725, 126
      %v735 = vpop.permute.xlu0 %734
      %736 = vrot.lane.b32.xlu0 %v726, 126
      %v737 = vpop.permute.xlu0 %736
      %738 = vrot.lane.b32.xlu0 %v727, 126
      %v739 = vpop.permute.xlu0 %738
      %v744 = vadd.f32 %v664, %v733
      %v745 = vadd.f32 %v665, %v735
      %v746 = vadd.f32 %v666, %v737
      %v747 = vadd.f32 %v667, %v739
      %748 = vset.pattern.permute.xlu0 4
      %749 = vperm.xlu0 %748, %v424
      %v750 = vpop.permute.xlu0 %749
      %752 = vset.pattern.permute.xlu0 4
      %753 = vperm.xlu0 %752, %v425
      %v754 = vpop.permute.xlu0 %753
      %756 = vset.pattern.permute.xlu0 4
      %757 = vperm.xlu0 %756, %v426
      %v758 = vpop.permute.xlu0 %757
      %760 = vset.pattern.permute.xlu0 4
      %761 = vperm.xlu0 %760, %v427
      %v762 = vpop.permute.xlu0 %761
      %v764 = vmul.f32 %v750, %v432
      %v765 = vmul.f32 %v754, %v433
      %v766 = vmul.f32 %v758, %v434
      %v767 = vmul.f32 %v762, %v435
      %772 = vrot.lane.b32.xlu0 %v764, 126
      %v773 = vpop.permute.xlu0 %772
      %774 = vrot.lane.b32.xlu0 %v765, 126
      %v775 = vpop.permute.xlu0 %774
      %776 = vrot.lane.b32.xlu0 %v766, 126
      %v777 = vpop.permute.xlu0 %776
      %778 = vrot.lane.b32.xlu0 %v767, 126
      %v779 = vpop.permute.xlu0 %778
      %v784 = vadd.f32 %v704, %v773
      %v785 = vadd.f32 %v705, %v775
      %v786 = vadd.f32 %v706, %v777
      %v787 = vadd.f32 %v707, %v779
      %v788 = vld [vmem:[%s3] sm:$0xff]
      %v789 = vld [vmem:[%s3 + $0x8] sm:$0xff]
      %v790 = vld [vmem:[%s3 + $0x10] sm:$0xff]
      %v791 = vld [vmem:[%s3 + $0x18] sm:$0xff]
      %793 = vset.pattern.permute.xlu0 0
      %794 = vperm.xlu0 %793, %v788
      %v795 = vpop.permute.xlu0 %794
      %798 = vset.pattern.permute.xlu0 0
      %799 = vperm.xlu0 %798, %v789
      %v800 = vpop.permute.xlu0 %799
      %803 = vset.pattern.permute.xlu0 0
      %804 = vperm.xlu0 %803, %v790
      %v805 = vpop.permute.xlu0 %804
      %808 = vset.pattern.permute.xlu0 0
      %809 = vperm.xlu0 %808, %v791
      %v810 = vpop.permute.xlu0 %809
      %v812 = vadd.f32 %v744, %v795
      %v813 = vadd.f32 %v745, %v800
      %v814 = vadd.f32 %v746, %v805
      %v815 = vadd.f32 %v747, %v810
      %v816 = vld [vmem:[%s7] sm:$0xff]
      %v817 = vld [vmem:[%s7 + $0x8] sm:$0xff]
      %v818 = vld [vmem:[%s7 + $0x10] sm:$0xff]
      %v819 = vld [vmem:[%s7 + $0x18] sm:$0xff]
      %821 = vset.pattern.permute.xlu0 0
      %822 = vperm.xlu0 %821, %v816
      %v823 = vpop.permute.xlu0 %822
      %826 = vset.pattern.permute.xlu0 0
      %827 = vperm.xlu0 %826, %v817
      %v828 = vpop.permute.xlu0 %827
      %831 = vset.pattern.permute.xlu0 0
      %832 = vperm.xlu0 %831, %v818
      %v833 = vpop.permute.xlu0 %832
      %836 = vset.pattern.permute.xlu0 0
      %837 = vperm.xlu0 %836, %v819
      %v838 = vpop.permute.xlu0 %837
      %v840 = vadd.f32 %v784, %v823
      %v841 = vadd.f32 %v785, %v828
      %v842 = vadd.f32 %v786, %v833
      %v843 = vadd.f32 %v787, %v838
      %v844 = vld [vmem:[%s4] sm:$0xff]
      %v845 = vld [vmem:[%s4 + $0x8] sm:$0xff]
      %v846 = vld [vmem:[%s4 + $0x10] sm:$0xff]
      %v847 = vld [vmem:[%s4 + $0x18] sm:$0xff]
      %v848 = vld [vmem:[%s5] sm:$0xff]
      %v849 = vld [vmem:[%s5 + $0x8] sm:$0xff]
      %v850 = vld [vmem:[%s5 + $0x10] sm:$0xff]
      %v851 = vld [vmem:[%s5 + $0x18] sm:$0xff]
      %vm852 = vcmask 130048
      %v853 = vsel %vm852, %v812, 0.0
      %v854 = vsel %vm852, %v813, 0.0
      %v855 = vadd.f32 %v853, %v854
      %v856 = vsel %vm852, %v814, 0.0
      %v857 = vadd.f32 %v855, %v856
      %v858 = vsel %vm852, %v815, 0.0
      %v859 = vadd.f32 %v857, %v858
      %860 = vadd.xlane.f32.xlu0 %v859
      %v861 = vpop.xlane.xlu0 %860
      %v862 = vrot.slane %v861, 4
      %v863 = vadd.f32 %v861, %v862
      %v864 = vrot.slane %v863, 2
      %v865 = vadd.f32 %v863, %v864
      %v866 = vrot.slane %v865, 1
      %v867 = vadd.f32 %v865, %v866
      %s868 = vtos %v867
      %v869 = vmul.f32 %v812, %v812
      %v870 = vmul.f32 %v813, %v813
      %v871 = vmul.f32 %v814, %v814
      %v872 = vmul.f32 %v815, %v815
      %v873 = vsel %vm852, %v869, 0.0
      %v874 = vsel %vm852, %v870, 0.0
      %v875 = vadd.f32 %v873, %v874
      %v876 = vsel %vm852, %v871, 0.0
      %v877 = vadd.f32 %v875, %v876
      %v878 = vsel %vm852, %v872, 0.0
      %v879 = vadd.f32 %v877, %v878
      %880 = vadd.xlane.f32.xlu0 %v879
      %v881 = vpop.xlane.xlu0 %880
      %v882 = vrot.slane %v881, 4
      %v883 = vadd.f32 %v881, %v882
      %v884 = vrot.slane %v883, 2
      %v885 = vadd.f32 %v883, %v884
      %v886 = vrot.slane %v885, 1
      %v887 = vadd.f32 %v885, %v886
      %s888 = vtos %v887
      %v889 = vrcp.pop 512.0
      %s890 = vtos %v889
      %s891 = smul.f32 %s868, %s890
      %v892 = vrcp.pop 512.0
      %s893 = vtos %v892
      %s894 = smul.f32 %s888, %s893
      %s895 = smul.f32 %s891, %s891
      %s896 = ssub.f32 %s894, %s895
      %s897 = smax.f32 %s896, 0.0
      %v898 = vstv %s891
      %v899 = vsub.f32 %v812, %v898
      %v900 = vsub.f32 %v813, %v898
      %v901 = vsub.f32 %v814, %v898
      %v902 = vsub.f32 %v815, %v898
      %s903 = sadd.f32 %s897, 1e-08
      %v904 = vstv %s903
      %v905 = vrsqrt.pop %v904
      %s906 = vtos %v905
      %v907 = vstv %s906
      %v908 = vmul.f32 %v899, %v907
      %v909 = vmul.f32 %v900, %v907
      %v910 = vmul.f32 %v901, %v907
      %v911 = vmul.f32 %v902, %v907
      %913 = vset.pattern.permute.xlu0 0
      %914 = vperm.xlu0 %913, %v844
      %v915 = vpop.permute.xlu0 %914
      %918 = vset.pattern.permute.xlu0 0
      %919 = vperm.xlu0 %918, %v845
      %v920 = vpop.permute.xlu0 %919
      %923 = vset.pattern.permute.xlu0 0
      %924 = vperm.xlu0 %923, %v846
      %v925 = vpop.permute.xlu0 %924
      %928 = vset.pattern.permute.xlu0 0
      %929 = vperm.xlu0 %928, %v847
      %v930 = vpop.permute.xlu0 %929
      %v932 = vmul.f32 %v908, %v915
      %v933 = vmul.f32 %v909, %v920
      %v934 = vmul.f32 %v910, %v925
      %v935 = vmul.f32 %v911, %v930
      %937 = vset.pattern.permute.xlu0 0
      %938 = vperm.xlu0 %937, %v848
      %v939 = vpop.permute.xlu0 %938
      %942 = vset.pattern.permute.xlu0 0
      %943 = vperm.xlu0 %942, %v849
      %v944 = vpop.permute.xlu0 %943
      %947 = vset.pattern.permute.xlu0 0
      %948 = vperm.xlu0 %947, %v850
      %v949 = vpop.permute.xlu0 %948
      %952 = vset.pattern.permute.xlu0 0
      %953 = vperm.xlu0 %952, %v851
      %v954 = vpop.permute.xlu0 %953
      %v956 = vadd.f32 %v932, %v939
      %v957 = vadd.f32 %v933, %v944
      %v958 = vadd.f32 %v934, %v949
      %v959 = vadd.f32 %v935, %v954
      %v960 = vpack.c.bf16 %v957, %v956
      %v961 = vpack.c.bf16 %v959, %v958
      %v964 = vunpack.c.l.b16 %v960
      %v965 = vunpack.c.h.b16 %v960
      %v966 = vunpack.c.l.b16 %v961
      %v967 = vunpack.c.h.b16 %v961
      %v968 = vpack.c.b16 %v964, %v964
      %v969 = vpack.c.b16 %v965, %v965
      %v970 = vpack.c.b16 %v966, %v966
      %v971 = vpack.c.b16 %v967, %v967
      %vm976 = vcmask 125952
      %977 = vst.msk [vmem:[%s414] sm:$0xf] %vm976, %v968
      %978 = vst.msk [vmem:[%s414 + $0x4] sm:$0xf] %vm976, %v969
      %979 = vst.msk [vmem:[%s414 + $0x8] sm:$0xf] %vm976, %v970
      %980 = vst.msk [vmem:[%s414 + $0xc] sm:$0xf] %vm976, %v971
      %v981 = vld [vmem:[%s8] sm:$0xff]
      %v982 = vld [vmem:[%s8 + $0x8] sm:$0xff]
      %v983 = vld [vmem:[%s8 + $0x10] sm:$0xff]
      %v984 = vld [vmem:[%s8 + $0x18] sm:$0xff]
      %v985 = vld [vmem:[%s9] sm:$0xff]
      %v986 = vld [vmem:[%s9 + $0x8] sm:$0xff]
      %v987 = vld [vmem:[%s9 + $0x10] sm:$0xff]
      %v988 = vld [vmem:[%s9 + $0x18] sm:$0xff]
      %v989 = vsel %vm852, %v840, 0.0
      %v990 = vsel %vm852, %v841, 0.0
      %v991 = vadd.f32 %v989, %v990
      %v992 = vsel %vm852, %v842, 0.0
      %v993 = vadd.f32 %v991, %v992
      %v994 = vsel %vm852, %v843, 0.0
      %v995 = vadd.f32 %v993, %v994
      %996 = vadd.xlane.f32.xlu0 %v995
      %v997 = vpop.xlane.xlu0 %996
      %v998 = vrot.slane %v997, 4
      %v999 = vadd.f32 %v997, %v998
      %v1000 = vrot.slane %v999, 2
      %v1001 = vadd.f32 %v999, %v1000
      %v1002 = vrot.slane %v1001, 1
      %v1003 = vadd.f32 %v1001, %v1002
      %s1004 = vtos %v1003
      %v1005 = vmul.f32 %v840, %v840
      %v1006 = vmul.f32 %v841, %v841
      %v1007 = vmul.f32 %v842, %v842
      %v1008 = vmul.f32 %v843, %v843
      %v1009 = vsel %vm852, %v1005, 0.0
      %v1010 = vsel %vm852, %v1006, 0.0
      %v1011 = vadd.f32 %v1009, %v1010
      %v1012 = vsel %vm852, %v1007, 0.0
      %v1013 = vadd.f32 %v1011, %v1012
      %v1014 = vsel %vm852, %v1008, 0.0
      %v1015 = vadd.f32 %v1013, %v1014
      %1016 = vadd.xlane.f32.xlu0 %v1015
      %v1017 = vpop.xlane.xlu0 %1016
      %v1018 = vrot.slane %v1017, 4
      %v1019 = vadd.f32 %v1017, %v1018
      %v1020 = vrot.slane %v1019, 2
      %v1021 = vadd.f32 %v1019, %v1020
      %v1022 = vrot.slane %v1021, 1
      %v1023 = vadd.f32 %v1021, %v1022
      %s1024 = vtos %v1023
      %v1025 = vrcp.pop 512.0
      %s1026 = vtos %v1025
      %s1027 = smul.f32 %s1004, %s1026
      %v1028 = vrcp.pop 512.0
      %s1029 = vtos %v1028
      %s1030 = smul.f32 %s1024, %s1029
      %s1031 = smul.f32 %s1027, %s1027
      %s1032 = ssub.f32 %s1030, %s1031
      %s1033 = smax.f32 %s1032, 0.0
      %v1034 = vstv %s1027
      %v1035 = vsub.f32 %v840, %v1034
      %v1036 = vsub.f32 %v841, %v1034
      %v1037 = vsub.f32 %v842, %v1034
      %v1038 = vsub.f32 %v843, %v1034
      %s1039 = sadd.f32 %s1033, 1e-08
      %v1040 = vstv %s1039
      %v1041 = vrsqrt.pop %v1040
      %s1042 = vtos %v1041
      %v1043 = vstv %s1042
      %v1044 = vmul.f32 %v1035, %v1043
      %v1045 = vmul.f32 %v1036, %v1043
      %v1046 = vmul.f32 %v1037, %v1043
      %v1047 = vmul.f32 %v1038, %v1043
      %1049 = vset.pattern.permute.xlu0 0
      %1050 = vperm.xlu0 %1049, %v981
      %v1051 = vpop.permute.xlu0 %1050
      %1054 = vset.pattern.permute.xlu0 0
      %1055 = vperm.xlu0 %1054, %v982
      %v1056 = vpop.permute.xlu0 %1055
      %1059 = vset.pattern.permute.xlu0 0
      %1060 = vperm.xlu0 %1059, %v983
      %v1061 = vpop.permute.xlu0 %1060
      %1064 = vset.pattern.permute.xlu0 0
      %1065 = vperm.xlu0 %1064, %v984
      %v1066 = vpop.permute.xlu0 %1065
      %v1068 = vmul.f32 %v1044, %v1051
      %v1069 = vmul.f32 %v1045, %v1056
      %v1070 = vmul.f32 %v1046, %v1061
      %v1071 = vmul.f32 %v1047, %v1066
      %1073 = vset.pattern.permute.xlu0 0
      %1074 = vperm.xlu0 %1073, %v985
      %v1075 = vpop.permute.xlu0 %1074
      %1078 = vset.pattern.permute.xlu0 0
      %1079 = vperm.xlu0 %1078, %v986
      %v1080 = vpop.permute.xlu0 %1079
      %1083 = vset.pattern.permute.xlu0 0
      %1084 = vperm.xlu0 %1083, %v987
      %v1085 = vpop.permute.xlu0 %1084
      %1088 = vset.pattern.permute.xlu0 0
      %1089 = vperm.xlu0 %1088, %v988
      %v1090 = vpop.permute.xlu0 %1089
      %v1092 = vadd.f32 %v1068, %v1075
      %v1093 = vadd.f32 %v1069, %v1080
      %v1094 = vadd.f32 %v1070, %v1085
      %v1095 = vadd.f32 %v1071, %v1090
      %v1096 = vpack.c.bf16 %v1093, %v1092
      %v1097 = vpack.c.bf16 %v1095, %v1094
      %v1100 = vunpack.c.l.b16 %v1096
      %v1101 = vunpack.c.h.b16 %v1096
      %v1102 = vunpack.c.l.b16 %v1097
      %v1103 = vunpack.c.h.b16 %v1097
      %v1104 = vpack.c.b16 %v1100, %v1100
      %v1105 = vpack.c.b16 %v1101, %v1101
      %v1106 = vpack.c.b16 %v1102, %v1102
      %v1107 = vpack.c.b16 %v1103, %v1103
      %1112 = vst.msk [vmem:[%s419] sm:$0xf] %vm976, %v1104
      %1113 = vst.msk [vmem:[%s419 + $0x4] sm:$0xf] %vm976, %v1105
      %1114 = vst.msk [vmem:[%s419 + $0x8] sm:$0xf] %vm976, %v1106
      %1115 = vst.msk [vmem:[%s419 + $0xc] sm:$0xf] %vm976, %v1107
      %p1116 = scmp.lt.s32.totalorder %s23, 1
      %s1117 = scalar_select %p1116, %s23, 1
      %s1118 = smul.addr %s1117, 4
      %s1119 = smul.addr %s1118, 4
      %s1120 = scalar_lea.vmem %s10, %s1119
      %p1121 = scmp.lt.s32.totalorder %s23, 1
      %s1122 = scalar_select %p1121, %s23, 1
      %s1123 = smul.addr %s1122, 4
      %s1124 = smul.addr %s1123, 4
      %s1125 = scalar_lea.vmem %s11, %s1124
      // Predicated region
      $region61: #{afrcnn_block_forward.13} parent=59 // pred_check
        %p1126 = pneg %p261
      $region62: #{afrcnn_block_forward.13} parent=59 // pred_check_branch
        %1128 = sbr.rel (%p1126) target = $region64
      $region63: #{afrcnn_block_forward.13} parent=59 // pred_region
        _
      $region64: #{afrcnn_block_forward.13} parent=59 // pred_fallthru
        _
      // Predicated region
      $region65: #{afrcnn_block_forward.13} parent=59 // pred_check
        %p1129 = pneg %p287
      $region66: #{afrcnn_block_forward.13} parent=59 // pred_check_branch
        %1131 = sbr.rel (%p1129) target = $region68
      $region67: #{afrcnn_block_forward.13} parent=59 // pred_region
        _
      $region68: #{afrcnn_block_forward.13} parent=59 // pred_fallthru
        _
    $region60: #{afrcnn_block_forward.13} parent=5 // pred_fallthru
      _
    %p1132 = scmp.le.s32.totalorder 2, %s18
    // Predicated region
    $region69: #{afrcnn_block_forward.13} parent=5 // pred_check
      %p1133 = pneg %p1132
    $region70: #{afrcnn_block_forward.13} parent=5 // pred_check_branch
      %1135 = sbr.rel (%p1133) target = $region72
    $region71: #{afrcnn_block_forward.13} parent=5 // pred_region
      %s1136 = ssub.s32 %s18, 2
      // Predicated region
      $region73: #{afrcnn_block_forward.13} parent=71 // pred_check
        %p1137 = pneg %p267
      $region74: #{afrcnn_block_forward.13} parent=71 // pred_check_branch
        %1139 = sbr.rel (%p1137) target = $region76
      $region75: #{afrcnn_block_forward.13} parent=71 // pred_region
        %p1140 = scmp.lt.s32.totalorder %s24, 1
        %s1141 = scalar_select %p1140, %s24, 1
        %s1142 = smul.addr %s1141, 4
        %s1143 = smul.addr %s1142, 4
        %s1144 = scalar_lea.vmem %s10, %s1143
      $region76: #{afrcnn_block_forward.13} parent=71 // pred_fallthru
        _
      // Predicated region
      $region77: #{afrcnn_block_forward.13} parent=71 // pred_check
        %p1145 = pneg %p293
      $region78: #{afrcnn_block_forward.13} parent=71 // pred_check_branch
        %1147 = sbr.rel (%p1145) target = $region80
      $region79: #{afrcnn_block_forward.13} parent=71 // pred_region
        %p1148 = scmp.lt.s32.totalorder %s24, 1
        %s1149 = scalar_select %p1148, %s24, 1
        %s1150 = smul.addr %s1149, 4
        %s1151 = smul.addr %s1150, 4
        %s1152 = scalar_lea.vmem %s11, %s1151
      $region80: #{afrcnn_block_forward.13} parent=71 // pred_fallthru
        _
    $region72: #{afrcnn_block_forward.13} parent=5 // pred_fallthru
      _
  $region6: #{afrcnn_block_forward.13} parent=0 // loop_footer
    %s22 = sadd.s32 1, %s18
  $region7: #{afrcnn_block_forward.13} parent=0 // loop_footer_branch
    %17 = sbr.rel target = $region3
  $region8: #{afrcnn_block_forward.13} parent=0 // loop_exit
    _

// kernel: afrcnn_block_forward.19
$region0: #{afrcnn_block_forward.19}
  #allocation0 [shape = 'u32[]', space=smem, size = 0x4, offset = 0x4, fixed_abs, tag = 'smem constant byte address 0x4 - core index']
  #allocation1 [shape = 'u32[144,128]{1,0:T(1,128)}', space=vmem, size = 0x12000, scoped, tag = 'internal scratch']
  #allocation2 [shape = 'f32[1]{0:T(128)S(6)}', space=smem, size = 0x200, scoped, tag = 'scoped memory for afrcnn_block_forward.19']
  %s0 = inlined_call_operand.vmem [shape: bf16[2,32,4], index: 0, kind: input, shape index: {}]
  %s1 = inlined_call_operand.vmem [shape: bf16[2,32,4], index: 1, kind: input, shape index: {}]
  %s2 = inlined_call_operand.vmem [shape: f32[32,1], index: 2, kind: input, shape index: {}]
  %s3 = inlined_call_operand.vmem [shape: f32[32,1], index: 3, kind: input, shape index: {}]
  %s4 = inlined_call_operand.<no memory space> [shape: f32[1], index: 4, kind: input, shape index: {}]
  %s5 = inlined_call_operand.vmem [shape: bf16[2,32,4], index: 5, kind: output, shape index: {}]
  %s6 = sld [smem:[#allocation0]]
  $region53: #{afrcnn_block_forward.19} parent=0
    _
  %s8 = ssub.s32 1, %s6
  %s9 = scalar_select 0, %s8, %s6
  %10 = sst [smem:[#allocation2]] %s4
  loop: start=0, step=1, limit=4
  $region2: #{afrcnn_block_forward.19} parent=0 // loop_pre_header
    _
  $region3: #{afrcnn_block_forward.19} parent=0 // loop_header
    %s12 = sphi 0, %s16
    %p13 = scmp.ge.s32.totalorder %s12, 4
    %s22 = sphi 0, %s24
    %s25 = sphi 0, %s22
    %s26 = sphi 0, %s25
    %s42 = sphi 0, %s26
    %s48 = sphi 0, %s50
    %s51 = sphi 0, %s48
    %s52 = sphi 0, %s51
    %s68 = sphi 0, %s52
    %s72 = sphi 0, %s72
    %s74 = sphi 0, %s72
    %s75 = sphi 0, %s74
    %s89 = sphi 0, %s75
    %s93 = sphi 0, %s93
    %s95 = sphi 0, %s93
    %s96 = sphi 0, %s95
    %s110 = sphi 0, %s96
    %s114 = sphi 0, %s114
    %s116 = sphi 0, %s114
    %s117 = sphi 0, %s116
    %s131 = sphi 0, %s117
    %s137 = sphi 0, %s139
    %s140 = sphi 0, %s137
    %s141 = sphi 0, %s140
    %s157 = sphi 0, %s141
  $region4: #{afrcnn_block_forward.19} parent=0 // loop_header_branch
    %15 = sbr.rel (%p13) target = $region8
  $region5: #{afrcnn_block_forward.19} parent=0 // loop_body
    %s17 = ssub.s32 %s12, 1
    %s18 = ssub.s32 %s12, 2
    %s19 = sadd.s32 %s12, 1
    %s20 = ssub.s32 %s12, %s19
    %p21 = scmp.eq.s32.totalorder %s20, 0
    %s23 = sadd.s32 %s22, 1
    %s24 = scalar_select %p21, %s22, %s23
    %p27 = pneg %p21
    %p28 = scmp.eq.s32.totalorder %s12, 1
    %p29 = por %p27, %p28
    %p30 = scmp.ne.s32.totalorder %s22, %s25
    %p31 = scmp.eq.s32.totalorder %s12, 0
    %p32 = por %p30, %p31
    %p33 = scmp.ne.s32.totalorder %s22, %s25
    %p34 = scmp.eq.s32.totalorder %s17, 1
    %p35 = por %p33, %p34
    %p36 = scmp.ne.s32.totalorder %s25, %s26
    %p37 = scmp.eq.s32.totalorder %s17, 0
    %p38 = por %p36, %p37
    %p39 = scmp.ne.s32.totalorder %s25, %s26
    %p40 = scmp.eq.s32.totalorder %s18, 1
    %p41 = por %p39, %p40
    %p43 = scmp.ne.s32.totalorder %s26, %s42
    %p44 = scmp.eq.s32.totalorder %s18, 0
    %p45 = por %p43, %p44
    %s46 = ssub.s32 %s12, %s19
    %p47 = scmp.eq.s32.totalorder %s46, 0
    %s49 = sadd.s32 %s48, 1
    %s50 = scalar_select %p47, %s48, %s49
    %p53 = pneg %p47
    %p54 = scmp.eq.s32.totalorder %s12, 1
    %p55 = por %p53, %p54
    %p56 = scmp.ne.s32.totalorder %s48, %s51
    %p57 = scmp.eq.s32.totalorder %s12, 0
    %p58 = por %p56, %p57
    %p59 = scmp.ne.s32.totalorder %s48, %s51
    %p60 = scmp.eq.s32.totalorder %s17, 1
    %p61 = por %p59, %p60
    %p62 = scmp.ne.s32.totalorder %s51, %s52
    %p63 = scmp.eq.s32.totalorder %s17, 0
    %p64 = por %p62, %p63
    %p65 = scmp.ne.s32.totalorder %s51, %s52
    %p66 = scmp.eq.s32.totalorder %s18, 1
    %p67 = por %p65, %p66
    %p69 = scmp.ne.s32.totalorder %s52, %s68
    %p70 = scmp.eq.s32.totalorder %s18, 0
    %p71 = por %p69, %p70
    %s73 = sadd.s32 %s72, 1
    %p76 = scmp.eq.s32.totalorder %s12, 1
    %p77 = scmp.ne.s32.totalorder %s72, %s74
    %p78 = scmp.eq.s32.totalorder %s12, 0
    %p79 = por %p77, %p78
    %p80 = scmp.ne.s32.totalorder %s72, %s74
    %p81 = scmp.eq.s32.totalorder %s17, 1
    %p82 = por %p80, %p81
    %p83 = scmp.ne.s32.totalorder %s74, %s75
    %p84 = scmp.eq.s32.totalorder %s17, 0
    %p85 = por %p83, %p84
    %p86 = scmp.ne.s32.totalorder %s74, %s75
    %p87 = scmp.eq.s32.totalorder %s18, 1
    %p88 = por %p86, %p87
    %p90 = scmp.ne.s32.totalorder %s75, %s89
    %p91 = scmp.eq.s32.totalorder %s18, 0
    %p92 = por %p90, %p91
    %s94 = sadd.s32 %s93, 1
    %p97 = scmp.eq.s32.totalorder %s12, 1
    %p98 = scmp.ne.s32.totalorder %s93, %s95
    %p99 = scmp.eq.s32.totalorder %s12, 0
    %p100 = por %p98, %p99
    %p101 = scmp.ne.s32.totalorder %s93, %s95
    %p102 = scmp.eq.s32.totalorder %s17, 1
    %p103 = por %p101, %p102
    %p104 = scmp.ne.s32.totalorder %s95, %s96
    %p105 = scmp.eq.s32.totalorder %s17, 0
    %p106 = por %p104, %p105
    %p107 = scmp.ne.s32.totalorder %s95, %s96
    %p108 = scmp.eq.s32.totalorder %s18, 1
    %p109 = por %p107, %p108
    %p111 = scmp.ne.s32.totalorder %s96, %s110
    %p112 = scmp.eq.s32.totalorder %s18, 0
    %p113 = por %p111, %p112
    %s115 = sadd.s32 %s114, 1
    %p118 = scmp.eq.s32.totalorder %s12, 1
    %p119 = scmp.ne.s32.totalorder %s114, %s116
    %p120 = scmp.eq.s32.totalorder %s12, 0
    %p121 = por %p119, %p120
    %p122 = scmp.ne.s32.totalorder %s114, %s116
    %p123 = scmp.eq.s32.totalorder %s17, 1
    %p124 = por %p122, %p123
    %p125 = scmp.ne.s32.totalorder %s116, %s117
    %p126 = scmp.eq.s32.totalorder %s17, 0
    %p127 = por %p125, %p126
    %p128 = scmp.ne.s32.totalorder %s116, %s117
    %p129 = scmp.eq.s32.totalorder %s18, 1
    %p130 = por %p128, %p129
    %p132 = scmp.ne.s32.totalorder %s117, %s131
    %p133 = scmp.eq.s32.totalorder %s18, 0
    %p134 = por %p132, %p133
    %s135 = ssub.s32 %s12, %s19
    %p136 = scmp.eq.s32.totalorder %s135, 0
    %s138 = sadd.s32 %s137, 1
    %s139 = scalar_select %p136, %s137, %s138
    %p142 = pneg %p136
    %p143 = scmp.eq.s32.totalorder %s12, 1
    %p144 = por %p142, %p143
    %p145 = scmp.ne.s32.totalorder %s137, %s140
    %p146 = scmp.eq.s32.totalorder %s12, 0
    %p147 = por %p145, %p146
    %p148 = scmp.ne.s32.totalorder %s137, %s140
    %p149 = scmp.eq.s32.totalorder %s17, 1
    %p150 = por %p148, %p149
    %p151 = scmp.ne.s32.totalorder %s140, %s141
    %p152 = scmp.eq.s32.totalorder %s17, 0
    %p153 = por %p151, %p152
    %p154 = scmp.ne.s32.totalorder %s140, %s141
    %p155 = scmp.eq.s32.totalorder %s18, 1
    %p156 = por %p154, %p155
    %p158 = scmp.ne.s32.totalorder %s141, %s157
    %p159 = scmp.eq.s32.totalorder %s18, 0
    %p160 = por %p158, %p159
    %p161 = scmp.le.s32.totalorder 1, %s12
    %p162 = scmp.lt.s32.totalorder %s12, 3
    %p163 = pnand %p161, %p162
    %p164 = pneg %p163
    // Predicated region
    $region9: #{afrcnn_block_forward.19} parent=5 // pred_check
      _
    $region10: #{afrcnn_block_forward.19} parent=5 // pred_check_branch
      %166 = sbr.rel (%p163) target = $region12
    $region11: #{afrcnn_block_forward.19} parent=5 // pred_region
      %s167 = ssub.s32 %s12, 1
      // Predicated region
      $region13: #{afrcnn_block_forward.19} parent=11 // pred_check
        %p168 = pneg %p85
      $region14: #{afrcnn_block_forward.19} parent=11 // pred_check_branch
        %170 = sbr.rel (%p168) target = $region16
      $region15: #{afrcnn_block_forward.19} parent=11 // pred_region
        _
      $region16: #{afrcnn_block_forward.19} parent=11 // pred_fallthru
        _
      // Predicated region
      $region17: #{afrcnn_block_forward.19} parent=11 // pred_check
        %p171 = pneg %p106
      $region18: #{afrcnn_block_forward.19} parent=11 // pred_check_branch
        %173 = sbr.rel (%p171) target = $region20
      $region19: #{afrcnn_block_forward.19} parent=11 // pred_region
        _
      $region20: #{afrcnn_block_forward.19} parent=11 // pred_fallthru
        _
      // Predicated region
      $region21: #{afrcnn_block_forward.19} parent=11 // pred_check
        %p174 = pneg %p127
      $region22: #{afrcnn_block_forward.19} parent=11 // pred_check_branch
        %176 = sbr.rel (%p174) target = $region24
      $region23: #{afrcnn_block_forward.19} parent=11 // pred_region
        _
      $region24: #{afrcnn_block_forward.19} parent=11 // pred_fallthru
        _
    $region12: #{afrcnn_block_forward.19} parent=5 // pred_fallthru
      _
    %p177 = scmp.lt.s32.totalorder %s12, 2
    // Predicated region
    $region25: #{afrcnn_block_forward.19} parent=5 // pred_check
      %p178 = pneg %p177
    $region26: #{afrcnn_block_forward.19} parent=5 // pred_check_branch
      %180 = sbr.rel (%p178) target = $region28
    $region27: #{afrcnn_block_forward.19} parent=5 // pred_region
      // Predicated region
      $region29: #{afrcnn_block_forward.19} parent=27 // pred_check
        %p181 = pneg %p32
      $region30: #{afrcnn_block_forward.19} parent=27 // pred_check_branch
        %183 = sbr.rel (%p181) target = $region32
      $region31: #{afrcnn_block_forward.19} parent=27 // pred_region
        %p184 = scmp.lt.s32.totalorder %s12, 1
        %s185 = scalar_select %p184, %s12, 1
        %s186 = smul.addr %s185, 4
        %s187 = smul.addr %s186, 4
        %s188 = scalar_lea.vmem %s0, %s187
      $region32: #{afrcnn_block_forward.19} parent=27 // pred_fallthru
        _
      // Predicated region
      $region33: #{afrcnn_block_forward.19} parent=27 // pred_check
        %p189 = pneg %p58
      $region34: #{afrcnn_block_forward.19} parent=27 // pred_check_branch
        %191 = sbr.rel (%p189) target = $region36
      $region35: #{afrcnn_block_forward.19} parent=27 // pred_region
        %p192 = scmp.lt.s32.totalorder %s12, 1
        %s193 = scalar_select %p192, %s12, 1
        %s194 = smul.addr %s193, 4
        %s195 = smul.addr %s194, 4
        %s196 = scalar_lea.vmem %s1, %s195
      $region36: #{afrcnn_block_forward.19} parent=27 // pred_fallthru
        _
    $region28: #{afrcnn_block_forward.19} parent=5 // pred_fallthru
      _
    %p197 = scmp.le.s32.totalorder 1, %s12
    %p198 = scmp.lt.s32.totalorder %s12, 3
    %p199 = pnand %p197, %p198
    %p200 = pneg %p199
    // Predicated region
    $region37: #{afrcnn_block_forward.19} parent=5 // pred_check
      _
    $region38: #{afrcnn_block_forward.19} parent=5 // pred_check_branch
      %202 = sbr.rel (%p199) target = $region40
    $region39: #{afrcnn_block_forward.19} parent=5 // pred_region
      %s203 = ssub.s32 %s12, 1
      %p204 = scmp.lt.s32.totalorder %s17, 1
      %s205 = scalar_select %p204, %s17, 1
      %s206 = smul.addr %s205, 4
      %s207 = smul.addr %s206, 4
      %s208 = scalar_lea.vmem %s0, %s207
      %p209 = pneg %p38
      %p210 = pneg %p35
      %p211 = scmp.lt.s32.totalorder %s17, 1
      %s212 = scalar_select %p211, %s17, 1
      %s213 = smul.addr %s212, 4
      %s214 = smul.addr %s213, 4
      %s215 = scalar_lea.vmem %s1, %s214
      %p216 = pneg %p64
      %p217 = pneg %p61
      %p218 = pneg %p85
      %p219 = pneg %p82
      %p220 = pneg %p106
      %p221 = pneg %p103
      %p222 = pneg %p127
      %p223 = pneg %p124
      %p224 = pneg %p153
      %p225 = pneg %p150
      %p226 = scmp.lt.s32.totalorder %s17, 1
      %s227 = scalar_select %p226, %s17, 1
      %s228 = smul.addr %s227, 4
      %s229 = smul.addr %s228, 4
      %s230 = scalar_lea.vmem %s5, %s229
      %p231 = scmp.lt.s32.totalorder %s17, 1
      %s232 = scalar_select %p231, %s17, 1
      %s233 = smul.addr %s232, 4
      %s234 = smul.addr %s233, 4
      %s235 = scalar_lea.vmem %s0, %s234
      %p236 = scmp.lt.s32.totalorder %s17, 1
      %s237 = scalar_select %p236, %s17, 1
      %s238 = smul.addr %s237, 4
      %s239 = smul.addr %s238, 4
      %s240 = scalar_lea.vmem %s1, %s239
      %p241 = scmp.lt.s32.totalorder %s17, 1
      %s242 = scalar_select %p241, %s17, 1
      %s243 = smul.addr %s242, 4
      %s244 = smul.addr %s243, 4
      %s245 = scalar_lea.vmem %s5, %s244
      %v246 = vld [vmem:[%s235] sm:$0xf]
      %v247 = vld [vmem:[%s235 + $0x4] sm:$0xf]
      %v248 = vld [vmem:[%s235 + $0x8] sm:$0xf]
      %v249 = vld [vmem:[%s235 + $0xc] sm:$0xf]
      %v250 = vunpack.c.l.bf16 %v246
      %v251 = vunpack.c.l.bf16 %v247
      %v252 = vunpack.c.l.bf16 %v248
      %v253 = vunpack.c.l.bf16 %v249
      %v254 = vld [vmem:[%s240] sm:$0xf]
      %v255 = vld [vmem:[%s240 + $0x4] sm:$0xf]
      %v256 = vld [vmem:[%s240 + $0x8] sm:$0xf]
      %v257 = vld [vmem:[%s240 + $0xc] sm:$0xf]
      %v258 = vunpack.c.l.bf16 %v254
      %v259 = vunpack.c.l.bf16 %v255
      %v260 = vunpack.c.l.bf16 %v256
      %v261 = vunpack.c.l.bf16 %v257
      %v262 = vadd.f32 %v250, %v258
      %v263 = vadd.f32 %v251, %v259
      %v264 = vadd.f32 %v252, %v260
      %v265 = vadd.f32 %v253, %v261
      %v266 = vld [vmem:[%s2] sm:$0xff]
      %v267 = vld [vmem:[%s2 + $0x8] sm:$0xff]
      %v268 = vld [vmem:[%s2 + $0x10] sm:$0xff]
      %v269 = vld [vmem:[%s2 + $0x18] sm:$0xff]
      %v270 = vld [vmem:[%s3] sm:$0xff]
      %v271 = vld [vmem:[%s3 + $0x8] sm:$0xff]
      %v272 = vld [vmem:[%s3 + $0x10] sm:$0xff]
      %v273 = vld [vmem:[%s3 + $0x18] sm:$0xff]
      %vm274 = vcmask 31744
      %v275 = vsel %vm274, %v262, 0.0
      %v276 = vsel %vm274, %v263, 0.0
      %v277 = vadd.f32 %v275, %v276
      %v278 = vsel %vm274, %v264, 0.0
      %v279 = vadd.f32 %v277, %v278
      %v280 = vsel %vm274, %v265, 0.0
      %v281 = vadd.f32 %v279, %v280
      %282 = vadd.xlane.f32.xlu0 %v281
      %v283 = vpop.xlane.xlu0 %282
      %v284 = vrot.slane %v283, 4
      %v285 = vadd.f32 %v283, %v284
      %v286 = vrot.slane %v285, 2
      %v287 = vadd.f32 %v285, %v286
      %v288 = vrot.slane %v287, 1
      %v289 = vadd.f32 %v287, %v288
      %s290 = vtos %v289
      %v291 = vmul.f32 %v262, %v262
      %v292 = vmul.f32 %v263, %v263
      %v293 = vmul.f32 %v264, %v264
      %v294 = vmul.f32 %v265, %v265
      %v295 = vsel %vm274, %v291, 0.0
      %v296 = vsel %vm274, %v292, 0.0
      %v297 = vadd.f32 %v295, %v296
      %v298 = vsel %vm274, %v293, 0.0
      %v299 = vadd.f32 %v297, %v298
      %v300 = vsel %vm274, %v294, 0.0
      %v301 = vadd.f32 %v299, %v300
      %302 = vadd.xlane.f32.xlu0 %v301
      %v303 = vpop.xlane.xlu0 %302
      %v304 = vrot.slane %v303, 4
      %v305 = vadd.f32 %v303, %v304
      %v306 = vrot.slane %v305, 2
      %v307 = vadd.f32 %v305, %v306
      %v308 = vrot.slane %v307, 1
      %v309 = vadd.f32 %v307, %v308
      %s310 = vtos %v309
      %v311 = vrcp.pop 128.0
      %s312 = vtos %v311
      %s313 = smul.f32 %s290, %s312
      %v314 = vrcp.pop 128.0
      %s315 = vtos %v314
      %s316 = smul.f32 %s310, %s315
      %s317 = smul.f32 %s313, %s313
      %s318 = ssub.f32 %s316, %s317
      %s319 = smax.f32 %s318, 0.0
      %v320 = vstv %s313
      %v321 = vsub.f32 %v262, %v320
      %v322 = vsub.f32 %v263, %v320
      %v323 = vsub.f32 %v264, %v320
      %v324 = vsub.f32 %v265, %v320
      %s325 = sadd.f32 %s319, 1e-08
      %v326 = vstv %s325
      %v327 = vrsqrt.pop %v326
      %s328 = vtos %v327
      %v329 = vstv %s328
      %v330 = vmul.f32 %v321, %v329
      %v331 = vmul.f32 %v322, %v329
      %v332 = vmul.f32 %v323, %v329
      %v333 = vmul.f32 %v324, %v329
      %335 = vset.pattern.permute.xlu0 0
      %336 = vperm.xlu0 %335, %v266
      %v337 = vpop.permute.xlu0 %336
      %340 = vset.pattern.permute.xlu0 0
      %341 = vperm.xlu0 %340, %v267
      %v342 = vpop.permute.xlu0 %341
      %345 = vset.pattern.permute.xlu0 0
      %346 = vperm.xlu0 %345, %v268
      %v347 = vpop.permute.xlu0 %346
      %350 = vset.pattern.permute.xlu0 0
      %351 = vperm.xlu0 %350, %v269
      %v352 = vpop.permute.xlu0 %351
      %v354 = vmul.f32 %v330, %v337
      %v355 = vmul.f32 %v331, %v342
      %v356 = vmul.f32 %v332, %v347
      %v357 = vmul.f32 %v333, %v352
      %359 = vset.pattern.permute.xlu0 0
      %360 = vperm.xlu0 %359, %v270
      %v361 = vpop.permute.xlu0 %360
      %364 = vset.pattern.permute.xlu0 0
      %365 = vperm.xlu0 %364, %v271
      %v366 = vpop.permute.xlu0 %365
      %369 = vset.pattern.permute.xlu0 0
      %370 = vperm.xlu0 %369, %v272
      %v371 = vpop.permute.xlu0 %370
      %374 = vset.pattern.permute.xlu0 0
      %375 = vperm.xlu0 %374, %v273
      %v376 = vpop.permute.xlu0 %375
      %v378 = vadd.f32 %v354, %v361
      %v379 = vadd.f32 %v355, %v366
      %v380 = vadd.f32 %v356, %v371
      %v381 = vadd.f32 %v357, %v376
      %s382 = sld [smem:[#allocation2]]
      %vm383 = vcmp.ge.f32.partialorder %v378, 0.0
      %vm384 = vcmp.ge.f32.partialorder %v379, 0.0
      %vm385 = vcmp.ge.f32.partialorder %v380, 0.0
      %vm386 = vcmp.ge.f32.partialorder %v381, 0.0
      %v387 = vstv %s382
      %v388 = vmul.f32 %v387, %v378
      %v389 = vmul.f32 %v387, %v379
      %v390 = vmul.f32 %v387, %v380
      %v391 = vmul.f32 %v387, %v381
      %v392 = vsel %vm383, %v378, %v388
      %v393 = vsel %vm384, %v379, %v389
      %v394 = vsel %vm385, %v380, %v390
      %v395 = vsel %vm386, %v381, %v391
      %v396 = vpack.c.bf16 %v393, %v392
      %v397 = vpack.c.bf16 %v395, %v394
      %v400 = vunpack.c.l.b16 %v396
      %v401 = vunpack.c.h.b16 %v396
      %v402 = vunpack.c.l.b16 %v397
      %v403 = vunpack.c.h.b16 %v397
      %v404 = vpack.c.b16 %v400, %v400
      %v405 = vpack.c.b16 %v401, %v401
      %v406 = vpack.c.b16 %v402, %v402
      %v407 = vpack.c.b16 %v403, %v403
      %vm412 = vcmask 27648
      %413 = vst.msk [vmem:[%s245] sm:$0xf] %vm412, %v404
      %414 = vst.msk [vmem:[%s245 + $0x4] sm:$0xf] %vm412, %v405
      %415 = vst.msk [vmem:[%s245 + $0x8] sm:$0xf] %vm412, %v406
      %416 = vst.msk [vmem:[%s245 + $0xc] sm:$0xf] %vm412, %v407
      %p417 = scmp.lt.s32.totalorder %s17, 1
      %s418 = scalar_select %p417, %s17, 1
      %s419 = smul.addr %s418, 4
      %s420 = smul.addr %s419, 4
      %s421 = scalar_lea.vmem %s5, %s420
      // Predicated region
      $region41: #{afrcnn_block_forward.19} parent=39 // pred_check
        %p422 = pneg %p150
      $region42: #{afrcnn_block_forward.19} parent=39 // pred_check_branch
        %424 = sbr.rel (%p422) target = $region44
      $region43: #{afrcnn_block_forward.19} parent=39 // pred_region
        _
      $region44: #{afrcnn_block_forward.19} parent=39 // pred_fallthru
        _
    $region40: #{afrcnn_block_forward.19} parent=5 // pred_fallthru
      _
    %p425 = scmp.le.s32.totalorder 2, %s12
    // Predicated region
    $region45: #{afrcnn_block_forward.19} parent=5 // pred_check
      %p426 = pneg %p425
    $region46: #{afrcnn_block_forward.19} parent=5 // pred_check_branch
      %428 = sbr.rel (%p426) target = $region48
    $region47: #{afrcnn_block_forward.19} parent=5 // pred_region
      %s429 = ssub.s32 %s12, 2
      // Predicated region
      $region49: #{afrcnn_block_forward.19} parent=47 // pred_check
        %p430 = pneg %p156
      $region50: #{afrcnn_block_forward.19} parent=47 // pred_check_branch
        %432 = sbr.rel (%p430) target = $region52
      $region51: #{afrcnn_block_forward.19} parent=47 // pred_region
        %p433 = scmp.lt.s32.totalorder %s18, 1
        %s434 = scalar_select %p433, %s18, 1
        %s435 = smul.addr %s434, 4
        %s436 = smul.addr %s435, 4
        %s437 = scalar_lea.vmem %s5, %s436
      $region52: #{afrcnn_block_forward.19} parent=47 // pred_fallthru
        _
    $region48: #{afrcnn_block_forward.19} parent=5 // pred_fallthru
      _
  $region6: #{afrcnn_block_forward.19} parent=0 // loop_footer
    %s16 = sadd.s32 1, %s12
  $region7: #{afrcnn_block_forward.19} parent=0 // loop_footer_branch
    %11 = sbr.rel target = $region3
  $region8: #{afrcnn_block_forward.19} parent=0 // loop_exit
    _

// kernel: afrcnn_block_forward.14
$region0: #{afrcnn_block_forward.14}
  #allocation0 [shape = 'u32[]', space=smem, size = 0x4, offset = 0x4, fixed_abs, tag = 'smem constant byte address 0x4 - core index']
  #allocation1 [shape = 'u32[144,128]{1,0:T(1,128)}', space=vmem, size = 0x12000, scoped, tag = 'internal scratch']
  %s0 = inlined_call_operand.vmem [shape: bf16[2,32,10], index: 0, kind: input, shape index: {}]
  %s1 = inlined_call_operand.vmem [shape: bf16[2,32,9], index: 1, kind: input, shape index: {}]
  %s2 = inlined_call_operand.vmem [shape: f32[32,5], index: 2, kind: input, shape index: {}]
  %s3 = inlined_call_operand.vmem [shape: f32[32,1], index: 3, kind: input, shape index: {}]
  %s4 = inlined_call_operand.vmem [shape: f32[32,1], index: 4, kind: input, shape index: {}]
  %s5 = inlined_call_operand.vmem [shape: f32[32,1], index: 5, kind: input, shape index: {}]
  %s6 = inlined_call_operand.vmem [shape: f32[32,5], index: 6, kind: input, shape index: {}]
  %s7 = inlined_call_operand.vmem [shape: f32[32,1], index: 7, kind: input, shape index: {}]
  %s8 = inlined_call_operand.vmem [shape: f32[32,1], index: 8, kind: input, shape index: {}]
  %s9 = inlined_call_operand.vmem [shape: f32[32,1], index: 9, kind: input, shape index: {}]
  %s10 = inlined_call_operand.vmem [shape: bf16[2,32,8], index: 10, kind: output, shape index: {0}]
  %s11 = inlined_call_operand.vmem [shape: bf16[2,32,8], index: 11, kind: output, shape index: {1}]
  %12 = xla_tuple %s10, %s11
  %s13 = sld [smem:[#allocation0]]
  $region81: #{afrcnn_block_forward.14} parent=0
    _
  %s15 = ssub.s32 1, %s13
  %s16 = scalar_select 0, %s15, %s13
  loop: start=0, step=1, limit=4
  $region2: #{afrcnn_block_forward.14} parent=0 // loop_pre_header
    _
  $region3: #{afrcnn_block_forward.14} parent=0 // loop_header
    %s18 = sphi 0, %s22
    %p19 = scmp.ge.s32.totalorder %s18, 4
    %s28 = sphi 0, %s30
    %s31 = sphi 0, %s28
    %s32 = sphi 0, %s31
    %s48 = sphi 0, %s32
    %s54 = sphi 0, %s56
    %s57 = sphi 0, %s54
    %s58 = sphi 0, %s57
    %s74 = sphi 0, %s58
    %s78 = sphi 0, %s78
    %s80 = sphi 0, %s78
    %s81 = sphi 0, %s80
    %s95 = sphi 0, %s81
    %s99 = sphi 0, %s99
    %s101 = sphi 0, %s99
    %s102 = sphi 0, %s101
    %s116 = sphi 0, %s102
    %s120 = sphi 0, %s120
    %s122 = sphi 0, %s120
    %s123 = sphi 0, %s122
    %s137 = sphi 0, %s123
    %s141 = sphi 0, %s141
    %s143 = sphi 0, %s141
    %s144 = sphi 0, %s143
    %s158 = sphi 0, %s144
    %s162 = sphi 0, %s162
    %s164 = sphi 0, %s162
    %s165 = sphi 0, %s164
    %s179 = sphi 0, %s165
    %s183 = sphi 0, %s183
    %s185 = sphi 0, %s183
    %s186 = sphi 0, %s185
    %s200 = sphi 0, %s186
    %s204 = sphi 0, %s204
    %s206 = sphi 0, %s204
    %s207 = sphi 0, %s206
    %s221 = sphi 0, %s207
    %s225 = sphi 0, %s225
    %s227 = sphi 0, %s225
    %s228 = sphi 0, %s227
    %s242 = sphi 0, %s228
    %s248 = sphi 0, %s250
    %s251 = sphi 0, %s248
    %s252 = sphi 0, %s251
    %s268 = sphi 0, %s252
    %s274 = sphi 0, %s276
    %s277 = sphi 0, %s274
    %s278 = sphi 0, %s277
    %s294 = sphi 0, %s278
  $region4: #{afrcnn_block_forward.14} parent=0 // loop_header_branch
    %21 = sbr.rel (%p19) target = $region8
  $region5: #{afrcnn_block_forward.14} parent=0 // loop_body
    %s23 = ssub.s32 %s18, 1
    %s24 = ssub.s32 %s18, 2
    %s25 = sadd.s32 %s18, 1
    %s26 = ssub.s32 %s18, %s25
    %p27 = scmp.eq.s32.totalorder %s26, 0
    %s29 = sadd.s32 %s28, 1
    %s30 = scalar_select %p27, %s28, %s29
    %p33 = pneg %p27
    %p34 = scmp.eq.s32.totalorder %s18, 1
    %p35 = por %p33, %p34
    %p36 = scmp.ne.s32.totalorder %s28, %s31
    %p37 = scmp.eq.s32.totalorder %s18, 0
    %p38 = por %p36, %p37
    %p39 = scmp.ne.s32.totalorder %s28, %s31
    %p40 = scmp.eq.s32.totalorder %s23, 1
    %p41 = por %p39, %p40
    %p42 = scmp.ne.s32.totalorder %s31, %s32
    %p43 = scmp.eq.s32.totalorder %s23, 0
    %p44 = por %p42, %p43
    %p45 = scmp.ne.s32.totalorder %s31, %s32
    %p46 = scmp.eq.s32.totalorder %s24, 1
    %p47 = por %p45, %p46
    %p49 = scmp.ne.s32.totalorder %s32, %s48
    %p50 = scmp.eq.s32.totalorder %s24, 0
    %p51 = por %p49, %p50
    %s52 = ssub.s32 %s18, %s25
    %p53 = scmp.eq.s32.totalorder %s52, 0
    %s55 = sadd.s32 %s54, 1
    %s56 = scalar_select %p53, %s54, %s55
    %p59 = pneg %p53
    %p60 = scmp.eq.s32.totalorder %s18, 1
    %p61 = por %p59, %p60
    %p62 = scmp.ne.s32.totalorder %s54, %s57
    %p63 = scmp.eq.s32.totalorder %s18, 0
    %p64 = por %p62, %p63
    %p65 = scmp.ne.s32.totalorder %s54, %s57
    %p66 = scmp.eq.s32.totalorder %s23, 1
    %p67 = por %p65, %p66
    %p68 = scmp.ne.s32.totalorder %s57, %s58
    %p69 = scmp.eq.s32.totalorder %s23, 0
    %p70 = por %p68, %p69
    %p71 = scmp.ne.s32.totalorder %s57, %s58
    %p72 = scmp.eq.s32.totalorder %s24, 1
    %p73 = por %p71, %p72
    %p75 = scmp.ne.s32.totalorder %s58, %s74
    %p76 = scmp.eq.s32.totalorder %s24, 0
    %p77 = por %p75, %p76
    %s79 = sadd.s32 %s78, 1
    %p82 = scmp.eq.s32.totalorder %s18, 1
    %p83 = scmp.ne.s32.totalorder %s78, %s80
    %p84 = scmp.eq.s32.totalorder %s18, 0
    %p85 = por %p83, %p84
    %p86 = scmp.ne.s32.totalorder %s78, %s80
    %p87 = scmp.eq.s32.totalorder %s23, 1
    %p88 = por %p86, %p87
    %p89 = scmp.ne.s32.totalorder %s80, %s81
    %p90 = scmp.eq.s32.totalorder %s23, 0
    %p91 = por %p89, %p90
    %p92 = scmp.ne.s32.totalorder %s80, %s81
    %p93 = scmp.eq.s32.totalorder %s24, 1
    %p94 = por %p92, %p93
    %p96 = scmp.ne.s32.totalorder %s81, %s95
    %p97 = scmp.eq.s32.totalorder %s24, 0
    %p98 = por %p96, %p97
    %s100 = sadd.s32 %s99, 1
    %p103 = scmp.eq.s32.totalorder %s18, 1
    %p104 = scmp.ne.s32.totalorder %s99, %s101
    %p105 = scmp.eq.s32.totalorder %s18, 0
    %p106 = por %p104, %p105
    %p107 = scmp.ne.s32.totalorder %s99, %s101
    %p108 = scmp.eq.s32.totalorder %s23, 1
    %p109 = por %p107, %p108
    %p110 = scmp.ne.s32.totalorder %s101, %s102
    %p111 = scmp.eq.s32.totalorder %s23, 0
    %p112 = por %p110, %p111
    %p113 = scmp.ne.s32.totalorder %s101, %s102
    %p114 = scmp.eq.s32.totalorder %s24, 1
    %p115 = por %p113, %p114
    %p117 = scmp.ne.s32.totalorder %s102, %s116
    %p118 = scmp.eq.s32.totalorder %s24, 0
    %p119 = por %p117, %p118
    %s121 = sadd.s32 %s120, 1
    %p124 = scmp.eq.s32.totalorder %s18, 1
    %p125 = scmp.ne.s32.totalorder %s120, %s122
    %p126 = scmp.eq.s32.totalorder %s18, 0
    %p127 = por %p125, %p126
    %p128 = scmp.ne.s32.totalorder %s120, %s122
    %p129 = scmp.eq.s32.totalorder %s23, 1
    %p130 = por %p128, %p129
    %p131 = scmp.ne.s32.totalorder %s122, %s123
    %p132 = scmp.eq.s32.totalorder %s23, 0
    %p133 = por %p131, %p132
    %p134 = scmp.ne.s32.totalorder %s122, %s123
    %p135 = scmp.eq.s32.totalorder %s24, 1
    %p136 = por %p134, %p135
    %p138 = scmp.ne.s32.totalorder %s123, %s137
    %p139 = scmp.eq.s32.totalorder %s24, 0
    %p140 = por %p138, %p139
    %s142 = sadd.s32 %s141, 1
    %p145 = scmp.eq.s32.totalorder %s18, 1
    %p146 = scmp.ne.s32.totalorder %s141, %s143
    %p147 = scmp.eq.s32.totalorder %s18, 0
    %p148 = por %p146, %p147
    %p149 = scmp.ne.s32.totalorder %s141, %s143
    %p150 = scmp.eq.s32.totalorder %s23, 1
    %p151 = por %p149, %p150
    %p152 = scmp.ne.s32.totalorder %s143, %s144
    %p153 = scmp.eq.s32.totalorder %s23, 0
    %p154 = por %p152, %p153
    %p155 = scmp.ne.s32.totalorder %s143, %s144
    %p156 = scmp.eq.s32.totalorder %s24, 1
    %p157 = por %p155, %p156
    %p159 = scmp.ne.s32.totalorder %s144, %s158
    %p160 = scmp.eq.s32.totalorder %s24, 0
    %p161 = por %p159, %p160
    %s163 = sadd.s32 %s162, 1
    %p166 = scmp.eq.s32.totalorder %s18, 1
    %p167 = scmp.ne.s32.totalorder %s162, %s164
    %p168 = scmp.eq.s32.totalorder %s18, 0
    %p169 = por %p167, %p168
    %p170 = scmp.ne.s32.totalorder %s162, %s164
    %p171 = scmp.eq.s32.totalorder %s23, 1
    %p172 = por %p170, %p171
    %p173 = scmp.ne.s32.totalorder %s164, %s165
    %p174 = scmp.eq.s32.totalorder %s23, 0
    %p175 = por %p173, %p174
    %p176 = scmp.ne.s32.totalorder %s164, %s165
    %p177 = scmp.eq.s32.totalorder %s24, 1
    %p178 = por %p176, %p177
    %p180 = scmp.ne.s32.totalorder %s165, %s179
    %p181 = scmp.eq.s32.totalorder %s24, 0
    %p182 = por %p180, %p181
    %s184 = sadd.s32 %s183, 1
    %p187 = scmp.eq.s32.totalorder %s18, 1
    %p188 = scmp.ne.s32.totalorder %s183, %s185
    %p189 = scmp.eq.s32.totalorder %s18, 0
    %p190 = por %p188, %p189
    %p191 = scmp.ne.s32.totalorder %s183, %s185
    %p192 = scmp.eq.s32.totalorder %s23, 1
    %p193 = por %p191, %p192
    %p194 = scmp.ne.s32.totalorder %s185, %s186
    %p195 = scmp.eq.s32.totalorder %s23, 0
    %p196 = por %p194, %p195
    %p197 = scmp.ne.s32.totalorder %s185, %s186
    %p198 = scmp.eq.s32.totalorder %s24, 1
    %p199 = por %p197, %p198
    %p201 = scmp.ne.s32.totalorder %s186, %s200
    %p202 = scmp.eq.s32.totalorder %s24, 0
    %p203 = por %p201, %p202
    %s205 = sadd.s32 %s204, 1
    %p208 = scmp.eq.s32.totalorder %s18, 1
    %p209 = scmp.ne.s32.totalorder %s204, %s206
    %p210 = scmp.eq.s32.totalorder %s18, 0
    %p211 = por %p209, %p210
    %p212 = scmp.ne.s32.totalorder %s204, %s206
    %p213 = scmp.eq.s32.totalorder %s23, 1
    %p214 = por %p212, %p213
    %p215 = scmp.ne.s32.totalorder %s206, %s207
    %p216 = scmp.eq.s32.totalorder %s23, 0
    %p217 = por %p215, %p216
    %p218 = scmp.ne.s32.totalorder %s206, %s207
    %p219 = scmp.eq.s32.totalorder %s24, 1
    %p220 = por %p218, %p219
    %p222 = scmp.ne.s32.totalorder %s207, %s221
    %p223 = scmp.eq.s32.totalorder %s24, 0
    %p224 = por %p222, %p223
    %s226 = sadd.s32 %s225, 1
    %p229 = scmp.eq.s32.totalorder %s18, 1
    %p230 = scmp.ne.s32.totalorder %s225, %s227
    %p231 = scmp.eq.s32.totalorder %s18, 0
    %p232 = por %p230, %p231
    %p233 = scmp.ne.s32.totalorder %s225, %s227
    %p234 = scmp.eq.s32.totalorder %s23, 1
    %p235 = por %p233, %p234
    %p236 = scmp.ne.s32.totalorder %s227, %s228
    %p237 = scmp.eq.s32.totalorder %s23, 0
    %p238 = por %p236, %p237
    %p239 = scmp.ne.s32.totalorder %s227, %s228
    %p240 = scmp.eq.s32.totalorder %s24, 1
    %p241 = por %p239, %p240
    %p243 = scmp.ne.s32.totalorder %s228, %s242
    %p244 = scmp.eq.s32.totalorder %s24, 0
    %p245 = por %p243, %p244
    %s246 = ssub.s32 %s18, %s25
    %p247 = scmp.eq.s32.totalorder %s246, 0
    %s249 = sadd.s32 %s248, 1
    %s250 = scalar_select %p247, %s248, %s249
    %p253 = pneg %p247
    %p254 = scmp.eq.s32.totalorder %s18, 1
    %p255 = por %p253, %p254
    %p256 = scmp.ne.s32.totalorder %s248, %s251
    %p257 = scmp.eq.s32.totalorder %s18, 0
    %p258 = por %p256, %p257
    %p259 = scmp.ne.s32.totalorder %s248, %s251
    %p260 = scmp.eq.s32.totalorder %s23, 1
    %p261 = por %p259, %p260
    %p262 = scmp.ne.s32.totalorder %s251, %s252
    %p263 = scmp.eq.s32.totalorder %s23, 0
    %p264 = por %p262, %p263
    %p265 = scmp.ne.s32.totalorder %s251, %s252
    %p266 = scmp.eq.s32.totalorder %s24, 1
    %p267 = por %p265, %p266
    %p269 = scmp.ne.s32.totalorder %s252, %s268
    %p270 = scmp.eq.s32.totalorder %s24, 0
    %p271 = por %p269, %p270
    %s272 = ssub.s32 %s18, %s25
    %p273 = scmp.eq.s32.totalorder %s272, 0
    %s275 = sadd.s32 %s274, 1
    %s276 = scalar_select %p273, %s274, %s275
    %p279 = pneg %p273
    %p280 = scmp.eq.s32.totalorder %s18, 1
    %p281 = por %p279, %p280
    %p282 = scmp.ne.s32.totalorder %s274, %s277
    %p283 = scmp.eq.s32.totalorder %s18, 0
    %p284 = por %p282, %p283
    %p285 = scmp.ne.s32.totalorder %s274, %s277
    %p286 = scmp.eq.s32.totalorder %s23, 1
    %p287 = por %p285, %p286
    %p288 = scmp.ne.s32.totalorder %s277, %s278
    %p289 = scmp.eq.s32.totalorder %s23, 0
    %p290 = por %p288, %p289
    %p291 = scmp.ne.s32.totalorder %s277, %s278
    %p292 = scmp.eq.s32.totalorder %s24, 1
    %p293 = por %p291, %p292
    %p295 = scmp.ne.s32.totalorder %s278, %s294
    %p296 = scmp.eq.s32.totalorder %s24, 0
    %p297 = por %p295, %p296
    %p298 = scmp.le.s32.totalorder 1, %s18
    %p299 = scmp.lt.s32.totalorder %s18, 3
    %p300 = pnand %p298, %p299
    %p301 = pneg %p300
    // Predicated region
    $region9: #{afrcnn_block_forward.14} parent=5 // pred_check
      _
    $region10: #{afrcnn_block_forward.14} parent=5 // pred_check_branch
      %303 = sbr.rel (%p300) target = $region12
    $region11: #{afrcnn_block_forward.14} parent=5 // pred_region
      %s304 = ssub.s32 %s18, 1
      // Predicated region
      $region13: #{afrcnn_block_forward.14} parent=11 // pred_check
        %p305 = pneg %p91
      $region14: #{afrcnn_block_forward.14} parent=11 // pred_check_branch
        %307 = sbr.rel (%p305) target = $region16
      $region15: #{afrcnn_block_forward.14} parent=11 // pred_region
        _
      $region16: #{afrcnn_block_forward.14} parent=11 // pred_fallthru
        _
      // Predicated region
      $region17: #{afrcnn_block_forward.14} parent=11 // pred_check
        %p308 = pneg %p112
      $region18: #{afrcnn_block_forward.14} parent=11 // pred_check_branch
        %310 = sbr.rel (%p308) target = $region20
      $region19: #{afrcnn_block_forward.14} parent=11 // pred_region
        _
      $region20: #{afrcnn_block_forward.14} parent=11 // pred_fallthru
        _
      // Predicated region
      $region21: #{afrcnn_block_forward.14} parent=11 // pred_check
        %p311 = pneg %p133
      $region22: #{afrcnn_block_forward.14} parent=11 // pred_check_branch
        %313 = sbr.rel (%p311) target = $region24
      $region23: #{afrcnn_block_forward.14} parent=11 // pred_region
        _
      $region24: #{afrcnn_block_forward.14} parent=11 // pred_fallthru
        _
      // Predicated region
      $region25: #{afrcnn_block_forward.14} parent=11 // pred_check
        %p314 = pneg %p154
      $region26: #{afrcnn_block_forward.14} parent=11 // pred_check_branch
        %316 = sbr.rel (%p314) target = $region28
      $region27: #{afrcnn_block_forward.14} parent=11 // pred_region
        _
      $region28: #{afrcnn_block_forward.14} parent=11 // pred_fallthru
        _
      // Predicated region
      $region29: #{afrcnn_block_forward.14} parent=11 // pred_check
        %p317 = pneg %p175
      $region30: #{afrcnn_block_forward.14} parent=11 // pred_check_branch
        %319 = sbr.rel (%p317) target = $region32
      $region31: #{afrcnn_block_forward.14} parent=11 // pred_region
        _
      $region32: #{afrcnn_block_forward.14} parent=11 // pred_fallthru
        _
      // Predicated region
      $region33: #{afrcnn_block_forward.14} parent=11 // pred_check
        %p320 = pneg %p196
      $region34: #{afrcnn_block_forward.14} parent=11 // pred_check_branch
        %322 = sbr.rel (%p320) target = $region36
      $region35: #{afrcnn_block_forward.14} parent=11 // pred_region
        _
      $region36: #{afrcnn_block_forward.14} parent=11 // pred_fallthru
        _
      // Predicated region
      $region37: #{afrcnn_block_forward.14} parent=11 // pred_check
        %p323 = pneg %p217
      $region38: #{afrcnn_block_forward.14} parent=11 // pred_check_branch
        %325 = sbr.rel (%p323) target = $region40
      $region39: #{afrcnn_block_forward.14} parent=11 // pred_region
        _
      $region40: #{afrcnn_block_forward.14} parent=11 // pred_fallthru
        _
      // Predicated region
      $region41: #{afrcnn_block_forward.14} parent=11 // pred_check
        %p326 = pneg %p238
      $region42: #{afrcnn_block_forward.14} parent=11 // pred_check_branch
        %328 = sbr.rel (%p326) target = $region44
      $region43: #{afrcnn_block_forward.14} parent=11 // pred_region
        _
      $region44: #{afrcnn_block_forward.14} parent=11 // pred_fallthru
        _
    $region12: #{afrcnn_block_forward.14} parent=5 // pred_fallthru
      _
    %p329 = scmp.lt.s32.totalorder %s18, 2
    // Predicated region
    $region45: #{afrcnn_block_forward.14} parent=5 // pred_check
      %p330 = pneg %p329
    $region46: #{afrcnn_block_forward.14} parent=5 // pred_check_branch
      %332 = sbr.rel (%p330) target = $region48
    $region47: #{afrcnn_block_forward.14} parent=5 // pred_region
      // Predicated region
      $region49: #{afrcnn_block_forward.14} parent=47 // pred_check
        %p333 = pneg %p38
      $region50: #{afrcnn_block_forward.14} parent=47 // pred_check_branch
        %335 = sbr.rel (%p333) target = $region52
      $region51: #{afrcnn_block_forward.14} parent=47 // pred_region
        %p336 = scmp.lt.s32.totalorder %s18, 1
        %s337 = scalar_select %p336, %s18, 1
        %s338 = smul.addr %s337, 4
        %s339 = smul.addr %s338, 4
        %s340 = scalar_lea.vmem %s0, %s339
      $region52: #{afrcnn_block_forward.14} parent=47 // pred_fallthru
        _
      // Predicated region
      $region53: #{afrcnn_block_forward.14} parent=47 // pred_check
        %p341 = pneg %p64
      $region54: #{afrcnn_block_forward.14} parent=47 // pred_check_branch
        %343 = sbr.rel (%p341) target = $region56
      $region55: #{afrcnn_block_forward.14} parent=47 // pred_region
        %p344 = scmp.lt.s32.totalorder %s18, 1
        %s345 = scalar_select %p344, %s18, 1
        %s346 = smul.addr %s345, 4
        %s347 = smul.addr %s346, 4
        %s348 = scalar_lea.vmem %s1, %s347
      $region56: #{afrcnn_block_forward.14} parent=47 // pred_fallthru
        _
    $region48: #{afrcnn_block_forward.14} parent=5 // pred_fallthru
      _
    %p349 = scmp.le.s32.totalorder 1, %s18
    %p350 = scmp.lt.s32.totalorder %s18, 3
    %p351 = pnand %p349, %p350
    %p352 = pneg %p351
    // Predicated region
    $region57: #{afrcnn_block_forward.14} parent=5 // pred_check
      _
    $region58: #{afrcnn_block_forward.14} parent=5 // pred_check_branch
      %354 = sbr.rel (%p351) target = $region60
    $region59: #{afrcnn_block_forward.14} parent=5 // pred_region
      %s355 = ssub.s32 %s18, 1
      %p356 = scmp.lt.s32.totalorder %s23, 1
      %s357 = scalar_select %p356, %s23, 1
      %s358 = smul.addr %s357, 4
      %s359 = smul.addr %s358, 4
      %s360 = scalar_lea.vmem %s0, %s359
      %p361 = pneg %p44
      %p362 = pneg %p41
      %p363 = scmp.lt.s32.totalorder %s23, 1
      %s364 = scalar_select %p363, %s23, 1
      %s365 = smul.addr %s364, 4
      %s366 = smul.addr %s365, 4
      %s367 = scalar_lea.vmem %s1, %s366
      %p368 = pneg %p70
      %p369 = pneg %p67
      %p370 = pneg %p91
      %p371 = pneg %p88
      %p372 = pneg %p112
      %p373 = pneg %p109
      %p374 = pneg %p133
      %p375 = pneg %p130
      %p376 = pneg %p154
      %p377 = pneg %p151
      %p378 = pneg %p175
      %p379 = pneg %p172
      %p380 = pneg %p196
      %p381 = pneg %p193
      %p382 = pneg %p217
      %p383 = pneg %p214
      %p384 = pneg %p238
      %p385 = pneg %p235
      %p386 = pneg %p264
      %p387 = pneg %p261
      %p388 = scmp.lt.s32.totalorder %s23, 1
      %s389 = scalar_select %p388, %s23, 1
      %s390 = smul.addr %s389, 4
      %s391 = smul.addr %s390, 4
      %s392 = scalar_lea.vmem %s10, %s391
      %p393 = pneg %p290
      %p394 = pneg %p287
      %p395 = scmp.lt.s32.totalorder %s23, 1
      %s396 = scalar_select %p395, %s23, 1
      %s397 = smul.addr %s396, 4
      %s398 = smul.addr %s397, 4
      %s399 = scalar_lea.vmem %s11, %s398
      %p400 = scmp.lt.s32.totalorder %s23, 1
      %s401 = scalar_select %p400, %s23, 1
      %s402 = smul.addr %s401, 4
      %s403 = smul.addr %s402, 4
      %s404 = scalar_lea.vmem %s0, %s403
      %p405 = scmp.lt.s32.totalorder %s23, 1
      %s406 = scalar_select %p405, %s23, 1
      %s407 = smul.addr %s406, 4
      %s408 = smul.addr %s407, 4
      %s409 = scalar_lea.vmem %s1, %s408
      %p410 = scmp.lt.s32.totalorder %s23, 1
      %s411 = scalar_select %p410, %s23, 1
      %s412 = smul.addr %s411, 4
      %s413 = smul.addr %s412, 4
      %s414 = scalar_lea.vmem %s10, %s413
      %p415 = scmp.lt.s32.totalorder %s23, 1
      %s416 = scalar_select %p415, %s23, 1
      %s417 = smul.addr %s416, 4
      %s418 = smul.addr %s417, 4
      %s419 = scalar_lea.vmem %s11, %s418
      %v420 = vld [vmem:[%s2] sm:$0xff]
      %v421 = vld [vmem:[%s2 + $0x8] sm:$0xff]
      %v422 = vld [vmem:[%s2 + $0x10] sm:$0xff]
      %v423 = vld [vmem:[%s2 + $0x18] sm:$0xff]
      %v424 = vld [vmem:[%s6] sm:$0xff]
      %v425 = vld [vmem:[%s6 + $0x8] sm:$0xff]
      %v426 = vld [vmem:[%s6 + $0x10] sm:$0xff]
      %v427 = vld [vmem:[%s6 + $0x18] sm:$0xff]
      %v428 = vld [vmem:[%s404] sm:$0xf]
      %v429 = vld [vmem:[%s404 + $0x4] sm:$0xf]
      %v430 = vld [vmem:[%s404 + $0x8] sm:$0xf]
      %v431 = vld [vmem:[%s404 + $0xc] sm:$0xf]
      %v432 = vunpack.c.l.bf16 %v428
      %v433 = vunpack.c.l.bf16 %v429
      %v434 = vunpack.c.l.bf16 %v430
      %v435 = vunpack.c.l.bf16 %v431
      %437 = vset.pattern.permute.xlu0 0
      %438 = vperm.xlu0 %437, %v420
      %v439 = vpop.permute.xlu0 %438
      %442 = vset.pattern.permute.xlu0 0
      %443 = vperm.xlu0 %442, %v421
      %v444 = vpop.permute.xlu0 %443
      %447 = vset.pattern.permute.xlu0 0
      %448 = vperm.xlu0 %447, %v422
      %v449 = vpop.permute.xlu0 %448
      %452 = vset.pattern.permute.xlu0 0
      %453 = vperm.xlu0 %452, %v423
      %v454 = vpop.permute.xlu0 %453
      %v456 = vmul.f32 %v439, %v432
      %v457 = vmul.f32 %v444, %v433
      %v458 = vmul.f32 %v449, %v434
      %v459 = vmul.f32 %v454, %v435
      %v460 = vadd.f32 %v456, 0.0
      %v461 = vadd.f32 %v457, 0.0
      %v462 = vadd.f32 %v458, 0.0
      %v463 = vadd.f32 %v459, 0.0
      %465 = vset.pattern.permute.xlu0 0
      %466 = vperm.xlu0 %465, %v424
      %v467 = vpop.permute.xlu0 %466
      %470 = vset.pattern.permute.xlu0 0
      %471 = vperm.xlu0 %470, %v425
      %v472 = vpop.permute.xlu0 %471
      %475 = vset.pattern.permute.xlu0 0
      %476 = vperm.xlu0 %475, %v426
      %v477 = vpop.permute.xlu0 %476
      %480 = vset.pattern.permute.xlu0 0
      %481 = vperm.xlu0 %480, %v427
      %v482 = vpop.permute.xlu0 %481
      %v484 = vmul.f32 %v467, %v432
      %v485 = vmul.f32 %v472, %v433
      %v486 = vmul.f32 %v477, %v434
      %v487 = vmul.f32 %v482, %v435
      %v488 = vadd.f32 %v484, 0.0
      %v489 = vadd.f32 %v485, 0.0
      %v490 = vadd.f32 %v486, 0.0
      %v491 = vadd.f32 %v487, 0.0
      %v492 = vld [vmem:[%s409] sm:$0xf]
      %v493 = vld [vmem:[%s409 + $0x4] sm:$0xf]
      %v494 = vld [vmem:[%s409 + $0x8] sm:$0xf]
      %v495 = vld [vmem:[%s409 + $0xc] sm:$0xf]
      %v496 = vunpack.c.l.bf16 %v492
      %v497 = vunpack.c.l.bf16 %v493
      %v498 = vunpack.c.l.bf16 %v494
      %v499 = vunpack.c.l.bf16 %v495
      %500 = vset.pattern.permute.xlu0 1
      %501 = vperm.xlu0 %500, %v420
      %v502 = vpop.permute.xlu0 %501
      %504 = vset.pattern.permute.xlu0 1
      %505 = vperm.xlu0 %504, %v421
      %v506 = vpop.permute.xlu0 %505
      %508 = vset.pattern.permute.xlu0 1
      %509 = vperm.xlu0 %508, %v422
      %v510 = vpop.permute.xlu0 %509
      %512 = vset.pattern.permute.xlu0 1
      %513 = vperm.xlu0 %512, %v423
      %v514 = vpop.permute.xlu0 %513
      %v516 = vmul.f32 %v502, %v496
      %v517 = vmul.f32 %v506, %v497
      %v518 = vmul.f32 %v510, %v498
      %v519 = vmul.f32 %v514, %v499
      %v520 = vadd.f32 %v460, %v516
      %v521 = vadd.f32 %v461, %v517
      %v522 = vadd.f32 %v462, %v518
      %v523 = vadd.f32 %v463, %v519
      %524 = vset.pattern.permute.xlu0 1
      %525 = vperm.xlu0 %524, %v424
      %v526 = vpop.permute.xlu0 %525
      %528 = vset.pattern.permute.xlu0 1
      %529 = vperm.xlu0 %528, %v425
      %v530 = vpop.permute.xlu0 %529
      %532 = vset.pattern.permute.xlu0 1
      %533 = vperm.xlu0 %532, %v426
      %v534 = vpop.permute.xlu0 %533
      %536 = vset.pattern.permute.xlu0 1
      %537 = vperm.xlu0 %536, %v427
      %v538 = vpop.permute.xlu0 %537
      %v540 = vmul.f32 %v526, %v496
      %v541 = vmul.f32 %v530, %v497
      %v542 = vmul.f32 %v534, %v498
      %v543 = vmul.f32 %v538, %v499
      %v544 = vadd.f32 %v488, %v540
      %v545 = vadd.f32 %v489, %v541
      %v546 = vadd.f32 %v490, %v542
      %v547 = vadd.f32 %v491, %v543
      %548 = vset.pattern.permute.xlu0 2
      %549 = vperm.xlu0 %548, %v420
      %v550 = vpop.permute.xlu0 %549
      %552 = vset.pattern.permute.xlu0 2
      %553 = vperm.xlu0 %552, %v421
      %v554 = vpop.permute.xlu0 %553
      %556 = vset.pattern.permute.xlu0 2
      %557 = vperm.xlu0 %556, %v422
      %v558 = vpop.permute.xlu0 %557
      %560 = vset.pattern.permute.xlu0 2
      %561 = vperm.xlu0 %560, %v423
      %v562 = vpop.permute.xlu0 %561
      %v564 = vmul.f32 %v550, %v432
      %v565 = vmul.f32 %v554, %v433
      %v566 = vmul.f32 %v558, %v434
      %v567 = vmul.f32 %v562, %v435
      %572 = vrot.lane.b32.xlu0 %v564, 127
      %v573 = vpop.permute.xlu0 %572
      %574 = vrot.lane.b32.xlu0 %v565, 127
      %v575 = vpop.permute.xlu0 %574
      %576 = vrot.lane.b32.xlu0 %v566, 127
      %v577 = vpop.permute.xlu0 %576
      %578 = vrot.lane.b32.xlu0 %v567, 127
      %v579 = vpop.permute.xlu0 %578
      %v584 = vadd.f32 %v520, %v573
      %v585 = vadd.f32 %v521, %v575
      %v586 = vadd.f32 %v522, %v577
      %v587 = vadd.f32 %v523, %v579
      %588 = vset.pattern.permute.xlu0 2
      %589 = vperm.xlu0 %588, %v424
      %v590 = vpop.permute.xlu0 %589
      %592 = vset.pattern.permute.xlu0 2
      %593 = vperm.xlu0 %592, %v425
      %v594 = vpop.permute.xlu0 %593
      %596 = vset.pattern.permute.xlu0 2
      %597 = vperm.xlu0 %596, %v426
      %v598 = vpop.permute.xlu0 %597
      %600 = vset.pattern.permute.xlu0 2
      %601 = vperm.xlu0 %600, %v427
      %v602 = vpop.permute.xlu0 %601
      %v604 = vmul.f32 %v590, %v432
      %v605 = vmul.f32 %v594, %v433
      %v606 = vmul.f32 %v598, %v434
      %v607 = vmul.f32 %v602, %v435
      %612 = vrot.lane.b32.xlu0 %v604, 127
      %v613 = vpop.permute.xlu0 %612
      %614 = vrot.lane.b32.xlu0 %v605, 127
      %v615 = vpop.permute.xlu0 %614
      %616 = vrot.lane.b32.xlu0 %v606, 127
      %v617 = vpop.permute.xlu0 %616
      %618 = vrot.lane.b32.xlu0 %v607, 127
      %v619 = vpop.permute.xlu0 %618
      %v624 = vadd.f32 %v544, %v613
      %v625 = vadd.f32 %v545, %v615
      %v626 = vadd.f32 %v546, %v617
      %v627 = vadd.f32 %v547, %v619
      %628 = vset.pattern.permute.xlu0 3
      %629 = vperm.xlu0 %628, %v420
      %v630 = vpop.permute.xlu0 %629
      %632 = vset.pattern.permute.xlu0 3
      %633 = vperm.xlu0 %632, %v421
      %v634 = vpop.permute.xlu0 %633
      %636 = vset.pattern.permute.xlu0 3
      %637 = vperm.xlu0 %636, %v422
      %v638 = vpop.permute.xlu0 %637
      %640 = vset.pattern.permute.xlu0 3
      %641 = vperm.xlu0 %640, %v423
      %v642 = vpop.permute.xlu0 %641
      %v644 = vmul.f32 %v630, %v496
      %v645 = vmul.f32 %v634, %v497
      %v646 = vmul.f32 %v638, %v498
      %v647 = vmul.f32 %v642, %v499
      %652 = vrot.lane.b32.xlu0 %v644, 127
      %v653 = vpop.permute.xlu0 %652
      %654 = vrot.lane.b32.xlu0 %v645, 127
      %v655 = vpop.permute.xlu0 %654
      %656 = vrot.lane.b32.xlu0 %v646, 127
      %v657 = vpop.permute.xlu0 %656
      %658 = vrot.lane.b32.xlu0 %v647, 127
      %v659 = vpop.permute.xlu0 %658
      %v664 = vadd.f32 %v584, %v653
      %v665 = vadd.f32 %v585, %v655
      %v666 = vadd.f32 %v586, %v657
      %v667 = vadd.f32 %v587, %v659
      %668 = vset.pattern.permute.xlu0 3
      %669 = vperm.xlu0 %668, %v424
      %v670 = vpop.permute.xlu0 %669
      %672 = vset.pattern.permute.xlu0 3
      %673 = vperm.xlu0 %672, %v425
      %v674 = vpop.permute.xlu0 %673
      %676 = vset.pattern.permute.xlu0 3
      %677 = vperm.xlu0 %676, %v426
      %v678 = vpop.permute.xlu0 %677
      %680 = vset.pattern.permute.xlu0 3
      %681 = vperm.xlu0 %680, %v427
      %v682 = vpop.permute.xlu0 %681
      %v684 = vmul.f32 %v670, %v496
      %v685 = vmul.f32 %v674, %v497
      %v686 = vmul.f32 %v678, %v498
      %v687 = vmul.f32 %v682, %v499
      %692 = vrot.lane.b32.xlu0 %v684, 127
      %v693 = vpop.permute.xlu0 %692
      %694 = vrot.lane.b32.xlu0 %v685, 127
      %v695 = vpop.permute.xlu0 %694
      %696 = vrot.lane.b32.xlu0 %v686, 127
      %v697 = vpop.permute.xlu0 %696
      %698 = vrot.lane.b32.xlu0 %v687, 127
      %v699 = vpop.permute.xlu0 %698
      %v704 = vadd.f32 %v624, %v693
      %v705 = vadd.f32 %v625, %v695
      %v706 = vadd.f32 %v626, %v697
      %v707 = vadd.f32 %v627, %v699
      %708 = vset.pattern.permute.xlu0 4
      %709 = vperm.xlu0 %708, %v420
      %v710 = vpop.permute.xlu0 %709
      %712 = vset.pattern.permute.xlu0 4
      %713 = vperm.xlu0 %712, %v421
      %v714 = vpop.permute.xlu0 %713
      %716 = vset.pattern.permute.xlu0 4
      %717 = vperm.xlu0 %716, %v422
      %v718 = vpop.permute.xlu0 %717
      %720 = vset.pattern.permute.xlu0 4
      %721 = vperm.xlu0 %720, %v423
      %v722 = vpop.permute.xlu0 %721
      %v724 = vmul.f32 %v710, %v432
      %v725 = vmul.f32 %v714, %v433
      %v726 = vmul.f32 %v718, %v434
      %v727 = vmul.f32 %v722, %v435
      %732 = vrot.lane.b32.xlu0 %v724, 126
      %v733 = vpop.permute.xlu0 %732
      %734 = vrot.lane.b32.xlu0 %v725, 126
      %v735 = vpop.permute.xlu0 %734
      %736 = vrot.lane.b32.xlu0 %v726, 126
      %v737 = vpop.permute.xlu0 %736
      %738 = vrot.lane.b32.xlu0 %v727, 126
      %v739 = vpop.permute.xlu0 %738
      %v744 = vadd.f32 %v664, %v733
      %v745 = vadd.f32 %v665, %v735
      %v746 = vadd.f32 %v666, %v737
      %v747 = vadd.f32 %v667, %v739
      %748 = vset.pattern.permute.xlu0 4
      %749 = vperm.xlu0 %748, %v424
      %v750 = vpop.permute.xlu0 %749
      %752 = vset.pattern.permute.xlu0 4
      %753 = vperm.xlu0 %752, %v425
      %v754 = vpop.permute.xlu0 %753
      %756 = vset.pattern.permute.xlu0 4
      %757 = vperm.xlu0 %756, %v426
      %v758 = vpop.permute.xlu0 %757
      %760 = vset.pattern.permute.xlu0 4
      %761 = vperm.xlu0 %760, %v427
      %v762 = vpop.permute.xlu0 %761
      %v764 = vmul.f32 %v750, %v432
      %v765 = vmul.f32 %v754, %v433
      %v766 = vmul.f32 %v758, %v434
      %v767 = vmul.f32 %v762, %v435
      %772 = vrot.lane.b32.xlu0 %v764, 126
      %v773 = vpop.permute.xlu0 %772
      %774 = vrot.lane.b32.xlu0 %v765, 126
      %v775 = vpop.permute.xlu0 %774
      %776 = vrot.lane.b32.xlu0 %v766, 126
      %v777 = vpop.permute.xlu0 %776
      %778 = vrot.lane.b32.xlu0 %v767, 126
      %v779 = vpop.permute.xlu0 %778
      %v784 = vadd.f32 %v704, %v773
      %v785 = vadd.f32 %v705, %v775
      %v786 = vadd.f32 %v706, %v777
      %v787 = vadd.f32 %v707, %v779
      %v788 = vld [vmem:[%s3] sm:$0xff]
      %v789 = vld [vmem:[%s3 + $0x8] sm:$0xff]
      %v790 = vld [vmem:[%s3 + $0x10] sm:$0xff]
      %v791 = vld [vmem:[%s3 + $0x18] sm:$0xff]
      %793 = vset.pattern.permute.xlu0 0
      %794 = vperm.xlu0 %793, %v788
      %v795 = vpop.permute.xlu0 %794
      %798 = vset.pattern.permute.xlu0 0
      %799 = vperm.xlu0 %798, %v789
      %v800 = vpop.permute.xlu0 %799
      %803 = vset.pattern.permute.xlu0 0
      %804 = vperm.xlu0 %803, %v790
      %v805 = vpop.permute.xlu0 %804
      %808 = vset.pattern.permute.xlu0 0
      %809 = vperm.xlu0 %808, %v791
      %v810 = vpop.permute.xlu0 %809
      %v812 = vadd.f32 %v744, %v795
      %v813 = vadd.f32 %v745, %v800
      %v814 = vadd.f32 %v746, %v805
      %v815 = vadd.f32 %v747, %v810
      %v816 = vld [vmem:[%s7] sm:$0xff]
      %v817 = vld [vmem:[%s7 + $0x8] sm:$0xff]
      %v818 = vld [vmem:[%s7 + $0x10] sm:$0xff]
      %v819 = vld [vmem:[%s7 + $0x18] sm:$0xff]
      %821 = vset.pattern.permute.xlu0 0
      %822 = vperm.xlu0 %821, %v816
      %v823 = vpop.permute.xlu0 %822
      %826 = vset.pattern.permute.xlu0 0
      %827 = vperm.xlu0 %826, %v817
      %v828 = vpop.permute.xlu0 %827
      %831 = vset.pattern.permute.xlu0 0
      %832 = vperm.xlu0 %831, %v818
      %v833 = vpop.permute.xlu0 %832
      %836 = vset.pattern.permute.xlu0 0
      %837 = vperm.xlu0 %836, %v819
      %v838 = vpop.permute.xlu0 %837
      %v840 = vadd.f32 %v784, %v823
      %v841 = vadd.f32 %v785, %v828
      %v842 = vadd.f32 %v786, %v833
      %v843 = vadd.f32 %v787, %v838
      %v844 = vld [vmem:[%s4] sm:$0xff]
      %v845 = vld [vmem:[%s4 + $0x8] sm:$0xff]
      %v846 = vld [vmem:[%s4 + $0x10] sm:$0xff]
      %v847 = vld [vmem:[%s4 + $0x18] sm:$0xff]
      %v848 = vld [vmem:[%s5] sm:$0xff]
      %v849 = vld [vmem:[%s5 + $0x8] sm:$0xff]
      %v850 = vld [vmem:[%s5 + $0x10] sm:$0xff]
      %v851 = vld [vmem:[%s5 + $0x18] sm:$0xff]
      %vm852 = vcmask 64512
      %v853 = vsel %vm852, %v812, 0.0
      %v854 = vsel %vm852, %v813, 0.0
      %v855 = vadd.f32 %v853, %v854
      %v856 = vsel %vm852, %v814, 0.0
      %v857 = vadd.f32 %v855, %v856
      %v858 = vsel %vm852, %v815, 0.0
      %v859 = vadd.f32 %v857, %v858
      %860 = vadd.xlane.f32.xlu0 %v859
      %v861 = vpop.xlane.xlu0 %860
      %v862 = vrot.slane %v861, 4
      %v863 = vadd.f32 %v861, %v862
      %v864 = vrot.slane %v863, 2
      %v865 = vadd.f32 %v863, %v864
      %v866 = vrot.slane %v865, 1
      %v867 = vadd.f32 %v865, %v866
      %s868 = vtos %v867
      %v869 = vmul.f32 %v812, %v812
      %v870 = vmul.f32 %v813, %v813
      %v871 = vmul.f32 %v814, %v814
      %v872 = vmul.f32 %v815, %v815
      %v873 = vsel %vm852, %v869, 0.0
      %v874 = vsel %vm852, %v870, 0.0
      %v875 = vadd.f32 %v873, %v874
      %v876 = vsel %vm852, %v871, 0.0
      %v877 = vadd.f32 %v875, %v876
      %v878 = vsel %vm852, %v872, 0.0
      %v879 = vadd.f32 %v877, %v878
      %880 = vadd.xlane.f32.xlu0 %v879
      %v881 = vpop.xlane.xlu0 %880
      %v882 = vrot.slane %v881, 4
      %v883 = vadd.f32 %v881, %v882
      %v884 = vrot.slane %v883, 2
      %v885 = vadd.f32 %v883, %v884
      %v886 = vrot.slane %v885, 1
      %v887 = vadd.f32 %v885, %v886
      %s888 = vtos %v887
      %v889 = vrcp.pop 256.0
      %s890 = vtos %v889
      %s891 = smul.f32 %s868, %s890
      %v892 = vrcp.pop 256.0
      %s893 = vtos %v892
      %s894 = smul.f32 %s888, %s893
      %s895 = smul.f32 %s891, %s891
      %s896 = ssub.f32 %s894, %s895
      %s897 = smax.f32 %s896, 0.0
      %v898 = vstv %s891
      %v899 = vsub.f32 %v812, %v898
      %v900 = vsub.f32 %v813, %v898
      %v901 = vsub.f32 %v814, %v898
      %v902 = vsub.f32 %v815, %v898
      %s903 = sadd.f32 %s897, 1e-08
      %v904 = vstv %s903
      %v905 = vrsqrt.pop %v904
      %s906 = vtos %v905
      %v907 = vstv %s906
      %v908 = vmul.f32 %v899, %v907
      %v909 = vmul.f32 %v900, %v907
      %v910 = vmul.f32 %v901, %v907
      %v911 = vmul.f32 %v902, %v907
      %913 = vset.pattern.permute.xlu0 0
      %914 = vperm.xlu0 %913, %v844
      %v915 = vpop.permute.xlu0 %914
      %918 = vset.pattern.permute.xlu0 0
      %919 = vperm.xlu0 %918, %v845
      %v920 = vpop.permute.xlu0 %919
      %923 = vset.pattern.permute.xlu0 0
      %924 = vperm.xlu0 %923, %v846
      %v925 = vpop.permute.xlu0 %924
      %928 = vset.pattern.permute.xlu0 0
      %929 = vperm.xlu0 %928, %v847
      %v930 = vpop.permute.xlu0 %929
      %v932 = vmul.f32 %v908, %v915
      %v933 = vmul.f32 %v909, %v920
      %v934 = vmul.f32 %v910, %v925
      %v935 = vmul.f32 %v911, %v930
      %937 = vset.pattern.permute.xlu0 0
      %938 = vperm.xlu0 %937, %v848
      %v939 = vpop.permute.xlu0 %938
      %942 = vset.pattern.permute.xlu0 0
      %943 = vperm.xlu0 %942, %v849
      %v944 = vpop.permute.xlu0 %943
      %947 = vset.pattern.permute.xlu0 0
      %948 = vperm.xlu0 %947, %v850
      %v949 = vpop.permute.xlu0 %948
      %952 = vset.pattern.permute.xlu0 0
      %953 = vperm.xlu0 %952, %v851
      %v954 = vpop.permute.xlu0 %953
      %v956 = vadd.f32 %v932, %v939
      %v957 = vadd.f32 %v933, %v944
      %v958 = vadd.f32 %v934, %v949
      %v959 = vadd.f32 %v935, %v954
      %v960 = vpack.c.bf16 %v957, %v956
      %v961 = vpack.c.bf16 %v959, %v958
      %v964 = vunpack.c.l.b16 %v960
      %v965 = vunpack.c.h.b16 %v960
      %v966 = vunpack.c.l.b16 %v961
      %v967 = vunpack.c.h.b16 %v961
      %v968 = vpack.c.b16 %v964, %v964
      %v969 = vpack.c.b16 %v965, %v965
      %v970 = vpack.c.b16 %v966, %v966
      %v971 = vpack.c.b16 %v967, %v967
      %vm976 = vcmask 60416
      %977 = vst.msk [vmem:[%s414] sm:$0xf] %vm976, %v968
      %978 = vst.msk [vmem:[%s414 + $0x4] sm:$0xf] %vm976, %v969
      %979 = vst.msk [vmem:[%s414 + $0x8] sm:$0xf] %vm976, %v970
      %980 = vst.msk [vmem:[%s414 + $0xc] sm:$0xf] %vm976, %v971
      %v981 = vld [vmem:[%s8] sm:$0xff]
      %v982 = vld [vmem:[%s8 + $0x8] sm:$0xff]
      %v983 = vld [vmem:[%s8 + $0x10] sm:$0xff]
      %v984 = vld [vmem:[%s8 + $0x18] sm:$0xff]
      %v985 = vld [vmem:[%s9] sm:$0xff]
      %v986 = vld [vmem:[%s9 + $0x8] sm:$0xff]
      %v987 = vld [vmem:[%s9 + $0x10] sm:$0xff]
      %v988 = vld [vmem:[%s9 + $0x18] sm:$0xff]
      %v989 = vsel %vm852, %v840, 0.0
      %v990 = vsel %vm852, %v841, 0.0
      %v991 = vadd.f32 %v989, %v990
      %v992 = vsel %vm852, %v842, 0.0
      %v993 = vadd.f32 %v991, %v992
      %v994 = vsel %vm852, %v843, 0.0
      %v995 = vadd.f32 %v993, %v994
      %996 = vadd.xlane.f32.xlu0 %v995
      %v997 = vpop.xlane.xlu0 %996
      %v998 = vrot.slane %v997, 4
      %v999 = vadd.f32 %v997, %v998
      %v1000 = vrot.slane %v999, 2
      %v1001 = vadd.f32 %v999, %v1000
      %v1002 = vrot.slane %v1001, 1
      %v1003 = vadd.f32 %v1001, %v1002
      %s1004 = vtos %v1003
      %v1005 = vmul.f32 %v840, %v840
      %v1006 = vmul.f32 %v841, %v841
      %v1007 = vmul.f32 %v842, %v842
      %v1008 = vmul.f32 %v843, %v843
      %v1009 = vsel %vm852, %v1005, 0.0
      %v1010 = vsel %vm852, %v1006, 0.0
      %v1011 = vadd.f32 %v1009, %v1010
      %v1012 = vsel %vm852, %v1007, 0.0
      %v1013 = vadd.f32 %v1011, %v1012
      %v1014 = vsel %vm852, %v1008, 0.0
      %v1015 = vadd.f32 %v1013, %v1014
      %1016 = vadd.xlane.f32.xlu0 %v1015
      %v1017 = vpop.xlane.xlu0 %1016
      %v1018 = vrot.slane %v1017, 4
      %v1019 = vadd.f32 %v1017, %v1018
      %v1020 = vrot.slane %v1019, 2
      %v1021 = vadd.f32 %v1019, %v1020
      %v1022 = vrot.slane %v1021, 1
      %v1023 = vadd.f32 %v1021, %v1022
      %s1024 = vtos %v1023
      %v1025 = vrcp.pop 256.0
      %s1026 = vtos %v1025
      %s1027 = smul.f32 %s1004, %s1026
      %v1028 = vrcp.pop 256.0
      %s1029 = vtos %v1028
      %s1030 = smul.f32 %s1024, %s1029
      %s1031 = smul.f32 %s1027, %s1027
      %s1032 = ssub.f32 %s1030, %s1031
      %s1033 = smax.f32 %s1032, 0.0
      %v1034 = vstv %s1027
      %v1035 = vsub.f32 %v840, %v1034
      %v1036 = vsub.f32 %v841, %v1034
      %v1037 = vsub.f32 %v842, %v1034
      %v1038 = vsub.f32 %v843, %v1034
      %s1039 = sadd.f32 %s1033, 1e-08
      %v1040 = vstv %s1039
      %v1041 = vrsqrt.pop %v1040
      %s1042 = vtos %v1041
      %v1043 = vstv %s1042
      %v1044 = vmul.f32 %v1035, %v1043
      %v1045 = vmul.f32 %v1036, %v1043
      %v1046 = vmul.f32 %v1037, %v1043
      %v1047 = vmul.f32 %v1038, %v1043
      %1049 = vset.pattern.permute.xlu0 0
      %1050 = vperm.xlu0 %1049, %v981
      %v1051 = vpop.permute.xlu0 %1050
      %1054 = vset.pattern.permute.xlu0 0
      %1055 = vperm.xlu0 %1054, %v982
      %v1056 = vpop.permute.xlu0 %1055
      %1059 = vset.pattern.permute.xlu0 0
      %1060 = vperm.xlu0 %1059, %v983
      %v1061 = vpop.permute.xlu0 %1060
      %1064 = vset.pattern.permute.xlu0 0
      %1065 = vperm.xlu0 %1064, %v984
      %v1066 = vpop.permute.xlu0 %1065
      %v1068 = vmul.f32 %v1044, %v1051
      %v1069 = vmul.f32 %v1045, %v1056
      %v1070 = vmul.f32 %v1046, %v1061
      %v1071 = vmul.f32 %v1047, %v1066
      %1073 = vset.pattern.permute.xlu0 0
      %1074 = vperm.xlu0 %1073, %v985
      %v1075 = vpop.permute.xlu0 %1074
      %1078 = vset.pattern.permute.xlu0 0
      %1079 = vperm.xlu0 %1078, %v986
      %v1080 = vpop.permute.xlu0 %1079
      %1083 = vset.pattern.permute.xlu0 0
      %1084 = vperm.xlu0 %1083, %v987
      %v1085 = vpop.permute.xlu0 %1084
      %1088 = vset.pattern.permute.xlu0 0
      %1089 = vperm.xlu0 %1088, %v988
      %v1090 = vpop.permute.xlu0 %1089
      %v1092 = vadd.f32 %v1068, %v1075
      %v1093 = vadd.f32 %v1069, %v1080
      %v1094 = vadd.f32 %v1070, %v1085
      %v1095 = vadd.f32 %v1071, %v1090
      %v1096 = vpack.c.bf16 %v1093, %v1092
      %v1097 = vpack.c.bf16 %v1095, %v1094
      %v1100 = vunpack.c.l.b16 %v1096
      %v1101 = vunpack.c.h.b16 %v1096
      %v1102 = vunpack.c.l.b16 %v1097
      %v1103 = vunpack.c.h.b16 %v1097
      %v1104 = vpack.c.b16 %v1100, %v1100
      %v1105 = vpack.c.b16 %v1101, %v1101
      %v1106 = vpack.c.b16 %v1102, %v1102
      %v1107 = vpack.c.b16 %v1103, %v1103
      %1112 = vst.msk [vmem:[%s419] sm:$0xf] %vm976, %v1104
      %1113 = vst.msk [vmem:[%s419 + $0x4] sm:$0xf] %vm976, %v1105
      %1114 = vst.msk [vmem:[%s419 + $0x8] sm:$0xf] %vm976, %v1106
      %1115 = vst.msk [vmem:[%s419 + $0xc] sm:$0xf] %vm976, %v1107
      %p1116 = scmp.lt.s32.totalorder %s23, 1
      %s1117 = scalar_select %p1116, %s23, 1
      %s1118 = smul.addr %s1117, 4
      %s1119 = smul.addr %s1118, 4
      %s1120 = scalar_lea.vmem %s10, %s1119
      %p1121 = scmp.lt.s32.totalorder %s23, 1
      %s1122 = scalar_select %p1121, %s23, 1
      %s1123 = smul.addr %s1122, 4
      %s1124 = smul.addr %s1123, 4
      %s1125 = scalar_lea.vmem %s11, %s1124
      // Predicated region
      $region61: #{afrcnn_block_forward.14} parent=59 // pred_check
        %p1126 = pneg %p261
      $region62: #{afrcnn_block_forward.14} parent=59 // pred_check_branch
        %1128 = sbr.rel (%p1126) target = $region64
      $region63: #{afrcnn_block_forward.14} parent=59 // pred_region
        _
      $region64: #{afrcnn_block_forward.14} parent=59 // pred_fallthru
        _
      // Predicated region
      $region65: #{afrcnn_block_forward.14} parent=59 // pred_check
        %p1129 = pneg %p287
      $region66: #{afrcnn_block_forward.14} parent=59 // pred_check_branch
        %1131 = sbr.rel (%p1129) target = $region68
      $region67: #{afrcnn_block_forward.14} parent=59 // pred_region
        _
      $region68: #{afrcnn_block_forward.14} parent=59 // pred_fallthru
        _
    $region60: #{afrcnn_block_forward.14} parent=5 // pred_fallthru
      _
    %p1132 = scmp.le.s32.totalorder 2, %s18
    // Predicated region
    $region69: #{afrcnn_block_forward.14} parent=5 // pred_check
      %p1133 = pneg %p1132
    $region70: #{afrcnn_block_forward.14} parent=5 // pred_check_branch
      %1135 = sbr.rel (%p1133) target = $region72
    $region71: #{afrcnn_block_forward.14} parent=5 // pred_region
      %s1136 = ssub.s32 %s18, 2
      // Predicated region
      $region73: #{afrcnn_block_forward.14} parent=71 // pred_check
        %p1137 = pneg %p267
      $region74: #{afrcnn_block_forward.14} parent=71 // pred_check_branch
        %1139 = sbr.rel (%p1137) target = $region76
      $region75: #{afrcnn_block_forward.14} parent=71 // pred_region
        %p1140 = scmp.lt.s32.totalorder %s24, 1
        %s1141 = scalar_select %p1140, %s24, 1
        %s1142 = smul.addr %s1141, 4
        %s1143 = smul.addr %s1142, 4
        %s1144 = scalar_lea.vmem %s10, %s1143
      $region76: #{afrcnn_block_forward.14} parent=71 // pred_fallthru
        _
      // Predicated region
      $region77: #{afrcnn_block_forward.14} parent=71 // pred_check
        %p1145 = pneg %p293
      $region78: #{afrcnn_block_forward.14} parent=71 // pred_check_branch
        %1147 = sbr.rel (%p1145) target = $region80
      $region79: #{afrcnn_block_forward.14} parent=71 // pred_region
        %p1148 = scmp.lt.s32.totalorder %s24, 1
        %s1149 = scalar_select %p1148, %s24, 1
        %s1150 = smul.addr %s1149, 4
        %s1151 = smul.addr %s1150, 4
        %s1152 = scalar_lea.vmem %s11, %s1151
      $region80: #{afrcnn_block_forward.14} parent=71 // pred_fallthru
        _
    $region72: #{afrcnn_block_forward.14} parent=5 // pred_fallthru
      _
  $region6: #{afrcnn_block_forward.14} parent=0 // loop_footer
    %s22 = sadd.s32 1, %s18
  $region7: #{afrcnn_block_forward.14} parent=0 // loop_footer_branch
    %17 = sbr.rel target = $region3
  $region8: #{afrcnn_block_forward.14} parent=0 // loop_exit
    _

// kernel: afrcnn_block_forward.15
$region0: #{afrcnn_block_forward.15}
  #allocation0 [shape = 'u32[]', space=smem, size = 0x4, offset = 0x4, fixed_abs, tag = 'smem constant byte address 0x4 - core index']
  #allocation1 [shape = 'u32[144,128]{1,0:T(1,128)}', space=vmem, size = 0x12000, scoped, tag = 'internal scratch']
  %s0 = inlined_call_operand.vmem [shape: bf16[2,32,6], index: 0, kind: input, shape index: {}]
  %s1 = inlined_call_operand.vmem [shape: bf16[2,32,5], index: 1, kind: input, shape index: {}]
  %s2 = inlined_call_operand.vmem [shape: f32[32,5], index: 2, kind: input, shape index: {}]
  %s3 = inlined_call_operand.vmem [shape: f32[32,1], index: 3, kind: input, shape index: {}]
  %s4 = inlined_call_operand.vmem [shape: f32[32,1], index: 4, kind: input, shape index: {}]
  %s5 = inlined_call_operand.vmem [shape: f32[32,1], index: 5, kind: input, shape index: {}]
  %s6 = inlined_call_operand.vmem [shape: f32[32,5], index: 6, kind: input, shape index: {}]
  %s7 = inlined_call_operand.vmem [shape: f32[32,1], index: 7, kind: input, shape index: {}]
  %s8 = inlined_call_operand.vmem [shape: f32[32,1], index: 8, kind: input, shape index: {}]
  %s9 = inlined_call_operand.vmem [shape: f32[32,1], index: 9, kind: input, shape index: {}]
  %s10 = inlined_call_operand.vmem [shape: bf16[2,32,4], index: 10, kind: output, shape index: {0}]
  %s11 = inlined_call_operand.vmem [shape: bf16[2,32,4], index: 11, kind: output, shape index: {1}]
  %12 = xla_tuple %s10, %s11
  %s13 = sld [smem:[#allocation0]]
  $region81: #{afrcnn_block_forward.15} parent=0
    _
  %s15 = ssub.s32 1, %s13
  %s16 = scalar_select 0, %s15, %s13
  loop: start=0, step=1, limit=4
  $region2: #{afrcnn_block_forward.15} parent=0 // loop_pre_header
    _
  $region3: #{afrcnn_block_forward.15} parent=0 // loop_header
    %s18 = sphi 0, %s22
    %p19 = scmp.ge.s32.totalorder %s18, 4
    %s28 = sphi 0, %s30
    %s31 = sphi 0, %s28
    %s32 = sphi 0, %s31
    %s48 = sphi 0, %s32
    %s54 = sphi 0, %s56
    %s57 = sphi 0, %s54
    %s58 = sphi 0, %s57
    %s74 = sphi 0, %s58
    %s78 = sphi 0, %s78
    %s80 = sphi 0, %s78
    %s81 = sphi 0, %s80
    %s95 = sphi 0, %s81
    %s99 = sphi 0, %s99
    %s101 = sphi 0, %s99
    %s102 = sphi 0, %s101
    %s116 = sphi 0, %s102
    %s120 = sphi 0, %s120
    %s122 = sphi 0, %s120
    %s123 = sphi 0, %s122
    %s137 = sphi 0, %s123
    %s141 = sphi 0, %s141
    %s143 = sphi 0, %s141
    %s144 = sphi 0, %s143
    %s158 = sphi 0, %s144
    %s162 = sphi 0, %s162
    %s164 = sphi 0, %s162
    %s165 = sphi 0, %s164
    %s179 = sphi 0, %s165
    %s183 = sphi 0, %s183
    %s185 = sphi 0, %s183
    %s186 = sphi 0, %s185
    %s200 = sphi 0, %s186
    %s204 = sphi 0, %s204
    %s206 = sphi 0, %s204
    %s207 = sphi 0, %s206
    %s221 = sphi 0, %s207
    %s225 = sphi 0, %s225
    %s227 = sphi 0, %s225
    %s228 = sphi 0, %s227
    %s242 = sphi 0, %s228
    %s248 = sphi 0, %s250
    %s251 = sphi 0, %s248
    %s252 = sphi 0, %s251
    %s268 = sphi 0, %s252
    %s274 = sphi 0, %s276
    %s277 = sphi 0, %s274
    %s278 = sphi 0, %s277
    %s294 = sphi 0, %s278
  $region4: #{afrcnn_block_forward.15} parent=0 // loop_header_branch
    %21 = sbr.rel (%p19) target = $region8
  $region5: #{afrcnn_block_forward.15} parent=0 // loop_body
    %s23 = ssub.s32 %s18, 1
    %s24 = ssub.s32 %s18, 2
    %s25 = sadd.s32 %s18, 1
    %s26 = ssub.s32 %s18, %s25
    %p27 = scmp.eq.s32.totalorder %s26, 0
    %s29 = sadd.s32 %s28, 1
    %s30 = scalar_select %p27, %s28, %s29
    %p33 = pneg %p27
    %p34 = scmp.eq.s32.totalorder %s18, 1
    %p35 = por %p33, %p34
    %p36 = scmp.ne.s32.totalorder %s28, %s31
    %p37 = scmp.eq.s32.totalorder %s18, 0
    %p38 = por %p36, %p37
    %p39 = scmp.ne.s32.totalorder %s28, %s31
    %p40 = scmp.eq.s32.totalorder %s23, 1
    %p41 = por %p39, %p40
    %p42 = scmp.ne.s32.totalorder %s31, %s32
    %p43 = scmp.eq.s32.totalorder %s23, 0
    %p44 = por %p42, %p43
    %p45 = scmp.ne.s32.totalorder %s31, %s32
    %p46 = scmp.eq.s32.totalorder %s24, 1
    %p47 = por %p45, %p46
    %p49 = scmp.ne.s32.totalorder %s32, %s48
    %p50 = scmp.eq.s32.totalorder %s24, 0
    %p51 = por %p49, %p50
    %s52 = ssub.s32 %s18, %s25
    %p53 = scmp.eq.s32.totalorder %s52, 0
    %s55 = sadd.s32 %s54, 1
    %s56 = scalar_select %p53, %s54, %s55
    %p59 = pneg %p53
    %p60 = scmp.eq.s32.totalorder %s18, 1
    %p61 = por %p59, %p60
    %p62 = scmp.ne.s32.totalorder %s54, %s57
    %p63 = scmp.eq.s32.totalorder %s18, 0
    %p64 = por %p62, %p63
    %p65 = scmp.ne.s32.totalorder %s54, %s57
    %p66 = scmp.eq.s32.totalorder %s23, 1
    %p67 = por %p65, %p66
    %p68 = scmp.ne.s32.totalorder %s57, %s58
    %p69 = scmp.eq.s32.totalorder %s23, 0
    %p70 = por %p68, %p69
    %p71 = scmp.ne.s32.totalorder %s57, %s58
    %p72 = scmp.eq.s32.totalorder %s24, 1
    %p73 = por %p71, %p72
    %p75 = scmp.ne.s32.totalorder %s58, %s74
    %p76 = scmp.eq.s32.totalorder %s24, 0
    %p77 = por %p75, %p76
    %s79 = sadd.s32 %s78, 1
    %p82 = scmp.eq.s32.totalorder %s18, 1
    %p83 = scmp.ne.s32.totalorder %s78, %s80
    %p84 = scmp.eq.s32.totalorder %s18, 0
    %p85 = por %p83, %p84
    %p86 = scmp.ne.s32.totalorder %s78, %s80
    %p87 = scmp.eq.s32.totalorder %s23, 1
    %p88 = por %p86, %p87
    %p89 = scmp.ne.s32.totalorder %s80, %s81
    %p90 = scmp.eq.s32.totalorder %s23, 0
    %p91 = por %p89, %p90
    %p92 = scmp.ne.s32.totalorder %s80, %s81
    %p93 = scmp.eq.s32.totalorder %s24, 1
    %p94 = por %p92, %p93
    %p96 = scmp.ne.s32.totalorder %s81, %s95
    %p97 = scmp.eq.s32.totalorder %s24, 0
    %p98 = por %p96, %p97
    %s100 = sadd.s32 %s99, 1
    %p103 = scmp.eq.s32.totalorder %s18, 1
    %p104 = scmp.ne.s32.totalorder %s99, %s101
    %p105 = scmp.eq.s32.totalorder %s18, 0
    %p106 = por %p104, %p105
    %p107 = scmp.ne.s32.totalorder %s99, %s101
    %p108 = scmp.eq.s32.totalorder %s23, 1
    %p109 = por %p107, %p108
    %p110 = scmp.ne.s32.totalorder %s101, %s102
    %p111 = scmp.eq.s32.totalorder %s23, 0
    %p112 = por %p110, %p111
    %p113 = scmp.ne.s32.totalorder %s101, %s102
    %p114 = scmp.eq.s32.totalorder %s24, 1
    %p115 = por %p113, %p114
    %p117 = scmp.ne.s32.totalorder %s102, %s116
    %p118 = scmp.eq.s32.totalorder %s24, 0
    %p119 = por %p117, %p118
    %s121 = sadd.s32 %s120, 1
    %p124 = scmp.eq.s32.totalorder %s18, 1
    %p125 = scmp.ne.s32.totalorder %s120, %s122
    %p126 = scmp.eq.s32.totalorder %s18, 0
    %p127 = por %p125, %p126
    %p128 = scmp.ne.s32.totalorder %s120, %s122
    %p129 = scmp.eq.s32.totalorder %s23, 1
    %p130 = por %p128, %p129
    %p131 = scmp.ne.s32.totalorder %s122, %s123
    %p132 = scmp.eq.s32.totalorder %s23, 0
    %p133 = por %p131, %p132
    %p134 = scmp.ne.s32.totalorder %s122, %s123
    %p135 = scmp.eq.s32.totalorder %s24, 1
    %p136 = por %p134, %p135
    %p138 = scmp.ne.s32.totalorder %s123, %s137
    %p139 = scmp.eq.s32.totalorder %s24, 0
    %p140 = por %p138, %p139
    %s142 = sadd.s32 %s141, 1
    %p145 = scmp.eq.s32.totalorder %s18, 1
    %p146 = scmp.ne.s32.totalorder %s141, %s143
    %p147 = scmp.eq.s32.totalorder %s18, 0
    %p148 = por %p146, %p147
    %p149 = scmp.ne.s32.totalorder %s141, %s143
    %p150 = scmp.eq.s32.totalorder %s23, 1
    %p151 = por %p149, %p150
    %p152 = scmp.ne.s32.totalorder %s143, %s144
    %p153 = scmp.eq.s32.totalorder %s23, 0
    %p154 = por %p152, %p153
    %p155 = scmp.ne.s32.totalorder %s143, %s144
    %p156 = scmp.eq.s32.totalorder %s24, 1
    %p157 = por %p155, %p156
    %p159 = scmp.ne.s32.totalorder %s144, %s158
    %p160 = scmp.eq.s32.totalorder %s24, 0
    %p161 = por %p159, %p160
    %s163 = sadd.s32 %s162, 1
    %p166 = scmp.eq.s32.totalorder %s18, 1
    %p167 = scmp.ne.s32.totalorder %s162, %s164
    %p168 = scmp.eq.s32.totalorder %s18, 0
    %p169 = por %p167, %p168
    %p170 = scmp.ne.s32.totalorder %s162, %s164
    %p171 = scmp.eq.s32.totalorder %s23, 1
    %p172 = por %p170, %p171
    %p173 = scmp.ne.s32.totalorder %s164, %s165
    %p174 = scmp.eq.s32.totalorder %s23, 0
    %p175 = por %p173, %p174
    %p176 = scmp.ne.s32.totalorder %s164, %s165
    %p177 = scmp.eq.s32.totalorder %s24, 1
    %p178 = por %p176, %p177
    %p180 = scmp.ne.s32.totalorder %s165, %s179
    %p181 = scmp.eq.s32.totalorder %s24, 0
    %p182 = por %p180, %p181
    %s184 = sadd.s32 %s183, 1
    %p187 = scmp.eq.s32.totalorder %s18, 1
    %p188 = scmp.ne.s32.totalorder %s183, %s185
    %p189 = scmp.eq.s32.totalorder %s18, 0
    %p190 = por %p188, %p189
    %p191 = scmp.ne.s32.totalorder %s183, %s185
    %p192 = scmp.eq.s32.totalorder %s23, 1
    %p193 = por %p191, %p192
    %p194 = scmp.ne.s32.totalorder %s185, %s186
    %p195 = scmp.eq.s32.totalorder %s23, 0
    %p196 = por %p194, %p195
    %p197 = scmp.ne.s32.totalorder %s185, %s186
    %p198 = scmp.eq.s32.totalorder %s24, 1
    %p199 = por %p197, %p198
    %p201 = scmp.ne.s32.totalorder %s186, %s200
    %p202 = scmp.eq.s32.totalorder %s24, 0
    %p203 = por %p201, %p202
    %s205 = sadd.s32 %s204, 1
    %p208 = scmp.eq.s32.totalorder %s18, 1
    %p209 = scmp.ne.s32.totalorder %s204, %s206
    %p210 = scmp.eq.s32.totalorder %s18, 0
    %p211 = por %p209, %p210
    %p212 = scmp.ne.s32.totalorder %s204, %s206
    %p213 = scmp.eq.s32.totalorder %s23, 1
    %p214 = por %p212, %p213
    %p215 = scmp.ne.s32.totalorder %s206, %s207
    %p216 = scmp.eq.s32.totalorder %s23, 0
    %p217 = por %p215, %p216
    %p218 = scmp.ne.s32.totalorder %s206, %s207
    %p219 = scmp.eq.s32.totalorder %s24, 1
    %p220 = por %p218, %p219
    %p222 = scmp.ne.s32.totalorder %s207, %s221
    %p223 = scmp.eq.s32.totalorder %s24, 0
    %p224 = por %p222, %p223
    %s226 = sadd.s32 %s225, 1
    %p229 = scmp.eq.s32.totalorder %s18, 1
    %p230 = scmp.ne.s32.totalorder %s225, %s227
    %p231 = scmp.eq.s32.totalorder %s18, 0
    %p232 = por %p230, %p231
    %p233 = scmp.ne.s32.totalorder %s225, %s227
    %p234 = scmp.eq.s32.totalorder %s23, 1
    %p235 = por %p233, %p234
    %p236 = scmp.ne.s32.totalorder %s227, %s228
    %p237 = scmp.eq.s32.totalorder %s23, 0
    %p238 = por %p236, %p237
    %p239 = scmp.ne.s32.totalorder %s227, %s228
    %p240 = scmp.eq.s32.totalorder %s24, 1
    %p241 = por %p239, %p240
    %p243 = scmp.ne.s32.totalorder %s228, %s242
    %p244 = scmp.eq.s32.totalorder %s24, 0
    %p245 = por %p243, %p244
    %s246 = ssub.s32 %s18, %s25
    %p247 = scmp.eq.s32.totalorder %s246, 0
    %s249 = sadd.s32 %s248, 1
    %s250 = scalar_select %p247, %s248, %s249
    %p253 = pneg %p247
    %p254 = scmp.eq.s32.totalorder %s18, 1
    %p255 = por %p253, %p254
    %p256 = scmp.ne.s32.totalorder %s248, %s251
    %p257 = scmp.eq.s32.totalorder %s18, 0
    %p258 = por %p256, %p257
    %p259 = scmp.ne.s32.totalorder %s248, %s251
    %p260 = scmp.eq.s32.totalorder %s23, 1
    %p261 = por %p259, %p260
    %p262 = scmp.ne.s32.totalorder %s251, %s252
    %p263 = scmp.eq.s32.totalorder %s23, 0
    %p264 = por %p262, %p263
    %p265 = scmp.ne.s32.totalorder %s251, %s252
    %p266 = scmp.eq.s32.totalorder %s24, 1
    %p267 = por %p265, %p266
    %p269 = scmp.ne.s32.totalorder %s252, %s268
    %p270 = scmp.eq.s32.totalorder %s24, 0
    %p271 = por %p269, %p270
    %s272 = ssub.s32 %s18, %s25
    %p273 = scmp.eq.s32.totalorder %s272, 0
    %s275 = sadd.s32 %s274, 1
    %s276 = scalar_select %p273, %s274, %s275
    %p279 = pneg %p273
    %p280 = scmp.eq.s32.totalorder %s18, 1
    %p281 = por %p279, %p280
    %p282 = scmp.ne.s32.totalorder %s274, %s277
    %p283 = scmp.eq.s32.totalorder %s18, 0
    %p284 = por %p282, %p283
    %p285 = scmp.ne.s32.totalorder %s274, %s277
    %p286 = scmp.eq.s32.totalorder %s23, 1
    %p287 = por %p285, %p286
    %p288 = scmp.ne.s32.totalorder %s277, %s278
    %p289 = scmp.eq.s32.totalorder %s23, 0
    %p290 = por %p288, %p289
    %p291 = scmp.ne.s32.totalorder %s277, %s278
    %p292 = scmp.eq.s32.totalorder %s24, 1
    %p293 = por %p291, %p292
    %p295 = scmp.ne.s32.totalorder %s278, %s294
    %p296 = scmp.eq.s32.totalorder %s24, 0
    %p297 = por %p295, %p296
    %p298 = scmp.le.s32.totalorder 1, %s18
    %p299 = scmp.lt.s32.totalorder %s18, 3
    %p300 = pnand %p298, %p299
    %p301 = pneg %p300
    // Predicated region
    $region9: #{afrcnn_block_forward.15} parent=5 // pred_check
      _
    $region10: #{afrcnn_block_forward.15} parent=5 // pred_check_branch
      %303 = sbr.rel (%p300) target = $region12
    $region11: #{afrcnn_block_forward.15} parent=5 // pred_region
      %s304 = ssub.s32 %s18, 1
      // Predicated region
      $region13: #{afrcnn_block_forward.15} parent=11 // pred_check
        %p305 = pneg %p91
      $region14: #{afrcnn_block_forward.15} parent=11 // pred_check_branch
        %307 = sbr.rel (%p305) target = $region16
      $region15: #{afrcnn_block_forward.15} parent=11 // pred_region
        _
      $region16: #{afrcnn_block_forward.15} parent=11 // pred_fallthru
        _
      // Predicated region
      $region17: #{afrcnn_block_forward.15} parent=11 // pred_check
        %p308 = pneg %p112
      $region18: #{afrcnn_block_forward.15} parent=11 // pred_check_branch
        %310 = sbr.rel (%p308) target = $region20
      $region19: #{afrcnn_block_forward.15} parent=11 // pred_region
        _
      $region20: #{afrcnn_block_forward.15} parent=11 // pred_fallthru
        _
      // Predicated region
      $region21: #{afrcnn_block_forward.15} parent=11 // pred_check
        %p311 = pneg %p133
      $region22: #{afrcnn_block_forward.15} parent=11 // pred_check_branch
        %313 = sbr.rel (%p311) target = $region24
      $region23: #{afrcnn_block_forward.15} parent=11 // pred_region
        _
      $region24: #{afrcnn_block_forward.15} parent=11 // pred_fallthru
        _
      // Predicated region
      $region25: #{afrcnn_block_forward.15} parent=11 // pred_check
        %p314 = pneg %p154
      $region26: #{afrcnn_block_forward.15} parent=11 // pred_check_branch
        %316 = sbr.rel (%p314) target = $region28
      $region27: #{afrcnn_block_forward.15} parent=11 // pred_region
        _
      $region28: #{afrcnn_block_forward.15} parent=11 // pred_fallthru
        _
      // Predicated region
      $region29: #{afrcnn_block_forward.15} parent=11 // pred_check
        %p317 = pneg %p175
      $region30: #{afrcnn_block_forward.15} parent=11 // pred_check_branch
        %319 = sbr.rel (%p317) target = $region32
      $region31: #{afrcnn_block_forward.15} parent=11 // pred_region
        _
      $region32: #{afrcnn_block_forward.15} parent=11 // pred_fallthru
        _
      // Predicated region
      $region33: #{afrcnn_block_forward.15} parent=11 // pred_check
        %p320 = pneg %p196
      $region34: #{afrcnn_block_forward.15} parent=11 // pred_check_branch
        %322 = sbr.rel (%p320) target = $region36
      $region35: #{afrcnn_block_forward.15} parent=11 // pred_region
        _
      $region36: #{afrcnn_block_forward.15} parent=11 // pred_fallthru
        _
      // Predicated region
      $region37: #{afrcnn_block_forward.15} parent=11 // pred_check
        %p323 = pneg %p217
      $region38: #{afrcnn_block_forward.15} parent=11 // pred_check_branch
        %325 = sbr.rel (%p323) target = $region40
      $region39: #{afrcnn_block_forward.15} parent=11 // pred_region
        _
      $region40: #{afrcnn_block_forward.15} parent=11 // pred_fallthru
        _
      // Predicated region
      $region41: #{afrcnn_block_forward.15} parent=11 // pred_check
        %p326 = pneg %p238
      $region42: #{afrcnn_block_forward.15} parent=11 // pred_check_branch
        %328 = sbr.rel (%p326) target = $region44
      $region43: #{afrcnn_block_forward.15} parent=11 // pred_region
        _
      $region44: #{afrcnn_block_forward.15} parent=11 // pred_fallthru
        _
    $region12: #{afrcnn_block_forward.15} parent=5 // pred_fallthru
      _
    %p329 = scmp.lt.s32.totalorder %s18, 2
    // Predicated region
    $region45: #{afrcnn_block_forward.15} parent=5 // pred_check
      %p330 = pneg %p329
    $region46: #{afrcnn_block_forward.15} parent=5 // pred_check_branch
      %332 = sbr.rel (%p330) target = $region48
    $region47: #{afrcnn_block_forward.15} parent=5 // pred_region
      // Predicated region
      $region49: #{afrcnn_block_forward.15} parent=47 // pred_check
        %p333 = pneg %p38
      $region50: #{afrcnn_block_forward.15} parent=47 // pred_check_branch
        %335 = sbr.rel (%p333) target = $region52
      $region51: #{afrcnn_block_forward.15} parent=47 // pred_region
        %p336 = scmp.lt.s32.totalorder %s18, 1
        %s337 = scalar_select %p336, %s18, 1
        %s338 = smul.addr %s337, 4
        %s339 = smul.addr %s338, 4
        %s340 = scalar_lea.vmem %s0, %s339
      $region52: #{afrcnn_block_forward.15} parent=47 // pred_fallthru
        _
      // Predicated region
      $region53: #{afrcnn_block_forward.15} parent=47 // pred_check
        %p341 = pneg %p64
      $region54: #{afrcnn_block_forward.15} parent=47 // pred_check_branch
        %343 = sbr.rel (%p341) target = $region56
      $region55: #{afrcnn_block_forward.15} parent=47 // pred_region
        %p344 = scmp.lt.s32.totalorder %s18, 1
        %s345 = scalar_select %p344, %s18, 1
        %s346 = smul.addr %s345, 4
        %s347 = smul.addr %s346, 4
        %s348 = scalar_lea.vmem %s1, %s347
      $region56: #{afrcnn_block_forward.15} parent=47 // pred_fallthru
        _
    $region48: #{afrcnn_block_forward.15} parent=5 // pred_fallthru
      _
    %p349 = scmp.le.s32.totalorder 1, %s18
    %p350 = scmp.lt.s32.totalorder %s18, 3
    %p351 = pnand %p349, %p350
    %p352 = pneg %p351
    // Predicated region
    $region57: #{afrcnn_block_forward.15} parent=5 // pred_check
      _
    $region58: #{afrcnn_block_forward.15} parent=5 // pred_check_branch
      %354 = sbr.rel (%p351) target = $region60
    $region59: #{afrcnn_block_forward.15} parent=5 // pred_region
      %s355 = ssub.s32 %s18, 1
      %p356 = scmp.lt.s32.totalorder %s23, 1
      %s357 = scalar_select %p356, %s23, 1
      %s358 = smul.addr %s357, 4
      %s359 = smul.addr %s358, 4
      %s360 = scalar_lea.vmem %s0, %s359
      %p361 = pneg %p44
      %p362 = pneg %p41
      %p363 = scmp.lt.s32.totalorder %s23, 1
      %s364 = scalar_select %p363, %s23, 1
      %s365 = smul.addr %s364, 4
      %s366 = smul.addr %s365, 4
      %s367 = scalar_lea.vmem %s1, %s366
      %p368 = pneg %p70
      %p369 = pneg %p67
      %p370 = pneg %p91
      %p371 = pneg %p88
      %p372 = pneg %p112
      %p373 = pneg %p109
      %p374 = pneg %p133
      %p375 = pneg %p130
      %p376 = pneg %p154
      %p377 = pneg %p151
      %p378 = pneg %p175
      %p379 = pneg %p172
      %p380 = pneg %p196
      %p381 = pneg %p193
      %p382 = pneg %p217
      %p383 = pneg %p214
      %p384 = pneg %p238
      %p385 = pneg %p235
      %p386 = pneg %p264
      %p387 = pneg %p261
      %p388 = scmp.lt.s32.totalorder %s23, 1
      %s389 = scalar_select %p388, %s23, 1
      %s390 = smul.addr %s389, 4
      %s391 = smul.addr %s390, 4
      %s392 = scalar_lea.vmem %s10, %s391
      %p393 = pneg %p290
      %p394 = pneg %p287
      %p395 = scmp.lt.s32.totalorder %s23, 1
      %s396 = scalar_select %p395, %s23, 1
      %s397 = smul.addr %s396, 4
      %s398 = smul.addr %s397, 4
      %s399 = scalar_lea.vmem %s11, %s398
      %p400 = scmp.lt.s32.totalorder %s23, 1
      %s401 = scalar_select %p400, %s23, 1
      %s402 = smul.addr %s401, 4
      %s403 = smul.addr %s402, 4
      %s404 = scalar_lea.vmem %s0, %s403
      %p405 = scmp.lt.s32.totalorder %s23, 1
      %s406 = scalar_select %p405, %s23, 1
      %s407 = smul.addr %s406, 4
      %s408 = smul.addr %s407, 4
      %s409 = scalar_lea.vmem %s1, %s408
      %p410 = scmp.lt.s32.totalorder %s23, 1
      %s411 = scalar_select %p410, %s23, 1
      %s412 = smul.addr %s411, 4
      %s413 = smul.addr %s412, 4
      %s414 = scalar_lea.vmem %s10, %s413
      %p415 = scmp.lt.s32.totalorder %s23, 1
      %s416 = scalar_select %p415, %s23, 1
      %s417 = smul.addr %s416, 4
      %s418 = smul.addr %s417, 4
      %s419 = scalar_lea.vmem %s11, %s418
      %v420 = vld [vmem:[%s2] sm:$0xff]
      %v421 = vld [vmem:[%s2 + $0x8] sm:$0xff]
      %v422 = vld [vmem:[%s2 + $0x10] sm:$0xff]
      %v423 = vld [vmem:[%s2 + $0x18] sm:$0xff]
      %v424 = vld [vmem:[%s6] sm:$0xff]
      %v425 = vld [vmem:[%s6 + $0x8] sm:$0xff]
      %v426 = vld [vmem:[%s6 + $0x10] sm:$0xff]
      %v427 = vld [vmem:[%s6 + $0x18] sm:$0xff]
      %v428 = vld [vmem:[%s404] sm:$0xf]
      %v429 = vld [vmem:[%s404 + $0x4] sm:$0xf]
      %v430 = vld [vmem:[%s404 + $0x8] sm:$0xf]
      %v431 = vld [vmem:[%s404 + $0xc] sm:$0xf]
      %v432 = vunpack.c.l.bf16 %v428
      %v433 = vunpack.c.l.bf16 %v429
      %v434 = vunpack.c.l.bf16 %v430
      %v435 = vunpack.c.l.bf16 %v431
      %437 = vset.pattern.permute.xlu0 0
      %438 = vperm.xlu0 %437, %v420
      %v439 = vpop.permute.xlu0 %438
      %442 = vset.pattern.permute.xlu0 0
      %443 = vperm.xlu0 %442, %v421
      %v444 = vpop.permute.xlu0 %443
      %447 = vset.pattern.permute.xlu0 0
      %448 = vperm.xlu0 %447, %v422
      %v449 = vpop.permute.xlu0 %448
      %452 = vset.pattern.permute.xlu0 0
      %453 = vperm.xlu0 %452, %v423
      %v454 = vpop.permute.xlu0 %453
      %v456 = vmul.f32 %v439, %v432
      %v457 = vmul.f32 %v444, %v433
      %v458 = vmul.f32 %v449, %v434
      %v459 = vmul.f32 %v454, %v435
      %v460 = vadd.f32 %v456, 0.0
      %v461 = vadd.f32 %v457, 0.0
      %v462 = vadd.f32 %v458, 0.0
      %v463 = vadd.f32 %v459, 0.0
      %465 = vset.pattern.permute.xlu0 0
      %466 = vperm.xlu0 %465, %v424
      %v467 = vpop.permute.xlu0 %466
      %470 = vset.pattern.permute.xlu0 0
      %471 = vperm.xlu0 %470, %v425
      %v472 = vpop.permute.xlu0 %471
      %475 = vset.pattern.permute.xlu0 0
      %476 = vperm.xlu0 %475, %v426
      %v477 = vpop.permute.xlu0 %476
      %480 = vset.pattern.permute.xlu0 0
      %481 = vperm.xlu0 %480, %v427
      %v482 = vpop.permute.xlu0 %481
      %v484 = vmul.f32 %v467, %v432
      %v485 = vmul.f32 %v472, %v433
      %v486 = vmul.f32 %v477, %v434
      %v487 = vmul.f32 %v482, %v435
      %v488 = vadd.f32 %v484, 0.0
      %v489 = vadd.f32 %v485, 0.0
      %v490 = vadd.f32 %v486, 0.0
      %v491 = vadd.f32 %v487, 0.0
      %v492 = vld [vmem:[%s409] sm:$0xf]
      %v493 = vld [vmem:[%s409 + $0x4] sm:$0xf]
      %v494 = vld [vmem:[%s409 + $0x8] sm:$0xf]
      %v495 = vld [vmem:[%s409 + $0xc] sm:$0xf]
      %v496 = vunpack.c.l.bf16 %v492
      %v497 = vunpack.c.l.bf16 %v493
      %v498 = vunpack.c.l.bf16 %v494
      %v499 = vunpack.c.l.bf16 %v495
      %500 = vset.pattern.permute.xlu0 1
      %501 = vperm.xlu0 %500, %v420
      %v502 = vpop.permute.xlu0 %501
      %504 = vset.pattern.permute.xlu0 1
      %505 = vperm.xlu0 %504, %v421
      %v506 = vpop.permute.xlu0 %505
      %508 = vset.pattern.permute.xlu0 1
      %509 = vperm.xlu0 %508, %v422
      %v510 = vpop.permute.xlu0 %509
      %512 = vset.pattern.permute.xlu0 1
      %513 = vperm.xlu0 %512, %v423
      %v514 = vpop.permute.xlu0 %513
      %v516 = vmul.f32 %v502, %v496
      %v517 = vmul.f32 %v506, %v497
      %v518 = vmul.f32 %v510, %v498
      %v519 = vmul.f32 %v514, %v499
      %v520 = vadd.f32 %v460, %v516
      %v521 = vadd.f32 %v461, %v517
      %v522 = vadd.f32 %v462, %v518
      %v523 = vadd.f32 %v463, %v519
      %524 = vset.pattern.permute.xlu0 1
      %525 = vperm.xlu0 %524, %v424
      %v526 = vpop.permute.xlu0 %525
      %528 = vset.pattern.permute.xlu0 1
      %529 = vperm.xlu0 %528, %v425
      %v530 = vpop.permute.xlu0 %529
      %532 = vset.pattern.permute.xlu0 1
      %533 = vperm.xlu0 %532, %v426
      %v534 = vpop.permute.xlu0 %533
      %536 = vset.pattern.permute.xlu0 1
      %537 = vperm.xlu0 %536, %v427
      %v538 = vpop.permute.xlu0 %537
      %v540 = vmul.f32 %v526, %v496
      %v541 = vmul.f32 %v530, %v497
      %v542 = vmul.f32 %v534, %v498
      %v543 = vmul.f32 %v538, %v499
      %v544 = vadd.f32 %v488, %v540
      %v545 = vadd.f32 %v489, %v541
      %v546 = vadd.f32 %v490, %v542
      %v547 = vadd.f32 %v491, %v543
      %548 = vset.pattern.permute.xlu0 2
      %549 = vperm.xlu0 %548, %v420
      %v550 = vpop.permute.xlu0 %549
      %552 = vset.pattern.permute.xlu0 2
      %553 = vperm.xlu0 %552, %v421
      %v554 = vpop.permute.xlu0 %553
      %556 = vset.pattern.permute.xlu0 2
      %557 = vperm.xlu0 %556, %v422
      %v558 = vpop.permute.xlu0 %557
      %560 = vset.pattern.permute.xlu0 2
      %561 = vperm.xlu0 %560, %v423
      %v562 = vpop.permute.xlu0 %561
      %v564 = vmul.f32 %v550, %v432
      %v565 = vmul.f32 %v554, %v433
      %v566 = vmul.f32 %v558, %v434
      %v567 = vmul.f32 %v562, %v435
      %572 = vrot.lane.b32.xlu0 %v564, 127
      %v573 = vpop.permute.xlu0 %572
      %574 = vrot.lane.b32.xlu0 %v565, 127
      %v575 = vpop.permute.xlu0 %574
      %576 = vrot.lane.b32.xlu0 %v566, 127
      %v577 = vpop.permute.xlu0 %576
      %578 = vrot.lane.b32.xlu0 %v567, 127
      %v579 = vpop.permute.xlu0 %578
      %v584 = vadd.f32 %v520, %v573
      %v585 = vadd.f32 %v521, %v575
      %v586 = vadd.f32 %v522, %v577
      %v587 = vadd.f32 %v523, %v579
      %588 = vset.pattern.permute.xlu0 2
      %589 = vperm.xlu0 %588, %v424
      %v590 = vpop.permute.xlu0 %589
      %592 = vset.pattern.permute.xlu0 2
      %593 = vperm.xlu0 %592, %v425
      %v594 = vpop.permute.xlu0 %593
      %596 = vset.pattern.permute.xlu0 2
      %597 = vperm.xlu0 %596, %v426
      %v598 = vpop.permute.xlu0 %597
      %600 = vset.pattern.permute.xlu0 2
      %601 = vperm.xlu0 %600, %v427
      %v602 = vpop.permute.xlu0 %601
      %v604 = vmul.f32 %v590, %v432
      %v605 = vmul.f32 %v594, %v433
      %v606 = vmul.f32 %v598, %v434
      %v607 = vmul.f32 %v602, %v435
      %612 = vrot.lane.b32.xlu0 %v604, 127
      %v613 = vpop.permute.xlu0 %612
      %614 = vrot.lane.b32.xlu0 %v605, 127
      %v615 = vpop.permute.xlu0 %614
      %616 = vrot.lane.b32.xlu0 %v606, 127
      %v617 = vpop.permute.xlu0 %616
      %618 = vrot.lane.b32.xlu0 %v607, 127
      %v619 = vpop.permute.xlu0 %618
      %v624 = vadd.f32 %v544, %v613
      %v625 = vadd.f32 %v545, %v615
      %v626 = vadd.f32 %v546, %v617
      %v627 = vadd.f32 %v547, %v619
      %628 = vset.pattern.permute.xlu0 3
      %629 = vperm.xlu0 %628, %v420
      %v630 = vpop.permute.xlu0 %629
      %632 = vset.pattern.permute.xlu0 3
      %633 = vperm.xlu0 %632, %v421
      %v634 = vpop.permute.xlu0 %633
      %636 = vset.pattern.permute.xlu0 3
      %637 = vperm.xlu0 %636, %v422
      %v638 = vpop.permute.xlu0 %637
      %640 = vset.pattern.permute.xlu0 3
      %641 = vperm.xlu0 %640, %v423
      %v642 = vpop.permute.xlu0 %641
      %v644 = vmul.f32 %v630, %v496
      %v645 = vmul.f32 %v634, %v497
      %v646 = vmul.f32 %v638, %v498
      %v647 = vmul.f32 %v642, %v499
      %652 = vrot.lane.b32.xlu0 %v644, 127
      %v653 = vpop.permute.xlu0 %652
      %654 = vrot.lane.b32.xlu0 %v645, 127
      %v655 = vpop.permute.xlu0 %654
      %656 = vrot.lane.b32.xlu0 %v646, 127
      %v657 = vpop.permute.xlu0 %656
      %658 = vrot.lane.b32.xlu0 %v647, 127
      %v659 = vpop.permute.xlu0 %658
      %v664 = vadd.f32 %v584, %v653
      %v665 = vadd.f32 %v585, %v655
      %v666 = vadd.f32 %v586, %v657
      %v667 = vadd.f32 %v587, %v659
      %668 = vset.pattern.permute.xlu0 3
      %669 = vperm.xlu0 %668, %v424
      %v670 = vpop.permute.xlu0 %669
      %672 = vset.pattern.permute.xlu0 3
      %673 = vperm.xlu0 %672, %v425
      %v674 = vpop.permute.xlu0 %673
      %676 = vset.pattern.permute.xlu0 3
      %677 = vperm.xlu0 %676, %v426
      %v678 = vpop.permute.xlu0 %677
      %680 = vset.pattern.permute.xlu0 3
      %681 = vperm.xlu0 %680, %v427
      %v682 = vpop.permute.xlu0 %681
      %v684 = vmul.f32 %v670, %v496
      %v685 = vmul.f32 %v674, %v497
      %v686 = vmul.f32 %v678, %v498
      %v687 = vmul.f32 %v682, %v499
      %692 = vrot.lane.b32.xlu0 %v684, 127
      %v693 = vpop.permute.xlu0 %692
      %694 = vrot.lane.b32.xlu0 %v685, 127
      %v695 = vpop.permute.xlu0 %694
      %696 = vrot.lane.b32.xlu0 %v686, 127
      %v697 = vpop.permute.xlu0 %696
      %698 = vrot.lane.b32.xlu0 %v687, 127
      %v699 = vpop.permute.xlu0 %698
      %v704 = vadd.f32 %v624, %v693
      %v705 = vadd.f32 %v625, %v695
      %v706 = vadd.f32 %v626, %v697
      %v707 = vadd.f32 %v627, %v699
      %708 = vset.pattern.permute.xlu0 4
      %709 = vperm.xlu0 %708, %v420
      %v710 = vpop.permute.xlu0 %709
      %712 = vset.pattern.permute.xlu0 4
      %713 = vperm.xlu0 %712, %v421
      %v714 = vpop.permute.xlu0 %713
      %716 = vset.pattern.permute.xlu0 4
      %717 = vperm.xlu0 %716, %v422
      %v718 = vpop.permute.xlu0 %717
      %720 = vset.pattern.permute.xlu0 4
      %721 = vperm.xlu0 %720, %v423
      %v722 = vpop.permute.xlu0 %721
      %v724 = vmul.f32 %v710, %v432
      %v725 = vmul.f32 %v714, %v433
      %v726 = vmul.f32 %v718, %v434
      %v727 = vmul.f32 %v722, %v435
      %732 = vrot.lane.b32.xlu0 %v724, 126
      %v733 = vpop.permute.xlu0 %732
      %734 = vrot.lane.b32.xlu0 %v725, 126
      %v735 = vpop.permute.xlu0 %734
      %736 = vrot.lane.b32.xlu0 %v726, 126
      %v737 = vpop.permute.xlu0 %736
      %738 = vrot.lane.b32.xlu0 %v727, 126
      %v739 = vpop.permute.xlu0 %738
      %v744 = vadd.f32 %v664, %v733
      %v745 = vadd.f32 %v665, %v735
      %v746 = vadd.f32 %v666, %v737
      %v747 = vadd.f32 %v667, %v739
      %748 = vset.pattern.permute.xlu0 4
      %749 = vperm.xlu0 %748, %v424
      %v750 = vpop.permute.xlu0 %749
      %752 = vset.pattern.permute.xlu0 4
      %753 = vperm.xlu0 %752, %v425
      %v754 = vpop.permute.xlu0 %753
      %756 = vset.pattern.permute.xlu0 4
      %757 = vperm.xlu0 %756, %v426
      %v758 = vpop.permute.xlu0 %757
      %760 = vset.pattern.permute.xlu0 4
      %761 = vperm.xlu0 %760, %v427
      %v762 = vpop.permute.xlu0 %761
      %v764 = vmul.f32 %v750, %v432
      %v765 = vmul.f32 %v754, %v433
      %v766 = vmul.f32 %v758, %v434
      %v767 = vmul.f32 %v762, %v435
      %772 = vrot.lane.b32.xlu0 %v764, 126
      %v773 = vpop.permute.xlu0 %772
      %774 = vrot.lane.b32.xlu0 %v765, 126
      %v775 = vpop.permute.xlu0 %774
      %776 = vrot.lane.b32.xlu0 %v766, 126
      %v777 = vpop.permute.xlu0 %776
      %778 = vrot.lane.b32.xlu0 %v767, 126
      %v779 = vpop.permute.xlu0 %778
      %v784 = vadd.f32 %v704, %v773
      %v785 = vadd.f32 %v705, %v775
      %v786 = vadd.f32 %v706, %v777
      %v787 = vadd.f32 %v707, %v779
      %v788 = vld [vmem:[%s3] sm:$0xff]
      %v789 = vld [vmem:[%s3 + $0x8] sm:$0xff]
      %v790 = vld [vmem:[%s3 + $0x10] sm:$0xff]
      %v791 = vld [vmem:[%s3 + $0x18] sm:$0xff]
      %793 = vset.pattern.permute.xlu0 0
      %794 = vperm.xlu0 %793, %v788
      %v795 = vpop.permute.xlu0 %794
      %798 = vset.pattern.permute.xlu0 0
      %799 = vperm.xlu0 %798, %v789
      %v800 = vpop.permute.xlu0 %799
      %803 = vset.pattern.permute.xlu0 0
      %804 = vperm.xlu0 %803, %v790
      %v805 = vpop.permute.xlu0 %804
      %808 = vset.pattern.permute.xlu0 0
      %809 = vperm.xlu0 %808, %v791
      %v810 = vpop.permute.xlu0 %809
      %v812 = vadd.f32 %v744, %v795
      %v813 = vadd.f32 %v745, %v800
      %v814 = vadd.f32 %v746, %v805
      %v815 = vadd.f32 %v747, %v810
      %v816 = vld [vmem:[%s7] sm:$0xff]
      %v817 = vld [vmem:[%s7 + $0x8] sm:$0xff]
      %v818 = vld [vmem:[%s7 + $0x10] sm:$0xff]
      %v819 = vld [vmem:[%s7 + $0x18] sm:$0xff]
      %821 = vset.pattern.permute.xlu0 0
      %822 = vperm.xlu0 %821, %v816
      %v823 = vpop.permute.xlu0 %822
      %826 = vset.pattern.permute.xlu0 0
      %827 = vperm.xlu0 %826, %v817
      %v828 = vpop.permute.xlu0 %827
      %831 = vset.pattern.permute.xlu0 0
      %832 = vperm.xlu0 %831, %v818
      %v833 = vpop.permute.xlu0 %832
      %836 = vset.pattern.permute.xlu0 0
      %837 = vperm.xlu0 %836, %v819
      %v838 = vpop.permute.xlu0 %837
      %v840 = vadd.f32 %v784, %v823
      %v841 = vadd.f32 %v785, %v828
      %v842 = vadd.f32 %v786, %v833
      %v843 = vadd.f32 %v787, %v838
      %v844 = vld [vmem:[%s4] sm:$0xff]
      %v845 = vld [vmem:[%s4 + $0x8] sm:$0xff]
      %v846 = vld [vmem:[%s4 + $0x10] sm:$0xff]
      %v847 = vld [vmem:[%s4 + $0x18] sm:$0xff]
      %v848 = vld [vmem:[%s5] sm:$0xff]
      %v849 = vld [vmem:[%s5 + $0x8] sm:$0xff]
      %v850 = vld [vmem:[%s5 + $0x10] sm:$0xff]
      %v851 = vld [vmem:[%s5 + $0x18] sm:$0xff]
      %vm852 = vcmask 31744
      %v853 = vsel %vm852, %v812, 0.0
      %v854 = vsel %vm852, %v813, 0.0
      %v855 = vadd.f32 %v853, %v854
      %v856 = vsel %vm852, %v814, 0.0
      %v857 = vadd.f32 %v855, %v856
      %v858 = vsel %vm852, %v815, 0.0
      %v859 = vadd.f32 %v857, %v858
      %860 = vadd.xlane.f32.xlu0 %v859
      %v861 = vpop.xlane.xlu0 %860
      %v862 = vrot.slane %v861, 4
      %v863 = vadd.f32 %v861, %v862
      %v864 = vrot.slane %v863, 2
      %v865 = vadd.f32 %v863, %v864
      %v866 = vrot.slane %v865, 1
      %v867 = vadd.f32 %v865, %v866
      %s868 = vtos %v867
      %v869 = vmul.f32 %v812, %v812
      %v870 = vmul.f32 %v813, %v813
      %v871 = vmul.f32 %v814, %v814
      %v872 = vmul.f32 %v815, %v815
      %v873 = vsel %vm852, %v869, 0.0
      %v874 = vsel %vm852, %v870, 0.0
      %v875 = vadd.f32 %v873, %v874
      %v876 = vsel %vm852, %v871, 0.0
      %v877 = vadd.f32 %v875, %v876
      %v878 = vsel %vm852, %v872, 0.0
      %v879 = vadd.f32 %v877, %v878
      %880 = vadd.xlane.f32.xlu0 %v879
      %v881 = vpop.xlane.xlu0 %880
      %v882 = vrot.slane %v881, 4
      %v883 = vadd.f32 %v881, %v882
      %v884 = vrot.slane %v883, 2
      %v885 = vadd.f32 %v883, %v884
      %v886 = vrot.slane %v885, 1
      %v887 = vadd.f32 %v885, %v886
      %s888 = vtos %v887
      %v889 = vrcp.pop 128.0
      %s890 = vtos %v889
      %s891 = smul.f32 %s868, %s890
      %v892 = vrcp.pop 128.0
      %s893 = vtos %v892
      %s894 = smul.f32 %s888, %s893
      %s895 = smul.f32 %s891, %s891
      %s896 = ssub.f32 %s894, %s895
      %s897 = smax.f32 %s896, 0.0
      %v898 = vstv %s891
      %v899 = vsub.f32 %v812, %v898
      %v900 = vsub.f32 %v813, %v898
      %v901 = vsub.f32 %v814, %v898
      %v902 = vsub.f32 %v815, %v898
      %s903 = sadd.f32 %s897, 1e-08
      %v904 = vstv %s903
      %v905 = vrsqrt.pop %v904
      %s906 = vtos %v905
      %v907 = vstv %s906
      %v908 = vmul.f32 %v899, %v907
      %v909 = vmul.f32 %v900, %v907
      %v910 = vmul.f32 %v901, %v907
      %v911 = vmul.f32 %v902, %v907
      %913 = vset.pattern.permute.xlu0 0
      %914 = vperm.xlu0 %913, %v844
      %v915 = vpop.permute.xlu0 %914
      %918 = vset.pattern.permute.xlu0 0
      %919 = vperm.xlu0 %918, %v845
      %v920 = vpop.permute.xlu0 %919
      %923 = vset.pattern.permute.xlu0 0
      %924 = vperm.xlu0 %923, %v846
      %v925 = vpop.permute.xlu0 %924
      %928 = vset.pattern.permute.xlu0 0
      %929 = vperm.xlu0 %928, %v847
      %v930 = vpop.permute.xlu0 %929
      %v932 = vmul.f32 %v908, %v915
      %v933 = vmul.f32 %v909, %v920
      %v934 = vmul.f32 %v910, %v925
      %v935 = vmul.f32 %v911, %v930
      %937 = vset.pattern.permute.xlu0 0
      %938 = vperm.xlu0 %937, %v848
      %v939 = vpop.permute.xlu0 %938
      %942 = vset.pattern.permute.xlu0 0
      %943 = vperm.xlu0 %942, %v849
      %v944 = vpop.permute.xlu0 %943
      %947 = vset.pattern.permute.xlu0 0
      %948 = vperm.xlu0 %947, %v850
      %v949 = vpop.permute.xlu0 %948
      %952 = vset.pattern.permute.xlu0 0
      %953 = vperm.xlu0 %952, %v851
      %v954 = vpop.permute.xlu0 %953
      %v956 = vadd.f32 %v932, %v939
      %v957 = vadd.f32 %v933, %v944
      %v958 = vadd.f32 %v934, %v949
      %v959 = vadd.f32 %v935, %v954
      %v960 = vpack.c.bf16 %v957, %v956
      %v961 = vpack.c.bf16 %v959, %v958
      %v964 = vunpack.c.l.b16 %v960
      %v965 = vunpack.c.h.b16 %v960
      %v966 = vunpack.c.l.b16 %v961
      %v967 = vunpack.c.h.b16 %v961
      %v968 = vpack.c.b16 %v964, %v964
      %v969 = vpack.c.b16 %v965, %v965
      %v970 = vpack.c.b16 %v966, %v966
      %v971 = vpack.c.b16 %v967, %v967
      %vm976 = vcmask 27648
      %977 = vst.msk [vmem:[%s414] sm:$0xf] %vm976, %v968
      %978 = vst.msk [vmem:[%s414 + $0x4] sm:$0xf] %vm976, %v969
      %979 = vst.msk [vmem:[%s414 + $0x8] sm:$0xf] %vm976, %v970
      %980 = vst.msk [vmem:[%s414 + $0xc] sm:$0xf] %vm976, %v971
      %v981 = vld [vmem:[%s8] sm:$0xff]
      %v982 = vld [vmem:[%s8 + $0x8] sm:$0xff]
      %v983 = vld [vmem:[%s8 + $0x10] sm:$0xff]
      %v984 = vld [vmem:[%s8 + $0x18] sm:$0xff]
      %v985 = vld [vmem:[%s9] sm:$0xff]
      %v986 = vld [vmem:[%s9 + $0x8] sm:$0xff]
      %v987 = vld [vmem:[%s9 + $0x10] sm:$0xff]
      %v988 = vld [vmem:[%s9 + $0x18] sm:$0xff]
      %v989 = vsel %vm852, %v840, 0.0
      %v990 = vsel %vm852, %v841, 0.0
      %v991 = vadd.f32 %v989, %v990
      %v992 = vsel %vm852, %v842, 0.0
      %v993 = vadd.f32 %v991, %v992
      %v994 = vsel %vm852, %v843, 0.0
      %v995 = vadd.f32 %v993, %v994
      %996 = vadd.xlane.f32.xlu0 %v995
      %v997 = vpop.xlane.xlu0 %996
      %v998 = vrot.slane %v997, 4
      %v999 = vadd.f32 %v997, %v998
      %v1000 = vrot.slane %v999, 2
      %v1001 = vadd.f32 %v999, %v1000
      %v1002 = vrot.slane %v1001, 1
      %v1003 = vadd.f32 %v1001, %v1002
      %s1004 = vtos %v1003
      %v1005 = vmul.f32 %v840, %v840
      %v1006 = vmul.f32 %v841, %v841
      %v1007 = vmul.f32 %v842, %v842
      %v1008 = vmul.f32 %v843, %v843
      %v1009 = vsel %vm852, %v1005, 0.0
      %v1010 = vsel %vm852, %v1006, 0.0
      %v1011 = vadd.f32 %v1009, %v1010
      %v1012 = vsel %vm852, %v1007, 0.0
      %v1013 = vadd.f32 %v1011, %v1012
      %v1014 = vsel %vm852, %v1008, 0.0
      %v1015 = vadd.f32 %v1013, %v1014
      %1016 = vadd.xlane.f32.xlu0 %v1015
      %v1017 = vpop.xlane.xlu0 %1016
      %v1018 = vrot.slane %v1017, 4
      %v1019 = vadd.f32 %v1017, %v1018
      %v1020 = vrot.slane %v1019, 2
      %v1021 = vadd.f32 %v1019, %v1020
      %v1022 = vrot.slane %v1021, 1
      %v1023 = vadd.f32 %v1021, %v1022
      %s1024 = vtos %v1023
      %v1025 = vrcp.pop 128.0
      %s1026 = vtos %v1025
      %s1027 = smul.f32 %s1004, %s1026
      %v1028 = vrcp.pop 128.0
      %s1029 = vtos %v1028
      %s1030 = smul.f32 %s1024, %s1029
      %s1031 = smul.f32 %s1027, %s1027
      %s1032 = ssub.f32 %s1030, %s1031
      %s1033 = smax.f32 %s1032, 0.0
      %v1034 = vstv %s1027
      %v1035 = vsub.f32 %v840, %v1034
      %v1036 = vsub.f32 %v841, %v1034
      %v1037 = vsub.f32 %v842, %v1034
      %v1038 = vsub.f32 %v843, %v1034
      %s1039 = sadd.f32 %s1033, 1e-08
      %v1040 = vstv %s1039
      %v1041 = vrsqrt.pop %v1040
      %s1042 = vtos %v1041
      %v1043 = vstv %s1042
      %v1044 = vmul.f32 %v1035, %v1043
      %v1045 = vmul.f32 %v1036, %v1043
      %v1046 = vmul.f32 %v1037, %v1043
      %v1047 = vmul.f32 %v1038, %v1043
      %1049 = vset.pattern.permute.xlu0 0
      %1050 = vperm.xlu0 %1049, %v981
      %v1051 = vpop.permute.xlu0 %1050
      %1054 = vset.pattern.permute.xlu0 0
      %1055 = vperm.xlu0 %1054, %v982
      %v1056 = vpop.permute.xlu0 %1055
      %1059 = vset.pattern.permute.xlu0 0
      %1060 = vperm.xlu0 %1059, %v983
      %v1061 = vpop.permute.xlu0 %1060
      %1064 = vset.pattern.permute.xlu0 0
      %1065 = vperm.xlu0 %1064, %v984
      %v1066 = vpop.permute.xlu0 %1065
      %v1068 = vmul.f32 %v1044, %v1051
      %v1069 = vmul.f32 %v1045, %v1056
      %v1070 = vmul.f32 %v1046, %v1061
      %v1071 = vmul.f32 %v1047, %v1066
      %1073 = vset.pattern.permute.xlu0 0
      %1074 = vperm.xlu0 %1073, %v985
      %v1075 = vpop.permute.xlu0 %1074
      %1078 = vset.pattern.permute.xlu0 0
      %1079 = vperm.xlu0 %1078, %v986
      %v1080 = vpop.permute.xlu0 %1079
      %1083 = vset.pattern.permute.xlu0 0
      %1084 = vperm.xlu0 %1083, %v987
      %v1085 = vpop.permute.xlu0 %1084
      %1088 = vset.pattern.permute.xlu0 0
      %1089 = vperm.xlu0 %1088, %v988
      %v1090 = vpop.permute.xlu0 %1089
      %v1092 = vadd.f32 %v1068, %v1075
      %v1093 = vadd.f32 %v1069, %v1080
      %v1094 = vadd.f32 %v1070, %v1085
      %v1095 = vadd.f32 %v1071, %v1090
      %v1096 = vpack.c.bf16 %v1093, %v1092
      %v1097 = vpack.c.bf16 %v1095, %v1094
      %v1100 = vunpack.c.l.b16 %v1096
      %v1101 = vunpack.c.h.b16 %v1096
      %v1102 = vunpack.c.l.b16 %v1097
      %v1103 = vunpack.c.h.b16 %v1097
      %v1104 = vpack.c.b16 %v1100, %v1100
      %v1105 = vpack.c.b16 %v1101, %v1101
      %v1106 = vpack.c.b16 %v1102, %v1102
      %v1107 = vpack.c.b16 %v1103, %v1103
      %1112 = vst.msk [vmem:[%s419] sm:$0xf] %vm976, %v1104
      %1113 = vst.msk [vmem:[%s419 + $0x4] sm:$0xf] %vm976, %v1105
      %1114 = vst.msk [vmem:[%s419 + $0x8] sm:$0xf] %vm976, %v1106
      %1115 = vst.msk [vmem:[%s419 + $0xc] sm:$0xf] %vm976, %v1107
      %p1116 = scmp.lt.s32.totalorder %s23, 1
      %s1117 = scalar_select %p1116, %s23, 1
      %s1118 = smul.addr %s1117, 4
      %s1119 = smul.addr %s1118, 4
      %s1120 = scalar_lea.vmem %s10, %s1119
      %p1121 = scmp.lt.s32.totalorder %s23, 1
      %s1122 = scalar_select %p1121, %s23, 1
      %s1123 = smul.addr %s1122, 4
      %s1124 = smul.addr %s1123, 4
      %s1125 = scalar_lea.vmem %s11, %s1124
      // Predicated region
      $region61: #{afrcnn_block_forward.15} parent=59 // pred_check
        %p1126 = pneg %p261
      $region62: #{afrcnn_block_forward.15} parent=59 // pred_check_branch
        %1128 = sbr.rel (%p1126) target = $region64
      $region63: #{afrcnn_block_forward.15} parent=59 // pred_region
        _
      $region64: #{afrcnn_block_forward.15} parent=59 // pred_fallthru
        _
      // Predicated region
      $region65: #{afrcnn_block_forward.15} parent=59 // pred_check
        %p1129 = pneg %p287
      $region66: #{afrcnn_block_forward.15} parent=59 // pred_check_branch
        %1131 = sbr.rel (%p1129) target = $region68
      $region67: #{afrcnn_block_forward.15} parent=59 // pred_region
        _
      $region68: #{afrcnn_block_forward.15} parent=59 // pred_fallthru
        _
    $region60: #{afrcnn_block_forward.15} parent=5 // pred_fallthru
      _
    %p1132 = scmp.le.s32.totalorder 2, %s18
    // Predicated region
    $region69: #{afrcnn_block_forward.15} parent=5 // pred_check
      %p1133 = pneg %p1132
    $region70: #{afrcnn_block_forward.15} parent=5 // pred_check_branch
      %1135 = sbr.rel (%p1133) target = $region72
    $region71: #{afrcnn_block_forward.15} parent=5 // pred_region
      %s1136 = ssub.s32 %s18, 2
      // Predicated region
      $region73: #{afrcnn_block_forward.15} parent=71 // pred_check
        %p1137 = pneg %p267
      $region74: #{afrcnn_block_forward.15} parent=71 // pred_check_branch
        %1139 = sbr.rel (%p1137) target = $region76
      $region75: #{afrcnn_block_forward.15} parent=71 // pred_region
        %p1140 = scmp.lt.s32.totalorder %s24, 1
        %s1141 = scalar_select %p1140, %s24, 1
        %s1142 = smul.addr %s1141, 4
        %s1143 = smul.addr %s1142, 4
        %s1144 = scalar_lea.vmem %s10, %s1143
      $region76: #{afrcnn_block_forward.15} parent=71 // pred_fallthru
        _
      // Predicated region
      $region77: #{afrcnn_block_forward.15} parent=71 // pred_check
        %p1145 = pneg %p293
      $region78: #{afrcnn_block_forward.15} parent=71 // pred_check_branch
        %1147 = sbr.rel (%p1145) target = $region80
      $region79: #{afrcnn_block_forward.15} parent=71 // pred_region
        %p1148 = scmp.lt.s32.totalorder %s24, 1
        %s1149 = scalar_select %p1148, %s24, 1
        %s1150 = smul.addr %s1149, 4
        %s1151 = smul.addr %s1150, 4
        %s1152 = scalar_lea.vmem %s11, %s1151
      $region80: #{afrcnn_block_forward.15} parent=71 // pred_fallthru
        _
    $region72: #{afrcnn_block_forward.15} parent=5 // pred_fallthru
      _
  $region6: #{afrcnn_block_forward.15} parent=0 // loop_footer
    %s22 = sadd.s32 1, %s18
  $region7: #{afrcnn_block_forward.15} parent=0 // loop_footer_branch
    %17 = sbr.rel target = $region3
  $region8: #{afrcnn_block_forward.15} parent=0 // loop_exit
    _

// kernel: afrcnn_block_forward.17
$region0: #{afrcnn_block_forward.17}
  #allocation0 [shape = 'u32[]', space=smem, size = 0x4, offset = 0x4, fixed_abs, tag = 'smem constant byte address 0x4 - core index']
  #allocation1 [shape = 'u32[144,128]{1,0:T(1,128)}', space=vmem, size = 0x12000, scoped, tag = 'internal scratch']
  #allocation2 [shape = 'f32[1]{0:T(128)S(6)}', space=smem, size = 0x200, scoped, tag = 'scoped memory for afrcnn_block_forward.17']
  %s0 = inlined_call_operand.vmem [shape: bf16[2,32,16], index: 0, kind: input, shape index: {}]
  %s1 = inlined_call_operand.vmem [shape: bf16[2,32,16], index: 1, kind: input, shape index: {}]
  %s2 = inlined_call_operand.vmem [shape: bf16[2,32,16], index: 2, kind: input, shape index: {}]
  %s3 = inlined_call_operand.vmem [shape: f32[32,1], index: 3, kind: input, shape index: {}]
  %s4 = inlined_call_operand.vmem [shape: f32[32,1], index: 4, kind: input, shape index: {}]
  %s5 = inlined_call_operand.<no memory space> [shape: f32[1], index: 5, kind: input, shape index: {}]
  %s6 = inlined_call_operand.vmem [shape: bf16[2,32,16], index: 6, kind: output, shape index: {}]
  %s7 = sld [smem:[#allocation0]]
  $region57: #{afrcnn_block_forward.17} parent=0
    _
  %s9 = ssub.s32 1, %s7
  %s10 = scalar_select 0, %s9, %s7
  %11 = sst [smem:[#allocation2]] %s5
  loop: start=0, step=1, limit=4
  $region2: #{afrcnn_block_forward.17} parent=0 // loop_pre_header
    _
  $region3: #{afrcnn_block_forward.17} parent=0 // loop_header
    %s13 = sphi 0, %s17
    %p14 = scmp.ge.s32.totalorder %s13, 4
    %s23 = sphi 0, %s25
    %s26 = sphi 0, %s23
    %s27 = sphi 0, %s26
    %s43 = sphi 0, %s27
    %s49 = sphi 0, %s51
    %s52 = sphi 0, %s49
    %s53 = sphi 0, %s52
    %s69 = sphi 0, %s53
    %s75 = sphi 0, %s77
    %s78 = sphi 0, %s75
    %s79 = sphi 0, %s78
    %s95 = sphi 0, %s79
    %s99 = sphi 0, %s99
    %s101 = sphi 0, %s99
    %s102 = sphi 0, %s101
    %s116 = sphi 0, %s102
    %s120 = sphi 0, %s120
    %s122 = sphi 0, %s120
    %s123 = sphi 0, %s122
    %s137 = sphi 0, %s123
    %s141 = sphi 0, %s141
    %s143 = sphi 0, %s141
    %s144 = sphi 0, %s143
    %s158 = sphi 0, %s144
    %s164 = sphi 0, %s166
    %s167 = sphi 0, %s164
    %s168 = sphi 0, %s167
    %s184 = sphi 0, %s168
  $region4: #{afrcnn_block_forward.17} parent=0 // loop_header_branch
    %16 = sbr.rel (%p14) target = $region8
  $region5: #{afrcnn_block_forward.17} parent=0 // loop_body
    %s18 = ssub.s32 %s13, 1
    %s19 = ssub.s32 %s13, 2
    %s20 = sadd.s32 %s13, 1
    %s21 = ssub.s32 %s13, %s20
    %p22 = scmp.eq.s32.totalorder %s21, 0
    %s24 = sadd.s32 %s23, 1
    %s25 = scalar_select %p22, %s23, %s24
    %p28 = pneg %p22
    %p29 = scmp.eq.s32.totalorder %s13, 1
    %p30 = por %p28, %p29
    %p31 = scmp.ne.s32.totalorder %s23, %s26
    %p32 = scmp.eq.s32.totalorder %s13, 0
    %p33 = por %p31, %p32
    %p34 = scmp.ne.s32.totalorder %s23, %s26
    %p35 = scmp.eq.s32.totalorder %s18, 1
    %p36 = por %p34, %p35
    %p37 = scmp.ne.s32.totalorder %s26, %s27
    %p38 = scmp.eq.s32.totalorder %s18, 0
    %p39 = por %p37, %p38
    %p40 = scmp.ne.s32.totalorder %s26, %s27
    %p41 = scmp.eq.s32.totalorder %s19, 1
    %p42 = por %p40, %p41
    %p44 = scmp.ne.s32.totalorder %s27, %s43
    %p45 = scmp.eq.s32.totalorder %s19, 0
    %p46 = por %p44, %p45
    %s47 = ssub.s32 %s13, %s20
    %p48 = scmp.eq.s32.totalorder %s47, 0
    %s50 = sadd.s32 %s49, 1
    %s51 = scalar_select %p48, %s49, %s50
    %p54 = pneg %p48
    %p55 = scmp.eq.s32.totalorder %s13, 1
    %p56 = por %p54, %p55
    %p57 = scmp.ne.s32.totalorder %s49, %s52
    %p58 = scmp.eq.s32.totalorder %s13, 0
    %p59 = por %p57, %p58
    %p60 = scmp.ne.s32.totalorder %s49, %s52
    %p61 = scmp.eq.s32.totalorder %s18, 1
    %p62 = por %p60, %p61
    %p63 = scmp.ne.s32.totalorder %s52, %s53
    %p64 = scmp.eq.s32.totalorder %s18, 0
    %p65 = por %p63, %p64
    %p66 = scmp.ne.s32.totalorder %s52, %s53
    %p67 = scmp.eq.s32.totalorder %s19, 1
    %p68 = por %p66, %p67
    %p70 = scmp.ne.s32.totalorder %s53, %s69
    %p71 = scmp.eq.s32.totalorder %s19, 0
    %p72 = por %p70, %p71
    %s73 = ssub.s32 %s13, %s20
    %p74 = scmp.eq.s32.totalorder %s73, 0
    %s76 = sadd.s32 %s75, 1
    %s77 = scalar_select %p74, %s75, %s76
    %p80 = pneg %p74
    %p81 = scmp.eq.s32.totalorder %s13, 1
    %p82 = por %p80, %p81
    %p83 = scmp.ne.s32.totalorder %s75, %s78
    %p84 = scmp.eq.s32.totalorder %s13, 0
    %p85 = por %p83, %p84
    %p86 = scmp.ne.s32.totalorder %s75, %s78
    %p87 = scmp.eq.s32.totalorder %s18, 1
    %p88 = por %p86, %p87
    %p89 = scmp.ne.s32.totalorder %s78, %s79
    %p90 = scmp.eq.s32.totalorder %s18, 0
    %p91 = por %p89, %p90
    %p92 = scmp.ne.s32.totalorder %s78, %s79
    %p93 = scmp.eq.s32.totalorder %s19, 1
    %p94 = por %p92, %p93
    %p96 = scmp.ne.s32.totalorder %s79, %s95
    %p97 = scmp.eq.s32.totalorder %s19, 0
    %p98 = por %p96, %p97
    %s100 = sadd.s32 %s99, 1
    %p103 = scmp.eq.s32.totalorder %s13, 1
    %p104 = scmp.ne.s32.totalorder %s99, %s101
    %p105 = scmp.eq.s32.totalorder %s13, 0
    %p106 = por %p104, %p105
    %p107 = scmp.ne.s32.totalorder %s99, %s101
    %p108 = scmp.eq.s32.totalorder %s18, 1
    %p109 = por %p107, %p108
    %p110 = scmp.ne.s32.totalorder %s101, %s102
    %p111 = scmp.eq.s32.totalorder %s18, 0
    %p112 = por %p110, %p111
    %p113 = scmp.ne.s32.totalorder %s101, %s102
    %p114 = scmp.eq.s32.totalorder %s19, 1
    %p115 = por %p113, %p114
    %p117 = scmp.ne.s32.totalorder %s102, %s116
    %p118 = scmp.eq.s32.totalorder %s19, 0
    %p119 = por %p117, %p118
    %s121 = sadd.s32 %s120, 1
    %p124 = scmp.eq.s32.totalorder %s13, 1
    %p125 = scmp.ne.s32.totalorder %s120, %s122
    %p126 = scmp.eq.s32.totalorder %s13, 0
    %p127 = por %p125, %p126
    %p128 = scmp.ne.s32.totalorder %s120, %s122
    %p129 = scmp.eq.s32.totalorder %s18, 1
    %p130 = por %p128, %p129
    %p131 = scmp.ne.s32.totalorder %s122, %s123
    %p132 = scmp.eq.s32.totalorder %s18, 0
    %p133 = por %p131, %p132
    %p134 = scmp.ne.s32.totalorder %s122, %s123
    %p135 = scmp.eq.s32.totalorder %s19, 1
    %p136 = por %p134, %p135
    %p138 = scmp.ne.s32.totalorder %s123, %s137
    %p139 = scmp.eq.s32.totalorder %s19, 0
    %p140 = por %p138, %p139
    %s142 = sadd.s32 %s141, 1
    %p145 = scmp.eq.s32.totalorder %s13, 1
    %p146 = scmp.ne.s32.totalorder %s141, %s143
    %p147 = scmp.eq.s32.totalorder %s13, 0
    %p148 = por %p146, %p147
    %p149 = scmp.ne.s32.totalorder %s141, %s143
    %p150 = scmp.eq.s32.totalorder %s18, 1
    %p151 = por %p149, %p150
    %p152 = scmp.ne.s32.totalorder %s143, %s144
    %p153 = scmp.eq.s32.totalorder %s18, 0
    %p154 = por %p152, %p153
    %p155 = scmp.ne.s32.totalorder %s143, %s144
    %p156 = scmp.eq.s32.totalorder %s19, 1
    %p157 = por %p155, %p156
    %p159 = scmp.ne.s32.totalorder %s144, %s158
    %p160 = scmp.eq.s32.totalorder %s19, 0
    %p161 = por %p159, %p160
    %s162 = ssub.s32 %s13, %s20
    %p163 = scmp.eq.s32.totalorder %s162, 0
    %s165 = sadd.s32 %s164, 1
    %s166 = scalar_select %p163, %s164, %s165
    %p169 = pneg %p163
    %p170 = scmp.eq.s32.totalorder %s13, 1
    %p171 = por %p169, %p170
    %p172 = scmp.ne.s32.totalorder %s164, %s167
    %p173 = scmp.eq.s32.totalorder %s13, 0
    %p174 = por %p172, %p173
    %p175 = scmp.ne.s32.totalorder %s164, %s167
    %p176 = scmp.eq.s32.totalorder %s18, 1
    %p177 = por %p175, %p176
    %p178 = scmp.ne.s32.totalorder %s167, %s168
    %p179 = scmp.eq.s32.totalorder %s18, 0
    %p180 = por %p178, %p179
    %p181 = scmp.ne.s32.totalorder %s167, %s168
    %p182 = scmp.eq.s32.totalorder %s19, 1
    %p183 = por %p181, %p182
    %p185 = scmp.ne.s32.totalorder %s168, %s184
    %p186 = scmp.eq.s32.totalorder %s19, 0
    %p187 = por %p185, %p186
    %p188 = scmp.le.s32.totalorder 1, %s13
    %p189 = scmp.lt.s32.totalorder %s13, 3
    %p190 = pnand %p188, %p189
    %p191 = pneg %p190
    // Predicated region
    $region9: #{afrcnn_block_forward.17} parent=5 // pred_check
      _
    $region10: #{afrcnn_block_forward.17} parent=5 // pred_check_branch
      %193 = sbr.rel (%p190) target = $region12
    $region11: #{afrcnn_block_forward.17} parent=5 // pred_region
      %s194 = ssub.s32 %s13, 1
      // Predicated region
      $region13: #{afrcnn_block_forward.17} parent=11 // pred_check
        %p195 = pneg %p112
      $region14: #{afrcnn_block_forward.17} parent=11 // pred_check_branch
        %197 = sbr.rel (%p195) target = $region16
      $region15: #{afrcnn_block_forward.17} parent=11 // pred_region
        _
      $region16: #{afrcnn_block_forward.17} parent=11 // pred_fallthru
        _
      // Predicated region
      $region17: #{afrcnn_block_forward.17} parent=11 // pred_check
        %p198 = pneg %p133
      $region18: #{afrcnn_block_forward.17} parent=11 // pred_check_branch
        %200 = sbr.rel (%p198) target = $region20
      $region19: #{afrcnn_block_forward.17} parent=11 // pred_region
        _
      $region20: #{afrcnn_block_forward.17} parent=11 // pred_fallthru
        _
      // Predicated region
      $region21: #{afrcnn_block_forward.17} parent=11 // pred_check
        %p201 = pneg %p154
      $region22: #{afrcnn_block_forward.17} parent=11 // pred_check_branch
        %203 = sbr.rel (%p201) target = $region24
      $region23: #{afrcnn_block_forward.17} parent=11 // pred_region
        _
      $region24: #{afrcnn_block_forward.17} parent=11 // pred_fallthru
        _
    $region12: #{afrcnn_block_forward.17} parent=5 // pred_fallthru
      _
    %p204 = scmp.lt.s32.totalorder %s13, 2
    // Predicated region
    $region25: #{afrcnn_block_forward.17} parent=5 // pred_check
      %p205 = pneg %p204
    $region26: #{afrcnn_block_forward.17} parent=5 // pred_check_branch
      %207 = sbr.rel (%p205) target = $region28
    $region27: #{afrcnn_block_forward.17} parent=5 // pred_region
      // Predicated region
      $region29: #{afrcnn_block_forward.17} parent=27 // pred_check
        %p208 = pneg %p33
      $region30: #{afrcnn_block_forward.17} parent=27 // pred_check_branch
        %210 = sbr.rel (%p208) target = $region32
      $region31: #{afrcnn_block_forward.17} parent=27 // pred_region
        %p211 = scmp.lt.s32.totalorder %s13, 1
        %s212 = scalar_select %p211, %s13, 1
        %s213 = smul.addr %s212, 4
        %s214 = smul.addr %s213, 4
        %s215 = scalar_lea.vmem %s0, %s214
      $region32: #{afrcnn_block_forward.17} parent=27 // pred_fallthru
        _
      // Predicated region
      $region33: #{afrcnn_block_forward.17} parent=27 // pred_check
        %p216 = pneg %p59
      $region34: #{afrcnn_block_forward.17} parent=27 // pred_check_branch
        %218 = sbr.rel (%p216) target = $region36
      $region35: #{afrcnn_block_forward.17} parent=27 // pred_region
        %p219 = scmp.lt.s32.totalorder %s13, 1
        %s220 = scalar_select %p219, %s13, 1
        %s221 = smul.addr %s220, 4
        %s222 = smul.addr %s221, 4
        %s223 = scalar_lea.vmem %s1, %s222
      $region36: #{afrcnn_block_forward.17} parent=27 // pred_fallthru
        _
      // Predicated region
      $region37: #{afrcnn_block_forward.17} parent=27 // pred_check
        %p224 = pneg %p85
      $region38: #{afrcnn_block_forward.17} parent=27 // pred_check_branch
        %226 = sbr.rel (%p224) target = $region40
      $region39: #{afrcnn_block_forward.17} parent=27 // pred_region
        %p227 = scmp.lt.s32.totalorder %s13, 1
        %s228 = scalar_select %p227, %s13, 1
        %s229 = smul.addr %s228, 4
        %s230 = smul.addr %s229, 4
        %s231 = scalar_lea.vmem %s2, %s230
      $region40: #{afrcnn_block_forward.17} parent=27 // pred_fallthru
        _
    $region28: #{afrcnn_block_forward.17} parent=5 // pred_fallthru
      _
    %p232 = scmp.le.s32.totalorder 1, %s13
    %p233 = scmp.lt.s32.totalorder %s13, 3
    %p234 = pnand %p232, %p233
    %p235 = pneg %p234
    // Predicated region
    $region41: #{afrcnn_block_forward.17} parent=5 // pred_check
      _
    $region42: #{afrcnn_block_forward.17} parent=5 // pred_check_branch
      %237 = sbr.rel (%p234) target = $region44
    $region43: #{afrcnn_block_forward.17} parent=5 // pred_region
      %s238 = ssub.s32 %s13, 1
      %p239 = scmp.lt.s32.totalorder %s18, 1
      %s240 = scalar_select %p239, %s18, 1
      %s241 = smul.addr %s240, 4
      %s242 = smul.addr %s241, 4
      %s243 = scalar_lea.vmem %s0, %s242
      %p244 = pneg %p39
      %p245 = pneg %p36
      %p246 = scmp.lt.s32.totalorder %s18, 1
      %s247 = scalar_select %p246, %s18, 1
      %s248 = smul.addr %s247, 4
      %s249 = smul.addr %s248, 4
      %s250 = scalar_lea.vmem %s1, %s249
      %p251 = pneg %p65
      %p252 = pneg %p62
      %p253 = scmp.lt.s32.totalorder %s18, 1
      %s254 = scalar_select %p253, %s18, 1
      %s255 = smul.addr %s254, 4
      %s256 = smul.addr %s255, 4
      %s257 = scalar_lea.vmem %s2, %s256
      %p258 = pneg %p91
      %p259 = pneg %p88
      %p260 = pneg %p112
      %p261 = pneg %p109
      %p262 = pneg %p133
      %p263 = pneg %p130
      %p264 = pneg %p154
      %p265 = pneg %p151
      %p266 = pneg %p180
      %p267 = pneg %p177
      %p268 = scmp.lt.s32.totalorder %s18, 1
      %s269 = scalar_select %p268, %s18, 1
      %s270 = smul.addr %s269, 4
      %s271 = smul.addr %s270, 4
      %s272 = scalar_lea.vmem %s6, %s271
      %p273 = scmp.lt.s32.totalorder %s18, 1
      %s274 = scalar_select %p273, %s18, 1
      %s275 = smul.addr %s274, 4
      %s276 = smul.addr %s275, 4
      %s277 = scalar_lea.vmem %s0, %s276
      %p278 = scmp.lt.s32.totalorder %s18, 1
      %s279 = scalar_select %p278, %s18, 1
      %s280 = smul.addr %s279, 4
      %s281 = smul.addr %s280, 4
      %s282 = scalar_lea.vmem %s1, %s281
      %p283 = scmp.lt.s32.totalorder %s18, 1
      %s284 = scalar_select %p283, %s18, 1
      %s285 = smul.addr %s284, 4
      %s286 = smul.addr %s285, 4
      %s287 = scalar_lea.vmem %s2, %s286
      %p288 = scmp.lt.s32.totalorder %s18, 1
      %s289 = scalar_select %p288, %s18, 1
      %s290 = smul.addr %s289, 4
      %s291 = smul.addr %s290, 4
      %s292 = scalar_lea.vmem %s6, %s291
      %v293 = vld [vmem:[%s277] sm:$0xf]
      %v294 = vld [vmem:[%s277 + $0x4] sm:$0xf]
      %v295 = vld [vmem:[%s277 + $0x8] sm:$0xf]
      %v296 = vld [vmem:[%s277 + $0xc] sm:$0xf]
      %v297 = vunpack.c.l.bf16 %v293
      %v298 = vunpack.c.l.bf16 %v294
      %v299 = vunpack.c.l.bf16 %v295
      %v300 = vunpack.c.l.bf16 %v296
      %v301 = vld [vmem:[%s282] sm:$0xf]
      %v302 = vld [vmem:[%s282 + $0x4] sm:$0xf]
      %v303 = vld [vmem:[%s282 + $0x8] sm:$0xf]
      %v304 = vld [vmem:[%s282 + $0xc] sm:$0xf]
      %v305 = vunpack.c.l.bf16 %v301
      %v306 = vunpack.c.l.bf16 %v302
      %v307 = vunpack.c.l.bf16 %v303
      %v308 = vunpack.c.l.bf16 %v304
      %v309 = vadd.f32 %v297, %v305
      %v310 = vadd.f32 %v298, %v306
      %v311 = vadd.f32 %v299, %v307
      %v312 = vadd.f32 %v300, %v308
      %v313 = vld [vmem:[%s287] sm:$0xf]
      %v314 = vld [vmem:[%s287 + $0x4] sm:$0xf]
      %v315 = vld [vmem:[%s287 + $0x8] sm:$0xf]
      %v316 = vld [vmem:[%s287 + $0xc] sm:$0xf]
      %v317 = vunpack.c.l.bf16 %v313
      %v318 = vunpack.c.l.bf16 %v314
      %v319 = vunpack.c.l.bf16 %v315
      %v320 = vunpack.c.l.bf16 %v316
      %v321 = vadd.f32 %v309, %v317
      %v322 = vadd.f32 %v310, %v318
      %v323 = vadd.f32 %v311, %v319
      %v324 = vadd.f32 %v312, %v320
      %v325 = vld [vmem:[%s3] sm:$0xff]
      %v326 = vld [vmem:[%s3 + $0x8] sm:$0xff]
      %v327 = vld [vmem:[%s3 + $0x10] sm:$0xff]
      %v328 = vld [vmem:[%s3 + $0x18] sm:$0xff]
      %v329 = vld [vmem:[%s4] sm:$0xff]
      %v330 = vld [vmem:[%s4 + $0x8] sm:$0xff]
      %v331 = vld [vmem:[%s4 + $0x10] sm:$0xff]
      %v332 = vld [vmem:[%s4 + $0x18] sm:$0xff]
      %vm333 = vcmask 130048
      %v334 = vsel %vm333, %v321, 0.0
      %v335 = vsel %vm333, %v322, 0.0
      %v336 = vadd.f32 %v334, %v335
      %v337 = vsel %vm333, %v323, 0.0
      %v338 = vadd.f32 %v336, %v337
      %v339 = vsel %vm333, %v324, 0.0
      %v340 = vadd.f32 %v338, %v339
      %341 = vadd.xlane.f32.xlu0 %v340
      %v342 = vpop.xlane.xlu0 %341
      %v343 = vrot.slane %v342, 4
      %v344 = vadd.f32 %v342, %v343
      %v345 = vrot.slane %v344, 2
      %v346 = vadd.f32 %v344, %v345
      %v347 = vrot.slane %v346, 1
      %v348 = vadd.f32 %v346, %v347
      %s349 = vtos %v348
      %v350 = vmul.f32 %v321, %v321
      %v351 = vmul.f32 %v322, %v322
      %v352 = vmul.f32 %v323, %v323
      %v353 = vmul.f32 %v324, %v324
      %v354 = vsel %vm333, %v350, 0.0
      %v355 = vsel %vm333, %v351, 0.0
      %v356 = vadd.f32 %v354, %v355
      %v357 = vsel %vm333, %v352, 0.0
      %v358 = vadd.f32 %v356, %v357
      %v359 = vsel %vm333, %v353, 0.0
      %v360 = vadd.f32 %v358, %v359
      %361 = vadd.xlane.f32.xlu0 %v360
      %v362 = vpop.xlane.xlu0 %361
      %v363 = vrot.slane %v362, 4
      %v364 = vadd.f32 %v362, %v363
      %v365 = vrot.slane %v364, 2
      %v366 = vadd.f32 %v364, %v365
      %v367 = vrot.slane %v366, 1
      %v368 = vadd.f32 %v366, %v367
      %s369 = vtos %v368
      %v370 = vrcp.pop 512.0
      %s371 = vtos %v370
      %s372 = smul.f32 %s349, %s371
      %v373 = vrcp.pop 512.0
      %s374 = vtos %v373
      %s375 = smul.f32 %s369, %s374
      %s376 = smul.f32 %s372, %s372
      %s377 = ssub.f32 %s375, %s376
      %s378 = smax.f32 %s377, 0.0
      %v379 = vstv %s372
      %v380 = vsub.f32 %v321, %v379
      %v381 = vsub.f32 %v322, %v379
      %v382 = vsub.f32 %v323, %v379
      %v383 = vsub.f32 %v324, %v379
      %s384 = sadd.f32 %s378, 1e-08
      %v385 = vstv %s384
      %v386 = vrsqrt.pop %v385
      %s387 = vtos %v386
      %v388 = vstv %s387
      %v389 = vmul.f32 %v380, %v388
      %v390 = vmul.f32 %v381, %v388
      %v391 = vmul.f32 %v382, %v388
      %v392 = vmul.f32 %v383, %v388
      %394 = vset.pattern.permute.xlu0 0
      %395 = vperm.xlu0 %394, %v325
      %v396 = vpop.permute.xlu0 %395
      %399 = vset.pattern.permute.xlu0 0
      %400 = vperm.xlu0 %399, %v326
      %v401 = vpop.permute.xlu0 %400
      %404 = vset.pattern.permute.xlu0 0
      %405 = vperm.xlu0 %404, %v327
      %v406 = vpop.permute.xlu0 %405
      %409 = vset.pattern.permute.xlu0 0
      %410 = vperm.xlu0 %409, %v328
      %v411 = vpop.permute.xlu0 %410
      %v413 = vmul.f32 %v389, %v396
      %v414 = vmul.f32 %v390, %v401
      %v415 = vmul.f32 %v391, %v406
      %v416 = vmul.f32 %v392, %v411
      %418 = vset.pattern.permute.xlu0 0
      %419 = vperm.xlu0 %418, %v329
      %v420 = vpop.permute.xlu0 %419
      %423 = vset.pattern.permute.xlu0 0
      %424 = vperm.xlu0 %423, %v330
      %v425 = vpop.permute.xlu0 %424
      %428 = vset.pattern.permute.xlu0 0
      %429 = vperm.xlu0 %428, %v331
      %v430 = vpop.permute.xlu0 %429
      %433 = vset.pattern.permute.xlu0 0
      %434 = vperm.xlu0 %433, %v332
      %v435 = vpop.permute.xlu0 %434
      %v437 = vadd.f32 %v413, %v420
      %v438 = vadd.f32 %v414, %v425
      %v439 = vadd.f32 %v415, %v430
      %v440 = vadd.f32 %v416, %v435
      %s441 = sld [smem:[#allocation2]]
      %vm442 = vcmp.ge.f32.partialorder %v437, 0.0
      %vm443 = vcmp.ge.f32.partialorder %v438, 0.0
      %vm444 = vcmp.ge.f32.partialorder %v439, 0.0
      %vm445 = vcmp.ge.f32.partialorder %v440, 0.0
      %v446 = vstv %s441
      %v447 = vmul.f32 %v446, %v437
      %v448 = vmul.f32 %v446, %v438
      %v449 = vmul.f32 %v446, %v439
      %v450 = vmul.f32 %v446, %v440
      %v451 = vsel %vm442, %v437, %v447
      %v452 = vsel %vm443, %v438, %v448
      %v453 = vsel %vm444, %v439, %v449
      %v454 = vsel %vm445, %v440, %v450
      %v455 = vpack.c.bf16 %v452, %v451
      %v456 = vpack.c.bf16 %v454, %v453
      %v459 = vunpack.c.l.b16 %v455
      %v460 = vunpack.c.h.b16 %v455
      %v461 = vunpack.c.l.b16 %v456
      %v462 = vunpack.c.h.b16 %v456
      %v463 = vpack.c.b16 %v459, %v459
      %v464 = vpack.c.b16 %v460, %v460
      %v465 = vpack.c.b16 %v461, %v461
      %v466 = vpack.c.b16 %v462, %v462
      %vm471 = vcmask 125952
      %472 = vst.msk [vmem:[%s292] sm:$0xf] %vm471, %v463
      %473 = vst.msk [vmem:[%s292 + $0x4] sm:$0xf] %vm471, %v464
      %474 = vst.msk [vmem:[%s292 + $0x8] sm:$0xf] %vm471, %v465
      %475 = vst.msk [vmem:[%s292 + $0xc] sm:$0xf] %vm471, %v466
      %p476 = scmp.lt.s32.totalorder %s18, 1
      %s477 = scalar_select %p476, %s18, 1
      %s478 = smul.addr %s477, 4
      %s479 = smul.addr %s478, 4
      %s480 = scalar_lea.vmem %s6, %s479
      // Predicated region
      $region45: #{afrcnn_block_forward.17} parent=43 // pred_check
        %p481 = pneg %p177
      $region46: #{afrcnn_block_forward.17} parent=43 // pred_check_branch
        %483 = sbr.rel (%p481) target = $region48
      $region47: #{afrcnn_block_forward.17} parent=43 // pred_region
        _
      $region48: #{afrcnn_block_forward.17} parent=43 // pred_fallthru
        _
    $region44: #{afrcnn_block_forward.17} parent=5 // pred_fallthru
      _
    %p484 = scmp.le.s32.totalorder 2, %s13
    // Predicated region
    $region49: #{afrcnn_block_forward.17} parent=5 // pred_check
      %p485 = pneg %p484
    $region50: #{afrcnn_block_forward.17} parent=5 // pred_check_branch
      %487 = sbr.rel (%p485) target = $region52
    $region51: #{afrcnn_block_forward.17} parent=5 // pred_region
      %s488 = ssub.s32 %s13, 2
      // Predicated region
      $region53: #{afrcnn_block_forward.17} parent=51 // pred_check
        %p489 = pneg %p183
      $region54: #{afrcnn_block_forward.17} parent=51 // pred_check_branch
        %491 = sbr.rel (%p489) target = $region56
      $region55: #{afrcnn_block_forward.17} parent=51 // pred_region
        %p492 = scmp.lt.s32.totalorder %s19, 1
        %s493 = scalar_select %p492, %s19, 1
        %s494 = smul.addr %s493, 4
        %s495 = smul.addr %s494, 4
        %s496 = scalar_lea.vmem %s6, %s495
      $region56: #{afrcnn_block_forward.17} parent=51 // pred_fallthru
        _
    $region52: #{afrcnn_block_forward.17} parent=5 // pred_fallthru
      _
  $region6: #{afrcnn_block_forward.17} parent=0 // loop_footer
    %s17 = sadd.s32 1, %s13
  $region7: #{afrcnn_block_forward.17} parent=0 // loop_footer_branch
    %12 = sbr.rel target = $region3
  $region8: #{afrcnn_block_forward.17} parent=0 // loop_exit
    _

// kernel: afrcnn_block_forward.16
$region0: #{afrcnn_block_forward.16}
  #allocation0 [shape = 'u32[]', space=smem, size = 0x4, offset = 0x4, fixed_abs, tag = 'smem constant byte address 0x4 - core index']
  #allocation1 [shape = 'u32[144,128]{1,0:T(1,128)}', space=vmem, size = 0x12000, scoped, tag = 'internal scratch']
  #allocation2 [shape = 'f32[1]{0:T(128)S(6)}', space=smem, size = 0x200, scoped, tag = 'scoped memory for afrcnn_block_forward.16']
  %s0 = inlined_call_operand.vmem [shape: bf16[2,32,32], index: 0, kind: input, shape index: {}]
  %s1 = inlined_call_operand.vmem [shape: bf16[2,32,32], index: 1, kind: input, shape index: {}]
  %s2 = inlined_call_operand.vmem [shape: f32[32,1], index: 2, kind: input, shape index: {}]
  %s3 = inlined_call_operand.vmem [shape: f32[32,1], index: 3, kind: input, shape index: {}]
  %s4 = inlined_call_operand.<no memory space> [shape: f32[1], index: 4, kind: input, shape index: {}]
  %s5 = inlined_call_operand.vmem [shape: bf16[2,32,32], index: 5, kind: output, shape index: {}]
  %s6 = sld [smem:[#allocation0]]
  $region53: #{afrcnn_block_forward.16} parent=0
    _
  %s8 = ssub.s32 1, %s6
  %s9 = scalar_select 0, %s8, %s6
  %10 = sst [smem:[#allocation2]] %s4
  loop: start=0, step=1, limit=4
  $region2: #{afrcnn_block_forward.16} parent=0 // loop_pre_header
    _
  $region3: #{afrcnn_block_forward.16} parent=0 // loop_header
    %s12 = sphi 0, %s16
    %p13 = scmp.ge.s32.totalorder %s12, 4
    %s22 = sphi 0, %s24
    %s25 = sphi 0, %s22
    %s26 = sphi 0, %s25
    %s42 = sphi 0, %s26
    %s48 = sphi 0, %s50
    %s51 = sphi 0, %s48
    %s52 = sphi 0, %s51
    %s68 = sphi 0, %s52
    %s72 = sphi 0, %s72
    %s74 = sphi 0, %s72
    %s75 = sphi 0, %s74
    %s89 = sphi 0, %s75
    %s93 = sphi 0, %s93
    %s95 = sphi 0, %s93
    %s96 = sphi 0, %s95
    %s110 = sphi 0, %s96
    %s114 = sphi 0, %s114
    %s116 = sphi 0, %s114
    %s117 = sphi 0, %s116
    %s131 = sphi 0, %s117
    %s137 = sphi 0, %s139
    %s140 = sphi 0, %s137
    %s141 = sphi 0, %s140
    %s157 = sphi 0, %s141
  $region4: #{afrcnn_block_forward.16} parent=0 // loop_header_branch
    %15 = sbr.rel (%p13) target = $region8
  $region5: #{afrcnn_block_forward.16} parent=0 // loop_body
    %s17 = ssub.s32 %s12, 1
    %s18 = ssub.s32 %s12, 2
    %s19 = sadd.s32 %s12, 1
    %s20 = ssub.s32 %s12, %s19
    %p21 = scmp.eq.s32.totalorder %s20, 0
    %s23 = sadd.s32 %s22, 1
    %s24 = scalar_select %p21, %s22, %s23
    %p27 = pneg %p21
    %p28 = scmp.eq.s32.totalorder %s12, 1
    %p29 = por %p27, %p28
    %p30 = scmp.ne.s32.totalorder %s22, %s25
    %p31 = scmp.eq.s32.totalorder %s12, 0
    %p32 = por %p30, %p31
    %p33 = scmp.ne.s32.totalorder %s22, %s25
    %p34 = scmp.eq.s32.totalorder %s17, 1
    %p35 = por %p33, %p34
    %p36 = scmp.ne.s32.totalorder %s25, %s26
    %p37 = scmp.eq.s32.totalorder %s17, 0
    %p38 = por %p36, %p37
    %p39 = scmp.ne.s32.totalorder %s25, %s26
    %p40 = scmp.eq.s32.totalorder %s18, 1
    %p41 = por %p39, %p40
    %p43 = scmp.ne.s32.totalorder %s26, %s42
    %p44 = scmp.eq.s32.totalorder %s18, 0
    %p45 = por %p43, %p44
    %s46 = ssub.s32 %s12, %s19
    %p47 = scmp.eq.s32.totalorder %s46, 0
    %s49 = sadd.s32 %s48, 1
    %s50 = scalar_select %p47, %s48, %s49
    %p53 = pneg %p47
    %p54 = scmp.eq.s32.totalorder %s12, 1
    %p55 = por %p53, %p54
    %p56 = scmp.ne.s32.totalorder %s48, %s51
    %p57 = scmp.eq.s32.totalorder %s12, 0
    %p58 = por %p56, %p57
    %p59 = scmp.ne.s32.totalorder %s48, %s51
    %p60 = scmp.eq.s32.totalorder %s17, 1
    %p61 = por %p59, %p60
    %p62 = scmp.ne.s32.totalorder %s51, %s52
    %p63 = scmp.eq.s32.totalorder %s17, 0
    %p64 = por %p62, %p63
    %p65 = scmp.ne.s32.totalorder %s51, %s52
    %p66 = scmp.eq.s32.totalorder %s18, 1
    %p67 = por %p65, %p66
    %p69 = scmp.ne.s32.totalorder %s52, %s68
    %p70 = scmp.eq.s32.totalorder %s18, 0
    %p71 = por %p69, %p70
    %s73 = sadd.s32 %s72, 1
    %p76 = scmp.eq.s32.totalorder %s12, 1
    %p77 = scmp.ne.s32.totalorder %s72, %s74
    %p78 = scmp.eq.s32.totalorder %s12, 0
    %p79 = por %p77, %p78
    %p80 = scmp.ne.s32.totalorder %s72, %s74
    %p81 = scmp.eq.s32.totalorder %s17, 1
    %p82 = por %p80, %p81
    %p83 = scmp.ne.s32.totalorder %s74, %s75
    %p84 = scmp.eq.s32.totalorder %s17, 0
    %p85 = por %p83, %p84
    %p86 = scmp.ne.s32.totalorder %s74, %s75
    %p87 = scmp.eq.s32.totalorder %s18, 1
    %p88 = por %p86, %p87
    %p90 = scmp.ne.s32.totalorder %s75, %s89
    %p91 = scmp.eq.s32.totalorder %s18, 0
    %p92 = por %p90, %p91
    %s94 = sadd.s32 %s93, 1
    %p97 = scmp.eq.s32.totalorder %s12, 1
    %p98 = scmp.ne.s32.totalorder %s93, %s95
    %p99 = scmp.eq.s32.totalorder %s12, 0
    %p100 = por %p98, %p99
    %p101 = scmp.ne.s32.totalorder %s93, %s95
    %p102 = scmp.eq.s32.totalorder %s17, 1
    %p103 = por %p101, %p102
    %p104 = scmp.ne.s32.totalorder %s95, %s96
    %p105 = scmp.eq.s32.totalorder %s17, 0
    %p106 = por %p104, %p105
    %p107 = scmp.ne.s32.totalorder %s95, %s96
    %p108 = scmp.eq.s32.totalorder %s18, 1
    %p109 = por %p107, %p108
    %p111 = scmp.ne.s32.totalorder %s96, %s110
    %p112 = scmp.eq.s32.totalorder %s18, 0
    %p113 = por %p111, %p112
    %s115 = sadd.s32 %s114, 1
    %p118 = scmp.eq.s32.totalorder %s12, 1
    %p119 = scmp.ne.s32.totalorder %s114, %s116
    %p120 = scmp.eq.s32.totalorder %s12, 0
    %p121 = por %p119, %p120
    %p122 = scmp.ne.s32.totalorder %s114, %s116
    %p123 = scmp.eq.s32.totalorder %s17, 1
    %p124 = por %p122, %p123
    %p125 = scmp.ne.s32.totalorder %s116, %s117
    %p126 = scmp.eq.s32.totalorder %s17, 0
    %p127 = por %p125, %p126
    %p128 = scmp.ne.s32.totalorder %s116, %s117
    %p129 = scmp.eq.s32.totalorder %s18, 1
    %p130 = por %p128, %p129
    %p132 = scmp.ne.s32.totalorder %s117, %s131
    %p133 = scmp.eq.s32.totalorder %s18, 0
    %p134 = por %p132, %p133
    %s135 = ssub.s32 %s12, %s19
    %p136 = scmp.eq.s32.totalorder %s135, 0
    %s138 = sadd.s32 %s137, 1
    %s139 = scalar_select %p136, %s137, %s138
    %p142 = pneg %p136
    %p143 = scmp.eq.s32.totalorder %s12, 1
    %p144 = por %p142, %p143
    %p145 = scmp.ne.s32.totalorder %s137, %s140
    %p146 = scmp.eq.s32.totalorder %s12, 0
    %p147 = por %p145, %p146
    %p148 = scmp.ne.s32.totalorder %s137, %s140
    %p149 = scmp.eq.s32.totalorder %s17, 1
    %p150 = por %p148, %p149
    %p151 = scmp.ne.s32.totalorder %s140, %s141
    %p152 = scmp.eq.s32.totalorder %s17, 0
    %p153 = por %p151, %p152
    %p154 = scmp.ne.s32.totalorder %s140, %s141
    %p155 = scmp.eq.s32.totalorder %s18, 1
    %p156 = por %p154, %p155
    %p158 = scmp.ne.s32.totalorder %s141, %s157
    %p159 = scmp.eq.s32.totalorder %s18, 0
    %p160 = por %p158, %p159
    %p161 = scmp.le.s32.totalorder 1, %s12
    %p162 = scmp.lt.s32.totalorder %s12, 3
    %p163 = pnand %p161, %p162
    %p164 = pneg %p163
    // Predicated region
    $region9: #{afrcnn_block_forward.16} parent=5 // pred_check
      _
    $region10: #{afrcnn_block_forward.16} parent=5 // pred_check_branch
      %166 = sbr.rel (%p163) target = $region12
    $region11: #{afrcnn_block_forward.16} parent=5 // pred_region
      %s167 = ssub.s32 %s12, 1
      // Predicated region
      $region13: #{afrcnn_block_forward.16} parent=11 // pred_check
        %p168 = pneg %p85
      $region14: #{afrcnn_block_forward.16} parent=11 // pred_check_branch
        %170 = sbr.rel (%p168) target = $region16
      $region15: #{afrcnn_block_forward.16} parent=11 // pred_region
        _
      $region16: #{afrcnn_block_forward.16} parent=11 // pred_fallthru
        _
      // Predicated region
      $region17: #{afrcnn_block_forward.16} parent=11 // pred_check
        %p171 = pneg %p106
      $region18: #{afrcnn_block_forward.16} parent=11 // pred_check_branch
        %173 = sbr.rel (%p171) target = $region20
      $region19: #{afrcnn_block_forward.16} parent=11 // pred_region
        _
      $region20: #{afrcnn_block_forward.16} parent=11 // pred_fallthru
        _
      // Predicated region
      $region21: #{afrcnn_block_forward.16} parent=11 // pred_check
        %p174 = pneg %p127
      $region22: #{afrcnn_block_forward.16} parent=11 // pred_check_branch
        %176 = sbr.rel (%p174) target = $region24
      $region23: #{afrcnn_block_forward.16} parent=11 // pred_region
        _
      $region24: #{afrcnn_block_forward.16} parent=11 // pred_fallthru
        _
    $region12: #{afrcnn_block_forward.16} parent=5 // pred_fallthru
      _
    %p177 = scmp.lt.s32.totalorder %s12, 2
    // Predicated region
    $region25: #{afrcnn_block_forward.16} parent=5 // pred_check
      %p178 = pneg %p177
    $region26: #{afrcnn_block_forward.16} parent=5 // pred_check_branch
      %180 = sbr.rel (%p178) target = $region28
    $region27: #{afrcnn_block_forward.16} parent=5 // pred_region
      // Predicated region
      $region29: #{afrcnn_block_forward.16} parent=27 // pred_check
        %p181 = pneg %p32
      $region30: #{afrcnn_block_forward.16} parent=27 // pred_check_branch
        %183 = sbr.rel (%p181) target = $region32
      $region31: #{afrcnn_block_forward.16} parent=27 // pred_region
        %p184 = scmp.lt.s32.totalorder %s12, 1
        %s185 = scalar_select %p184, %s12, 1
        %s186 = smul.addr %s185, 4
        %s187 = smul.addr %s186, 4
        %s188 = scalar_lea.vmem %s0, %s187
      $region32: #{afrcnn_block_forward.16} parent=27 // pred_fallthru
        _
      // Predicated region
      $region33: #{afrcnn_block_forward.16} parent=27 // pred_check
        %p189 = pneg %p58
      $region34: #{afrcnn_block_forward.16} parent=27 // pred_check_branch
        %191 = sbr.rel (%p189) target = $region36
      $region35: #{afrcnn_block_forward.16} parent=27 // pred_region
        %p192 = scmp.lt.s32.totalorder %s12, 1
        %s193 = scalar_select %p192, %s12, 1
        %s194 = smul.addr %s193, 4
        %s195 = smul.addr %s194, 4
        %s196 = scalar_lea.vmem %s1, %s195
      $region36: #{afrcnn_block_forward.16} parent=27 // pred_fallthru
        _
    $region28: #{afrcnn_block_forward.16} parent=5 // pred_fallthru
      _
    %p197 = scmp.le.s32.totalorder 1, %s12
    %p198 = scmp.lt.s32.totalorder %s12, 3
    %p199 = pnand %p197, %p198
    %p200 = pneg %p199
    // Predicated region
    $region37: #{afrcnn_block_forward.16} parent=5 // pred_check
      _
    $region38: #{afrcnn_block_forward.16} parent=5 // pred_check_branch
      %202 = sbr.rel (%p199) target = $region40
    $region39: #{afrcnn_block_forward.16} parent=5 // pred_region
      %s203 = ssub.s32 %s12, 1
      %p204 = scmp.lt.s32.totalorder %s17, 1
      %s205 = scalar_select %p204, %s17, 1
      %s206 = smul.addr %s205, 4
      %s207 = smul.addr %s206, 4
      %s208 = scalar_lea.vmem %s0, %s207
      %p209 = pneg %p38
      %p210 = pneg %p35
      %p211 = scmp.lt.s32.totalorder %s17, 1
      %s212 = scalar_select %p211, %s17, 1
      %s213 = smul.addr %s212, 4
      %s214 = smul.addr %s213, 4
      %s215 = scalar_lea.vmem %s1, %s214
      %p216 = pneg %p64
      %p217 = pneg %p61
      %p218 = pneg %p85
      %p219 = pneg %p82
      %p220 = pneg %p106
      %p221 = pneg %p103
      %p222 = pneg %p127
      %p223 = pneg %p124
      %p224 = pneg %p153
      %p225 = pneg %p150
      %p226 = scmp.lt.s32.totalorder %s17, 1
      %s227 = scalar_select %p226, %s17, 1
      %s228 = smul.addr %s227, 4
      %s229 = smul.addr %s228, 4
      %s230 = scalar_lea.vmem %s5, %s229
      %p231 = scmp.lt.s32.totalorder %s17, 1
      %s232 = scalar_select %p231, %s17, 1
      %s233 = smul.addr %s232, 4
      %s234 = smul.addr %s233, 4
      %s235 = scalar_lea.vmem %s0, %s234
      %p236 = scmp.lt.s32.totalorder %s17, 1
      %s237 = scalar_select %p236, %s17, 1
      %s238 = smul.addr %s237, 4
      %s239 = smul.addr %s238, 4
      %s240 = scalar_lea.vmem %s1, %s239
      %p241 = scmp.lt.s32.totalorder %s17, 1
      %s242 = scalar_select %p241, %s17, 1
      %s243 = smul.addr %s242, 4
      %s244 = smul.addr %s243, 4
      %s245 = scalar_lea.vmem %s5, %s244
      %v246 = vld [vmem:[%s235] sm:$0xf]
      %v247 = vld [vmem:[%s235 + $0x4] sm:$0xf]
      %v248 = vld [vmem:[%s235 + $0x8] sm:$0xf]
      %v249 = vld [vmem:[%s235 + $0xc] sm:$0xf]
      %v250 = vunpack.c.l.bf16 %v246
      %v251 = vunpack.c.l.bf16 %v247
      %v252 = vunpack.c.l.bf16 %v248
      %v253 = vunpack.c.l.bf16 %v249
      %v254 = vld [vmem:[%s240] sm:$0xf]
      %v255 = vld [vmem:[%s240 + $0x4] sm:$0xf]
      %v256 = vld [vmem:[%s240 + $0x8] sm:$0xf]
      %v257 = vld [vmem:[%s240 + $0xc] sm:$0xf]
      %v258 = vunpack.c.l.bf16 %v254
      %v259 = vunpack.c.l.bf16 %v255
      %v260 = vunpack.c.l.bf16 %v256
      %v261 = vunpack.c.l.bf16 %v257
      %v262 = vadd.f32 %v250, %v258
      %v263 = vadd.f32 %v251, %v259
      %v264 = vadd.f32 %v252, %v260
      %v265 = vadd.f32 %v253, %v261
      %v266 = vld [vmem:[%s2] sm:$0xff]
      %v267 = vld [vmem:[%s2 + $0x8] sm:$0xff]
      %v268 = vld [vmem:[%s2 + $0x10] sm:$0xff]
      %v269 = vld [vmem:[%s2 + $0x18] sm:$0xff]
      %v270 = vld [vmem:[%s3] sm:$0xff]
      %v271 = vld [vmem:[%s3 + $0x8] sm:$0xff]
      %v272 = vld [vmem:[%s3 + $0x10] sm:$0xff]
      %v273 = vld [vmem:[%s3 + $0x18] sm:$0xff]
      %vm274 = vcmask 261120
      %v275 = vsel %vm274, %v262, 0.0
      %v276 = vsel %vm274, %v263, 0.0
      %v277 = vadd.f32 %v275, %v276
      %v278 = vsel %vm274, %v264, 0.0
      %v279 = vadd.f32 %v277, %v278
      %v280 = vsel %vm274, %v265, 0.0
      %v281 = vadd.f32 %v279, %v280
      %282 = vadd.xlane.f32.xlu0 %v281
      %v283 = vpop.xlane.xlu0 %282
      %v284 = vrot.slane %v283, 4
      %v285 = vadd.f32 %v283, %v284
      %v286 = vrot.slane %v285, 2
      %v287 = vadd.f32 %v285, %v286
      %v288 = vrot.slane %v287, 1
      %v289 = vadd.f32 %v287, %v288
      %s290 = vtos %v289
      %v291 = vmul.f32 %v262, %v262
      %v292 = vmul.f32 %v263, %v263
      %v293 = vmul.f32 %v264, %v264
      %v294 = vmul.f32 %v265, %v265
      %v295 = vsel %vm274, %v291, 0.0
      %v296 = vsel %vm274, %v292, 0.0
      %v297 = vadd.f32 %v295, %v296
      %v298 = vsel %vm274, %v293, 0.0
      %v299 = vadd.f32 %v297, %v298
      %v300 = vsel %vm274, %v294, 0.0
      %v301 = vadd.f32 %v299, %v300
      %302 = vadd.xlane.f32.xlu0 %v301
      %v303 = vpop.xlane.xlu0 %302
      %v304 = vrot.slane %v303, 4
      %v305 = vadd.f32 %v303, %v304
      %v306 = vrot.slane %v305, 2
      %v307 = vadd.f32 %v305, %v306
      %v308 = vrot.slane %v307, 1
      %v309 = vadd.f32 %v307, %v308
      %s310 = vtos %v309
      %v311 = vrcp.pop 1024.0
      %s312 = vtos %v311
      %s313 = smul.f32 %s290, %s312
      %v314 = vrcp.pop 1024.0
      %s315 = vtos %v314
      %s316 = smul.f32 %s310, %s315
      %s317 = smul.f32 %s313, %s313
      %s318 = ssub.f32 %s316, %s317
      %s319 = smax.f32 %s318, 0.0
      %v320 = vstv %s313
      %v321 = vsub.f32 %v262, %v320
      %v322 = vsub.f32 %v263, %v320
      %v323 = vsub.f32 %v264, %v320
      %v324 = vsub.f32 %v265, %v320
      %s325 = sadd.f32 %s319, 1e-08
      %v326 = vstv %s325
      %v327 = vrsqrt.pop %v326
      %s328 = vtos %v327
      %v329 = vstv %s328
      %v330 = vmul.f32 %v321, %v329
      %v331 = vmul.f32 %v322, %v329
      %v332 = vmul.f32 %v323, %v329
      %v333 = vmul.f32 %v324, %v329
      %335 = vset.pattern.permute.xlu0 0
      %336 = vperm.xlu0 %335, %v266
      %v337 = vpop.permute.xlu0 %336
      %340 = vset.pattern.permute.xlu0 0
      %341 = vperm.xlu0 %340, %v267
      %v342 = vpop.permute.xlu0 %341
      %345 = vset.pattern.permute.xlu0 0
      %346 = vperm.xlu0 %345, %v268
      %v347 = vpop.permute.xlu0 %346
      %350 = vset.pattern.permute.xlu0 0
      %351 = vperm.xlu0 %350, %v269
      %v352 = vpop.permute.xlu0 %351
      %v354 = vmul.f32 %v330, %v337
      %v355 = vmul.f32 %v331, %v342
      %v356 = vmul.f32 %v332, %v347
      %v357 = vmul.f32 %v333, %v352
      %359 = vset.pattern.permute.xlu0 0
      %360 = vperm.xlu0 %359, %v270
      %v361 = vpop.permute.xlu0 %360
      %364 = vset.pattern.permute.xlu0 0
      %365 = vperm.xlu0 %364, %v271
      %v366 = vpop.permute.xlu0 %365
      %369 = vset.pattern.permute.xlu0 0
      %370 = vperm.xlu0 %369, %v272
      %v371 = vpop.permute.xlu0 %370
      %374 = vset.pattern.permute.xlu0 0
      %375 = vperm.xlu0 %374, %v273
      %v376 = vpop.permute.xlu0 %375
      %v378 = vadd.f32 %v354, %v361
      %v379 = vadd.f32 %v355, %v366
      %v380 = vadd.f32 %v356, %v371
      %v381 = vadd.f32 %v357, %v376
      %s382 = sld [smem:[#allocation2]]
      %vm383 = vcmp.ge.f32.partialorder %v378, 0.0
      %vm384 = vcmp.ge.f32.partialorder %v379, 0.0
      %vm385 = vcmp.ge.f32.partialorder %v380, 0.0
      %vm386 = vcmp.ge.f32.partialorder %v381, 0.0
      %v387 = vstv %s382
      %v388 = vmul.f32 %v387, %v378
      %v389 = vmul.f32 %v387, %v379
      %v390 = vmul.f32 %v387, %v380
      %v391 = vmul.f32 %v387, %v381
      %v392 = vsel %vm383, %v378, %v388
      %v393 = vsel %vm384, %v379, %v389
      %v394 = vsel %vm385, %v380, %v390
      %v395 = vsel %vm386, %v381, %v391
      %v396 = vpack.c.bf16 %v393, %v392
      %v397 = vpack.c.bf16 %v395, %v394
      %v400 = vunpack.c.l.b16 %v396
      %v401 = vunpack.c.h.b16 %v396
      %v402 = vunpack.c.l.b16 %v397
      %v403 = vunpack.c.h.b16 %v397
      %v404 = vpack.c.b16 %v400, %v400
      %v405 = vpack.c.b16 %v401, %v401
      %v406 = vpack.c.b16 %v402, %v402
      %v407 = vpack.c.b16 %v403, %v403
      %vm412 = vcmask 257024
      %413 = vst.msk [vmem:[%s245] sm:$0xf] %vm412, %v404
      %414 = vst.msk [vmem:[%s245 + $0x4] sm:$0xf] %vm412, %v405
      %415 = vst.msk [vmem:[%s245 + $0x8] sm:$0xf] %vm412, %v406
      %416 = vst.msk [vmem:[%s245 + $0xc] sm:$0xf] %vm412, %v407
      %p417 = scmp.lt.s32.totalorder %s17, 1
      %s418 = scalar_select %p417, %s17, 1
      %s419 = smul.addr %s418, 4
      %s420 = smul.addr %s419, 4
      %s421 = scalar_lea.vmem %s5, %s420
      // Predicated region
      $region41: #{afrcnn_block_forward.16} parent=39 // pred_check
        %p422 = pneg %p150
      $region42: #{afrcnn_block_forward.16} parent=39 // pred_check_branch
        %424 = sbr.rel (%p422) target = $region44
      $region43: #{afrcnn_block_forward.16} parent=39 // pred_region
        _
      $region44: #{afrcnn_block_forward.16} parent=39 // pred_fallthru
        _
    $region40: #{afrcnn_block_forward.16} parent=5 // pred_fallthru
      _
    %p425 = scmp.le.s32.totalorder 2, %s12
    // Predicated region
    $region45: #{afrcnn_block_forward.16} parent=5 // pred_check
      %p426 = pneg %p425
    $region46: #{afrcnn_block_forward.16} parent=5 // pred_check_branch
      %428 = sbr.rel (%p426) target = $region48
    $region47: #{afrcnn_block_forward.16} parent=5 // pred_region
      %s429 = ssub.s32 %s12, 2
      // Predicated region
      $region49: #{afrcnn_block_forward.16} parent=47 // pred_check
        %p430 = pneg %p156
      $region50: #{afrcnn_block_forward.16} parent=47 // pred_check_branch
        %432 = sbr.rel (%p430) target = $region52
      $region51: #{afrcnn_block_forward.16} parent=47 // pred_region
        %p433 = scmp.lt.s32.totalorder %s18, 1
        %s434 = scalar_select %p433, %s18, 1
        %s435 = smul.addr %s434, 4
        %s436 = smul.addr %s435, 4
        %s437 = scalar_lea.vmem %s5, %s436
      $region52: #{afrcnn_block_forward.16} parent=47 // pred_fallthru
        _
    $region48: #{afrcnn_block_forward.16} parent=5 // pred_fallthru
      _
  $region6: #{afrcnn_block_forward.16} parent=0 // loop_footer
    %s16 = sadd.s32 1, %s12
  $region7: #{afrcnn_block_forward.16} parent=0 // loop_footer_branch
    %11 = sbr.rel target = $region3
  $region8: #{afrcnn_block_forward.16} parent=0 // loop_exit
    _

// kernel: afrcnn_block_forward.18
$region0: #{afrcnn_block_forward.18}
  #allocation0 [shape = 'u32[]', space=smem, size = 0x4, offset = 0x4, fixed_abs, tag = 'smem constant byte address 0x4 - core index']
  #allocation1 [shape = 'u32[144,128]{1,0:T(1,128)}', space=vmem, size = 0x12000, scoped, tag = 'internal scratch']
  #allocation2 [shape = 'f32[1]{0:T(128)S(6)}', space=smem, size = 0x200, scoped, tag = 'scoped memory for afrcnn_block_forward.18']
  %s0 = inlined_call_operand.vmem [shape: bf16[2,32,8], index: 0, kind: input, shape index: {}]
  %s1 = inlined_call_operand.vmem [shape: bf16[2,32,8], index: 1, kind: input, shape index: {}]
  %s2 = inlined_call_operand.vmem [shape: bf16[2,32,8], index: 2, kind: input, shape index: {}]
  %s3 = inlined_call_operand.vmem [shape: f32[32,1], index: 3, kind: input, shape index: {}]
  %s4 = inlined_call_operand.vmem [shape: f32[32,1], index: 4, kind: input, shape index: {}]
  %s5 = inlined_call_operand.<no memory space> [shape: f32[1], index: 5, kind: input, shape index: {}]
  %s6 = inlined_call_operand.vmem [shape: bf16[2,32,8], index: 6, kind: output, shape index: {}]
  %s7 = sld [smem:[#allocation0]]
  $region57: #{afrcnn_block_forward.18} parent=0
    _
  %s9 = ssub.s32 1, %s7
  %s10 = scalar_select 0, %s9, %s7
  %11 = sst [smem:[#allocation2]] %s5
  loop: start=0, step=1, limit=4
  $region2: #{afrcnn_block_forward.18} parent=0 // loop_pre_header
    _
  $region3: #{afrcnn_block_forward.18} parent=0 // loop_header
    %s13 = sphi 0, %s17
    %p14 = scmp.ge.s32.totalorder %s13, 4
    %s23 = sphi 0, %s25
    %s26 = sphi 0, %s23
    %s27 = sphi 0, %s26
    %s43 = sphi 0, %s27
    %s49 = sphi 0, %s51
    %s52 = sphi 0, %s49
    %s53 = sphi 0, %s52
    %s69 = sphi 0, %s53
    %s75 = sphi 0, %s77
    %s78 = sphi 0, %s75
    %s79 = sphi 0, %s78
    %s95 = sphi 0, %s79
    %s99 = sphi 0, %s99
    %s101 = sphi 0, %s99
    %s102 = sphi 0, %s101
    %s116 = sphi 0, %s102
    %s120 = sphi 0, %s120
    %s122 = sphi 0, %s120
    %s123 = sphi 0, %s122
    %s137 = sphi 0, %s123
    %s141 = sphi 0, %s141
    %s143 = sphi 0, %s141
    %s144 = sphi 0, %s143
    %s158 = sphi 0, %s144
    %s164 = sphi 0, %s166
    %s167 = sphi 0, %s164
    %s168 = sphi 0, %s167
    %s184 = sphi 0, %s168
  $region4: #{afrcnn_block_forward.18} parent=0 // loop_header_branch
    %16 = sbr.rel (%p14) target = $region8
  $region5: #{afrcnn_block_forward.18} parent=0 // loop_body
    %s18 = ssub.s32 %s13, 1
    %s19 = ssub.s32 %s13, 2
    %s20 = sadd.s32 %s13, 1
    %s21 = ssub.s32 %s13, %s20
    %p22 = scmp.eq.s32.totalorder %s21, 0
    %s24 = sadd.s32 %s23, 1
    %s25 = scalar_select %p22, %s23, %s24
    %p28 = pneg %p22
    %p29 = scmp.eq.s32.totalorder %s13, 1
    %p30 = por %p28, %p29
    %p31 = scmp.ne.s32.totalorder %s23, %s26
    %p32 = scmp.eq.s32.totalorder %s13, 0
    %p33 = por %p31, %p32
    %p34 = scmp.ne.s32.totalorder %s23, %s26
    %p35 = scmp.eq.s32.totalorder %s18, 1
    %p36 = por %p34, %p35
    %p37 = scmp.ne.s32.totalorder %s26, %s27
    %p38 = scmp.eq.s32.totalorder %s18, 0
    %p39 = por %p37, %p38
    %p40 = scmp.ne.s32.totalorder %s26, %s27
    %p41 = scmp.eq.s32.totalorder %s19, 1
    %p42 = por %p40, %p41
    %p44 = scmp.ne.s32.totalorder %s27, %s43
    %p45 = scmp.eq.s32.totalorder %s19, 0
    %p46 = por %p44, %p45
    %s47 = ssub.s32 %s13, %s20
    %p48 = scmp.eq.s32.totalorder %s47, 0
    %s50 = sadd.s32 %s49, 1
    %s51 = scalar_select %p48, %s49, %s50
    %p54 = pneg %p48
    %p55 = scmp.eq.s32.totalorder %s13, 1
    %p56 = por %p54, %p55
    %p57 = scmp.ne.s32.totalorder %s49, %s52
    %p58 = scmp.eq.s32.totalorder %s13, 0
    %p59 = por %p57, %p58
    %p60 = scmp.ne.s32.totalorder %s49, %s52
    %p61 = scmp.eq.s32.totalorder %s18, 1
    %p62 = por %p60, %p61
    %p63 = scmp.ne.s32.totalorder %s52, %s53
    %p64 = scmp.eq.s32.totalorder %s18, 0
    %p65 = por %p63, %p64
    %p66 = scmp.ne.s32.totalorder %s52, %s53
    %p67 = scmp.eq.s32.totalorder %s19, 1
    %p68 = por %p66, %p67
    %p70 = scmp.ne.s32.totalorder %s53, %s69
    %p71 = scmp.eq.s32.totalorder %s19, 0
    %p72 = por %p70, %p71
    %s73 = ssub.s32 %s13, %s20
    %p74 = scmp.eq.s32.totalorder %s73, 0
    %s76 = sadd.s32 %s75, 1
    %s77 = scalar_select %p74, %s75, %s76
    %p80 = pneg %p74
    %p81 = scmp.eq.s32.totalorder %s13, 1
    %p82 = por %p80, %p81
    %p83 = scmp.ne.s32.totalorder %s75, %s78
    %p84 = scmp.eq.s32.totalorder %s13, 0
    %p85 = por %p83, %p84
    %p86 = scmp.ne.s32.totalorder %s75, %s78
    %p87 = scmp.eq.s32.totalorder %s18, 1
    %p88 = por %p86, %p87
    %p89 = scmp.ne.s32.totalorder %s78, %s79
    %p90 = scmp.eq.s32.totalorder %s18, 0
    %p91 = por %p89, %p90
    %p92 = scmp.ne.s32.totalorder %s78, %s79
    %p93 = scmp.eq.s32.totalorder %s19, 1
    %p94 = por %p92, %p93
    %p96 = scmp.ne.s32.totalorder %s79, %s95
    %p97 = scmp.eq.s32.totalorder %s19, 0
    %p98 = por %p96, %p97
    %s100 = sadd.s32 %s99, 1
    %p103 = scmp.eq.s32.totalorder %s13, 1
    %p104 = scmp.ne.s32.totalorder %s99, %s101
    %p105 = scmp.eq.s32.totalorder %s13, 0
    %p106 = por %p104, %p105
    %p107 = scmp.ne.s32.totalorder %s99, %s101
    %p108 = scmp.eq.s32.totalorder %s18, 1
    %p109 = por %p107, %p108
    %p110 = scmp.ne.s32.totalorder %s101, %s102
    %p111 = scmp.eq.s32.totalorder %s18, 0
    %p112 = por %p110, %p111
    %p113 = scmp.ne.s32.totalorder %s101, %s102
    %p114 = scmp.eq.s32.totalorder %s19, 1
    %p115 = por %p113, %p114
    %p117 = scmp.ne.s32.totalorder %s102, %s116
    %p118 = scmp.eq.s32.totalorder %s19, 0
    %p119 = por %p117, %p118
    %s121 = sadd.s32 %s120, 1
    %p124 = scmp.eq.s32.totalorder %s13, 1
    %p125 = scmp.ne.s32.totalorder %s120, %s122
    %p126 = scmp.eq.s32.totalorder %s13, 0
    %p127 = por %p125, %p126
    %p128 = scmp.ne.s32.totalorder %s120, %s122
    %p129 = scmp.eq.s32.totalorder %s18, 1
    %p130 = por %p128, %p129
    %p131 = scmp.ne.s32.totalorder %s122, %s123
    %p132 = scmp.eq.s32.totalorder %s18, 0
    %p133 = por %p131, %p132
    %p134 = scmp.ne.s32.totalorder %s122, %s123
    %p135 = scmp.eq.s32.totalorder %s19, 1
    %p136 = por %p134, %p135
    %p138 = scmp.ne.s32.totalorder %s123, %s137
    %p139 = scmp.eq.s32.totalorder %s19, 0
    %p140 = por %p138, %p139
    %s142 = sadd.s32 %s141, 1
    %p145 = scmp.eq.s32.totalorder %s13, 1
    %p146 = scmp.ne.s32.totalorder %s141, %s143
    %p147 = scmp.eq.s32.totalorder %s13, 0
    %p148 = por %p146, %p147
    %p149 = scmp.ne.s32.totalorder %s141, %s143
    %p150 = scmp.eq.s32.totalorder %s18, 1
    %p151 = por %p149, %p150
    %p152 = scmp.ne.s32.totalorder %s143, %s144
    %p153 = scmp.eq.s32.totalorder %s18, 0
    %p154 = por %p152, %p153
    %p155 = scmp.ne.s32.totalorder %s143, %s144
    %p156 = scmp.eq.s32.totalorder %s19, 1
    %p157 = por %p155, %p156
    %p159 = scmp.ne.s32.totalorder %s144, %s158
    %p160 = scmp.eq.s32.totalorder %s19, 0
    %p161 = por %p159, %p160
    %s162 = ssub.s32 %s13, %s20
    %p163 = scmp.eq.s32.totalorder %s162, 0
    %s165 = sadd.s32 %s164, 1
    %s166 = scalar_select %p163, %s164, %s165
    %p169 = pneg %p163
    %p170 = scmp.eq.s32.totalorder %s13, 1
    %p171 = por %p169, %p170
    %p172 = scmp.ne.s32.totalorder %s164, %s167
    %p173 = scmp.eq.s32.totalorder %s13, 0
    %p174 = por %p172, %p173
    %p175 = scmp.ne.s32.totalorder %s164, %s167
    %p176 = scmp.eq.s32.totalorder %s18, 1
    %p177 = por %p175, %p176
    %p178 = scmp.ne.s32.totalorder %s167, %s168
    %p179 = scmp.eq.s32.totalorder %s18, 0
    %p180 = por %p178, %p179
    %p181 = scmp.ne.s32.totalorder %s167, %s168
    %p182 = scmp.eq.s32.totalorder %s19, 1
    %p183 = por %p181, %p182
    %p185 = scmp.ne.s32.totalorder %s168, %s184
    %p186 = scmp.eq.s32.totalorder %s19, 0
    %p187 = por %p185, %p186
    %p188 = scmp.le.s32.totalorder 1, %s13
    %p189 = scmp.lt.s32.totalorder %s13, 3
    %p190 = pnand %p188, %p189
    %p191 = pneg %p190
    // Predicated region
    $region9: #{afrcnn_block_forward.18} parent=5 // pred_check
      _
    $region10: #{afrcnn_block_forward.18} parent=5 // pred_check_branch
      %193 = sbr.rel (%p190) target = $region12
    $region11: #{afrcnn_block_forward.18} parent=5 // pred_region
      %s194 = ssub.s32 %s13, 1
      // Predicated region
      $region13: #{afrcnn_block_forward.18} parent=11 // pred_check
        %p195 = pneg %p112
      $region14: #{afrcnn_block_forward.18} parent=11 // pred_check_branch
        %197 = sbr.rel (%p195) target = $region16
      $region15: #{afrcnn_block_forward.18} parent=11 // pred_region
        _
      $region16: #{afrcnn_block_forward.18} parent=11 // pred_fallthru
        _
      // Predicated region
      $region17: #{afrcnn_block_forward.18} parent=11 // pred_check
        %p198 = pneg %p133
      $region18: #{afrcnn_block_forward.18} parent=11 // pred_check_branch
        %200 = sbr.rel (%p198) target = $region20
      $region19: #{afrcnn_block_forward.18} parent=11 // pred_region
        _
      $region20: #{afrcnn_block_forward.18} parent=11 // pred_fallthru
        _
      // Predicated region
      $region21: #{afrcnn_block_forward.18} parent=11 // pred_check
        %p201 = pneg %p154
      $region22: #{afrcnn_block_forward.18} parent=11 // pred_check_branch
        %203 = sbr.rel (%p201) target = $region24
      $region23: #{afrcnn_block_forward.18} parent=11 // pred_region
        _
      $region24: #{afrcnn_block_forward.18} parent=11 // pred_fallthru
        _
    $region12: #{afrcnn_block_forward.18} parent=5 // pred_fallthru
      _
    %p204 = scmp.lt.s32.totalorder %s13, 2
    // Predicated region
    $region25: #{afrcnn_block_forward.18} parent=5 // pred_check
      %p205 = pneg %p204
    $region26: #{afrcnn_block_forward.18} parent=5 // pred_check_branch
      %207 = sbr.rel (%p205) target = $region28
    $region27: #{afrcnn_block_forward.18} parent=5 // pred_region
      // Predicated region
      $region29: #{afrcnn_block_forward.18} parent=27 // pred_check
        %p208 = pneg %p33
      $region30: #{afrcnn_block_forward.18} parent=27 // pred_check_branch
        %210 = sbr.rel (%p208) target = $region32
      $region31: #{afrcnn_block_forward.18} parent=27 // pred_region
        %p211 = scmp.lt.s32.totalorder %s13, 1
        %s212 = scalar_select %p211, %s13, 1
        %s213 = smul.addr %s212, 4
        %s214 = smul.addr %s213, 4
        %s215 = scalar_lea.vmem %s0, %s214
      $region32: #{afrcnn_block_forward.18} parent=27 // pred_fallthru
        _
      // Predicated region
      $region33: #{afrcnn_block_forward.18} parent=27 // pred_check
        %p216 = pneg %p59
      $region34: #{afrcnn_block_forward.18} parent=27 // pred_check_branch
        %218 = sbr.rel (%p216) target = $region36
      $region35: #{afrcnn_block_forward.18} parent=27 // pred_region
        %p219 = scmp.lt.s32.totalorder %s13, 1
        %s220 = scalar_select %p219, %s13, 1
        %s221 = smul.addr %s220, 4
        %s222 = smul.addr %s221, 4
        %s223 = scalar_lea.vmem %s1, %s222
      $region36: #{afrcnn_block_forward.18} parent=27 // pred_fallthru
        _
      // Predicated region
      $region37: #{afrcnn_block_forward.18} parent=27 // pred_check
        %p224 = pneg %p85
      $region38: #{afrcnn_block_forward.18} parent=27 // pred_check_branch
        %226 = sbr.rel (%p224) target = $region40
      $region39: #{afrcnn_block_forward.18} parent=27 // pred_region
        %p227 = scmp.lt.s32.totalorder %s13, 1
        %s228 = scalar_select %p227, %s13, 1
        %s229 = smul.addr %s228, 4
        %s230 = smul.addr %s229, 4
        %s231 = scalar_lea.vmem %s2, %s230
      $region40: #{afrcnn_block_forward.18} parent=27 // pred_fallthru
        _
    $region28: #{afrcnn_block_forward.18} parent=5 // pred_fallthru
      _
    %p232 = scmp.le.s32.totalorder 1, %s13
    %p233 = scmp.lt.s32.totalorder %s13, 3
    %p234 = pnand %p232, %p233
    %p235 = pneg %p234
    // Predicated region
    $region41: #{afrcnn_block_forward.18} parent=5 // pred_check
      _
    $region42: #{afrcnn_block_forward.18} parent=5 // pred_check_branch
      %237 = sbr.rel (%p234) target = $region44
    $region43: #{afrcnn_block_forward.18} parent=5 // pred_region
      %s238 = ssub.s32 %s13, 1
      %p239 = scmp.lt.s32.totalorder %s18, 1
      %s240 = scalar_select %p239, %s18, 1
      %s241 = smul.addr %s240, 4
      %s242 = smul.addr %s241, 4
      %s243 = scalar_lea.vmem %s0, %s242
      %p244 = pneg %p39
      %p245 = pneg %p36
      %p246 = scmp.lt.s32.totalorder %s18, 1
      %s247 = scalar_select %p246, %s18, 1
      %s248 = smul.addr %s247, 4
      %s249 = smul.addr %s248, 4
      %s250 = scalar_lea.vmem %s1, %s249
      %p251 = pneg %p65
      %p252 = pneg %p62
      %p253 = scmp.lt.s32.totalorder %s18, 1
      %s254 = scalar_select %p253, %s18, 1
      %s255 = smul.addr %s254, 4
      %s256 = smul.addr %s255, 4
      %s257 = scalar_lea.vmem %s2, %s256
      %p258 = pneg %p91
      %p259 = pneg %p88
      %p260 = pneg %p112
      %p261 = pneg %p109
      %p262 = pneg %p133
      %p263 = pneg %p130
      %p264 = pneg %p154
      %p265 = pneg %p151
      %p266 = pneg %p180
      %p267 = pneg %p177
      %p268 = scmp.lt.s32.totalorder %s18, 1
      %s269 = scalar_select %p268, %s18, 1
      %s270 = smul.addr %s269, 4
      %s271 = smul.addr %s270, 4
      %s272 = scalar_lea.vmem %s6, %s271
      %p273 = scmp.lt.s32.totalorder %s18, 1
      %s274 = scalar_select %p273, %s18, 1
      %s275 = smul.addr %s274, 4
      %s276 = smul.addr %s275, 4
      %s277 = scalar_lea.vmem %s0, %s276
      %p278 = scmp.lt.s32.totalorder %s18, 1
      %s279 = scalar_select %p278, %s18, 1
      %s280 = smul.addr %s279, 4
      %s281 = smul.addr %s280, 4
      %s282 = scalar_lea.vmem %s1, %s281
      %p283 = scmp.lt.s32.totalorder %s18, 1
      %s284 = scalar_select %p283, %s18, 1
      %s285 = smul.addr %s284, 4
      %s286 = smul.addr %s285, 4
      %s287 = scalar_lea.vmem %s2, %s286
      %p288 = scmp.lt.s32.totalorder %s18, 1
      %s289 = scalar_select %p288, %s18, 1
      %s290 = smul.addr %s289, 4
      %s291 = smul.addr %s290, 4
      %s292 = scalar_lea.vmem %s6, %s291
      %v293 = vld [vmem:[%s277] sm:$0xf]
      %v294 = vld [vmem:[%s277 + $0x4] sm:$0xf]
      %v295 = vld [vmem:[%s277 + $0x8] sm:$0xf]
      %v296 = vld [vmem:[%s277 + $0xc] sm:$0xf]
      %v297 = vunpack.c.l.bf16 %v293
      %v298 = vunpack.c.l.bf16 %v294
      %v299 = vunpack.c.l.bf16 %v295
      %v300 = vunpack.c.l.bf16 %v296
      %v301 = vld [vmem:[%s282] sm:$0xf]
      %v302 = vld [vmem:[%s282 + $0x4] sm:$0xf]
      %v303 = vld [vmem:[%s282 + $0x8] sm:$0xf]
      %v304 = vld [vmem:[%s282 + $0xc] sm:$0xf]
      %v305 = vunpack.c.l.bf16 %v301
      %v306 = vunpack.c.l.bf16 %v302
      %v307 = vunpack.c.l.bf16 %v303
      %v308 = vunpack.c.l.bf16 %v304
      %v309 = vadd.f32 %v297, %v305
      %v310 = vadd.f32 %v298, %v306
      %v311 = vadd.f32 %v299, %v307
      %v312 = vadd.f32 %v300, %v308
      %v313 = vld [vmem:[%s287] sm:$0xf]
      %v314 = vld [vmem:[%s287 + $0x4] sm:$0xf]
      %v315 = vld [vmem:[%s287 + $0x8] sm:$0xf]
      %v316 = vld [vmem:[%s287 + $0xc] sm:$0xf]
      %v317 = vunpack.c.l.bf16 %v313
      %v318 = vunpack.c.l.bf16 %v314
      %v319 = vunpack.c.l.bf16 %v315
      %v320 = vunpack.c.l.bf16 %v316
      %v321 = vadd.f32 %v309, %v317
      %v322 = vadd.f32 %v310, %v318
      %v323 = vadd.f32 %v311, %v319
      %v324 = vadd.f32 %v312, %v320
      %v325 = vld [vmem:[%s3] sm:$0xff]
      %v326 = vld [vmem:[%s3 + $0x8] sm:$0xff]
      %v327 = vld [vmem:[%s3 + $0x10] sm:$0xff]
      %v328 = vld [vmem:[%s3 + $0x18] sm:$0xff]
      %v329 = vld [vmem:[%s4] sm:$0xff]
      %v330 = vld [vmem:[%s4 + $0x8] sm:$0xff]
      %v331 = vld [vmem:[%s4 + $0x10] sm:$0xff]
      %v332 = vld [vmem:[%s4 + $0x18] sm:$0xff]
      %vm333 = vcmask 64512
      %v334 = vsel %vm333, %v321, 0.0
      %v335 = vsel %vm333, %v322, 0.0
      %v336 = vadd.f32 %v334, %v335
      %v337 = vsel %vm333, %v323, 0.0
      %v338 = vadd.f32 %v336, %v337
      %v339 = vsel %vm333, %v324, 0.0
      %v340 = vadd.f32 %v338, %v339
      %341 = vadd.xlane.f32.xlu0 %v340
      %v342 = vpop.xlane.xlu0 %341
      %v343 = vrot.slane %v342, 4
      %v344 = vadd.f32 %v342, %v343
      %v345 = vrot.slane %v344, 2
      %v346 = vadd.f32 %v344, %v345
      %v347 = vrot.slane %v346, 1
      %v348 = vadd.f32 %v346, %v347
      %s349 = vtos %v348
      %v350 = vmul.f32 %v321, %v321
      %v351 = vmul.f32 %v322, %v322
      %v352 = vmul.f32 %v323, %v323
      %v353 = vmul.f32 %v324, %v324
      %v354 = vsel %vm333, %v350, 0.0
      %v355 = vsel %vm333, %v351, 0.0
      %v356 = vadd.f32 %v354, %v355
      %v357 = vsel %vm333, %v352, 0.0
      %v358 = vadd.f32 %v356, %v357
      %v359 = vsel %vm333, %v353, 0.0
      %v360 = vadd.f32 %v358, %v359
      %361 = vadd.xlane.f32.xlu0 %v360
      %v362 = vpop.xlane.xlu0 %361
      %v363 = vrot.slane %v362, 4
      %v364 = vadd.f32 %v362, %v363
      %v365 = vrot.slane %v364, 2
      %v366 = vadd.f32 %v364, %v365
      %v367 = vrot.slane %v366, 1
      %v368 = vadd.f32 %v366, %v367
      %s369 = vtos %v368
      %v370 = vrcp.pop 256.0
      %s371 = vtos %v370
      %s372 = smul.f32 %s349, %s371
      %v373 = vrcp.pop 256.0
      %s374 = vtos %v373
      %s375 = smul.f32 %s369, %s374
      %s376 = smul.f32 %s372, %s372
      %s377 = ssub.f32 %s375, %s376
      %s378 = smax.f32 %s377, 0.0
      %v379 = vstv %s372
      %v380 = vsub.f32 %v321, %v379
      %v381 = vsub.f32 %v322, %v379
      %v382 = vsub.f32 %v323, %v379
      %v383 = vsub.f32 %v324, %v379
      %s384 = sadd.f32 %s378, 1e-08
      %v385 = vstv %s384
      %v386 = vrsqrt.pop %v385
      %s387 = vtos %v386
      %v388 = vstv %s387
      %v389 = vmul.f32 %v380, %v388
      %v390 = vmul.f32 %v381, %v388
      %v391 = vmul.f32 %v382, %v388
      %v392 = vmul.f32 %v383, %v388
      %394 = vset.pattern.permute.xlu0 0
      %395 = vperm.xlu0 %394, %v325
      %v396 = vpop.permute.xlu0 %395
      %399 = vset.pattern.permute.xlu0 0
      %400 = vperm.xlu0 %399, %v326
      %v401 = vpop.permute.xlu0 %400
      %404 = vset.pattern.permute.xlu0 0
      %405 = vperm.xlu0 %404, %v327
      %v406 = vpop.permute.xlu0 %405
      %409 = vset.pattern.permute.xlu0 0
      %410 = vperm.xlu0 %409, %v328
      %v411 = vpop.permute.xlu0 %410
      %v413 = vmul.f32 %v389, %v396
      %v414 = vmul.f32 %v390, %v401
      %v415 = vmul.f32 %v391, %v406
      %v416 = vmul.f32 %v392, %v411
      %418 = vset.pattern.permute.xlu0 0
      %419 = vperm.xlu0 %418, %v329
      %v420 = vpop.permute.xlu0 %419
      %423 = vset.pattern.permute.xlu0 0
      %424 = vperm.xlu0 %423, %v330
      %v425 = vpop.permute.xlu0 %424
      %428 = vset.pattern.permute.xlu0 0
      %429 = vperm.xlu0 %428, %v331
      %v430 = vpop.permute.xlu0 %429
      %433 = vset.pattern.permute.xlu0 0
      %434 = vperm.xlu0 %433, %v332
      %v435 = vpop.permute.xlu0 %434
      %v437 = vadd.f32 %v413, %v420
      %v438 = vadd.f32 %v414, %v425
      %v439 = vadd.f32 %v415, %v430
      %v440 = vadd.f32 %v416, %v435
      %s441 = sld [smem:[#allocation2]]
      %vm442 = vcmp.ge.f32.partialorder %v437, 0.0
      %vm443 = vcmp.ge.f32.partialorder %v438, 0.0
      %vm444 = vcmp.ge.f32.partialorder %v439, 0.0
      %vm445 = vcmp.ge.f32.partialorder %v440, 0.0
      %v446 = vstv %s441
      %v447 = vmul.f32 %v446, %v437
      %v448 = vmul.f32 %v446, %v438
      %v449 = vmul.f32 %v446, %v439
      %v450 = vmul.f32 %v446, %v440
      %v451 = vsel %vm442, %v437, %v447
      %v452 = vsel %vm443, %v438, %v448
      %v453 = vsel %vm444, %v439, %v449
      %v454 = vsel %vm445, %v440, %v450
      %v455 = vpack.c.bf16 %v452, %v451
      %v456 = vpack.c.bf16 %v454, %v453
      %v459 = vunpack.c.l.b16 %v455
      %v460 = vunpack.c.h.b16 %v455
      %v461 = vunpack.c.l.b16 %v456
      %v462 = vunpack.c.h.b16 %v456
      %v463 = vpack.c.b16 %v459, %v459
      %v464 = vpack.c.b16 %v460, %v460
      %v465 = vpack.c.b16 %v461, %v461
      %v466 = vpack.c.b16 %v462, %v462
      %vm471 = vcmask 60416
      %472 = vst.msk [vmem:[%s292] sm:$0xf] %vm471, %v463
      %473 = vst.msk [vmem:[%s292 + $0x4] sm:$0xf] %vm471, %v464
      %474 = vst.msk [vmem:[%s292 + $0x8] sm:$0xf] %vm471, %v465
      %475 = vst.msk [vmem:[%s292 + $0xc] sm:$0xf] %vm471, %v466
      %p476 = scmp.lt.s32.totalorder %s18, 1
      %s477 = scalar_select %p476, %s18, 1
      %s478 = smul.addr %s477, 4
      %s479 = smul.addr %s478, 4
      %s480 = scalar_lea.vmem %s6, %s479
      // Predicated region
      $region45: #{afrcnn_block_forward.18} parent=43 // pred_check
        %p481 = pneg %p177
      $region46: #{afrcnn_block_forward.18} parent=43 // pred_check_branch
        %483 = sbr.rel (%p481) target = $region48
      $region47: #{afrcnn_block_forward.18} parent=43 // pred_region
        _
      $region48: #{afrcnn_block_forward.18} parent=43 // pred_fallthru
        _
    $region44: #{afrcnn_block_forward.18} parent=5 // pred_fallthru
      _
    %p484 = scmp.le.s32.totalorder 2, %s13
    // Predicated region
    $region49: #{afrcnn_block_forward.18} parent=5 // pred_check
      %p485 = pneg %p484
    $region50: #{afrcnn_block_forward.18} parent=5 // pred_check_branch
      %487 = sbr.rel (%p485) target = $region52
    $region51: #{afrcnn_block_forward.18} parent=5 // pred_region
      %s488 = ssub.s32 %s13, 2
      // Predicated region
      $region53: #{afrcnn_block_forward.18} parent=51 // pred_check
        %p489 = pneg %p183
      $region54: #{afrcnn_block_forward.18} parent=51 // pred_check_branch
        %491 = sbr.rel (%p489) target = $region56
      $region55: #{afrcnn_block_forward.18} parent=51 // pred_region
        %p492 = scmp.lt.s32.totalorder %s19, 1
        %s493 = scalar_select %p492, %s19, 1
        %s494 = smul.addr %s493, 4
        %s495 = smul.addr %s494, 4
        %s496 = scalar_lea.vmem %s6, %s495
      $region56: #{afrcnn_block_forward.18} parent=51 // pred_fallthru
        _
    $region52: #{afrcnn_block_forward.18} parent=5 // pred_fallthru
      _
  $region6: #{afrcnn_block_forward.18} parent=0 // loop_footer
    %s17 = sadd.s32 1, %s13
  $region7: #{afrcnn_block_forward.18} parent=0 // loop_footer_branch
    %12 = sbr.rel target = $region3
  $region8: #{afrcnn_block_forward.18} parent=0 // loop_exit
    _

// kernel: afrcnn_block_forward.21
$region0: #{afrcnn_block_forward.21}
  #allocation0 [shape = 'u32[]', space=smem, size = 0x4, offset = 0x4, fixed_abs, tag = 'smem constant byte address 0x4 - core index']
  #allocation1 [shape = 'u32[144,128]{1,0:T(1,128)}', space=vmem, size = 0x12000, scoped, tag = 'internal scratch']
  #allocation2 [shape = 'f32[1]{0:T(128)S(6)}', space=smem, size = 0x200, scoped, tag = 'scoped memory for afrcnn_block_forward.21']
  %s0 = inlined_call_operand.vmem [shape: bf16[2,32,32], index: 0, kind: input, shape index: {}]
  %s1 = inlined_call_operand.vmem [shape: f32[2,1,1], index: 1, kind: input, shape index: {}]
  %s2 = inlined_call_operand.vmem [shape: f32[2,1,1], index: 2, kind: input, shape index: {}]
  %s3 = inlined_call_operand.vmem [shape: f32[32,1], index: 3, kind: input, shape index: {}]
  %s4 = inlined_call_operand.vmem [shape: f32[32,1], index: 4, kind: input, shape index: {}]
  %s5 = inlined_call_operand.<no memory space> [shape: f32[1], index: 5, kind: input, shape index: {}]
  %s6 = inlined_call_operand.vmem [shape: bf16[16,32], index: 6, kind: input, shape index: {}]
  %s7 = inlined_call_operand.vmem [shape: f32[16,1], index: 7, kind: input, shape index: {}]
  %s8 = inlined_call_operand.vmem [shape: f32[2,16,32], index: 8, kind: input, shape index: {}]
  %s9 = inlined_call_operand.hbm [shape: f32[2,16,32], index: 9, kind: output, shape index: {}]
  %s10 = sld [smem:[#allocation0]]
  $region69: #{afrcnn_block_forward.21} parent=0
    _
  %s12 = ssub.s32 1, %s10
  %s13 = scalar_select 0, %s12, %s10
  %14 = sst [smem:[#allocation2]] %s5
  $region1: #{afrcnn_block_forward.21} parent=0
    #allocation3 [shape = 'u8[16384]{0}', space=vmem, size = 0x4000, scoped, tag = 'output window, operand 0']
    #allocation4 [shape = 's32[2]{0}', space=sflag, size = 0x8, scoped, tag = 'scoped memory for afrcnn_block_forward.21']
    %15 = vsyncpa [#allocation4], 0
    %s16 = scalar_lea.sflag [#allocation4], 1
    %17 = vsyncpa %s16, 0
    loop: start=0, step=1, limit=4
    $region2: #{afrcnn_block_forward.21} parent=1 // loop_pre_header
      _
    $region3: #{afrcnn_block_forward.21} parent=1 // loop_header
      %s19 = sphi 0, %s23
      %p20 = scmp.ge.s32.totalorder %s19, 4
      %s26 = sphi 0, %s38
      %s27 = sphi 0, %s34
      %s28 = sphi 0, %s26
      %s29 = sphi 0, %s27
      %s30 = sphi 0, %s28
      %s31 = sphi 0, %s29
      %s43 = sphi 0, %s45
      %s46 = sphi 0, %s43
      %s47 = sphi 0, %s46
      %s63 = sphi 0, %s47
      %s69 = sphi 0, %s71
      %s72 = sphi 0, %s69
      %s73 = sphi 0, %s72
      %s89 = sphi 0, %s73
      %s95 = sphi 0, %s97
      %s98 = sphi 0, %s95
      %s99 = sphi 0, %s98
      %s115 = sphi 0, %s99
      %s119 = sphi 0, %s119
      %s121 = sphi 0, %s119
      %s122 = sphi 0, %s121
      %s136 = sphi 0, %s122
      %s140 = sphi 0, %s140
      %s142 = sphi 0, %s140
      %s143 = sphi 0, %s142
      %s157 = sphi 0, %s143
      %s161 = sphi 0, %s161
      %s163 = sphi 0, %s161
      %s164 = sphi 0, %s163
      %s178 = sphi 0, %s164
      %s182 = sphi 0, %s182
      %s184 = sphi 0, %s182
      %s185 = sphi 0, %s184
      %s199 = sphi 0, %s185
      %s203 = sphi 0, %s203
      %s205 = sphi 0, %s203
      %s206 = sphi 0, %s205
      %s220 = sphi 0, %s206
      %s228 = sphi 0, %s230
      %s231 = sphi 0, %s228
      %s232 = sphi 0, %s231
      %s248 = sphi 0, %s232
      %s256 = sphi 0, %s258
      %s259 = sphi 0, %s256
      %s260 = sphi 0, %s259
      %s276 = sphi 0, %s260
    $region4: #{afrcnn_block_forward.21} parent=1 // loop_header_branch
      %22 = sbr.rel (%p20) target = $region8
    $region5: #{afrcnn_block_forward.21} parent=1 // loop_body
      %s24 = ssub.s32 %s19, 1
      %s25 = ssub.s32 %s19, 2
      %s32 = sadd.s32 1, %s27
      %p33 = scmp.ge.s32.totalorder %s32, 1
      %s34 = scalar_select %p33, 0, %s32
      %s35 = sadd.s32 1, %s26
      %s36 = scalar_select %p33, %s35, %s26
      %p37 = scmp.ge.s32.totalorder %s36, 2
      %s38 = scalar_select %p37, 0, %s36
      %s39 = ssub.s32 %s26, %s38
      %s40 = ssub.s32 %s27, %s34
      %s41 = sor.u32 %s39, %s40
      %p42 = scmp.eq.s32.totalorder %s41, 0
      %s44 = sadd.s32 %s43, 1
      %s45 = scalar_select %p42, %s43, %s44
      %p48 = pneg %p42
      %p49 = scmp.eq.s32.totalorder %s19, 1
      %p50 = por %p48, %p49
      %p51 = scmp.ne.s32.totalorder %s43, %s46
      %p52 = scmp.eq.s32.totalorder %s19, 0
      %p53 = por %p51, %p52
      %p54 = scmp.ne.s32.totalorder %s43, %s46
      %p55 = scmp.eq.s32.totalorder %s24, 1
      %p56 = por %p54, %p55
      %p57 = scmp.ne.s32.totalorder %s46, %s47
      %p58 = scmp.eq.s32.totalorder %s24, 0
      %p59 = por %p57, %p58
      %p60 = scmp.ne.s32.totalorder %s46, %s47
      %p61 = scmp.eq.s32.totalorder %s25, 1
      %p62 = por %p60, %p61
      %p64 = scmp.ne.s32.totalorder %s47, %s63
      %p65 = scmp.eq.s32.totalorder %s25, 0
      %p66 = por %p64, %p65
      %s67 = ssub.s32 %s26, %s38
      %p68 = scmp.eq.s32.totalorder %s67, 0
      %s70 = sadd.s32 %s69, 1
      %s71 = scalar_select %p68, %s69, %s70
      %p74 = pneg %p68
      %p75 = scmp.eq.s32.totalorder %s19, 1
      %p76 = por %p74, %p75
      %p77 = scmp.ne.s32.totalorder %s69, %s72
      %p78 = scmp.eq.s32.totalorder %s19, 0
      %p79 = por %p77, %p78
      %p80 = scmp.ne.s32.totalorder %s69, %s72
      %p81 = scmp.eq.s32.totalorder %s24, 1
      %p82 = por %p80, %p81
      %p83 = scmp.ne.s32.totalorder %s72, %s73
      %p84 = scmp.eq.s32.totalorder %s24, 0
      %p85 = por %p83, %p84
      %p86 = scmp.ne.s32.totalorder %s72, %s73
      %p87 = scmp.eq.s32.totalorder %s25, 1
      %p88 = por %p86, %p87
      %p90 = scmp.ne.s32.totalorder %s73, %s89
      %p91 = scmp.eq.s32.totalorder %s25, 0
      %p92 = por %p90, %p91
      %s93 = ssub.s32 %s26, %s38
      %p94 = scmp.eq.s32.totalorder %s93, 0
      %s96 = sadd.s32 %s95, 1
      %s97 = scalar_select %p94, %s95, %s96
      %p100 = pneg %p94
      %p101 = scmp.eq.s32.totalorder %s19, 1
      %p102 = por %p100, %p101
      %p103 = scmp.ne.s32.totalorder %s95, %s98
      %p104 = scmp.eq.s32.totalorder %s19, 0
      %p105 = por %p103, %p104
      %p106 = scmp.ne.s32.totalorder %s95, %s98
      %p107 = scmp.eq.s32.totalorder %s24, 1
      %p108 = por %p106, %p107
      %p109 = scmp.ne.s32.totalorder %s98, %s99
      %p110 = scmp.eq.s32.totalorder %s24, 0
      %p111 = por %p109, %p110
      %p112 = scmp.ne.s32.totalorder %s98, %s99
      %p113 = scmp.eq.s32.totalorder %s25, 1
      %p114 = por %p112, %p113
      %p116 = scmp.ne.s32.totalorder %s99, %s115
      %p117 = scmp.eq.s32.totalorder %s25, 0
      %p118 = por %p116, %p117
      %s120 = sadd.s32 %s119, 1
      %p123 = scmp.eq.s32.totalorder %s19, 1
      %p124 = scmp.ne.s32.totalorder %s119, %s121
      %p125 = scmp.eq.s32.totalorder %s19, 0
      %p126 = por %p124, %p125
      %p127 = scmp.ne.s32.totalorder %s119, %s121
      %p128 = scmp.eq.s32.totalorder %s24, 1
      %p129 = por %p127, %p128
      %p130 = scmp.ne.s32.totalorder %s121, %s122
      %p131 = scmp.eq.s32.totalorder %s24, 0
      %p132 = por %p130, %p131
      %p133 = scmp.ne.s32.totalorder %s121, %s122
      %p134 = scmp.eq.s32.totalorder %s25, 1
      %p135 = por %p133, %p134
      %p137 = scmp.ne.s32.totalorder %s122, %s136
      %p138 = scmp.eq.s32.totalorder %s25, 0
      %p139 = por %p137, %p138
      %s141 = sadd.s32 %s140, 1
      %p144 = scmp.eq.s32.totalorder %s19, 1
      %p145 = scmp.ne.s32.totalorder %s140, %s142
      %p146 = scmp.eq.s32.totalorder %s19, 0
      %p147 = por %p145, %p146
      %p148 = scmp.ne.s32.totalorder %s140, %s142
      %p149 = scmp.eq.s32.totalorder %s24, 1
      %p150 = por %p148, %p149
      %p151 = scmp.ne.s32.totalorder %s142, %s143
      %p152 = scmp.eq.s32.totalorder %s24, 0
      %p153 = por %p151, %p152
      %p154 = scmp.ne.s32.totalorder %s142, %s143
      %p155 = scmp.eq.s32.totalorder %s25, 1
      %p156 = por %p154, %p155
      %p158 = scmp.ne.s32.totalorder %s143, %s157
      %p159 = scmp.eq.s32.totalorder %s25, 0
      %p160 = por %p158, %p159
      %s162 = sadd.s32 %s161, 1
      %p165 = scmp.eq.s32.totalorder %s19, 1
      %p166 = scmp.ne.s32.totalorder %s161, %s163
      %p167 = scmp.eq.s32.totalorder %s19, 0
      %p168 = por %p166, %p167
      %p169 = scmp.ne.s32.totalorder %s161, %s163
      %p170 = scmp.eq.s32.totalorder %s24, 1
      %p171 = por %p169, %p170
      %p172 = scmp.ne.s32.totalorder %s163, %s164
      %p173 = scmp.eq.s32.totalorder %s24, 0
      %p174 = por %p172, %p173
      %p175 = scmp.ne.s32.totalorder %s163, %s164
      %p176 = scmp.eq.s32.totalorder %s25, 1
      %p177 = por %p175, %p176
      %p179 = scmp.ne.s32.totalorder %s164, %s178
      %p180 = scmp.eq.s32.totalorder %s25, 0
      %p181 = por %p179, %p180
      %s183 = sadd.s32 %s182, 1
      %p186 = scmp.eq.s32.totalorder %s19, 1
      %p187 = scmp.ne.s32.totalorder %s182, %s184
      %p188 = scmp.eq.s32.totalorder %s19, 0
      %p189 = por %p187, %p188
      %p190 = scmp.ne.s32.totalorder %s182, %s184
      %p191 = scmp.eq.s32.totalorder %s24, 1
      %p192 = por %p190, %p191
      %p193 = scmp.ne.s32.totalorder %s184, %s185
      %p194 = scmp.eq.s32.totalorder %s24, 0
      %p195 = por %p193, %p194
      %p196 = scmp.ne.s32.totalorder %s184, %s185
      %p197 = scmp.eq.s32.totalorder %s25, 1
      %p198 = por %p196, %p197
      %p200 = scmp.ne.s32.totalorder %s185, %s199
      %p201 = scmp.eq.s32.totalorder %s25, 0
      %p202 = por %p200, %p201
      %s204 = sadd.s32 %s203, 1
      %p207 = scmp.eq.s32.totalorder %s19, 1
      %p208 = scmp.ne.s32.totalorder %s203, %s205
      %p209 = scmp.eq.s32.totalorder %s19, 0
      %p210 = por %p208, %p209
      %p211 = scmp.ne.s32.totalorder %s203, %s205
      %p212 = scmp.eq.s32.totalorder %s24, 1
      %p213 = por %p211, %p212
      %p214 = scmp.ne.s32.totalorder %s205, %s206
      %p215 = scmp.eq.s32.totalorder %s24, 0
      %p216 = por %p214, %p215
      %p217 = scmp.ne.s32.totalorder %s205, %s206
      %p218 = scmp.eq.s32.totalorder %s25, 1
      %p219 = por %p217, %p218
      %p221 = scmp.ne.s32.totalorder %s206, %s220
      %p222 = scmp.eq.s32.totalorder %s25, 0
      %p223 = por %p221, %p222
      %s224 = ssub.s32 %s26, %s38
      %s225 = ssub.s32 %s27, %s34
      %s226 = sor.u32 %s224, %s225
      %p227 = scmp.eq.s32.totalorder %s226, 0
      %s229 = sadd.s32 %s228, 1
      %s230 = scalar_select %p227, %s228, %s229
      %p233 = pneg %p227
      %p234 = scmp.eq.s32.totalorder %s19, 1
      %p235 = por %p233, %p234
      %p236 = scmp.ne.s32.totalorder %s228, %s231
      %p237 = scmp.eq.s32.totalorder %s19, 0
      %p238 = por %p236, %p237
      %p239 = scmp.ne.s32.totalorder %s228, %s231
      %p240 = scmp.eq.s32.totalorder %s24, 1
      %p241 = por %p239, %p240
      %p242 = scmp.ne.s32.totalorder %s231, %s232
      %p243 = scmp.eq.s32.totalorder %s24, 0
      %p244 = por %p242, %p243
      %p245 = scmp.ne.s32.totalorder %s231, %s232
      %p246 = scmp.eq.s32.totalorder %s25, 1
      %p247 = por %p245, %p246
      %p249 = scmp.ne.s32.totalorder %s232, %s248
      %p250 = scmp.eq.s32.totalorder %s25, 0
      %p251 = por %p249, %p250
      %s252 = ssub.s32 %s26, %s38
      %s253 = ssub.s32 %s27, %s34
      %s254 = sor.u32 %s252, %s253
      %p255 = scmp.eq.s32.totalorder %s254, 0
      %s257 = sadd.s32 %s256, 1
      %s258 = scalar_select %p255, %s256, %s257
      %p261 = pneg %p255
      %p262 = scmp.eq.s32.totalorder %s19, 1
      %p263 = por %p261, %p262
      %p264 = scmp.ne.s32.totalorder %s256, %s259
      %p265 = scmp.eq.s32.totalorder %s19, 0
      %p266 = por %p264, %p265
      %p267 = scmp.ne.s32.totalorder %s256, %s259
      %p268 = scmp.eq.s32.totalorder %s24, 1
      %p269 = por %p267, %p268
      %p270 = scmp.ne.s32.totalorder %s259, %s260
      %p271 = scmp.eq.s32.totalorder %s24, 0
      %p272 = por %p270, %p271
      %p273 = scmp.ne.s32.totalorder %s259, %s260
      %p274 = scmp.eq.s32.totalorder %s25, 1
      %p275 = por %p273, %p274
      %p277 = scmp.ne.s32.totalorder %s260, %s276
      %p278 = scmp.eq.s32.totalorder %s25, 0
      %p279 = por %p277, %p278
      %p280 = scmp.le.s32.totalorder 1, %s19
      %p281 = scmp.lt.s32.totalorder %s19, 3
      %p282 = pnand %p280, %p281
      %p283 = pneg %p282
      // Predicated region
      $region9: #{afrcnn_block_forward.21} parent=5 // pred_check
        _
      $region10: #{afrcnn_block_forward.21} parent=5 // pred_check_branch
        %285 = sbr.rel (%p282) target = $region12
      $region11: #{afrcnn_block_forward.21} parent=5 // pred_region
        %s286 = ssub.s32 %s19, 1
        // Predicated region
        $region13: #{afrcnn_block_forward.21} parent=11 // pred_check
          %p287 = pneg %p132
        $region14: #{afrcnn_block_forward.21} parent=11 // pred_check_branch
          %289 = sbr.rel (%p287) target = $region16
        $region15: #{afrcnn_block_forward.21} parent=11 // pred_region
          _
        $region16: #{afrcnn_block_forward.21} parent=11 // pred_fallthru
          _
        // Predicated region
        $region17: #{afrcnn_block_forward.21} parent=11 // pred_check
          %p290 = pneg %p153
        $region18: #{afrcnn_block_forward.21} parent=11 // pred_check_branch
          %292 = sbr.rel (%p290) target = $region20
        $region19: #{afrcnn_block_forward.21} parent=11 // pred_region
          _
        $region20: #{afrcnn_block_forward.21} parent=11 // pred_fallthru
          _
        // Predicated region
        $region21: #{afrcnn_block_forward.21} parent=11 // pred_check
          %p293 = pneg %p174
        $region22: #{afrcnn_block_forward.21} parent=11 // pred_check_branch
          %295 = sbr.rel (%p293) target = $region24
        $region23: #{afrcnn_block_forward.21} parent=11 // pred_region
          _
        $region24: #{afrcnn_block_forward.21} parent=11 // pred_fallthru
          _
        // Predicated region
        $region25: #{afrcnn_block_forward.21} parent=11 // pred_check
          %p296 = pneg %p195
        $region26: #{afrcnn_block_forward.21} parent=11 // pred_check_branch
          %298 = sbr.rel (%p296) target = $region28
        $region27: #{afrcnn_block_forward.21} parent=11 // pred_region
          _
        $region28: #{afrcnn_block_forward.21} parent=11 // pred_fallthru
          _
        // Predicated region
        $region29: #{afrcnn_block_forward.21} parent=11 // pred_check
          %p299 = pneg %p216
        $region30: #{afrcnn_block_forward.21} parent=11 // pred_check_branch
          %301 = sbr.rel (%p299) target = $region32
        $region31: #{afrcnn_block_forward.21} parent=11 // pred_region
          _
        $region32: #{afrcnn_block_forward.21} parent=11 // pred_fallthru
          _
      $region12: #{afrcnn_block_forward.21} parent=5 // pred_fallthru
        _
      %p302 = scmp.lt.s32.totalorder %s19, 2
      // Predicated region
      $region33: #{afrcnn_block_forward.21} parent=5 // pred_check
        %p303 = pneg %p302
      $region34: #{afrcnn_block_forward.21} parent=5 // pred_check_branch
        %305 = sbr.rel (%p303) target = $region36
      $region35: #{afrcnn_block_forward.21} parent=5 // pred_region
        // Predicated region
        $region37: #{afrcnn_block_forward.21} parent=35 // pred_check
          %p306 = pneg %p53
        $region38: #{afrcnn_block_forward.21} parent=35 // pred_check_branch
          %308 = sbr.rel (%p306) target = $region40
        $region39: #{afrcnn_block_forward.21} parent=35 // pred_region
          %p309 = scmp.lt.s32.totalorder %s26, 1
          %s310 = scalar_select %p309, %s26, 1
          %p311 = scmp.lt.s32.totalorder %s27, 0
          %s312 = scalar_select %p311, %s27, 0
          %s313 = smul.addr %s310, 4
          %s314 = sadd.s32 %s312, %s313
          %s315 = smul.addr %s314, 4
          %s316 = scalar_lea.vmem %s0, %s315
        $region40: #{afrcnn_block_forward.21} parent=35 // pred_fallthru
          _
        // Predicated region
        $region41: #{afrcnn_block_forward.21} parent=35 // pred_check
          %p317 = pneg %p79
        $region42: #{afrcnn_block_forward.21} parent=35 // pred_check_branch
          %319 = sbr.rel (%p317) target = $region44
        $region43: #{afrcnn_block_forward.21} parent=35 // pred_region
          %p320 = scmp.lt.s32.totalorder %s26, 1
          %s321 = scalar_select %p320, %s26, 1
          %s322 = scalar_lea.vmem %s1, %s321
        $region44: #{afrcnn_block_forward.21} parent=35 // pred_fallthru
          _
        // Predicated region
        $region45: #{afrcnn_block_forward.21} parent=35 // pred_check
          %p323 = pneg %p105
        $region46: #{afrcnn_block_forward.21} parent=35 // pred_check_branch
          %325 = sbr.rel (%p323) target = $region48
        $region47: #{afrcnn_block_forward.21} parent=35 // pred_region
          %p326 = scmp.lt.s32.totalorder %s26, 1
          %s327 = scalar_select %p326, %s26, 1
          %s328 = scalar_lea.vmem %s2, %s327
        $region48: #{afrcnn_block_forward.21} parent=35 // pred_fallthru
          _
        // Predicated region
        $region49: #{afrcnn_block_forward.21} parent=35 // pred_check
          %p329 = pneg %p238
        $region50: #{afrcnn_block_forward.21} parent=35 // pred_check_branch
          %331 = sbr.rel (%p329) target = $region52
        $region51: #{afrcnn_block_forward.21} parent=35 // pred_region
          %p332 = scmp.lt.s32.totalorder %s26, 1
          %s333 = scalar_select %p332, %s26, 1
          %p334 = scmp.lt.s32.totalorder %s27, 0
          %s335 = scalar_select %p334, %s27, 0
          %s336 = smul.addr %s333, 2
          %s337 = sadd.s32 %s335, %s336
          %s338 = smul.addr %s337, 8
          %s339 = scalar_lea.vmem %s8, %s338
        $region52: #{afrcnn_block_forward.21} parent=35 // pred_fallthru
          _
      $region36: #{afrcnn_block_forward.21} parent=5 // pred_fallthru
        _
      %p340 = scmp.le.s32.totalorder 1, %s19
      %p341 = scmp.lt.s32.totalorder %s19, 3
      %p342 = pnand %p340, %p341
      %p343 = pneg %p342
      // Predicated region
      $region53: #{afrcnn_block_forward.21} parent=5 // pred_check
        _
      $region54: #{afrcnn_block_forward.21} parent=5 // pred_check_branch
        %345 = sbr.rel (%p342) target = $region56
      $region55: #{afrcnn_block_forward.21} parent=5 // pred_region
        %s346 = ssub.s32 %s19, 1
        %p347 = scmp.lt.s32.totalorder %s28, 1
        %s348 = scalar_select %p347, %s28, 1
        %p349 = scmp.lt.s32.totalorder %s29, 0
        %s350 = scalar_select %p349, %s29, 0
        %s351 = smul.addr %s348, 4
        %s352 = sadd.s32 %s350, %s351
        %s353 = smul.addr %s352, 4
        %s354 = scalar_lea.vmem %s0, %s353
        %p355 = pneg %p59
        %p356 = pneg %p56
        %p357 = scmp.lt.s32.totalorder %s28, 1
        %s358 = scalar_select %p357, %s28, 1
        %s359 = scalar_lea.vmem %s1, %s358
        %p360 = pneg %p85
        %p361 = pneg %p82
        %p362 = scmp.lt.s32.totalorder %s28, 1
        %s363 = scalar_select %p362, %s28, 1
        %s364 = scalar_lea.vmem %s2, %s363
        %p365 = pneg %p111
        %p366 = pneg %p108
        %p367 = pneg %p132
        %p368 = pneg %p129
        %p369 = pneg %p153
        %p370 = pneg %p150
        %p371 = pneg %p174
        %p372 = pneg %p171
        %p373 = pneg %p195
        %p374 = pneg %p192
        %p375 = pneg %p216
        %p376 = pneg %p213
        %p377 = scmp.lt.s32.totalorder %s28, 1
        %s378 = scalar_select %p377, %s28, 1
        %p379 = scmp.lt.s32.totalorder %s29, 0
        %s380 = scalar_select %p379, %s29, 0
        %s381 = smul.addr %s378, 2
        %s382 = sadd.s32 %s380, %s381
        %s383 = smul.addr %s382, 8
        %s384 = scalar_lea.vmem %s8, %s383
        %p385 = pneg %p244
        %p386 = pneg %p241
        %p387 = pneg %p272
        %p388 = pneg %p269
        %s389 = sand.u32 %s259, 1
        %s390 = scalar_lea.sflag [#allocation4], %s389
        %s391 = sand.u32 %s259, 1
        %s392 = smul.addr %s391, 16
        %s393 = scalar_lea.vmem [#allocation3], %s392
        %p394 = scmp.lt.s32.totalorder %s28, 1
        %s395 = scalar_select %p394, %s28, 1
        %p396 = scmp.lt.s32.totalorder %s29, 0
        %s397 = scalar_select %p396, %s29, 0
        %s398 = smul.addr %s395, 4
        %s399 = sadd.s32 %s397, %s398
        %s400 = smul.addr %s399, 4
        %s401 = scalar_lea.vmem %s0, %s400
        %p402 = scmp.lt.s32.totalorder %s28, 1
        %s403 = scalar_select %p402, %s28, 1
        %s404 = scalar_lea.vmem %s1, %s403
        %p405 = scmp.lt.s32.totalorder %s28, 1
        %s406 = scalar_select %p405, %s28, 1
        %s407 = scalar_lea.vmem %s2, %s406
        %p408 = scmp.lt.s32.totalorder %s28, 1
        %s409 = scalar_select %p408, %s28, 1
        %p410 = scmp.lt.s32.totalorder %s29, 0
        %s411 = scalar_select %p410, %s29, 0
        %s412 = smul.addr %s409, 2
        %s413 = sadd.s32 %s411, %s412
        %s414 = smul.addr %s413, 8
        %s415 = scalar_lea.vmem %s8, %s414
        %v417 = vld [vmem:[%s404] sm:$0x1]
        %v418 = vrcp.pop 1024.0
        %v419 = vmul.f32 %v417, %v418
        %v420 = vld [vmem:[%s407] sm:$0x1]
        %v421 = vmul.f32 %v420, %v418
        %v422 = vmul.f32 %v419, %v419
        %v423 = vsub.f32 %v421, %v422
        %v424 = vmax.f32 %v423, 0.0
        %v425 = vadd.f32 %v424, 1e-08
        %v426 = vrsqrt.pop %v425
        %v427 = vld [vmem:[%s401] sm:$0xf]
        %v428 = vld [vmem:[%s401 + $0x4] sm:$0xf]
        %v429 = vld [vmem:[%s401 + $0x8] sm:$0xf]
        %v430 = vld [vmem:[%s401 + $0xc] sm:$0xf]
        %v431 = vunpack.c.l.bf16 %v427
        %v432 = vunpack.c.l.bf16 %v428
        %v433 = vunpack.c.l.bf16 %v429
        %v434 = vunpack.c.l.bf16 %v430
        %v436 = vlaneseq
        %v437 = vshrl.u32 %v436, 7
        %v438 = vsub.s32 0, %v437
        %v439 = vrot.slane %v419, %v438
        %440 = vset.pattern.permute.xlu0 0
        %441 = vperm.xlu0 %440, %v439
        %v442 = vpop.permute.xlu0 %441
        %v444 = vsub.f32 %v431, %v442
        %v445 = vsub.f32 %v432, %v442
        %v446 = vsub.f32 %v433, %v442
        %v447 = vsub.f32 %v434, %v442
        %v449 = vlaneseq
        %v450 = vshrl.u32 %v449, 7
        %v451 = vsub.s32 0, %v450
        %v452 = vrot.slane %v426, %v451
        %453 = vset.pattern.permute.xlu0 0
        %454 = vperm.xlu0 %453, %v452
        %v455 = vpop.permute.xlu0 %454
        %v457 = vmul.f32 %v444, %v455
        %v458 = vmul.f32 %v445, %v455
        %v459 = vmul.f32 %v446, %v455
        %v460 = vmul.f32 %v447, %v455
        %v461 = vld [vmem:[%s3] sm:$0xff]
        %v462 = vld [vmem:[%s3 + $0x8] sm:$0xff]
        %v463 = vld [vmem:[%s3 + $0x10] sm:$0xff]
        %v464 = vld [vmem:[%s3 + $0x18] sm:$0xff]
        %466 = vset.pattern.permute.xlu0 0
        %467 = vperm.xlu0 %466, %v461
        %v468 = vpop.permute.xlu0 %467
        %471 = vset.pattern.permute.xlu0 0
        %472 = vperm.xlu0 %471, %v462
        %v473 = vpop.permute.xlu0 %472
        %476 = vset.pattern.permute.xlu0 0
        %477 = vperm.xlu0 %476, %v463
        %v478 = vpop.permute.xlu0 %477
        %481 = vset.pattern.permute.xlu0 0
        %482 = vperm.xlu0 %481, %v464
        %v483 = vpop.permute.xlu0 %482
        %v485 = vmul.f32 %v457, %v468
        %v486 = vmul.f32 %v458, %v473
        %v487 = vmul.f32 %v459, %v478
        %v488 = vmul.f32 %v460, %v483
        %v489 = vld [vmem:[%s4] sm:$0xff]
        %v490 = vld [vmem:[%s4 + $0x8] sm:$0xff]
        %v491 = vld [vmem:[%s4 + $0x10] sm:$0xff]
        %v492 = vld [vmem:[%s4 + $0x18] sm:$0xff]
        %494 = vset.pattern.permute.xlu0 0
        %495 = vperm.xlu0 %494, %v489
        %v496 = vpop.permute.xlu0 %495
        %499 = vset.pattern.permute.xlu0 0
        %500 = vperm.xlu0 %499, %v490
        %v501 = vpop.permute.xlu0 %500
        %504 = vset.pattern.permute.xlu0 0
        %505 = vperm.xlu0 %504, %v491
        %v506 = vpop.permute.xlu0 %505
        %509 = vset.pattern.permute.xlu0 0
        %510 = vperm.xlu0 %509, %v492
        %v511 = vpop.permute.xlu0 %510
        %v513 = vadd.f32 %v485, %v496
        %v514 = vadd.f32 %v486, %v501
        %v515 = vadd.f32 %v487, %v506
        %v516 = vadd.f32 %v488, %v511
        %s517 = sld [smem:[#allocation2]]
        %vm518 = vcmp.ge.f32.partialorder %v513, 0.0
        %vm519 = vcmp.ge.f32.partialorder %v514, 0.0
        %vm520 = vcmp.ge.f32.partialorder %v515, 0.0
        %vm521 = vcmp.ge.f32.partialorder %v516, 0.0
        %v522 = vstv %s517
        %v523 = vmul.f32 %v522, %v513
        %v524 = vmul.f32 %v522, %v514
        %v525 = vmul.f32 %v522, %v515
        %v526 = vmul.f32 %v522, %v516
        %v527 = vsel %vm518, %v513, %v523
        %v528 = vsel %vm519, %v514, %v524
        %v529 = vsel %vm520, %v515, %v525
        %v530 = vsel %vm521, %v516, %v526
        %v531 = vld [vmem:[%s6] sm:$0xf]
        %v532 = vld [vmem:[%s6 + $0x4] sm:$0xf]
        %v533 = vpack.c.bf16 %v528, %v527
        %v534 = vpack.c.bf16 %v530, %v529
        %v535 = vld [vmem:[%s7] sm:$0xff]
        %v536 = vld [vmem:[%s7 + $0x8] sm:$0xff]
        %538 = vset.pattern.permute.xlu0 0
        %539 = vperm.xlu0 %538, %v535
        %v540 = vpop.permute.xlu0 %539
        %543 = vset.pattern.permute.xlu0 0
        %544 = vperm.xlu0 %543, %v536
        %v545 = vpop.permute.xlu0 %544
        %v549 = vunpack.c.l.b16 %v531
        %v550 = vunpack.c.l.b16 %v532
        %v551 = vpack.c.b16 %v550, %v549
        %vm552 = vcmask 261120
        %v554 = vsel %vm552, %v551, 0
        %556 = vmatprep.subr.bf16.mxu0 0
        %557 = vmatpush1.bf16.msra.mxu0 0
        %558 = vmatprep.subr.bf16.mxu0 0
        %559 = vmatpush1.bf16.msra.mxu0 0
        %560 = vmatprep.subr.bf16.mxu0 0
        %561 = vmatpush1.bf16.msra.mxu0 0
        %562 = vmatprep.subr.bf16.mxu0 0
        %563 = vmatpush1.bf16.msra.mxu0 0
        %564 = vmatprep.subr.bf16.mxu0 0
        %565 = vmatpush1.bf16.msra.mxu0 0
        %566 = vmatprep.subr.bf16.mxu0 0
        %567 = vmatpush1.bf16.msra.mxu0 0
        %568 = vmatprep.subr.bf16.mxu0 0
        %569 = vmatpush1.bf16.msra.mxu0 %v534
        %570 = vmatprep.subr.bf16.mxu0 0
        %571 = vmatpush1.bf16.msra.mxu0 %v533
        %572 = vmatprep.subr.bf16.mxu0 0
        %573 = vmatpush2.bf16.msra.mxu0 0
        %574 = vmatprep.subr.bf16.mxu0 0
        %575 = vmatpush2.bf16.msra.mxu0 0
        %576 = vmatprep.subr.bf16.mxu0 0
        %577 = vmatpush2.bf16.msra.mxu0 0
        %578 = vmatprep.subr.bf16.mxu0 0
        %579 = vmatpush2.bf16.msra.mxu0 0
        %580 = vmatprep.subr.bf16.mxu0 0
        %581 = vmatpush2.bf16.msra.mxu0 0
        %582 = vmatprep.subr.bf16.mxu0 0
        %583 = vmatpush2.bf16.msra.mxu0 0
        %584 = vmatprep.subr.bf16.mxu0 0
        %585 = vmatpush2.bf16.msra.mxu0 0
        %586 = vmatprep.subr.bf16.mxu0 0
        %587 = vmatpush2.bf16.msra.mxu0 0
        %588 = vmatprep.mubr.bf16.mxu0 0
        %589 = vmatmul.mubr.bf16.gmra.mxu0 %v554
        %v590 = vpop.f32.mrf.mxu0
        %v591 = vadd.f32 %v540, %v590
        %v592 = vpop.f32.mrf.mxu0
        %v593 = vpop.f32.mrf.mxu0
        %v594 = vadd.f32 %v545, %v593
        %v595 = vpop.f32.mrf.mxu0
        %596 = vdwg.mxu0
        %v597 = vld [vmem:[%s415] sm:$0xff]
        %v598 = vld [vmem:[%s415 + $0x8] sm:$0xff]
        %v599 = vadd.f32 %v591, %v597
        %v600 = vadd.f32 %v594, %v598
        %601 = vst.msk [vmem:[%s393] sm:$0xff] %vm552, %v599
        %602 = vst.msk [vmem:[%s393 + $0x8] sm:$0xff] %vm552, %v600
        %s603 = sand.u32 %s259, 1
        %s604 = scalar_lea.sflag [#allocation4], %s603
        %s605 = sand.u32 %s259, 1
        %s606 = smul.addr %s605, 16
        %s607 = scalar_lea.vmem [#allocation3], %s606
        // Predicated region
        $region57: #{afrcnn_block_forward.21} parent=55 // pred_check
          %p608 = pneg %p269
        $region58: #{afrcnn_block_forward.21} parent=55 // pred_check_branch
          %610 = sbr.rel (%p608) target = $region60
        $region59: #{afrcnn_block_forward.21} parent=55 // pred_region
          %s612 = ssub.s32 256, 256
          %613 = vsyncadd %s604, %s612
          %s614 = smul.addr %s28, 2
          %s615 = sadd.s32 %s29, %s614
          %s616 = smul.addr %s615, 128
          %s617 = scalar_lea.hbm %s9, %s616
          %s618 = sshll.u32 %s607, 4
          %s619 = int_to_ptr.vmem [resolvable:$true] %s618
          %624 = dma.vmem_to_hbm [thread:$0]  %s619, 256, %s617, %s604, 128, 128, 8
        $region60: #{afrcnn_block_forward.21} parent=55 // pred_fallthru
          _
      $region56: #{afrcnn_block_forward.21} parent=5 // pred_fallthru
        _
      %p625 = scmp.le.s32.totalorder 2, %s19
      // Predicated region
      $region61: #{afrcnn_block_forward.21} parent=5 // pred_check
        %p626 = pneg %p625
      $region62: #{afrcnn_block_forward.21} parent=5 // pred_check_branch
        %628 = sbr.rel (%p626) target = $region64
      $region63: #{afrcnn_block_forward.21} parent=5 // pred_region
        %s629 = ssub.s32 %s19, 2
        // Predicated region
        $region65: #{afrcnn_block_forward.21} parent=63 // pred_check
          %p630 = pneg %p275
        $region66: #{afrcnn_block_forward.21} parent=63 // pred_check_branch
          %632 = sbr.rel (%p630) target = $region68
        $region67: #{afrcnn_block_forward.21} parent=63 // pred_region
          %s633 = sand.u32 %s260, 1
          %s634 = scalar_lea.sflag [#allocation4], %s633
          %s635 = sand.u32 %s260, 1
          %s636 = smul.addr %s635, 16
          %s637 = scalar_lea.vmem [#allocation3], %s636
          %638 = dma.done %s634, 256
        $region68: #{afrcnn_block_forward.21} parent=63 // pred_fallthru
          _
      $region64: #{afrcnn_block_forward.21} parent=5 // pred_fallthru
        _
    $region6: #{afrcnn_block_forward.21} parent=1 // loop_footer
      %s23 = sadd.s32 1, %s19
    $region7: #{afrcnn_block_forward.21} parent=1 // loop_footer_branch
      %18 = sbr.rel target = $region3
    $region8: #{afrcnn_block_forward.21} parent=1 // loop_exit
      _
    %639 = vsyncpa [#allocation4], 1
    %s640 = scalar_lea.sflag [#allocation4], 1
    %641 = vsyncpa %s640, 1

// kernel: afrcnn_block_forward.20
$region0: #{afrcnn_block_forward.20}
  #allocation0 [shape = 'u32[]', space=smem, size = 0x4, offset = 0x4, fixed_abs, tag = 'smem constant byte address 0x4 - core index']
  #allocation1 [shape = 'u32[144,128]{1,0:T(1,128)}', space=vmem, size = 0x12000, scoped, tag = 'internal scratch']
  %s0 = inlined_call_operand.vmem [shape: bf16[2,32,32], index: 0, kind: input, shape index: {}]
  %s1 = inlined_call_operand.vmem [shape: bf16[2,32,32], index: 1, kind: input, shape index: {}]
  %s2 = inlined_call_operand.vmem [shape: bf16[2,32,32], index: 2, kind: input, shape index: {}]
  %s3 = inlined_call_operand.vmem [shape: bf16[2,32,32], index: 3, kind: input, shape index: {}]
  %s4 = inlined_call_operand.vmem [shape: bf16[4,32,32], index: 4, kind: input, shape index: {}]
  %s5 = inlined_call_operand.vmem [shape: f32[32,1], index: 5, kind: input, shape index: {}]
  %s6 = inlined_call_operand.vmem [shape: bf16[2,32,32], index: 6, kind: output, shape index: {0}]
  %s7 = inlined_call_operand.vmem [shape: f32[2,1,1], index: 7, kind: output, shape index: {1}]
  %s8 = inlined_call_operand.vmem [shape: f32[2,1,1], index: 8, kind: output, shape index: {2}]
  %9 = xla_tuple %s6, %s7, %s8
  %s10 = sld [smem:[#allocation0]]
  $region77: #{afrcnn_block_forward.20} parent=0
    _
  %s12 = ssub.s32 1, %s10
  %s13 = scalar_select 0, %s12, %s10
  loop: start=0, step=1, limit=4
  $region2: #{afrcnn_block_forward.20} parent=0 // loop_pre_header
    _
  $region3: #{afrcnn_block_forward.20} parent=0 // loop_header
    %s15 = sphi 0, %s19
    %p16 = scmp.ge.s32.totalorder %s15, 4
    %s22 = sphi 0, %s34
    %s23 = sphi 0, %s30
    %s24 = sphi 0, %s22
    %s25 = sphi 0, %s23
    %s26 = sphi 0, %s24
    %s27 = sphi 0, %s25
    %s39 = sphi 0, %s41
    %s42 = sphi 0, %s39
    %s43 = sphi 0, %s42
    %s59 = sphi 0, %s43
    %s67 = sphi 0, %s69
    %s70 = sphi 0, %s67
    %s71 = sphi 0, %s70
    %s87 = sphi 0, %s71
    %s95 = sphi 0, %s97
    %s98 = sphi 0, %s95
    %s99 = sphi 0, %s98
    %s115 = sphi 0, %s99
    %s123 = sphi 0, %s125
    %s126 = sphi 0, %s123
    %s127 = sphi 0, %s126
    %s143 = sphi 0, %s127
    %s147 = sphi 0, %s147
    %s149 = sphi 0, %s147
    %s150 = sphi 0, %s149
    %s164 = sphi 0, %s150
    %s168 = sphi 0, %s168
    %s170 = sphi 0, %s168
    %s171 = sphi 0, %s170
    %s185 = sphi 0, %s171
    %s193 = sphi 0, %s195
    %s196 = sphi 0, %s193
    %s197 = sphi 0, %s196
    %s213 = sphi 0, %s197
    %s219 = sphi 0, %s221
    %s222 = sphi 0, %s219
    %s223 = sphi 0, %s222
    %s239 = sphi 0, %s223
    %s245 = sphi 0, %s247
    %s248 = sphi 0, %s245
    %s249 = sphi 0, %s248
    %s265 = sphi 0, %s249
  $region4: #{afrcnn_block_forward.20} parent=0 // loop_header_branch
    %18 = sbr.rel (%p16) target = $region8
  $region5: #{afrcnn_block_forward.20} parent=0 // loop_body
    %s20 = ssub.s32 %s15, 1
    %s21 = ssub.s32 %s15, 2
    %s28 = sadd.s32 1, %s23
    %p29 = scmp.ge.s32.totalorder %s28, 1
    %s30 = scalar_select %p29, 0, %s28
    %s31 = sadd.s32 1, %s22
    %s32 = scalar_select %p29, %s31, %s22
    %p33 = scmp.ge.s32.totalorder %s32, 2
    %s34 = scalar_select %p33, 0, %s32
    %s35 = ssub.s32 %s22, %s34
    %s36 = ssub.s32 %s23, %s30
    %s37 = sor.u32 %s35, %s36
    %p38 = scmp.eq.s32.totalorder %s37, 0
    %s40 = sadd.s32 %s39, 1
    %s41 = scalar_select %p38, %s39, %s40
    %p44 = pneg %p38
    %p45 = scmp.eq.s32.totalorder %s15, 1
    %p46 = por %p44, %p45
    %p47 = scmp.ne.s32.totalorder %s39, %s42
    %p48 = scmp.eq.s32.totalorder %s15, 0
    %p49 = por %p47, %p48
    %p50 = scmp.ne.s32.totalorder %s39, %s42
    %p51 = scmp.eq.s32.totalorder %s20, 1
    %p52 = por %p50, %p51
    %p53 = scmp.ne.s32.totalorder %s42, %s43
    %p54 = scmp.eq.s32.totalorder %s20, 0
    %p55 = por %p53, %p54
    %p56 = scmp.ne.s32.totalorder %s42, %s43
    %p57 = scmp.eq.s32.totalorder %s21, 1
    %p58 = por %p56, %p57
    %p60 = scmp.ne.s32.totalorder %s43, %s59
    %p61 = scmp.eq.s32.totalorder %s21, 0
    %p62 = por %p60, %p61
    %s63 = ssub.s32 %s22, %s34
    %s64 = ssub.s32 %s23, %s30
    %s65 = sor.u32 %s63, %s64
    %p66 = scmp.eq.s32.totalorder %s65, 0
    %s68 = sadd.s32 %s67, 1
    %s69 = scalar_select %p66, %s67, %s68
    %p72 = pneg %p66
    %p73 = scmp.eq.s32.totalorder %s15, 1
    %p74 = por %p72, %p73
    %p75 = scmp.ne.s32.totalorder %s67, %s70
    %p76 = scmp.eq.s32.totalorder %s15, 0
    %p77 = por %p75, %p76
    %p78 = scmp.ne.s32.totalorder %s67, %s70
    %p79 = scmp.eq.s32.totalorder %s20, 1
    %p80 = por %p78, %p79
    %p81 = scmp.ne.s32.totalorder %s70, %s71
    %p82 = scmp.eq.s32.totalorder %s20, 0
    %p83 = por %p81, %p82
    %p84 = scmp.ne.s32.totalorder %s70, %s71
    %p85 = scmp.eq.s32.totalorder %s21, 1
    %p86 = por %p84, %p85
    %p88 = scmp.ne.s32.totalorder %s71, %s87
    %p89 = scmp.eq.s32.totalorder %s21, 0
    %p90 = por %p88, %p89
    %s91 = ssub.s32 %s22, %s34
    %s92 = ssub.s32 %s23, %s30
    %s93 = sor.u32 %s91, %s92
    %p94 = scmp.eq.s32.totalorder %s93, 0
    %s96 = sadd.s32 %s95, 1
    %s97 = scalar_select %p94, %s95, %s96
    %p100 = pneg %p94
    %p101 = scmp.eq.s32.totalorder %s15, 1
    %p102 = por %p100, %p101
    %p103 = scmp.ne.s32.totalorder %s95, %s98
    %p104 = scmp.eq.s32.totalorder %s15, 0
    %p105 = por %p103, %p104
    %p106 = scmp.ne.s32.totalorder %s95, %s98
    %p107 = scmp.eq.s32.totalorder %s20, 1
    %p108 = por %p106, %p107
    %p109 = scmp.ne.s32.totalorder %s98, %s99
    %p110 = scmp.eq.s32.totalorder %s20, 0
    %p111 = por %p109, %p110
    %p112 = scmp.ne.s32.totalorder %s98, %s99
    %p113 = scmp.eq.s32.totalorder %s21, 1
    %p114 = por %p112, %p113
    %p116 = scmp.ne.s32.totalorder %s99, %s115
    %p117 = scmp.eq.s32.totalorder %s21, 0
    %p118 = por %p116, %p117
    %s119 = ssub.s32 %s22, %s34
    %s120 = ssub.s32 %s23, %s30
    %s121 = sor.u32 %s119, %s120
    %p122 = scmp.eq.s32.totalorder %s121, 0
    %s124 = sadd.s32 %s123, 1
    %s125 = scalar_select %p122, %s123, %s124
    %p128 = pneg %p122
    %p129 = scmp.eq.s32.totalorder %s15, 1
    %p130 = por %p128, %p129
    %p131 = scmp.ne.s32.totalorder %s123, %s126
    %p132 = scmp.eq.s32.totalorder %s15, 0
    %p133 = por %p131, %p132
    %p134 = scmp.ne.s32.totalorder %s123, %s126
    %p135 = scmp.eq.s32.totalorder %s20, 1
    %p136 = por %p134, %p135
    %p137 = scmp.ne.s32.totalorder %s126, %s127
    %p138 = scmp.eq.s32.totalorder %s20, 0
    %p139 = por %p137, %p138
    %p140 = scmp.ne.s32.totalorder %s126, %s127
    %p141 = scmp.eq.s32.totalorder %s21, 1
    %p142 = por %p140, %p141
    %p144 = scmp.ne.s32.totalorder %s127, %s143
    %p145 = scmp.eq.s32.totalorder %s21, 0
    %p146 = por %p144, %p145
    %s148 = sadd.s32 %s147, 1
    %p151 = scmp.eq.s32.totalorder %s15, 1
    %p152 = scmp.ne.s32.totalorder %s147, %s149
    %p153 = scmp.eq.s32.totalorder %s15, 0
    %p154 = por %p152, %p153
    %p155 = scmp.ne.s32.totalorder %s147, %s149
    %p156 = scmp.eq.s32.totalorder %s20, 1
    %p157 = por %p155, %p156
    %p158 = scmp.ne.s32.totalorder %s149, %s150
    %p159 = scmp.eq.s32.totalorder %s20, 0
    %p160 = por %p158, %p159
    %p161 = scmp.ne.s32.totalorder %s149, %s150
    %p162 = scmp.eq.s32.totalorder %s21, 1
    %p163 = por %p161, %p162
    %p165 = scmp.ne.s32.totalorder %s150, %s164
    %p166 = scmp.eq.s32.totalorder %s21, 0
    %p167 = por %p165, %p166
    %s169 = sadd.s32 %s168, 1
    %p172 = scmp.eq.s32.totalorder %s15, 1
    %p173 = scmp.ne.s32.totalorder %s168, %s170
    %p174 = scmp.eq.s32.totalorder %s15, 0
    %p175 = por %p173, %p174
    %p176 = scmp.ne.s32.totalorder %s168, %s170
    %p177 = scmp.eq.s32.totalorder %s20, 1
    %p178 = por %p176, %p177
    %p179 = scmp.ne.s32.totalorder %s170, %s171
    %p180 = scmp.eq.s32.totalorder %s20, 0
    %p181 = por %p179, %p180
    %p182 = scmp.ne.s32.totalorder %s170, %s171
    %p183 = scmp.eq.s32.totalorder %s21, 1
    %p184 = por %p182, %p183
    %p186 = scmp.ne.s32.totalorder %s171, %s185
    %p187 = scmp.eq.s32.totalorder %s21, 0
    %p188 = por %p186, %p187
    %s189 = ssub.s32 %s22, %s34
    %s190 = ssub.s32 %s23, %s30
    %s191 = sor.u32 %s189, %s190
    %p192 = scmp.eq.s32.totalorder %s191, 0
    %s194 = sadd.s32 %s193, 1
    %s195 = scalar_select %p192, %s193, %s194
    %p198 = pneg %p192
    %p199 = scmp.eq.s32.totalorder %s15, 1
    %p200 = por %p198, %p199
    %p201 = scmp.ne.s32.totalorder %s193, %s196
    %p202 = scmp.eq.s32.totalorder %s15, 0
    %p203 = por %p201, %p202
    %p204 = scmp.ne.s32.totalorder %s193, %s196
    %p205 = scmp.eq.s32.totalorder %s20, 1
    %p206 = por %p204, %p205
    %p207 = scmp.ne.s32.totalorder %s196, %s197
    %p208 = scmp.eq.s32.totalorder %s20, 0
    %p209 = por %p207, %p208
    %p210 = scmp.ne.s32.totalorder %s196, %s197
    %p211 = scmp.eq.s32.totalorder %s21, 1
    %p212 = por %p210, %p211
    %p214 = scmp.ne.s32.totalorder %s197, %s213
    %p215 = scmp.eq.s32.totalorder %s21, 0
    %p216 = por %p214, %p215
    %s217 = ssub.s32 %s22, %s34
    %p218 = scmp.eq.s32.totalorder %s217, 0
    %s220 = sadd.s32 %s219, 1
    %s221 = scalar_select %p218, %s219, %s220
    %p224 = pneg %p218
    %p225 = scmp.eq.s32.totalorder %s15, 1
    %p226 = por %p224, %p225
    %p227 = scmp.ne.s32.totalorder %s219, %s222
    %p228 = scmp.eq.s32.totalorder %s15, 0
    %p229 = por %p227, %p228
    %p230 = scmp.ne.s32.totalorder %s219, %s222
    %p231 = scmp.eq.s32.totalorder %s20, 1
    %p232 = por %p230, %p231
    %p233 = scmp.ne.s32.totalorder %s222, %s223
    %p234 = scmp.eq.s32.totalorder %s20, 0
    %p235 = por %p233, %p234
    %p236 = scmp.ne.s32.totalorder %s222, %s223
    %p237 = scmp.eq.s32.totalorder %s21, 1
    %p238 = por %p236, %p237
    %p240 = scmp.ne.s32.totalorder %s223, %s239
    %p241 = scmp.eq.s32.totalorder %s21, 0
    %p242 = por %p240, %p241
    %s243 = ssub.s32 %s22, %s34
    %p244 = scmp.eq.s32.totalorder %s243, 0
    %s246 = sadd.s32 %s245, 1
    %s247 = scalar_select %p244, %s245, %s246
    %p250 = pneg %p244
    %p251 = scmp.eq.s32.totalorder %s15, 1
    %p252 = por %p250, %p251
    %p253 = scmp.ne.s32.totalorder %s245, %s248
    %p254 = scmp.eq.s32.totalorder %s15, 0
    %p255 = por %p253, %p254
    %p256 = scmp.ne.s32.totalorder %s245, %s248
    %p257 = scmp.eq.s32.totalorder %s20, 1
    %p258 = por %p256, %p257
    %p259 = scmp.ne.s32.totalorder %s248, %s249
    %p260 = scmp.eq.s32.totalorder %s20, 0
    %p261 = por %p259, %p260
    %p262 = scmp.ne.s32.totalorder %s248, %s249
    %p263 = scmp.eq.s32.totalorder %s21, 1
    %p264 = por %p262, %p263
    %p266 = scmp.ne.s32.totalorder %s249, %s265
    %p267 = scmp.eq.s32.totalorder %s21, 0
    %p268 = por %p266, %p267
    %p269 = scmp.le.s32.totalorder 1, %s15
    %p270 = scmp.lt.s32.totalorder %s15, 3
    %p271 = pnand %p269, %p270
    %p272 = pneg %p271
    // Predicated region
    $region9: #{afrcnn_block_forward.20} parent=5 // pred_check
      _
    $region10: #{afrcnn_block_forward.20} parent=5 // pred_check_branch
      %274 = sbr.rel (%p271) target = $region12
    $region11: #{afrcnn_block_forward.20} parent=5 // pred_region
      %s275 = ssub.s32 %s15, 1
      // Predicated region
      $region13: #{afrcnn_block_forward.20} parent=11 // pred_check
        %p276 = pneg %p160
      $region14: #{afrcnn_block_forward.20} parent=11 // pred_check_branch
        %278 = sbr.rel (%p276) target = $region16
      $region15: #{afrcnn_block_forward.20} parent=11 // pred_region
        _
      $region16: #{afrcnn_block_forward.20} parent=11 // pred_fallthru
        _
      // Predicated region
      $region17: #{afrcnn_block_forward.20} parent=11 // pred_check
        %p279 = pneg %p181
      $region18: #{afrcnn_block_forward.20} parent=11 // pred_check_branch
        %281 = sbr.rel (%p279) target = $region20
      $region19: #{afrcnn_block_forward.20} parent=11 // pred_region
        _
      $region20: #{afrcnn_block_forward.20} parent=11 // pred_fallthru
        _
    $region12: #{afrcnn_block_forward.20} parent=5 // pred_fallthru
      _
    %p282 = scmp.lt.s32.totalorder %s15, 2
    // Predicated region
    $region21: #{afrcnn_block_forward.20} parent=5 // pred_check
      %p283 = pneg %p282
    $region22: #{afrcnn_block_forward.20} parent=5 // pred_check_branch
      %285 = sbr.rel (%p283) target = $region24
    $region23: #{afrcnn_block_forward.20} parent=5 // pred_region
      // Predicated region
      $region25: #{afrcnn_block_forward.20} parent=23 // pred_check
        %p286 = pneg %p49
      $region26: #{afrcnn_block_forward.20} parent=23 // pred_check_branch
        %288 = sbr.rel (%p286) target = $region28
      $region27: #{afrcnn_block_forward.20} parent=23 // pred_region
        %p289 = scmp.lt.s32.totalorder %s22, 1
        %s290 = scalar_select %p289, %s22, 1
        %p291 = scmp.lt.s32.totalorder %s23, 0
        %s292 = scalar_select %p291, %s23, 0
        %s293 = smul.addr %s290, 4
        %s294 = sadd.s32 %s292, %s293
        %s295 = smul.addr %s294, 4
        %s296 = scalar_lea.vmem %s0, %s295
      $region28: #{afrcnn_block_forward.20} parent=23 // pred_fallthru
        _
      // Predicated region
      $region29: #{afrcnn_block_forward.20} parent=23 // pred_check
        %p297 = pneg %p77
      $region30: #{afrcnn_block_forward.20} parent=23 // pred_check_branch
        %299 = sbr.rel (%p297) target = $region32
      $region31: #{afrcnn_block_forward.20} parent=23 // pred_region
        %p300 = scmp.lt.s32.totalorder %s22, 1
        %s301 = scalar_select %p300, %s22, 1
        %p302 = scmp.lt.s32.totalorder %s23, 0
        %s303 = scalar_select %p302, %s23, 0
        %s304 = smul.addr %s301, 4
        %s305 = sadd.s32 %s303, %s304
        %s306 = smul.addr %s305, 4
        %s307 = scalar_lea.vmem %s1, %s306
      $region32: #{afrcnn_block_forward.20} parent=23 // pred_fallthru
        _
      // Predicated region
      $region33: #{afrcnn_block_forward.20} parent=23 // pred_check
        %p308 = pneg %p105
      $region34: #{afrcnn_block_forward.20} parent=23 // pred_check_branch
        %310 = sbr.rel (%p308) target = $region36
      $region35: #{afrcnn_block_forward.20} parent=23 // pred_region
        %p311 = scmp.lt.s32.totalorder %s22, 1
        %s312 = scalar_select %p311, %s22, 1
        %p313 = scmp.lt.s32.totalorder %s23, 0
        %s314 = scalar_select %p313, %s23, 0
        %s315 = smul.addr %s312, 4
        %s316 = sadd.s32 %s314, %s315
        %s317 = smul.addr %s316, 4
        %s318 = scalar_lea.vmem %s2, %s317
      $region36: #{afrcnn_block_forward.20} parent=23 // pred_fallthru
        _
      // Predicated region
      $region37: #{afrcnn_block_forward.20} parent=23 // pred_check
        %p319 = pneg %p133
      $region38: #{afrcnn_block_forward.20} parent=23 // pred_check_branch
        %321 = sbr.rel (%p319) target = $region40
      $region39: #{afrcnn_block_forward.20} parent=23 // pred_region
        %p322 = scmp.lt.s32.totalorder %s22, 1
        %s323 = scalar_select %p322, %s22, 1
        %p324 = scmp.lt.s32.totalorder %s23, 0
        %s325 = scalar_select %p324, %s23, 0
        %s326 = smul.addr %s323, 4
        %s327 = sadd.s32 %s325, %s326
        %s328 = smul.addr %s327, 4
        %s329 = scalar_lea.vmem %s3, %s328
      $region40: #{afrcnn_block_forward.20} parent=23 // pred_fallthru
        _
    $region24: #{afrcnn_block_forward.20} parent=5 // pred_fallthru
      _
    %p330 = scmp.le.s32.totalorder 1, %s15
    %p331 = scmp.lt.s32.totalorder %s15, 3
    %p332 = pnand %p330, %p331
    %p333 = pneg %p332
    // Predicated region
    $region41: #{afrcnn_block_forward.20} parent=5 // pred_check
      _
    $region42: #{afrcnn_block_forward.20} parent=5 // pred_check_branch
      %335 = sbr.rel (%p332) target = $region44
    $region43: #{afrcnn_block_forward.20} parent=5 // pred_region
      %s336 = ssub.s32 %s15, 1
      %p337 = scmp.lt.s32.totalorder %s24, 1
      %s338 = scalar_select %p337, %s24, 1
      %p339 = scmp.lt.s32.totalorder %s25, 0
      %s340 = scalar_select %p339, %s25, 0
      %s341 = smul.addr %s338, 4
      %s342 = sadd.s32 %s340, %s341
      %s343 = smul.addr %s342, 4
      %s344 = scalar_lea.vmem %s0, %s343
      %p345 = pneg %p55
      %p346 = pneg %p52
      %p347 = scmp.lt.s32.totalorder %s24, 1
      %s348 = scalar_select %p347, %s24, 1
      %p349 = scmp.lt.s32.totalorder %s25, 0
      %s350 = scalar_select %p349, %s25, 0
      %s351 = smul.addr %s348, 4
      %s352 = sadd.s32 %s350, %s351
      %s353 = smul.addr %s352, 4
      %s354 = scalar_lea.vmem %s1, %s353
      %p355 = pneg %p83
      %p356 = pneg %p80
      %p357 = scmp.lt.s32.totalorder %s24, 1
      %s358 = scalar_select %p357, %s24, 1
      %p359 = scmp.lt.s32.totalorder %s25, 0
      %s360 = scalar_select %p359, %s25, 0
      %s361 = smul.addr %s358, 4
      %s362 = sadd.s32 %s360, %s361
      %s363 = smul.addr %s362, 4
      %s364 = scalar_lea.vmem %s2, %s363
      %p365 = pneg %p111
      %p366 = pneg %p108
      %p367 = scmp.lt.s32.totalorder %s24, 1
      %s368 = scalar_select %p367, %s24, 1
      %p369 = scmp.lt.s32.totalorder %s25, 0
      %s370 = scalar_select %p369, %s25, 0
      %s371 = smul.addr %s368, 4
      %s372 = sadd.s32 %s370, %s371
      %s373 = smul.addr %s372, 4
      %s374 = scalar_lea.vmem %s3, %s373
      %p375 = pneg %p139
      %p376 = pneg %p136
      %p377 = pneg %p160
      %p378 = pneg %p157
      %p379 = pneg %p181
      %p380 = pneg %p178
      %p381 = pneg %p209
      %p382 = pneg %p206
      %p383 = scmp.lt.s32.totalorder %s24, 1
      %s384 = scalar_select %p383, %s24, 1
      %p385 = scmp.lt.s32.totalorder %s25, 0
      %s386 = scalar_select %p385, %s25, 0
      %s387 = smul.addr %s384, 4
      %s388 = sadd.s32 %s386, %s387
      %s389 = smul.addr %s388, 4
      %s390 = scalar_lea.vmem %s6, %s389
      %p391 = pneg %p235
      %p392 = pneg %p232
      %p393 = scmp.lt.s32.totalorder %s24, 1
      %s394 = scalar_select %p393, %s24, 1
      %s395 = scalar_lea.vmem %s7, %s394
      %p396 = pneg %p261
      %p397 = pneg %p258
      %p398 = scmp.lt.s32.totalorder %s24, 1
      %s399 = scalar_select %p398, %s24, 1
      %s400 = scalar_lea.vmem %s8, %s399
      %p401 = scmp.lt.s32.totalorder %s24, 1
      %s402 = scalar_select %p401, %s24, 1
      %p403 = scmp.lt.s32.totalorder %s25, 0
      %s404 = scalar_select %p403, %s25, 0
      %s405 = smul.addr %s402, 4
      %s406 = sadd.s32 %s404, %s405
      %s407 = smul.addr %s406, 4
      %s408 = scalar_lea.vmem %s0, %s407
      %p409 = scmp.lt.s32.totalorder %s24, 1
      %s410 = scalar_select %p409, %s24, 1
      %p411 = scmp.lt.s32.totalorder %s25, 0
      %s412 = scalar_select %p411, %s25, 0
      %s413 = smul.addr %s410, 4
      %s414 = sadd.s32 %s412, %s413
      %s415 = smul.addr %s414, 4
      %s416 = scalar_lea.vmem %s1, %s415
      %p417 = scmp.lt.s32.totalorder %s24, 1
      %s418 = scalar_select %p417, %s24, 1
      %p419 = scmp.lt.s32.totalorder %s25, 0
      %s420 = scalar_select %p419, %s25, 0
      %s421 = smul.addr %s418, 4
      %s422 = sadd.s32 %s420, %s421
      %s423 = smul.addr %s422, 4
      %s424 = scalar_lea.vmem %s2, %s423
      %p425 = scmp.lt.s32.totalorder %s24, 1
      %s426 = scalar_select %p425, %s24, 1
      %p427 = scmp.lt.s32.totalorder %s25, 0
      %s428 = scalar_select %p427, %s25, 0
      %s429 = smul.addr %s426, 4
      %s430 = sadd.s32 %s428, %s429
      %s431 = smul.addr %s430, 4
      %s432 = scalar_lea.vmem %s3, %s431
      %p433 = scmp.lt.s32.totalorder %s24, 1
      %s434 = scalar_select %p433, %s24, 1
      %p435 = scmp.lt.s32.totalorder %s25, 0
      %s436 = scalar_select %p435, %s25, 0
      %s437 = smul.addr %s434, 4
      %s438 = sadd.s32 %s436, %s437
      %s439 = smul.addr %s438, 4
      %s440 = scalar_lea.vmem %s6, %s439
      %p441 = scmp.lt.s32.totalorder %s24, 1
      %s442 = scalar_select %p441, %s24, 1
      %s443 = scalar_lea.vmem %s7, %s442
      %p444 = scmp.lt.s32.totalorder %s24, 1
      %s445 = scalar_select %p444, %s24, 1
      %s446 = scalar_lea.vmem %s8, %s445
      %v448 = vld [vmem:[%s4] sm:$0xf]
      %v449 = vld [vmem:[%s4 + $0x4] sm:$0xf]
      %v450 = vld [vmem:[%s4 + $0x8] sm:$0xf]
      %v451 = vld [vmem:[%s4 + $0xc] sm:$0xf]
      %v452 = vld [vmem:[%s408] sm:$0xf]
      %v453 = vld [vmem:[%s408 + $0x4] sm:$0xf]
      %v454 = vld [vmem:[%s408 + $0x8] sm:$0xf]
      %v455 = vld [vmem:[%s408 + $0xc] sm:$0xf]
      %s456 = scalar_lea.vmem %s4, 16
      %v457 = vld [vmem:[%s456] sm:$0xf]
      %v458 = vld [vmem:[%s456 + $0x4] sm:$0xf]
      %v459 = vld [vmem:[%s456 + $0x8] sm:$0xf]
      %v460 = vld [vmem:[%s456 + $0xc] sm:$0xf]
      %v461 = vld [vmem:[%s416] sm:$0xf]
      %v462 = vld [vmem:[%s416 + $0x4] sm:$0xf]
      %v463 = vld [vmem:[%s416 + $0x8] sm:$0xf]
      %v464 = vld [vmem:[%s416 + $0xc] sm:$0xf]
      %v469 = vunpack.c.l.b16 %v457
      %v470 = vunpack.c.l.b16 %v458
      %v471 = vunpack.c.l.b16 %v459
      %v472 = vunpack.c.l.b16 %v460
      %v473 = vpack.c.b16 %v470, %v469
      %v474 = vpack.c.b16 %v472, %v471
      %v479 = vunpack.c.l.b16 %v461
      %v480 = vunpack.c.l.b16 %v462
      %v481 = vunpack.c.l.b16 %v463
      %v482 = vunpack.c.l.b16 %v464
      %v483 = vpack.c.b16 %v480, %v479
      %v484 = vpack.c.b16 %v482, %v481
      %vm487 = vcmask 261120
      %v489 = vsel %vm487, %v473, 0
      %v492 = vsel %vm487, %v474, 0
      %494 = vmatprep.subr.bf16.mxu0 0
      %495 = vmatpush1.bf16.msra.mxu0 0
      %496 = vmatprep.subr.bf16.mxu0 0
      %497 = vmatpush1.bf16.msra.mxu0 0
      %498 = vmatprep.subr.bf16.mxu0 0
      %499 = vmatpush1.bf16.msra.mxu0 0
      %500 = vmatprep.subr.bf16.mxu0 0
      %501 = vmatpush1.bf16.msra.mxu0 0
      %502 = vmatprep.subr.bf16.mxu0 0
      %503 = vmatpush1.bf16.msra.mxu0 0
      %504 = vmatprep.subr.bf16.mxu0 0
      %505 = vmatpush1.bf16.msra.mxu0 0
      %506 = vmatprep.subr.bf16.mxu0 0
      %507 = vmatpush1.bf16.msra.mxu0 %v484
      %508 = vmatprep.subr.bf16.mxu0 0
      %509 = vmatpush1.bf16.msra.mxu0 %v483
      %510 = vmatprep.subr.bf16.mxu0 0
      %511 = vmatpush2.bf16.msra.mxu0 0
      %512 = vmatprep.subr.bf16.mxu0 0
      %513 = vmatpush2.bf16.msra.mxu0 0
      %514 = vmatprep.subr.bf16.mxu0 0
      %515 = vmatpush2.bf16.msra.mxu0 0
      %516 = vmatprep.subr.bf16.mxu0 0
      %517 = vmatpush2.bf16.msra.mxu0 0
      %518 = vmatprep.subr.bf16.mxu0 0
      %519 = vmatpush2.bf16.msra.mxu0 0
      %520 = vmatprep.subr.bf16.mxu0 0
      %521 = vmatpush2.bf16.msra.mxu0 0
      %522 = vmatprep.subr.bf16.mxu0 0
      %523 = vmatpush2.bf16.msra.mxu0 0
      %524 = vmatprep.subr.bf16.mxu0 0
      %525 = vmatpush2.bf16.msra.mxu0 0
      %526 = vmatprep.mubr.bf16.mxu0 0
      %527 = vmatmul.mubr.bf16.gmra.mxu0 %v489
      %v528 = vpop.f32.mrf.mxu0
      %v529 = vadd.f32 0.0, %v528
      %v530 = vpop.f32.mrf.mxu0
      %v531 = vpop.f32.mrf.mxu0
      %v532 = vadd.f32 0.0, %v531
      %v533 = vpop.f32.mrf.mxu0
      %534 = vmatprep.mubr.bf16.mxu0 0
      %535 = vmatmul.mubr.bf16.gmra.mxu0 %v492
      %v536 = vpop.f32.mrf.mxu0
      %v537 = vadd.f32 0.0, %v536
      %v538 = vpop.f32.mrf.mxu0
      %v539 = vpop.f32.mrf.mxu0
      %v540 = vadd.f32 0.0, %v539
      %v541 = vpop.f32.mrf.mxu0
      %542 = vdwg.mxu0
      %v547 = vunpack.c.l.b16 %v448
      %v548 = vunpack.c.l.b16 %v449
      %v549 = vunpack.c.l.b16 %v450
      %v550 = vunpack.c.l.b16 %v451
      %v551 = vpack.c.b16 %v548, %v547
      %v552 = vpack.c.b16 %v550, %v549
      %v557 = vunpack.c.l.b16 %v452
      %v558 = vunpack.c.l.b16 %v453
      %v559 = vunpack.c.l.b16 %v454
      %v560 = vunpack.c.l.b16 %v455
      %v561 = vpack.c.b16 %v558, %v557
      %v562 = vpack.c.b16 %v560, %v559
      %v566 = vsel %vm487, %v551, 0
      %v569 = vsel %vm487, %v552, 0
      %571 = vmatprep.subr.bf16.mxu0 0
      %572 = vmatpush1.bf16.msra.mxu0 0
      %573 = vmatprep.subr.bf16.mxu0 0
      %574 = vmatpush1.bf16.msra.mxu0 0
      %575 = vmatprep.subr.bf16.mxu0 0
      %576 = vmatpush1.bf16.msra.mxu0 0
      %577 = vmatprep.subr.bf16.mxu0 0
      %578 = vmatpush1.bf16.msra.mxu0 0
      %579 = vmatprep.subr.bf16.mxu0 0
      %580 = vmatpush1.bf16.msra.mxu0 0
      %581 = vmatprep.subr.bf16.mxu0 0
      %582 = vmatpush1.bf16.msra.mxu0 0
      %583 = vmatprep.subr.bf16.mxu0 0
      %584 = vmatpush1.bf16.msra.mxu0 %v562
      %585 = vmatprep.subr.bf16.mxu0 0
      %586 = vmatpush1.bf16.msra.mxu0 %v561
      %587 = vmatprep.subr.bf16.mxu0 0
      %588 = vmatpush2.bf16.msra.mxu0 0
      %589 = vmatprep.subr.bf16.mxu0 0
      %590 = vmatpush2.bf16.msra.mxu0 0
      %591 = vmatprep.subr.bf16.mxu0 0
      %592 = vmatpush2.bf16.msra.mxu0 0
      %593 = vmatprep.subr.bf16.mxu0 0
      %594 = vmatpush2.bf16.msra.mxu0 0
      %595 = vmatprep.subr.bf16.mxu0 0
      %596 = vmatpush2.bf16.msra.mxu0 0
      %597 = vmatprep.subr.bf16.mxu0 0
      %598 = vmatpush2.bf16.msra.mxu0 0
      %599 = vmatprep.subr.bf16.mxu0 0
      %600 = vmatpush2.bf16.msra.mxu0 0
      %601 = vmatprep.subr.bf16.mxu0 0
      %602 = vmatpush2.bf16.msra.mxu0 0
      %603 = vmatprep.mubr.bf16.mxu0 0
      %604 = vmatmul.mubr.bf16.gmra.mxu0 %v566
      %v605 = vpop.f32.mrf.mxu0
      %v606 = vadd.f32 %v529, %v605
      %v607 = vpop.f32.mrf.mxu0
      %v608 = vpop.f32.mrf.mxu0
      %v609 = vadd.f32 %v532, %v608
      %v610 = vpop.f32.mrf.mxu0
      %611 = vmatprep.mubr.bf16.mxu0 0
      %612 = vmatmul.mubr.bf16.gmra.mxu0 %v569
      %v613 = vpop.f32.mrf.mxu0
      %v614 = vadd.f32 %v537, %v613
      %v615 = vpop.f32.mrf.mxu0
      %v616 = vpop.f32.mrf.mxu0
      %v617 = vadd.f32 %v540, %v616
      %v618 = vpop.f32.mrf.mxu0
      %619 = vdwg.mxu0
      %s620 = scalar_lea.vmem %s4, 32
      %v621 = vld [vmem:[%s620] sm:$0xf]
      %v622 = vld [vmem:[%s620 + $0x4] sm:$0xf]
      %v623 = vld [vmem:[%s620 + $0x8] sm:$0xf]
      %v624 = vld [vmem:[%s620 + $0xc] sm:$0xf]
      %v625 = vld [vmem:[%s424] sm:$0xf]
      %v626 = vld [vmem:[%s424 + $0x4] sm:$0xf]
      %v627 = vld [vmem:[%s424 + $0x8] sm:$0xf]
      %v628 = vld [vmem:[%s424 + $0xc] sm:$0xf]
      %v633 = vunpack.c.l.b16 %v621
      %v634 = vunpack.c.l.b16 %v622
      %v635 = vunpack.c.l.b16 %v623
      %v636 = vunpack.c.l.b16 %v624
      %v637 = vpack.c.b16 %v634, %v633
      %v638 = vpack.c.b16 %v636, %v635
      %v643 = vunpack.c.l.b16 %v625
      %v644 = vunpack.c.l.b16 %v626
      %v645 = vunpack.c.l.b16 %v627
      %v646 = vunpack.c.l.b16 %v628
      %v647 = vpack.c.b16 %v644, %v643
      %v648 = vpack.c.b16 %v646, %v645
      %v652 = vsel %vm487, %v637, 0
      %v655 = vsel %vm487, %v638, 0
      %657 = vmatprep.subr.bf16.mxu0 0
      %658 = vmatpush1.bf16.msra.mxu0 0
      %659 = vmatprep.subr.bf16.mxu0 0
      %660 = vmatpush1.bf16.msra.mxu0 0
      %661 = vmatprep.subr.bf16.mxu0 0
      %662 = vmatpush1.bf16.msra.mxu0 0
      %663 = vmatprep.subr.bf16.mxu0 0
      %664 = vmatpush1.bf16.msra.mxu0 0
      %665 = vmatprep.subr.bf16.mxu0 0
      %666 = vmatpush1.bf16.msra.mxu0 0
      %667 = vmatprep.subr.bf16.mxu0 0
      %668 = vmatpush1.bf16.msra.mxu0 0
      %669 = vmatprep.subr.bf16.mxu0 0
      %670 = vmatpush1.bf16.msra.mxu0 %v648
      %671 = vmatprep.subr.bf16.mxu0 0
      %672 = vmatpush1.bf16.msra.mxu0 %v647
      %673 = vmatprep.subr.bf16.mxu0 0
      %674 = vmatpush2.bf16.msra.mxu0 0
      %675 = vmatprep.subr.bf16.mxu0 0
      %676 = vmatpush2.bf16.msra.mxu0 0
      %677 = vmatprep.subr.bf16.mxu0 0
      %678 = vmatpush2.bf16.msra.mxu0 0
      %679 = vmatprep.subr.bf16.mxu0 0
      %680 = vmatpush2.bf16.msra.mxu0 0
      %681 = vmatprep.subr.bf16.mxu0 0
      %682 = vmatpush2.bf16.msra.mxu0 0
      %683 = vmatprep.subr.bf16.mxu0 0
      %684 = vmatpush2.bf16.msra.mxu0 0
      %685 = vmatprep.subr.bf16.mxu0 0
      %686 = vmatpush2.bf16.msra.mxu0 0
      %687 = vmatprep.subr.bf16.mxu0 0
      %688 = vmatpush2.bf16.msra.mxu0 0
      %689 = vmatprep.mubr.bf16.mxu0 0
      %690 = vmatmul.mubr.bf16.gmra.mxu0 %v652
      %v691 = vpop.f32.mrf.mxu0
      %v692 = vadd.f32 0.0, %v691
      %v693 = vpop.f32.mrf.mxu0
      %v694 = vpop.f32.mrf.mxu0
      %v695 = vadd.f32 0.0, %v694
      %v696 = vpop.f32.mrf.mxu0
      %697 = vmatprep.mubr.bf16.mxu0 0
      %698 = vmatmul.mubr.bf16.gmra.mxu0 %v655
      %v699 = vpop.f32.mrf.mxu0
      %v700 = vadd.f32 0.0, %v699
      %v701 = vpop.f32.mrf.mxu0
      %v702 = vpop.f32.mrf.mxu0
      %v703 = vadd.f32 0.0, %v702
      %v704 = vpop.f32.mrf.mxu0
      %705 = vdwg.mxu0
      %v706 = vadd.f32 %v606, %v692
      %v707 = vadd.f32 %v609, %v695
      %v708 = vadd.f32 %v614, %v700
      %v709 = vadd.f32 %v617, %v703
      %s710 = scalar_lea.vmem %s4, 48
      %v711 = vld [vmem:[%s710] sm:$0xf]
      %v712 = vld [vmem:[%s710 + $0x4] sm:$0xf]
      %v713 = vld [vmem:[%s710 + $0x8] sm:$0xf]
      %v714 = vld [vmem:[%s710 + $0xc] sm:$0xf]
      %v715 = vld [vmem:[%s432] sm:$0xf]
      %v716 = vld [vmem:[%s432 + $0x4] sm:$0xf]
      %v717 = vld [vmem:[%s432 + $0x8] sm:$0xf]
      %v718 = vld [vmem:[%s432 + $0xc] sm:$0xf]
      %v723 = vunpack.c.l.b16 %v711
      %v724 = vunpack.c.l.b16 %v712
      %v725 = vunpack.c.l.b16 %v713
      %v726 = vunpack.c.l.b16 %v714
      %v727 = vpack.c.b16 %v724, %v723
      %v728 = vpack.c.b16 %v726, %v725
      %v733 = vunpack.c.l.b16 %v715
      %v734 = vunpack.c.l.b16 %v716
      %v735 = vunpack.c.l.b16 %v717
      %v736 = vunpack.c.l.b16 %v718
      %v737 = vpack.c.b16 %v734, %v733
      %v738 = vpack.c.b16 %v736, %v735
      %v742 = vsel %vm487, %v727, 0
      %v745 = vsel %vm487, %v728, 0
      %747 = vmatprep.subr.bf16.mxu0 0
      %748 = vmatpush1.bf16.msra.mxu0 0
      %749 = vmatprep.subr.bf16.mxu0 0
      %750 = vmatpush1.bf16.msra.mxu0 0
      %751 = vmatprep.subr.bf16.mxu0 0
      %752 = vmatpush1.bf16.msra.mxu0 0
      %753 = vmatprep.subr.bf16.mxu0 0
      %754 = vmatpush1.bf16.msra.mxu0 0
      %755 = vmatprep.subr.bf16.mxu0 0
      %756 = vmatpush1.bf16.msra.mxu0 0
      %757 = vmatprep.subr.bf16.mxu0 0
      %758 = vmatpush1.bf16.msra.mxu0 0
      %759 = vmatprep.subr.bf16.mxu0 0
      %760 = vmatpush1.bf16.msra.mxu0 %v738
      %761 = vmatprep.subr.bf16.mxu0 0
      %762 = vmatpush1.bf16.msra.mxu0 %v737
      %763 = vmatprep.subr.bf16.mxu0 0
      %764 = vmatpush2.bf16.msra.mxu0 0
      %765 = vmatprep.subr.bf16.mxu0 0
      %766 = vmatpush2.bf16.msra.mxu0 0
      %767 = vmatprep.subr.bf16.mxu0 0
      %768 = vmatpush2.bf16.msra.mxu0 0
      %769 = vmatprep.subr.bf16.mxu0 0
      %770 = vmatpush2.bf16.msra.mxu0 0
      %771 = vmatprep.subr.bf16.mxu0 0
      %772 = vmatpush2.bf16.msra.mxu0 0
      %773 = vmatprep.subr.bf16.mxu0 0
      %774 = vmatpush2.bf16.msra.mxu0 0
      %775 = vmatprep.subr.bf16.mxu0 0
      %776 = vmatpush2.bf16.msra.mxu0 0
      %777 = vmatprep.subr.bf16.mxu0 0
      %778 = vmatpush2.bf16.msra.mxu0 0
      %779 = vmatprep.mubr.bf16.mxu0 0
      %780 = vmatmul.mubr.bf16.gmra.mxu0 %v742
      %v781 = vpop.f32.mrf.mxu0
      %v782 = vadd.f32 0.0, %v781
      %v783 = vpop.f32.mrf.mxu0
      %v784 = vpop.f32.mrf.mxu0
      %v785 = vadd.f32 0.0, %v784
      %v786 = vpop.f32.mrf.mxu0
      %787 = vmatprep.mubr.bf16.mxu0 0
      %788 = vmatmul.mubr.bf16.gmra.mxu0 %v745
      %v789 = vpop.f32.mrf.mxu0
      %v790 = vadd.f32 0.0, %v789
      %v791 = vpop.f32.mrf.mxu0
      %v792 = vpop.f32.mrf.mxu0
      %v793 = vadd.f32 0.0, %v792
      %v794 = vpop.f32.mrf.mxu0
      %795 = vdwg.mxu0
      %v796 = vadd.f32 %v706, %v782
      %v797 = vadd.f32 %v707, %v785
      %v798 = vadd.f32 %v708, %v790
      %v799 = vadd.f32 %v709, %v793
      %v800 = vld [vmem:[%s5] sm:$0xff]
      %v801 = vld [vmem:[%s5 + $0x8] sm:$0xff]
      %v802 = vld [vmem:[%s5 + $0x10] sm:$0xff]
      %v803 = vld [vmem:[%s5 + $0x18] sm:$0xff]
      %805 = vset.pattern.permute.xlu0 0
      %806 = vperm.xlu0 %805, %v800
      %v807 = vpop.permute.xlu0 %806
      %810 = vset.pattern.permute.xlu0 0
      %811 = vperm.xlu0 %810, %v801
      %v812 = vpop.permute.xlu0 %811
      %815 = vset.pattern.permute.xlu0 0
      %816 = vperm.xlu0 %815, %v802
      %v817 = vpop.permute.xlu0 %816
      %820 = vset.pattern.permute.xlu0 0
      %821 = vperm.xlu0 %820, %v803
      %v822 = vpop.permute.xlu0 %821
      %v824 = vadd.f32 %v796, %v807
      %v825 = vadd.f32 %v797, %v812
      %v826 = vadd.f32 %v798, %v817
      %v827 = vadd.f32 %v799, %v822
      %v828 = vpack.c.bf16 %v825, %v824
      %v829 = vpack.c.bf16 %v827, %v826
      %v832 = vunpack.c.l.b16 %v828
      %v833 = vunpack.c.h.b16 %v828
      %v834 = vunpack.c.l.b16 %v829
      %v835 = vunpack.c.h.b16 %v829
      %v836 = vpack.c.b16 %v832, %v832
      %v837 = vpack.c.b16 %v833, %v833
      %v838 = vpack.c.b16 %v834, %v834
      %v839 = vpack.c.b16 %v835, %v835
      %vm844 = vcmask 257024
      %845 = vst.msk [vmem:[%s440] sm:$0xf] %vm844, %v836
      %846 = vst.msk [vmem:[%s440 + $0x4] sm:$0xf] %vm844, %v837
      %847 = vst.msk [vmem:[%s440 + $0x8] sm:$0xf] %vm844, %v838
      %848 = vst.msk [vmem:[%s440 + $0xc] sm:$0xf] %vm844, %v839
      %p849 = scmp.eq.s32.totalorder %s25, 0
      // Predicated region
      $region45: #{afrcnn_block_forward.20} parent=43 // pred_check
        %p850 = pneg %p849
      $region46: #{afrcnn_block_forward.20} parent=43 // pred_check_branch
        %852 = sbr.rel (%p850) target = $region48
      $region47: #{afrcnn_block_forward.20} parent=43 // pred_region
        %vm853 = vcmask 0
        %854 = vst.msk [vmem:[%s443] sm:$0x1] %vm853, 0.0
        %855 = vst.msk [vmem:[%s446] sm:$0x1] %vm853, 0.0
      $region48: #{afrcnn_block_forward.20} parent=43 // pred_fallthru
        _
      %v856 = vld [vmem:[%s443] sm:$0x1]
      %v857 = vsel %vm487, %v824, 0.0
      %v858 = vsel %vm487, %v825, 0.0
      %v859 = vadd.f32 %v857, %v858
      %v860 = vsel %vm487, %v826, 0.0
      %v861 = vadd.f32 %v859, %v860
      %v862 = vsel %vm487, %v827, 0.0
      %v863 = vadd.f32 %v861, %v862
      %864 = vadd.xlane.f32.xlu0 %v863
      %v865 = vpop.xlane.xlu0 %864
      %v866 = vrot.slane %v865, 4
      %v867 = vadd.f32 %v865, %v866
      %v868 = vrot.slane %v867, 2
      %v869 = vadd.f32 %v867, %v868
      %v870 = vrot.slane %v869, 1
      %v871 = vadd.f32 %v869, %v870
      %s872 = vtos %v871
      %v873 = vstv %s872
      %v874 = vadd.f32 %v856, %v873
      %vm875 = vcmask 0
      %876 = vst.msk [vmem:[%s443] sm:$0x1] %vm875, %v874
      %v877 = vld [vmem:[%s446] sm:$0x1]
      %v878 = vmul.f32 %v824, %v824
      %v879 = vmul.f32 %v825, %v825
      %v880 = vmul.f32 %v826, %v826
      %v881 = vmul.f32 %v827, %v827
      %v882 = vsel %vm487, %v878, 0.0
      %v883 = vsel %vm487, %v879, 0.0
      %v884 = vadd.f32 %v882, %v883
      %v885 = vsel %vm487, %v880, 0.0
      %v886 = vadd.f32 %v884, %v885
      %v887 = vsel %vm487, %v881, 0.0
      %v888 = vadd.f32 %v886, %v887
      %889 = vadd.xlane.f32.xlu0 %v888
      %v890 = vpop.xlane.xlu0 %889
      %v891 = vrot.slane %v890, 4
      %v892 = vadd.f32 %v890, %v891
      %v893 = vrot.slane %v892, 2
      %v894 = vadd.f32 %v892, %v893
      %v895 = vrot.slane %v894, 1
      %v896 = vadd.f32 %v894, %v895
      %s897 = vtos %v896
      %v898 = vstv %s897
      %v899 = vadd.f32 %v877, %v898
      %900 = vst.msk [vmem:[%s446] sm:$0x1] %vm875, %v899
      %p901 = scmp.lt.s32.totalorder %s24, 1
      %s902 = scalar_select %p901, %s24, 1
      %p903 = scmp.lt.s32.totalorder %s25, 0
      %s904 = scalar_select %p903, %s25, 0
      %s905 = smul.addr %s902, 4
      %s906 = sadd.s32 %s904, %s905
      %s907 = smul.addr %s906, 4
      %s908 = scalar_lea.vmem %s6, %s907
      %p909 = scmp.lt.s32.totalorder %s24, 1
      %s910 = scalar_select %p909, %s24, 1
      %s911 = scalar_lea.vmem %s7, %s910
      %p912 = scmp.lt.s32.totalorder %s24, 1
      %s913 = scalar_select %p912, %s24, 1
      %s914 = scalar_lea.vmem %s8, %s913
      // Predicated region
      $region49: #{afrcnn_block_forward.20} parent=43 // pred_check
        %p915 = pneg %p206
      $region50: #{afrcnn_block_forward.20} parent=43 // pred_check_branch
        %917 = sbr.rel (%p915) target = $region52
      $region51: #{afrcnn_block_forward.20} parent=43 // pred_region
        _
      $region52: #{afrcnn_block_forward.20} parent=43 // pred_fallthru
        _
      // Predicated region
      $region53: #{afrcnn_block_forward.20} parent=43 // pred_check
        %p918 = pneg %p232
      $region54: #{afrcnn_block_forward.20} parent=43 // pred_check_branch
        %920 = sbr.rel (%p918) target = $region56
      $region55: #{afrcnn_block_forward.20} parent=43 // pred_region
        _
      $region56: #{afrcnn_block_forward.20} parent=43 // pred_fallthru
        _
      // Predicated region
      $region57: #{afrcnn_block_forward.20} parent=43 // pred_check
        %p921 = pneg %p258
      $region58: #{afrcnn_block_forward.20} parent=43 // pred_check_branch
        %923 = sbr.rel (%p921) target = $region60
      $region59: #{afrcnn_block_forward.20} parent=43 // pred_region
        _
      $region60: #{afrcnn_block_forward.20} parent=43 // pred_fallthru
        _
    $region44: #{afrcnn_block_forward.20} parent=5 // pred_fallthru
      _
    %p924 = scmp.le.s32.totalorder 2, %s15
    // Predicated region
    $region61: #{afrcnn_block_forward.20} parent=5 // pred_check
      %p925 = pneg %p924
    $region62: #{afrcnn_block_forward.20} parent=5 // pred_check_branch
      %927 = sbr.rel (%p925) target = $region64
    $region63: #{afrcnn_block_forward.20} parent=5 // pred_region
      %s928 = ssub.s32 %s15, 2
      // Predicated region
      $region65: #{afrcnn_block_forward.20} parent=63 // pred_check
        %p929 = pneg %p212
      $region66: #{afrcnn_block_forward.20} parent=63 // pred_check_branch
        %931 = sbr.rel (%p929) target = $region68
      $region67: #{afrcnn_block_forward.20} parent=63 // pred_region
        %p932 = scmp.lt.s32.totalorder %s26, 1
        %s933 = scalar_select %p932, %s26, 1
        %p934 = scmp.lt.s32.totalorder %s27, 0
        %s935 = scalar_select %p934, %s27, 0
        %s936 = smul.addr %s933, 4
        %s937 = sadd.s32 %s935, %s936
        %s938 = smul.addr %s937, 4
        %s939 = scalar_lea.vmem %s6, %s938
      $region68: #{afrcnn_block_forward.20} parent=63 // pred_fallthru
        _
      // Predicated region
      $region69: #{afrcnn_block_forward.20} parent=63 // pred_check
        %p940 = pneg %p238
      $region70: #{afrcnn_block_forward.20} parent=63 // pred_check_branch
        %942 = sbr.rel (%p940) target = $region72
      $region71: #{afrcnn_block_forward.20} parent=63 // pred_region
        %p943 = scmp.lt.s32.totalorder %s26, 1
        %s944 = scalar_select %p943, %s26, 1
        %s945 = scalar_lea.vmem %s7, %s944
      $region72: #{afrcnn_block_forward.20} parent=63 // pred_fallthru
        _
      // Predicated region
      $region73: #{afrcnn_block_forward.20} parent=63 // pred_check
        %p946 = pneg %p264
      $region74: #{afrcnn_block_forward.20} parent=63 // pred_check_branch
        %948 = sbr.rel (%p946) target = $region76
      $region75: #{afrcnn_block_forward.20} parent=63 // pred_region
        %p949 = scmp.lt.s32.totalorder %s26, 1
        %s950 = scalar_select %p949, %s26, 1
        %s951 = scalar_lea.vmem %s8, %s950
      $region76: #{afrcnn_block_forward.20} parent=63 // pred_fallthru
        _
    $region64: #{afrcnn_block_forward.20} parent=5 // pred_fallthru
      _
  $region6: #{afrcnn_block_forward.20} parent=0 // loop_footer
    %s19 = sadd.s32 1, %s15
  $region7: #{afrcnn_block_forward.20} parent=0 // loop_footer_branch
    %14 = sbr.rel target = $region3
  $region8: #{afrcnn_block_forward.20} parent=0 // loop_exit
    _

</llo_original>
